<compile_context>
chip_gen: v7x
topology: tpu7x:2x2x1
jax: 0.10.0
libtpu: 0.0.40
codegen_flags: <defaults>
</compile_context>

<pallas_src>
import jax
import jax.numpy as jnp
from jax.experimental import pallas as pl
from jax.experimental.pallas import tpu as pltpu


# flat-layout sizes (28x28 input, 3x3 kernels, 2x2 pools)
_L1 = 288   # zero-padded pooled layer-1 grid: 18 rows x 16 cols, flat f = i*16 + j
_L2 = 248   # conv2 output rows (valid at g = p*16 + q, p,q in [0,14))
_L3 = 224   # pooled layer-2 rows (valid at r = 32*u + 2*v, u,v in [0,7))


# -----------------------------------------------------------------------------
# Fused forward kernel: one image per grid step, everything resident in VMEM.
# -----------------------------------------------------------------------------
def _fused_cnn_kernel(p1_ref, mask_ref, w1_ref, b1_ref, w2_ref, b2_ref,
                      w5_ref, bfc_ref, out_ref, a1_ref, a2_ref):
    # ---- layer 1: conv1 as 4 pooled-offset im2col matmuls, then max-pool,
    #      bias, ReLU (bias+ReLU commute with the max), zero the padding rows.
    cmax = None
    for o in range(4):                                   # 2x2 pool offsets
        m = jnp.dot(p1_ref[0, o], w1_ref[...],
                    preferred_element_type=jnp.float32)  # (288, 16)
        cmax = m if cmax is None else jnp.maximum(cmax, m)
    a1 = jnp.maximum(cmax + b1_ref[0, :], 0.0) * mask_ref[...]   # (288, 16)
    a1_ref[...] = a1

    # ---- layer 2: conv2 as 9 tap matmul-accumulates over the flat padded
    #      layout (contiguous shifted slices; out-of-window rows are garbage
    #      and never consumed downstream).
    acc = None
    for t in range(9):
        ky, kx = divmod(t, 3)
        xt = a1_ref[pl.ds(ky * 16 + kx, _L2), :]                 # (248, 16)
        m = jnp.dot(xt, w2_ref[t], preferred_element_type=jnp.float32)  # (248, 32)
        acc = m if acc is None else acc + m
    a2_ref[...] = jnp.maximum(acc + b2_ref[0, :], 0.0)           # (248, 32)

    # ---- max-pool 2x2 via 4 shifted contiguous slices: valid pooled values
    #      land at rows r = 32*u + 2*v of `pooled`.
    pooled = jnp.maximum(
        jnp.maximum(a2_ref[pl.ds(0, _L3), :], a2_ref[pl.ds(1, _L3), :]),
        jnp.maximum(a2_ref[pl.ds(16, _L3), :], a2_ref[pl.ds(17, _L3), :]))  # (224, 32)

    # ---- fc: full (row, channel) contraction against a fc-weight tensor that
    #      is zero on garbage rows (built in glue), + bias.
    prod = pooled[None, :, :] * w5_ref[...]                      # (10, 224, 32)
    logits = jnp.sum(jnp.sum(prod, axis=-1), axis=-1)            # (10,)
    out_ref[0, 0, :] = (logits + bfc_ref[0, :]).astype(out_ref.dtype)


# -----------------------------------------------------------------------------
# Glue: input / weight re-layout (runs once per call, fused by XLA under jit)
# -----------------------------------------------------------------------------
def _prep_patches(x_nchw):
    """(B,1,28,28) -> (B, 4, 288, 9) pooled-offset im2col patches in the
    zero-padded flat layout row = i*16 + j (valid interior i,j in [1,15))."""
    B = x_nchw.shape[0]
    xpad = jnp.pad(x_nchw[:, 0], ((0, 0), (1, 1), (1, 1)))          # (B,30,30)
    taps = jnp.stack([xpad[:, ky:ky + 28, kx:kx + 28]
                      for ky in range(3) for kx in range(3)], axis=-1)  # (B,28,28,9)
    tg = taps.reshape(B, 14, 2, 14, 2, 9).transpose(0, 2, 4, 1, 3, 5)   # (B,dy,dx,pi,pj,9)
    tg = tg.reshape(B, 4, 14, 14, 9)
    p1 = jnp.pad(tg, ((0, 0), (0, 0), (1, 3), (1, 1), (0, 0)))      # (B,4,18,16,9)
    return p1.reshape(B, 4, _L1, 9)


def _prep_fc_weight(fcw):
    """(10, 32*7*7) torch fc weight -> (10, 224, 32) scattered so that row
    32*u + 2*v carries fcw[n, c*49 + u*7 + v] and every other row is zero."""
    wf = fcw.reshape(10, 32, 7, 7).transpose(0, 2, 3, 1)            # (10,u,v,c)
    wf = jnp.pad(wf, ((0, 0), (0, 0), (0, 9), (0, 0)))              # (10,7,16,32)
    wf = jnp.stack([wf, jnp.zeros_like(wf)], axis=3)                # (10,7,16,2,32)
    return wf.reshape(10, _L3, 32)                                  # row = 32u+2v(+par)


@jax.jit
def kernel_size_cnn_forward(x_nchw, c1w, c1b, c2w, c2b, fcw, fcb):
    """x_nchw: (B,1,28,28) f32. Conv weights in PyTorch OIHW, fc weight (10, 32*7*7)."""
    B = x_nchw.shape[0]
    p1 = _prep_patches(x_nchw)                                      # (B,4,288,9)
    mask = jnp.pad(jnp.ones((14, 14), jnp.float32),
                   ((1, 3), (1, 1))).reshape(_L1, 1)                # (288,1)
    w1 = c1w.reshape(16, 9).T                                       # (9,16)
    w2 = c2w.transpose(2, 3, 1, 0).reshape(9, 16, 32)               # (9,16,32)
    w5 = _prep_fc_weight(fcw)                                       # (10,224,32)

    out = pl.pallas_call(
        _fused_cnn_kernel,
        out_shape=jax.ShapeDtypeStruct((B, 1, 10), jnp.float32),
        grid=(B,),
        in_specs=[
            pl.BlockSpec((1, 4, _L1, 9), lambda b: (b, 0, 0, 0)),
            pl.BlockSpec((_L1, 1), lambda b: (0, 0)),
            pl.BlockSpec((9, 16), lambda b: (0, 0)),
            pl.BlockSpec((1, 16), lambda b: (0, 0)),
            pl.BlockSpec((9, 16, 32), lambda b: (0, 0, 0)),
            pl.BlockSpec((1, 32), lambda b: (0, 0)),
            pl.BlockSpec((10, _L3, 32), lambda b: (0, 0, 0)),
            pl.BlockSpec((1, 10), lambda b: (0, 0)),
        ],
        out_specs=pl.BlockSpec((1, 1, 10), lambda b: (b, 0, 0)),
        scratch_shapes=[pltpu.VMEM((_L1, 16), jnp.float32),
                        pltpu.VMEM((_L2, 32), jnp.float32)],
        compiler_params=pltpu.CompilerParams(
            dimension_semantics=("parallel",)),
    )(p1, mask, w1, c1b.reshape(1, 16), w2, c2b.reshape(1, 32),
      w5, fcb.reshape(1, 10))
    return out.reshape(B, 10)


# -----------------------------------------------------------------------------
# Pure-JAX reference (same NCHW semantics as the PyTorch module)
# -----------------------------------------------------------------------------
def reference_forward(x, c1w, c1b, c2w, c2b, fcw, fcb):
    dn = ("NCHW", "OIHW", "NCHW")
    hp = jax.lax.Precision.HIGHEST
    h = jax.lax.conv_general_dilated(x, c1w, (1, 1), ((1, 1), (1, 1)),
                                     dimension_numbers=dn, precision=hp)
    h = jax.nn.relu(h + c1b[None, :, None, None])
    h = jax.lax.reduce_window(h, -jnp.inf, jax.lax.max,
                              (1, 1, 2, 2), (1, 1, 2, 2), "VALID")
    h = jax.lax.conv_general_dilated(h, c2w, (1, 1), ((1, 1), (1, 1)),
                                     dimension_numbers=dn, precision=hp)
    h = jax.nn.relu(h + c2b[None, :, None, None])
    h = jax.lax.reduce_window(h, -jnp.inf, jax.lax.max,
                              (1, 1, 2, 2), (1, 1, 2, 2), "VALID")
    h = h.reshape(h.shape[0], -1)
    return h @ fcw.T + fcb


if __name__ == "__main__":
    key = jax.random.PRNGKey(0)
    k1, k2, k3, k4, k5, k6, k7 = jax.random.split(key, 7)

    B = 2
    # fc expects 32*7*7 features -> input spatial must be 28x28, 1 channel.
    x = jax.random.normal(k1, (B, 1, 28, 28), jnp.float32)

    conv1_w = 0.10 * jax.random.normal(k2, (16, 1, 3, 3), jnp.float32)
    conv1_b = 0.10 * jax.random.normal(k3, (16,), jnp.float32)
    conv2_w = 0.10 * jax.random.normal(k4, (32, 16, 3, 3), jnp.float32)
    conv2_b = 0.10 * jax.random.normal(k5, (32,), jnp.float32)
    fc_w = 0.05 * jax.random.normal(k6, (10, 32 * 7 * 7), jnp.float32)
    fc_b = 0.05 * jax.random.normal(k7, (10,), jnp.float32)

    out = kernel_size_cnn_forward(x, conv1_w, conv1_b, conv2_w, conv2_b, fc_w, fc_b)
    out = jax.block_until_ready(out)
    assert out.shape == (B, 10) and out.dtype == jnp.float32

    ref = reference_forward(x, conv1_w, conv1_b, conv2_w, conv2_b, fc_w, fc_b)
    ref = jax.block_until_ready(ref)
    if not bool(jnp.allclose(out, ref, rtol=1e-2, atol=1e-2)):
        raise AssertionError(f"mismatch vs reference: max abs err = "
                             f"{float(jnp.max(jnp.abs(out - ref)))}")

    print("KERNEL_OK")
</pallas_src>

<mosaic_0001>
module attributes {stable_mosaic.version = 11 : i64} {
  func.func @_fused_cnn_kernel(%arg0: i32, %arg1: memref<1x4x288x9xf32, #tpu.memory_space<vmem>>, %arg2: memref<288x1xf32, #tpu.memory_space<vmem>>, %arg3: memref<9x16xf32, #tpu.memory_space<vmem>>, %arg4: memref<1x16xf32, #tpu.memory_space<vmem>>, %arg5: memref<9x16x32xf32, #tpu.memory_space<vmem>>, %arg6: memref<1x32xf32, #tpu.memory_space<vmem>>, %arg7: memref<10x224x32xf32, #tpu.memory_space<vmem>>, %arg8: memref<1x10xf32, #tpu.memory_space<vmem>>, %arg9: memref<1x1x10xf32, #tpu.memory_space<vmem>>, %arg10: memref<288x16xf32, #tpu.memory_space<vmem>>, %arg11: memref<248x32xf32, #tpu.memory_space<vmem>>) attributes {dimension_semantics = [#tpu.dimension_semantics<parallel>], iteration_bounds = array<i64: 2>, scalar_prefetch = 0 : i64, scratch_operands = 2 : i64, tpu.core_type = #tpu.core_type<tc>, window_params = [{transform_indices = @transform_0, window_bounds = array<i64: 1, 4, 288, 9>}, {pipeline_mode = #tpu.pipeline_mode<synchronous>, transform_indices = @transform_1, window_bounds = array<i64: 288, 1>}, {pipeline_mode = #tpu.pipeline_mode<synchronous>, transform_indices = @transform_2, window_bounds = array<i64: 9, 16>}, {pipeline_mode = #tpu.pipeline_mode<synchronous>, transform_indices = @transform_3, window_bounds = array<i64: 1, 16>}, {pipeline_mode = #tpu.pipeline_mode<synchronous>, transform_indices = @transform_4, window_bounds = array<i64: 9, 16, 32>}, {pipeline_mode = #tpu.pipeline_mode<synchronous>, transform_indices = @transform_5, window_bounds = array<i64: 1, 32>}, {pipeline_mode = #tpu.pipeline_mode<synchronous>, transform_indices = @transform_6, window_bounds = array<i64: 10, 224, 32>}, {pipeline_mode = #tpu.pipeline_mode<synchronous>, transform_indices = @transform_7, window_bounds = array<i64: 1, 10>}, {transform_indices = @transform_8, window_bounds = array<i64: 1, 1, 10>}]} {
    %c0 = arith.constant 0 : index
    %c0_0 = arith.constant 0 : index
    %c0_1 = arith.constant 0 : index
    %c0_2 = arith.constant 0 : index
    %0 = vector.load %arg1[%c0, %c0_0, %c0_1, %c0_2] : memref<1x4x288x9xf32, #tpu.memory_space<vmem>>, vector<1x1x288x9xf32>
    %1 = vector.shape_cast %0 : vector<1x1x288x9xf32> to vector<288x9xf32>
    %c0_3 = arith.constant 0 : index
    %c0_4 = arith.constant 0 : index
    %2 = vector.load %arg3[%c0_3, %c0_4] : memref<9x16xf32, #tpu.memory_space<vmem>>, vector<9x16xf32>
    %cst = arith.constant dense<0.000000e+00> : vector<288x16xf32>
    %3 = tpu.matmul %1, %2, %cst {dimension_numbers = #tpu.dot_dimension_numbers<[1], [0], [0], [1], [0, 0, 1, 1], [], []>} : vector<288x9xf32>, vector<9x16xf32>, vector<288x16xf32> -> vector<288x16xf32>
    %c0_5 = arith.constant 0 : index
    %c1 = arith.constant 1 : index
    %c0_6 = arith.constant 0 : index
    %c0_7 = arith.constant 0 : index
    %4 = vector.load %arg1[%c0_5, %c1, %c0_6, %c0_7] : memref<1x4x288x9xf32, #tpu.memory_space<vmem>>, vector<1x1x288x9xf32>
    %5 = vector.shape_cast %4 : vector<1x1x288x9xf32> to vector<288x9xf32>
    %c0_8 = arith.constant 0 : index
    %c0_9 = arith.constant 0 : index
    %6 = vector.load %arg3[%c0_8, %c0_9] : memref<9x16xf32, #tpu.memory_space<vmem>>, vector<9x16xf32>
    %cst_10 = arith.constant dense<0.000000e+00> : vector<288x16xf32>
    %7 = tpu.matmul %5, %6, %cst_10 {dimension_numbers = #tpu.dot_dimension_numbers<[1], [0], [0], [1], [0, 0, 1, 1], [], []>} : vector<288x9xf32>, vector<9x16xf32>, vector<288x16xf32> -> vector<288x16xf32>
    %8 = arith.maximumf %3, %7 : vector<288x16xf32>
    %c0_11 = arith.constant 0 : index
    %c2 = arith.constant 2 : index
    %c0_12 = arith.constant 0 : index
    %c0_13 = arith.constant 0 : index
    %9 = vector.load %arg1[%c0_11, %c2, %c0_12, %c0_13] : memref<1x4x288x9xf32, #tpu.memory_space<vmem>>, vector<1x1x288x9xf32>
    %10 = vector.shape_cast %9 : vector<1x1x288x9xf32> to vector<288x9xf32>
    %c0_14 = arith.constant 0 : index
    %c0_15 = arith.constant 0 : index
    %11 = vector.load %arg3[%c0_14, %c0_15] : memref<9x16xf32, #tpu.memory_space<vmem>>, vector<9x16xf32>
    %cst_16 = arith.constant dense<0.000000e+00> : vector<288x16xf32>
    %12 = tpu.matmul %10, %11, %cst_16 {dimension_numbers = #tpu.dot_dimension_numbers<[1], [0], [0], [1], [0, 0, 1, 1], [], []>} : vector<288x9xf32>, vector<9x16xf32>, vector<288x16xf32> -> vector<288x16xf32>
    %13 = arith.maximumf %8, %12 : vector<288x16xf32>
    %c0_17 = arith.constant 0 : index
    %c3 = arith.constant 3 : index
    %c0_18 = arith.constant 0 : index
    %c0_19 = arith.constant 0 : index
    %14 = vector.load %arg1[%c0_17, %c3, %c0_18, %c0_19] : memref<1x4x288x9xf32, #tpu.memory_space<vmem>>, vector<1x1x288x9xf32>
    %15 = vector.shape_cast %14 : vector<1x1x288x9xf32> to vector<288x9xf32>
    %c0_20 = arith.constant 0 : index
    %c0_21 = arith.constant 0 : index
    %16 = vector.load %arg3[%c0_20, %c0_21] : memref<9x16xf32, #tpu.memory_space<vmem>>, vector<9x16xf32>
    %cst_22 = arith.constant dense<0.000000e+00> : vector<288x16xf32>
    %17 = tpu.matmul %15, %16, %cst_22 {dimension_numbers = #tpu.dot_dimension_numbers<[1], [0], [0], [1], [0, 0, 1, 1], [], []>} : vector<288x9xf32>, vector<9x16xf32>, vector<288x16xf32> -> vector<288x16xf32>
    %18 = arith.maximumf %13, %17 : vector<288x16xf32>
    %c0_23 = arith.constant 0 : index
    %c0_24 = arith.constant 0 : index
    %19 = vector.load %arg4[%c0_23, %c0_24] : memref<1x16xf32, #tpu.memory_space<vmem>>, vector<1x16xf32>
    %20 = vector.shape_cast %19 : vector<1x16xf32> to vector<16xf32>
    %21 = vector.shape_cast %20 : vector<16xf32> to vector<1x16xf32>
    %22 = vector.broadcast %21 : vector<1x16xf32> to vector<288x16xf32>
    %23 = arith.addf %18, %22 : vector<288x16xf32>
    %cst_25 = arith.constant 0.000000e+00 : f32
    %24 = vector.broadcast %cst_25 : f32 to vector<288x16xf32>
    %25 = arith.maximumf %23, %24 : vector<288x16xf32>
    %c0_26 = arith.constant 0 : index
    %c0_27 = arith.constant 0 : index
    %26 = vector.load %arg2[%c0_26, %c0_27] : memref<288x1xf32, #tpu.memory_space<vmem>>, vector<288x1xf32>
    %27 = vector.broadcast %26 : vector<288x1xf32> to vector<288x16xf32>
    %28 = arith.mulf %25, %27 : vector<288x16xf32>
    %c0_28 = arith.constant 0 : index
    %c0_29 = arith.constant 0 : index
    %29 = vector.load %arg10[%c0_28, %c0_29] : memref<288x16xf32, #tpu.memory_space<vmem>>, vector<288x16xf32>
    tpu.vector_store %arg10[%c0_28, %c0_29], %28 {strides = array<i32>} : memref<288x16xf32, #tpu.memory_space<vmem>>, vector<288x16xf32>,
    %c0_30 = arith.constant 0 : index
    %c0_31 = arith.constant 0 : index
    %30 = vector.load %arg10[%c0_30, %c0_31] : memref<288x16xf32, #tpu.memory_space<vmem>>, vector<248x16xf32>
    %c0_32 = arith.constant 0 : index
    %c0_33 = arith.constant 0 : index
    %c0_34 = arith.constant 0 : index
    %31 = vector.load %arg5[%c0_32, %c0_33, %c0_34] : memref<9x16x32xf32, #tpu.memory_space<vmem>>, vector<1x16x32xf32>
    %32 = vector.shape_cast %31 : vector<1x16x32xf32> to vector<16x32xf32>
    %cst_35 = arith.constant dense<0.000000e+00> : vector<248x32xf32>
    %33 = tpu.matmul %30, %32, %cst_35 {dimension_numbers = #tpu.dot_dimension_numbers<[1], [0], [0], [1], [0, 0, 1, 1], [], []>} : vector<248x16xf32>, vector<16x32xf32>, vector<248x32xf32> -> vector<248x32xf32>
    %c1_36 = arith.constant 1 : index
    %c0_37 = arith.constant 0 : index
    %34 = vector.load %arg10[%c1_36, %c0_37] : memref<288x16xf32, #tpu.memory_space<vmem>>, vector<248x16xf32>
    %c1_38 = arith.constant 1 : index
    %c0_39 = arith.constant 0 : index
    %c0_40 = arith.constant 0 : index
    %35 = vector.load %arg5[%c1_38, %c0_39, %c0_40] : memref<9x16x32xf32, #tpu.memory_space<vmem>>, vector<1x16x32xf32>
    %36 = vector.shape_cast %35 : vector<1x16x32xf32> to vector<16x32xf32>
    %cst_41 = arith.constant dense<0.000000e+00> : vector<248x32xf32>
    %37 = tpu.matmul %34, %36, %cst_41 {dimension_numbers = #tpu.dot_dimension_numbers<[1], [0], [0], [1], [0, 0, 1, 1], [], []>} : vector<248x16xf32>, vector<16x32xf32>, vector<248x32xf32> -> vector<248x32xf32>
    %38 = arith.addf %33, %37 : vector<248x32xf32>
    %c2_42 = arith.constant 2 : index
    %c0_43 = arith.constant 0 : index
    %39 = vector.load %arg10[%c2_42, %c0_43] : memref<288x16xf32, #tpu.memory_space<vmem>>, vector<248x16xf32>
    %c2_44 = arith.constant 2 : index
    %c0_45 = arith.constant 0 : index
    %c0_46 = arith.constant 0 : index
    %40 = vector.load %arg5[%c2_44, %c0_45, %c0_46] : memref<9x16x32xf32, #tpu.memory_space<vmem>>, vector<1x16x32xf32>
    %41 = vector.shape_cast %40 : vector<1x16x32xf32> to vector<16x32xf32>
    %cst_47 = arith.constant dense<0.000000e+00> : vector<248x32xf32>
    %42 = tpu.matmul %39, %41, %cst_47 {dimension_numbers = #tpu.dot_dimension_numbers<[1], [0], [0], [1], [0, 0, 1, 1], [], []>} : vector<248x16xf32>, vector<16x32xf32>, vector<248x32xf32> -> vector<248x32xf32>
    %43 = arith.addf %38, %42 : vector<248x32xf32>
    %c16 = arith.constant 16 : index
    %c0_48 = arith.constant 0 : index
    %44 = vector.load %arg10[%c16, %c0_48] : memref<288x16xf32, #tpu.memory_space<vmem>>, vector<248x16xf32>
    %c3_49 = arith.constant 3 : index
    %c0_50 = arith.constant 0 : index
    %c0_51 = arith.constant 0 : index
    %45 = vector.load %arg5[%c3_49, %c0_50, %c0_51] : memref<9x16x32xf32, #tpu.memory_space<vmem>>, vector<1x16x32xf32>
    %46 = vector.shape_cast %45 : vector<1x16x32xf32> to vector<16x32xf32>
    %cst_52 = arith.constant dense<0.000000e+00> : vector<248x32xf32>
    %47 = tpu.matmul %44, %46, %cst_52 {dimension_numbers = #tpu.dot_dimension_numbers<[1], [0], [0], [1], [0, 0, 1, 1], [], []>} : vector<248x16xf32>, vector<16x32xf32>, vector<248x32xf32> -> vector<248x32xf32>
    %48 = arith.addf %43, %47 : vector<248x32xf32>
    %c17 = arith.constant 17 : index
    %c0_53 = arith.constant 0 : index
    %49 = vector.load %arg10[%c17, %c0_53] : memref<288x16xf32, #tpu.memory_space<vmem>>, vector<248x16xf32>
    %c4 = arith.constant 4 : index
    %c0_54 = arith.constant 0 : index
    %c0_55 = arith.constant 0 : index
    %50 = vector.load %arg5[%c4, %c0_54, %c0_55] : memref<9x16x32xf32, #tpu.memory_space<vmem>>, vector<1x16x32xf32>
    %51 = vector.shape_cast %50 : vector<1x16x32xf32> to vector<16x32xf32>
    %cst_56 = arith.constant dense<0.000000e+00> : vector<248x32xf32>
    %52 = tpu.matmul %49, %51, %cst_56 {dimension_numbers = #tpu.dot_dimension_numbers<[1], [0], [0], [1], [0, 0, 1, 1], [], []>} : vector<248x16xf32>, vector<16x32xf32>, vector<248x32xf32> -> vector<248x32xf32>
    %53 = arith.addf %48, %52 : vector<248x32xf32>
    %c18 = arith.constant 18 : index
    %c0_57 = arith.constant 0 : index
    %54 = vector.load %arg10[%c18, %c0_57] : memref<288x16xf32, #tpu.memory_space<vmem>>, vector<248x16xf32>
    %c5 = arith.constant 5 : index
    %c0_58 = arith.constant 0 : index
    %c0_59 = arith.constant 0 : index
    %55 = vector.load %arg5[%c5, %c0_58, %c0_59] : memref<9x16x32xf32, #tpu.memory_space<vmem>>, vector<1x16x32xf32>
    %56 = vector.shape_cast %55 : vector<1x16x32xf32> to vector<16x32xf32>
    %cst_60 = arith.constant dense<0.000000e+00> : vector<248x32xf32>
    %57 = tpu.matmul %54, %56, %cst_60 {dimension_numbers = #tpu.dot_dimension_numbers<[1], [0], [0], [1], [0, 0, 1, 1], [], []>} : vector<248x16xf32>, vector<16x32xf32>, vector<248x32xf32> -> vector<248x32xf32>
    %58 = arith.addf %53, %57 : vector<248x32xf32>
    %c32 = arith.constant 32 : index
    %c0_61 = arith.constant 0 : index
    %59 = vector.load %arg10[%c32, %c0_61] : memref<288x16xf32, #tpu.memory_space<vmem>>, vector<248x16xf32>
    %c6 = arith.constant 6 : index
    %c0_62 = arith.constant 0 : index
    %c0_63 = arith.constant 0 : index
    %60 = vector.load %arg5[%c6, %c0_62, %c0_63] : memref<9x16x32xf32, #tpu.memory_space<vmem>>, vector<1x16x32xf32>
    %61 = vector.shape_cast %60 : vector<1x16x32xf32> to vector<16x32xf32>
    %cst_64 = arith.constant dense<0.000000e+00> : vector<248x32xf32>
    %62 = tpu.matmul %59, %61, %cst_64 {dimension_numbers = #tpu.dot_dimension_numbers<[1], [0], [0], [1], [0, 0, 1, 1], [], []>} : vector<248x16xf32>, vector<16x32xf32>, vector<248x32xf32> -> vector<248x32xf32>
    %63 = arith.addf %58, %62 : vector<248x32xf32>
    %c33 = arith.constant 33 : index
    %c0_65 = arith.constant 0 : index
    %64 = vector.load %arg10[%c33, %c0_65] : memref<288x16xf32, #tpu.memory_space<vmem>>, vector<248x16xf32>
    %c7 = arith.constant 7 : index
    %c0_66 = arith.constant 0 : index
    %c0_67 = arith.constant 0 : index
    %65 = vector.load %arg5[%c7, %c0_66, %c0_67] : memref<9x16x32xf32, #tpu.memory_space<vmem>>, vector<1x16x32xf32>
    %66 = vector.shape_cast %65 : vector<1x16x32xf32> to vector<16x32xf32>
    %cst_68 = arith.constant dense<0.000000e+00> : vector<248x32xf32>
    %67 = tpu.matmul %64, %66, %cst_68 {dimension_numbers = #tpu.dot_dimension_numbers<[1], [0], [0], [1], [0, 0, 1, 1], [], []>} : vector<248x16xf32>, vector<16x32xf32>, vector<248x32xf32> -> vector<248x32xf32>
    %68 = arith.addf %63, %67 : vector<248x32xf32>
    %c34 = arith.constant 34 : index
    %c0_69 = arith.constant 0 : index
    %69 = vector.load %arg10[%c34, %c0_69] : memref<288x16xf32, #tpu.memory_space<vmem>>, vector<248x16xf32>
    %c8 = arith.constant 8 : index
    %c0_70 = arith.constant 0 : index
    %c0_71 = arith.constant 0 : index
    %70 = vector.load %arg5[%c8, %c0_70, %c0_71] : memref<9x16x32xf32, #tpu.memory_space<vmem>>, vector<1x16x32xf32>
    %71 = vector.shape_cast %70 : vector<1x16x32xf32> to vector<16x32xf32>
    %cst_72 = arith.constant dense<0.000000e+00> : vector<248x32xf32>
    %72 = tpu.matmul %69, %71, %cst_72 {dimension_numbers = #tpu.dot_dimension_numbers<[1], [0], [0], [1], [0, 0, 1, 1], [], []>} : vector<248x16xf32>, vector<16x32xf32>, vector<248x32xf32> -> vector<248x32xf32>
    %73 = arith.addf %68, %72 : vector<248x32xf32>
    %c0_73 = arith.constant 0 : index
    %c0_74 = arith.constant 0 : index
    %74 = vector.load %arg6[%c0_73, %c0_74] : memref<1x32xf32, #tpu.memory_space<vmem>>, vector<1x32xf32>
    %75 = vector.shape_cast %74 : vector<1x32xf32> to vector<32xf32>
    %76 = vector.shape_cast %75 : vector<32xf32> to vector<1x32xf32>
    %77 = vector.broadcast %76 : vector<1x32xf32> to vector<248x32xf32>
    %78 = arith.addf %73, %77 : vector<248x32xf32>
    %cst_75 = arith.constant 0.000000e+00 : f32
    %79 = vector.broadcast %cst_75 : f32 to vector<248x32xf32>
    %80 = arith.maximumf %78, %79 : vector<248x32xf32>
    %c0_76 = arith.constant 0 : index
    %c0_77 = arith.constant 0 : index
    %81 = vector.load %arg11[%c0_76, %c0_77] : memref<248x32xf32, #tpu.memory_space<vmem>>, vector<248x32xf32>
    tpu.vector_store %arg11[%c0_76, %c0_77], %80 {strides = array<i32>} : memref<248x32xf32, #tpu.memory_space<vmem>>, vector<248x32xf32>,
    %c0_78 = arith.constant 0 : index
    %c0_79 = arith.constant 0 : index
    %82 = vector.load %arg11[%c0_78, %c0_79] : memref<248x32xf32, #tpu.memory_space<vmem>>, vector<224x32xf32>
    %c1_80 = arith.constant 1 : index
    %c0_81 = arith.constant 0 : index
    %83 = vector.load %arg11[%c1_80, %c0_81] : memref<248x32xf32, #tpu.memory_space<vmem>>, vector<224x32xf32>
    %84 = arith.maximumf %82, %83 : vector<224x32xf32>
    %c16_82 = arith.constant 16 : index
    %c0_83 = arith.constant 0 : index
    %85 = vector.load %arg11[%c16_82, %c0_83] : memref<248x32xf32, #tpu.memory_space<vmem>>, vector<224x32xf32>
    %c17_84 = arith.constant 17 : index
    %c0_85 = arith.constant 0 : index
    %86 = vector.load %arg11[%c17_84, %c0_85] : memref<248x32xf32, #tpu.memory_space<vmem>>, vector<224x32xf32>
    %87 = arith.maximumf %85, %86 : vector<224x32xf32>
    %88 = arith.maximumf %84, %87 : vector<224x32xf32>
    %89 = vector.shape_cast %88 : vector<224x32xf32> to vector<1x224x32xf32>
    %c0_86 = arith.constant 0 : index
    %c0_87 = arith.constant 0 : index
    %c0_88 = arith.constant 0 : index
    %90 = vector.load %arg7[%c0_86, %c0_87, %c0_88] : memref<10x224x32xf32, #tpu.memory_space<vmem>>, vector<10x224x32xf32>
    %91 = vector.broadcast %89 : vector<1x224x32xf32> to vector<10x224x32xf32>
    %92 = arith.mulf %91, %90 : vector<10x224x32xf32>
    %cst_89 = arith.constant dense<0.000000e+00> : vector<10x224xf32>
    %93 = vector.multi_reduction <add>, %92, %cst_89 [2] : vector<10x224x32xf32> to vector<10x224xf32>
    %cst_90 = arith.constant dense<0.000000e+00> : vector<10xf32>
    %94 = vector.multi_reduction <add>, %93, %cst_90 [1] : vector<10x224xf32> to vector<10xf32>
    %c0_91 = arith.constant 0 : index
    %c0_92 = arith.constant 0 : index
    %95 = vector.load %arg8[%c0_91, %c0_92] : memref<1x10xf32, #tpu.memory_space<vmem>>, vector<1x10xf32>
    %96 = vector.shape_cast %95 : vector<1x10xf32> to vector<10xf32>
    %97 = arith.addf %94, %96 : vector<10xf32>
    %c0_93 = arith.constant 0 : index
    %c0_94 = arith.constant 0 : index
    %c0_95 = arith.constant 0 : index
    %98 = vector.load %arg9[%c0_93, %c0_94, %c0_95] : memref<1x1x10xf32, #tpu.memory_space<vmem>>, vector<1x1x10xf32>
    %99 = vector.shape_cast %98 : vector<1x1x10xf32> to vector<10xf32>
    %100 = vector.shape_cast %97 : vector<10xf32> to vector<1x1x10xf32>
    tpu.vector_store %arg9[%c0_93, %c0_94, %c0_95], %100 {strides = array<i32>} : memref<1x1x10xf32, #tpu.memory_space<vmem>>, vector<1x1x10xf32>,
    return
  }
  func.func @transform_0(%arg0: i32) -> (i32, i32, i32, i32) {
    %c0_i32 = arith.constant 0 : i32
    %c0_i32_0 = arith.constant 0 : i32
    %c0_i32_1 = arith.constant 0 : i32
    %c0_i32_2 = arith.constant 0 : i32
    return %arg0, %c0_i32, %c0_i32_0, %c0_i32_1 : i32, i32, i32, i32
  }
  func.func @transform_1(%arg0: i32) -> (i32, i32) {
    %c0_i32 = arith.constant 0 : i32
    %c0_i32_0 = arith.constant 0 : i32
    %c0_i32_1 = arith.constant 0 : i32
    return %c0_i32, %c0_i32_0 : i32, i32
  }
  func.func @transform_2(%arg0: i32) -> (i32, i32) {
    %c0_i32 = arith.constant 0 : i32
    %c0_i32_0 = arith.constant 0 : i32
    %c0_i32_1 = arith.constant 0 : i32
    return %c0_i32, %c0_i32_0 : i32, i32
  }
  func.func @transform_3(%arg0: i32) -> (i32, i32) {
    %c0_i32 = arith.constant 0 : i32
    %c0_i32_0 = arith.constant 0 : i32
    %c0_i32_1 = arith.constant 0 : i32
    return %c0_i32, %c0_i32_0 : i32, i32
  }
  func.func @transform_4(%arg0: i32) -> (i32, i32, i32) {
    %c0_i32 = arith.constant 0 : i32
    %c0_i32_0 = arith.constant 0 : i32
    %c0_i32_1 = arith.constant 0 : i32
    %c0_i32_2 = arith.constant 0 : i32
    return %c0_i32, %c0_i32_0, %c0_i32_1 : i32, i32, i32
  }
  func.func @transform_5(%arg0: i32) -> (i32, i32) {
    %c0_i32 = arith.constant 0 : i32
    %c0_i32_0 = arith.constant 0 : i32
    %c0_i32_1 = arith.constant 0 : i32
    return %c0_i32, %c0_i32_0 : i32, i32
  }
  func.func @transform_6(%arg0: i32) -> (i32, i32, i32) {
    %c0_i32 = arith.constant 0 : i32
    %c0_i32_0 = arith.constant 0 : i32
    %c0_i32_1 = arith.constant 0 : i32
    %c0_i32_2 = arith.constant 0 : i32
    return %c0_i32, %c0_i32_0, %c0_i32_1 : i32, i32, i32
  }
  func.func @transform_7(%arg0: i32) -> (i32, i32) {
    %c0_i32 = arith.constant 0 : i32
    %c0_i32_0 = arith.constant 0 : i32
    %c0_i32_1 = arith.constant 0 : i32
    return %c0_i32, %c0_i32_0 : i32, i32
  }
  func.func @transform_8(%arg0: i32) -> (i32, i32, i32) {
    %c0_i32 = arith.constant 0 : i32
    %c0_i32_0 = arith.constant 0 : i32
    %c0_i32_1 = arith.constant 0 : i32
    return %arg0, %c0_i32, %c0_i32_0 : i32, i32, i32
  }
}

</mosaic_0001>

<llo_original>
// kernel: kernel_size_cnn_forward.1
$region0: #{kernel_size_cnn_forward.1}
  #allocation0 [shape = 'u32[]', space=smem, size = 0x4, offset = 0x4, fixed_abs, tag = 'smem constant byte address 0x4 - core index']
  #allocation1 [shape = 'u32[144,128]{1,0:T(1,128)}', space=vmem, size = 0x12000, scoped, tag = 'internal scratch']
  #allocation2 [shape = 'f32[288,16]{1,0:T(8,128)}', space=vmem, size = 0x24000, scoped, tag = 'scratch operand']
  #allocation3 [shape = 'f32[248,32]{1,0:T(8,128)}', space=vmem, size = 0x1f000, scoped, tag = 'scratch operand']
  %s0 = inlined_call_operand.vmem [shape: f32[2,4,288,9], index: 0, kind: input, shape index: {}]
  %s1 = inlined_call_operand.vmem [shape: f32[288,1], index: 1, kind: input, shape index: {}]
  %s2 = inlined_call_operand.vmem [shape: f32[9,16], index: 2, kind: input, shape index: {}]
  %s3 = inlined_call_operand.vmem [shape: f32[1,16], index: 3, kind: input, shape index: {}]
  %s4 = inlined_call_operand.vmem [shape: f32[9,16,32], index: 4, kind: input, shape index: {}]
  %s5 = inlined_call_operand.vmem [shape: f32[1,32], index: 5, kind: input, shape index: {}]
  %s6 = inlined_call_operand.vmem [shape: f32[10,224,32], index: 6, kind: input, shape index: {}]
  %s7 = inlined_call_operand.vmem [shape: f32[1,10], index: 7, kind: input, shape index: {}]
  %s8 = inlined_call_operand.hbm [shape: f32[2,1,10], index: 8, kind: output, shape index: {}]
  %s9 = sld [smem:[#allocation0]]
  $region65: #{kernel_size_cnn_forward.1} parent=0
    _
  %s11 = ssub.s32 1, %s9
  %s12 = scalar_select 0, %s11, %s9
  $region1: #{kernel_size_cnn_forward.1} parent=0
    #allocation4 [shape = 'u8[1024]{0}', space=vmem, size = 0x400, scoped, tag = 'output window, operand 0']
    #allocation5 [shape = 's32[2]{0}', space=sflag, size = 0x8, scoped, tag = 'scoped memory for kernel_size_cnn_forward.1']
    %13 = vsyncpa [#allocation5], 0
    %s14 = scalar_lea.sflag [#allocation5], 1
    %15 = vsyncpa %s14, 0
    loop: start=0, step=1, limit=4
    $region2: #{kernel_size_cnn_forward.1} parent=1 // loop_pre_header
      _
    $region3: #{kernel_size_cnn_forward.1} parent=1 // loop_header
      %s17 = sphi 0, %s21
      %p18 = scmp.ge.s32.totalorder %s17, 4
      %s27 = sphi 0, %s29
      %s30 = sphi 0, %s27
      %s31 = sphi 0, %s30
      %s47 = sphi 0, %s31
      %s51 = sphi 0, %s51
      %s53 = sphi 0, %s51
      %s54 = sphi 0, %s53
      %s68 = sphi 0, %s54
      %s72 = sphi 0, %s72
      %s74 = sphi 0, %s72
      %s75 = sphi 0, %s74
      %s89 = sphi 0, %s75
      %s93 = sphi 0, %s93
      %s95 = sphi 0, %s93
      %s96 = sphi 0, %s95
      %s110 = sphi 0, %s96
      %s114 = sphi 0, %s114
      %s116 = sphi 0, %s114
      %s117 = sphi 0, %s116
      %s131 = sphi 0, %s117
      %s135 = sphi 0, %s135
      %s137 = sphi 0, %s135
      %s138 = sphi 0, %s137
      %s152 = sphi 0, %s138
      %s156 = sphi 0, %s156
      %s158 = sphi 0, %s156
      %s159 = sphi 0, %s158
      %s173 = sphi 0, %s159
      %s177 = sphi 0, %s177
      %s179 = sphi 0, %s177
      %s180 = sphi 0, %s179
      %s194 = sphi 0, %s180
      %s200 = sphi 0, %s202
      %s203 = sphi 0, %s200
      %s204 = sphi 0, %s203
      %s220 = sphi 0, %s204
    $region4: #{kernel_size_cnn_forward.1} parent=1 // loop_header_branch
      %20 = sbr.rel (%p18) target = $region8
    $region5: #{kernel_size_cnn_forward.1} parent=1 // loop_body
      %s22 = ssub.s32 %s17, 1
      %s23 = ssub.s32 %s17, 2
      %s24 = sadd.s32 %s17, 1
      %s25 = ssub.s32 %s17, %s24
      %p26 = scmp.eq.s32.totalorder %s25, 0
      %s28 = sadd.s32 %s27, 1
      %s29 = scalar_select %p26, %s27, %s28
      %p32 = pneg %p26
      %p33 = scmp.eq.s32.totalorder %s17, 1
      %p34 = por %p32, %p33
      %p35 = scmp.ne.s32.totalorder %s27, %s30
      %p36 = scmp.eq.s32.totalorder %s17, 0
      %p37 = por %p35, %p36
      %p38 = scmp.ne.s32.totalorder %s27, %s30
      %p39 = scmp.eq.s32.totalorder %s22, 1
      %p40 = por %p38, %p39
      %p41 = scmp.ne.s32.totalorder %s30, %s31
      %p42 = scmp.eq.s32.totalorder %s22, 0
      %p43 = por %p41, %p42
      %p44 = scmp.ne.s32.totalorder %s30, %s31
      %p45 = scmp.eq.s32.totalorder %s23, 1
      %p46 = por %p44, %p45
      %p48 = scmp.ne.s32.totalorder %s31, %s47
      %p49 = scmp.eq.s32.totalorder %s23, 0
      %p50 = por %p48, %p49
      %s52 = sadd.s32 %s51, 1
      %p55 = scmp.eq.s32.totalorder %s17, 1
      %p56 = scmp.ne.s32.totalorder %s51, %s53
      %p57 = scmp.eq.s32.totalorder %s17, 0
      %p58 = por %p56, %p57
      %p59 = scmp.ne.s32.totalorder %s51, %s53
      %p60 = scmp.eq.s32.totalorder %s22, 1
      %p61 = por %p59, %p60
      %p62 = scmp.ne.s32.totalorder %s53, %s54
      %p63 = scmp.eq.s32.totalorder %s22, 0
      %p64 = por %p62, %p63
      %p65 = scmp.ne.s32.totalorder %s53, %s54
      %p66 = scmp.eq.s32.totalorder %s23, 1
      %p67 = por %p65, %p66
      %p69 = scmp.ne.s32.totalorder %s54, %s68
      %p70 = scmp.eq.s32.totalorder %s23, 0
      %p71 = por %p69, %p70
      %s73 = sadd.s32 %s72, 1
      %p76 = scmp.eq.s32.totalorder %s17, 1
      %p77 = scmp.ne.s32.totalorder %s72, %s74
      %p78 = scmp.eq.s32.totalorder %s17, 0
      %p79 = por %p77, %p78
      %p80 = scmp.ne.s32.totalorder %s72, %s74
      %p81 = scmp.eq.s32.totalorder %s22, 1
      %p82 = por %p80, %p81
      %p83 = scmp.ne.s32.totalorder %s74, %s75
      %p84 = scmp.eq.s32.totalorder %s22, 0
      %p85 = por %p83, %p84
      %p86 = scmp.ne.s32.totalorder %s74, %s75
      %p87 = scmp.eq.s32.totalorder %s23, 1
      %p88 = por %p86, %p87
      %p90 = scmp.ne.s32.totalorder %s75, %s89
      %p91 = scmp.eq.s32.totalorder %s23, 0
      %p92 = por %p90, %p91
      %s94 = sadd.s32 %s93, 1
      %p97 = scmp.eq.s32.totalorder %s17, 1
      %p98 = scmp.ne.s32.totalorder %s93, %s95
      %p99 = scmp.eq.s32.totalorder %s17, 0
      %p100 = por %p98, %p99
      %p101 = scmp.ne.s32.totalorder %s93, %s95
      %p102 = scmp.eq.s32.totalorder %s22, 1
      %p103 = por %p101, %p102
      %p104 = scmp.ne.s32.totalorder %s95, %s96
      %p105 = scmp.eq.s32.totalorder %s22, 0
      %p106 = por %p104, %p105
      %p107 = scmp.ne.s32.totalorder %s95, %s96
      %p108 = scmp.eq.s32.totalorder %s23, 1
      %p109 = por %p107, %p108
      %p111 = scmp.ne.s32.totalorder %s96, %s110
      %p112 = scmp.eq.s32.totalorder %s23, 0
      %p113 = por %p111, %p112
      %s115 = sadd.s32 %s114, 1
      %p118 = scmp.eq.s32.totalorder %s17, 1
      %p119 = scmp.ne.s32.totalorder %s114, %s116
      %p120 = scmp.eq.s32.totalorder %s17, 0
      %p121 = por %p119, %p120
      %p122 = scmp.ne.s32.totalorder %s114, %s116
      %p123 = scmp.eq.s32.totalorder %s22, 1
      %p124 = por %p122, %p123
      %p125 = scmp.ne.s32.totalorder %s116, %s117
      %p126 = scmp.eq.s32.totalorder %s22, 0
      %p127 = por %p125, %p126
      %p128 = scmp.ne.s32.totalorder %s116, %s117
      %p129 = scmp.eq.s32.totalorder %s23, 1
      %p130 = por %p128, %p129
      %p132 = scmp.ne.s32.totalorder %s117, %s131
      %p133 = scmp.eq.s32.totalorder %s23, 0
      %p134 = por %p132, %p133
      %s136 = sadd.s32 %s135, 1
      %p139 = scmp.eq.s32.totalorder %s17, 1
      %p140 = scmp.ne.s32.totalorder %s135, %s137
      %p141 = scmp.eq.s32.totalorder %s17, 0
      %p142 = por %p140, %p141
      %p143 = scmp.ne.s32.totalorder %s135, %s137
      %p144 = scmp.eq.s32.totalorder %s22, 1
      %p145 = por %p143, %p144
      %p146 = scmp.ne.s32.totalorder %s137, %s138
      %p147 = scmp.eq.s32.totalorder %s22, 0
      %p148 = por %p146, %p147
      %p149 = scmp.ne.s32.totalorder %s137, %s138
      %p150 = scmp.eq.s32.totalorder %s23, 1
      %p151 = por %p149, %p150
      %p153 = scmp.ne.s32.totalorder %s138, %s152
      %p154 = scmp.eq.s32.totalorder %s23, 0
      %p155 = por %p153, %p154
      %s157 = sadd.s32 %s156, 1
      %p160 = scmp.eq.s32.totalorder %s17, 1
      %p161 = scmp.ne.s32.totalorder %s156, %s158
      %p162 = scmp.eq.s32.totalorder %s17, 0
      %p163 = por %p161, %p162
      %p164 = scmp.ne.s32.totalorder %s156, %s158
      %p165 = scmp.eq.s32.totalorder %s22, 1
      %p166 = por %p164, %p165
      %p167 = scmp.ne.s32.totalorder %s158, %s159
      %p168 = scmp.eq.s32.totalorder %s22, 0
      %p169 = por %p167, %p168
      %p170 = scmp.ne.s32.totalorder %s158, %s159
      %p171 = scmp.eq.s32.totalorder %s23, 1
      %p172 = por %p170, %p171
      %p174 = scmp.ne.s32.totalorder %s159, %s173
      %p175 = scmp.eq.s32.totalorder %s23, 0
      %p176 = por %p174, %p175
      %s178 = sadd.s32 %s177, 1
      %p181 = scmp.eq.s32.totalorder %s17, 1
      %p182 = scmp.ne.s32.totalorder %s177, %s179
      %p183 = scmp.eq.s32.totalorder %s17, 0
      %p184 = por %p182, %p183
      %p185 = scmp.ne.s32.totalorder %s177, %s179
      %p186 = scmp.eq.s32.totalorder %s22, 1
      %p187 = por %p185, %p186
      %p188 = scmp.ne.s32.totalorder %s179, %s180
      %p189 = scmp.eq.s32.totalorder %s22, 0
      %p190 = por %p188, %p189
      %p191 = scmp.ne.s32.totalorder %s179, %s180
      %p192 = scmp.eq.s32.totalorder %s23, 1
      %p193 = por %p191, %p192
      %p195 = scmp.ne.s32.totalorder %s180, %s194
      %p196 = scmp.eq.s32.totalorder %s23, 0
      %p197 = por %p195, %p196
      %s198 = ssub.s32 %s17, %s24
      %p199 = scmp.eq.s32.totalorder %s198, 0
      %s201 = sadd.s32 %s200, 1
      %s202 = scalar_select %p199, %s200, %s201
      %p205 = pneg %p199
      %p206 = scmp.eq.s32.totalorder %s17, 1
      %p207 = por %p205, %p206
      %p208 = scmp.ne.s32.totalorder %s200, %s203
      %p209 = scmp.eq.s32.totalorder %s17, 0
      %p210 = por %p208, %p209
      %p211 = scmp.ne.s32.totalorder %s200, %s203
      %p212 = scmp.eq.s32.totalorder %s22, 1
      %p213 = por %p211, %p212
      %p214 = scmp.ne.s32.totalorder %s203, %s204
      %p215 = scmp.eq.s32.totalorder %s22, 0
      %p216 = por %p214, %p215
      %p217 = scmp.ne.s32.totalorder %s203, %s204
      %p218 = scmp.eq.s32.totalorder %s23, 1
      %p219 = por %p217, %p218
      %p221 = scmp.ne.s32.totalorder %s204, %s220
      %p222 = scmp.eq.s32.totalorder %s23, 0
      %p223 = por %p221, %p222
      %p224 = scmp.le.s32.totalorder 1, %s17
      %p225 = scmp.lt.s32.totalorder %s17, 3
      %p226 = pnand %p224, %p225
      %p227 = pneg %p226
      // Predicated region
      $region9: #{kernel_size_cnn_forward.1} parent=5 // pred_check
        _
      $region10: #{kernel_size_cnn_forward.1} parent=5 // pred_check_branch
        %229 = sbr.rel (%p226) target = $region12
      $region11: #{kernel_size_cnn_forward.1} parent=5 // pred_region
        %s230 = ssub.s32 %s17, 1
        // Predicated region
        $region13: #{kernel_size_cnn_forward.1} parent=11 // pred_check
          %p231 = pneg %p64
        $region14: #{kernel_size_cnn_forward.1} parent=11 // pred_check_branch
          %233 = sbr.rel (%p231) target = $region16
        $region15: #{kernel_size_cnn_forward.1} parent=11 // pred_region
          _
        $region16: #{kernel_size_cnn_forward.1} parent=11 // pred_fallthru
          _
        // Predicated region
        $region17: #{kernel_size_cnn_forward.1} parent=11 // pred_check
          %p234 = pneg %p85
        $region18: #{kernel_size_cnn_forward.1} parent=11 // pred_check_branch
          %236 = sbr.rel (%p234) target = $region20
        $region19: #{kernel_size_cnn_forward.1} parent=11 // pred_region
          _
        $region20: #{kernel_size_cnn_forward.1} parent=11 // pred_fallthru
          _
        // Predicated region
        $region21: #{kernel_size_cnn_forward.1} parent=11 // pred_check
          %p237 = pneg %p106
        $region22: #{kernel_size_cnn_forward.1} parent=11 // pred_check_branch
          %239 = sbr.rel (%p237) target = $region24
        $region23: #{kernel_size_cnn_forward.1} parent=11 // pred_region
          _
        $region24: #{kernel_size_cnn_forward.1} parent=11 // pred_fallthru
          _
        // Predicated region
        $region25: #{kernel_size_cnn_forward.1} parent=11 // pred_check
          %p240 = pneg %p127
        $region26: #{kernel_size_cnn_forward.1} parent=11 // pred_check_branch
          %242 = sbr.rel (%p240) target = $region28
        $region27: #{kernel_size_cnn_forward.1} parent=11 // pred_region
          _
        $region28: #{kernel_size_cnn_forward.1} parent=11 // pred_fallthru
          _
        // Predicated region
        $region29: #{kernel_size_cnn_forward.1} parent=11 // pred_check
          %p243 = pneg %p148
        $region30: #{kernel_size_cnn_forward.1} parent=11 // pred_check_branch
          %245 = sbr.rel (%p243) target = $region32
        $region31: #{kernel_size_cnn_forward.1} parent=11 // pred_region
          _
        $region32: #{kernel_size_cnn_forward.1} parent=11 // pred_fallthru
          _
        // Predicated region
        $region33: #{kernel_size_cnn_forward.1} parent=11 // pred_check
          %p246 = pneg %p169
        $region34: #{kernel_size_cnn_forward.1} parent=11 // pred_check_branch
          %248 = sbr.rel (%p246) target = $region36
        $region35: #{kernel_size_cnn_forward.1} parent=11 // pred_region
          _
        $region36: #{kernel_size_cnn_forward.1} parent=11 // pred_fallthru
          _
        // Predicated region
        $region37: #{kernel_size_cnn_forward.1} parent=11 // pred_check
          %p249 = pneg %p190
        $region38: #{kernel_size_cnn_forward.1} parent=11 // pred_check_branch
          %251 = sbr.rel (%p249) target = $region40
        $region39: #{kernel_size_cnn_forward.1} parent=11 // pred_region
          _
        $region40: #{kernel_size_cnn_forward.1} parent=11 // pred_fallthru
          _
      $region12: #{kernel_size_cnn_forward.1} parent=5 // pred_fallthru
        _
      %p252 = scmp.lt.s32.totalorder %s17, 2
      // Predicated region
      $region41: #{kernel_size_cnn_forward.1} parent=5 // pred_check
        %p253 = pneg %p252
      $region42: #{kernel_size_cnn_forward.1} parent=5 // pred_check_branch
        %255 = sbr.rel (%p253) target = $region44
      $region43: #{kernel_size_cnn_forward.1} parent=5 // pred_region
        // Predicated region
        $region45: #{kernel_size_cnn_forward.1} parent=43 // pred_check
          %p256 = pneg %p37
        $region46: #{kernel_size_cnn_forward.1} parent=43 // pred_check_branch
          %258 = sbr.rel (%p256) target = $region48
        $region47: #{kernel_size_cnn_forward.1} parent=43 // pred_region
          %p259 = scmp.lt.s32.totalorder %s17, 1
          %s260 = scalar_select %p259, %s17, 1
          %s261 = smul.addr %s260, 144
          %s262 = smul.addr %s261, 8
          %s263 = scalar_lea.vmem %s0, %s262
        $region48: #{kernel_size_cnn_forward.1} parent=43 // pred_fallthru
          _
      $region44: #{kernel_size_cnn_forward.1} parent=5 // pred_fallthru
        _
      %p264 = scmp.le.s32.totalorder 1, %s17
      %p265 = scmp.lt.s32.totalorder %s17, 3
      %p266 = pnand %p264, %p265
      %p267 = pneg %p266
      // Predicated region
      $region49: #{kernel_size_cnn_forward.1} parent=5 // pred_check
        _
      $region50: #{kernel_size_cnn_forward.1} parent=5 // pred_check_branch
        %269 = sbr.rel (%p266) target = $region52
      $region51: #{kernel_size_cnn_forward.1} parent=5 // pred_region
        %s270 = ssub.s32 %s17, 1
        %p271 = scmp.lt.s32.totalorder %s22, 1
        %s272 = scalar_select %p271, %s22, 1
        %s273 = smul.addr %s272, 144
        %s274 = smul.addr %s273, 8
        %s275 = scalar_lea.vmem %s0, %s274
        %p276 = pneg %p43
        %p277 = pneg %p40
        %p278 = pneg %p64
        %p279 = pneg %p61
        %p280 = pneg %p85
        %p281 = pneg %p82
        %p282 = pneg %p106
        %p283 = pneg %p103
        %p284 = pneg %p127
        %p285 = pneg %p124
        %p286 = pneg %p148
        %p287 = pneg %p145
        %p288 = pneg %p169
        %p289 = pneg %p166
        %p290 = pneg %p190
        %p291 = pneg %p187
        %p292 = pneg %p216
        %p293 = pneg %p213
        %s294 = sand.u32 %s203, 1
        %s295 = scalar_lea.sflag [#allocation5], %s294
        %s296 = sand.u32 %s203, 1
        %s297 = scalar_lea.vmem [#allocation4], %s296
        %p298 = scmp.lt.s32.totalorder %s22, 1
        %s299 = scalar_select %p298, %s22, 1
        %s300 = smul.addr %s299, 144
        %s301 = smul.addr %s300, 8
        %s302 = scalar_lea.vmem %s0, %s301
        %v303 = vld [vmem:[%s302] sm:$0xff]
        %v304 = vld [vmem:[%s302 + $0x8] sm:$0xff]
        %v305 = vld [vmem:[%s302 + $0x10] sm:$0xff]
        %v306 = vld [vmem:[%s302 + $0x18] sm:$0xff]
        %v307 = vld [vmem:[%s302 + $0x20] sm:$0xff]
        %v308 = vld [vmem:[%s302 + $0x28] sm:$0xff]
        %v309 = vld [vmem:[%s302 + $0x30] sm:$0xff]
        %v310 = vld [vmem:[%s302 + $0x38] sm:$0xff]
        %v311 = vld [vmem:[%s302 + $0x40] sm:$0xff]
        %v312 = vld [vmem:[%s302 + $0x48] sm:$0xff]
        %v313 = vld [vmem:[%s302 + $0x50] sm:$0xff]
        %v314 = vld [vmem:[%s302 + $0x58] sm:$0xff]
        %v315 = vld [vmem:[%s302 + $0x60] sm:$0xff]
        %v316 = vld [vmem:[%s302 + $0x68] sm:$0xff]
        %v317 = vld [vmem:[%s302 + $0x70] sm:$0xff]
        %v318 = vld [vmem:[%s302 + $0x78] sm:$0xff]
        %v319 = vld [vmem:[%s302 + $0x80] sm:$0xff]
        %v320 = vld [vmem:[%s302 + $0x88] sm:$0xff]
        %v321 = vld [vmem:[%s302 + $0x90] sm:$0xff]
        %v322 = vld [vmem:[%s302 + $0x98] sm:$0xff]
        %v323 = vld [vmem:[%s302 + $0xa0] sm:$0xff]
        %v324 = vld [vmem:[%s302 + $0xa8] sm:$0xff]
        %v325 = vld [vmem:[%s302 + $0xb0] sm:$0xff]
        %v326 = vld [vmem:[%s302 + $0xb8] sm:$0xff]
        %v327 = vld [vmem:[%s302 + $0xc0] sm:$0xff]
        %v328 = vld [vmem:[%s302 + $0xc8] sm:$0xff]
        %v329 = vld [vmem:[%s302 + $0xd0] sm:$0xff]
        %v330 = vld [vmem:[%s302 + $0xd8] sm:$0xff]
        %v331 = vld [vmem:[%s302 + $0xe0] sm:$0xff]
        %v332 = vld [vmem:[%s302 + $0xe8] sm:$0xff]
        %v333 = vld [vmem:[%s302 + $0xf0] sm:$0xff]
        %v334 = vld [vmem:[%s302 + $0xf8] sm:$0xff]
        %v335 = vld [vmem:[%s302 + $0x100] sm:$0xff]
        %v336 = vld [vmem:[%s302 + $0x108] sm:$0xff]
        %v337 = vld [vmem:[%s302 + $0x110] sm:$0xff]
        %v338 = vld [vmem:[%s302 + $0x118] sm:$0xff]
        %v339 = vld [vmem:[%s2] sm:$0xff]
        %v340 = vld [vmem:[%s2 + $0x8] sm:$0x1]
        %vm341 = vcmask 72704
        %v343 = vsel %vm341, %v303, 0
        %v346 = vsel %vm341, %v304, 0
        %v349 = vsel %vm341, %v305, 0
        %v352 = vsel %vm341, %v306, 0
        %v355 = vsel %vm341, %v307, 0
        %v358 = vsel %vm341, %v308, 0
        %v361 = vsel %vm341, %v309, 0
        %v364 = vsel %vm341, %v310, 0
        %v367 = vsel %vm341, %v311, 0
        %v370 = vsel %vm341, %v312, 0
        %v373 = vsel %vm341, %v313, 0
        %v376 = vsel %vm341, %v314, 0
        %v379 = vsel %vm341, %v315, 0
        %v382 = vsel %vm341, %v316, 0
        %v385 = vsel %vm341, %v317, 0
        %v388 = vsel %vm341, %v318, 0
        %v391 = vsel %vm341, %v319, 0
        %v394 = vsel %vm341, %v320, 0
        %v397 = vsel %vm341, %v321, 0
        %v400 = vsel %vm341, %v322, 0
        %v403 = vsel %vm341, %v323, 0
        %v406 = vsel %vm341, %v324, 0
        %v409 = vsel %vm341, %v325, 0
        %v412 = vsel %vm341, %v326, 0
        %v415 = vsel %vm341, %v327, 0
        %v418 = vsel %vm341, %v328, 0
        %v421 = vsel %vm341, %v329, 0
        %v424 = vsel %vm341, %v330, 0
        %v427 = vsel %vm341, %v331, 0
        %v430 = vsel %vm341, %v332, 0
        %v433 = vsel %vm341, %v333, 0
        %v436 = vsel %vm341, %v334, 0
        %v439 = vsel %vm341, %v335, 0
        %v442 = vsel %vm341, %v336, 0
        %v445 = vsel %vm341, %v337, 0
        %v448 = vsel %vm341, %v338, 0
        %vm450 = vcmask 1040384
        %v452 = vsel %vm450, %v340, 0
        %454 = vmatprep.subr.mxu0 0.0
        %455 = vmatpush1.msra.mxu0 %v339
        %456 = vmatprep.subr.mxu0 0.0
        %457 = vmatpush1.msra.mxu0 %v452
        %458 = vmatprep.subr.mxu0 0.0
        %459 = vmatpush1.msra.mxu0 0.0
        %460 = vmatprep.subr.mxu0 0.0
        %461 = vmatpush1.msra.mxu0 0.0
        %462 = vmatprep.subr.mxu0 0.0
        %463 = vmatpush1.msra.mxu0 0.0
        %464 = vmatprep.subr.mxu0 0.0
        %465 = vmatpush1.msra.mxu0 0.0
        %466 = vmatprep.subr.mxu0 0.0
        %467 = vmatpush1.msra.mxu0 0.0
        %468 = vmatprep.subr.mxu0 0.0
        %469 = vmatpush1.msra.mxu0 0.0
        %470 = vmatprep.subr.mxu0 0.0
        %471 = vmatpush1.msra.mxu0 0.0
        %472 = vmatprep.subr.mxu0 0.0
        %473 = vmatpush1.msra.mxu0 0.0
        %474 = vmatprep.subr.mxu0 0.0
        %475 = vmatpush1.msra.mxu0 0.0
        %476 = vmatprep.subr.mxu0 0.0
        %477 = vmatpush1.msra.mxu0 0.0
        %478 = vmatprep.subr.mxu0 0.0
        %479 = vmatpush1.msra.mxu0 0.0
        %480 = vmatprep.subr.mxu0 0.0
        %481 = vmatpush1.msra.mxu0 0.0
        %482 = vmatprep.subr.mxu0 0.0
        %483 = vmatpush1.msra.mxu0 0.0
        %484 = vmatprep.subr.mxu0 0.0
        %485 = vmatpush1.msra.mxu0 0.0
        %486 = vmatprep.subr.mxu0 0.0
        %487 = vmatpush1.msra.mxu0 0.0
        %488 = vmatprep.subr.mxu0 0.0
        %489 = vmatpush1.msra.mxu0 0.0
        %490 = vmatprep.subr.mxu0 0.0
        %491 = vmatpush1.msra.mxu0 0.0
        %492 = vmatprep.subr.mxu0 0.0
        %493 = vmatpush1.msra.mxu0 0.0
        %494 = vmatprep.subr.mxu0 0.0
        %495 = vmatpush1.msra.mxu0 0.0
        %496 = vmatprep.subr.mxu0 0.0
        %497 = vmatpush1.msra.mxu0 0.0
        %498 = vmatprep.subr.mxu0 0.0
        %499 = vmatpush1.msra.mxu0 0.0
        %500 = vmatprep.subr.mxu0 0.0
        %501 = vmatpush1.msra.mxu0 0.0
        %502 = vmatprep.subr.mxu0 0.0
        %503 = vmatpush1.msra.mxu0 0.0
        %504 = vmatprep.subr.mxu0 0.0
        %505 = vmatpush1.msra.mxu0 0.0
        %506 = vmatprep.subr.mxu0 0.0
        %507 = vmatpush1.msra.mxu0 0.0
        %508 = vmatprep.subr.mxu0 0.0
        %509 = vmatpush1.msra.mxu0 0.0
        %510 = vmatprep.subr.mxu0 0.0
        %511 = vmatpush1.msra.mxu0 0.0
        %512 = vmatprep.subr.mxu0 0.0
        %513 = vmatpush1.msra.mxu0 0.0
        %514 = vmatprep.subr.mxu0 0.0
        %515 = vmatpush1.msra.mxu0 0.0
        %516 = vmatprep.subr.mxu0 0.0
        %517 = vmatpush1.msra.mxu0 0.0
        %518 = vmatprep.mubr.f32.mxu0 0.0
        %519 = vmatmul.mubr.f32.gmra.mrb[0].mxu0 %v343
        %v520 = vpop.f32.mrb[0].mxu0
        %v521 = vadd.f32 0.0, %v520
        %v522 = vpop.f32.mrb[0].mxu0
        %523 = vmatprep.mubr.f32.mxu0 0.0
        %524 = vmatmul.mubr.f32.gmra.mrb[0].mxu0 %v346
        %v525 = vpop.f32.mrb[0].mxu0
        %v526 = vadd.f32 0.0, %v525
        %v527 = vpop.f32.mrb[0].mxu0
        %528 = vmatprep.mubr.f32.mxu0 0.0
        %529 = vmatmul.mubr.f32.gmra.mrb[0].mxu0 %v349
        %v530 = vpop.f32.mrb[0].mxu0
        %v531 = vadd.f32 0.0, %v530
        %v532 = vpop.f32.mrb[0].mxu0
        %533 = vmatprep.mubr.f32.mxu0 0.0
        %534 = vmatmul.mubr.f32.gmra.mrb[0].mxu0 %v352
        %v535 = vpop.f32.mrb[0].mxu0
        %v536 = vadd.f32 0.0, %v535
        %v537 = vpop.f32.mrb[0].mxu0
        %538 = vmatprep.mubr.f32.mxu0 0.0
        %539 = vmatmul.mubr.f32.gmra.mrb[0].mxu0 %v355
        %v540 = vpop.f32.mrb[0].mxu0
        %v541 = vadd.f32 0.0, %v540
        %v542 = vpop.f32.mrb[0].mxu0
        %543 = vmatprep.mubr.f32.mxu0 0.0
        %544 = vmatmul.mubr.f32.gmra.mrb[0].mxu0 %v358
        %v545 = vpop.f32.mrb[0].mxu0
        %v546 = vadd.f32 0.0, %v545
        %v547 = vpop.f32.mrb[0].mxu0
        %548 = vmatprep.mubr.f32.mxu0 0.0
        %549 = vmatmul.mubr.f32.gmra.mrb[0].mxu0 %v361
        %v550 = vpop.f32.mrb[0].mxu0
        %v551 = vadd.f32 0.0, %v550
        %v552 = vpop.f32.mrb[0].mxu0
        %553 = vmatprep.mubr.f32.mxu0 0.0
        %554 = vmatmul.mubr.f32.gmra.mrb[0].mxu0 %v364
        %v555 = vpop.f32.mrb[0].mxu0
        %v556 = vadd.f32 0.0, %v555
        %v557 = vpop.f32.mrb[0].mxu0
        %558 = vmatprep.mubr.f32.mxu0 0.0
        %559 = vmatmul.mubr.f32.gmra.mrb[0].mxu0 %v367
        %v560 = vpop.f32.mrb[0].mxu0
        %v561 = vadd.f32 0.0, %v560
        %v562 = vpop.f32.mrb[0].mxu0
        %563 = vmatprep.mubr.f32.mxu0 0.0
        %564 = vmatmul.mubr.f32.gmra.mrb[0].mxu0 %v370
        %v565 = vpop.f32.mrb[0].mxu0
        %v566 = vadd.f32 0.0, %v565
        %v567 = vpop.f32.mrb[0].mxu0
        %568 = vmatprep.mubr.f32.mxu0 0.0
        %569 = vmatmul.mubr.f32.gmra.mrb[0].mxu0 %v373
        %v570 = vpop.f32.mrb[0].mxu0
        %v571 = vadd.f32 0.0, %v570
        %v572 = vpop.f32.mrb[0].mxu0
        %573 = vmatprep.mubr.f32.mxu0 0.0
        %574 = vmatmul.mubr.f32.gmra.mrb[0].mxu0 %v376
        %v575 = vpop.f32.mrb[0].mxu0
        %v576 = vadd.f32 0.0, %v575
        %v577 = vpop.f32.mrb[0].mxu0
        %578 = vmatprep.mubr.f32.mxu0 0.0
        %579 = vmatmul.mubr.f32.gmra.mrb[0].mxu0 %v379
        %v580 = vpop.f32.mrb[0].mxu0
        %v581 = vadd.f32 0.0, %v580
        %v582 = vpop.f32.mrb[0].mxu0
        %583 = vmatprep.mubr.f32.mxu0 0.0
        %584 = vmatmul.mubr.f32.gmra.mrb[0].mxu0 %v382
        %v585 = vpop.f32.mrb[0].mxu0
        %v586 = vadd.f32 0.0, %v585
        %v587 = vpop.f32.mrb[0].mxu0
        %588 = vmatprep.mubr.f32.mxu0 0.0
        %589 = vmatmul.mubr.f32.gmra.mrb[0].mxu0 %v385
        %v590 = vpop.f32.mrb[0].mxu0
        %v591 = vadd.f32 0.0, %v590
        %v592 = vpop.f32.mrb[0].mxu0
        %593 = vmatprep.mubr.f32.mxu0 0.0
        %594 = vmatmul.mubr.f32.gmra.mrb[0].mxu0 %v388
        %v595 = vpop.f32.mrb[0].mxu0
        %v596 = vadd.f32 0.0, %v595
        %v597 = vpop.f32.mrb[0].mxu0
        %598 = vmatprep.mubr.f32.mxu0 0.0
        %599 = vmatmul.mubr.f32.gmra.mrb[0].mxu0 %v391
        %v600 = vpop.f32.mrb[0].mxu0
        %v601 = vadd.f32 0.0, %v600
        %v602 = vpop.f32.mrb[0].mxu0
        %603 = vmatprep.mubr.f32.mxu0 0.0
        %604 = vmatmul.mubr.f32.gmra.mrb[0].mxu0 %v394
        %v605 = vpop.f32.mrb[0].mxu0
        %v606 = vadd.f32 0.0, %v605
        %v607 = vpop.f32.mrb[0].mxu0
        %608 = vmatprep.mubr.f32.mxu0 0.0
        %609 = vmatmul.mubr.f32.gmra.mrb[0].mxu0 %v397
        %v610 = vpop.f32.mrb[0].mxu0
        %v611 = vadd.f32 0.0, %v610
        %v612 = vpop.f32.mrb[0].mxu0
        %613 = vmatprep.mubr.f32.mxu0 0.0
        %614 = vmatmul.mubr.f32.gmra.mrb[0].mxu0 %v400
        %v615 = vpop.f32.mrb[0].mxu0
        %v616 = vadd.f32 0.0, %v615
        %v617 = vpop.f32.mrb[0].mxu0
        %618 = vmatprep.mubr.f32.mxu0 0.0
        %619 = vmatmul.mubr.f32.gmra.mrb[0].mxu0 %v403
        %v620 = vpop.f32.mrb[0].mxu0
        %v621 = vadd.f32 0.0, %v620
        %v622 = vpop.f32.mrb[0].mxu0
        %623 = vmatprep.mubr.f32.mxu0 0.0
        %624 = vmatmul.mubr.f32.gmra.mrb[0].mxu0 %v406
        %v625 = vpop.f32.mrb[0].mxu0
        %v626 = vadd.f32 0.0, %v625
        %v627 = vpop.f32.mrb[0].mxu0
        %628 = vmatprep.mubr.f32.mxu0 0.0
        %629 = vmatmul.mubr.f32.gmra.mrb[0].mxu0 %v409
        %v630 = vpop.f32.mrb[0].mxu0
        %v631 = vadd.f32 0.0, %v630
        %v632 = vpop.f32.mrb[0].mxu0
        %633 = vmatprep.mubr.f32.mxu0 0.0
        %634 = vmatmul.mubr.f32.gmra.mrb[0].mxu0 %v412
        %v635 = vpop.f32.mrb[0].mxu0
        %v636 = vadd.f32 0.0, %v635
        %v637 = vpop.f32.mrb[0].mxu0
        %638 = vmatprep.mubr.f32.mxu0 0.0
        %639 = vmatmul.mubr.f32.gmra.mrb[0].mxu0 %v415
        %v640 = vpop.f32.mrb[0].mxu0
        %v641 = vadd.f32 0.0, %v640
        %v642 = vpop.f32.mrb[0].mxu0
        %643 = vmatprep.mubr.f32.mxu0 0.0
        %644 = vmatmul.mubr.f32.gmra.mrb[0].mxu0 %v418
        %v645 = vpop.f32.mrb[0].mxu0
        %v646 = vadd.f32 0.0, %v645
        %v647 = vpop.f32.mrb[0].mxu0
        %648 = vmatprep.mubr.f32.mxu0 0.0
        %649 = vmatmul.mubr.f32.gmra.mrb[0].mxu0 %v421
        %v650 = vpop.f32.mrb[0].mxu0
        %v651 = vadd.f32 0.0, %v650
        %v652 = vpop.f32.mrb[0].mxu0
        %653 = vmatprep.mubr.f32.mxu0 0.0
        %654 = vmatmul.mubr.f32.gmra.mrb[0].mxu0 %v424
        %v655 = vpop.f32.mrb[0].mxu0
        %v656 = vadd.f32 0.0, %v655
        %v657 = vpop.f32.mrb[0].mxu0
        %658 = vmatprep.mubr.f32.mxu0 0.0
        %659 = vmatmul.mubr.f32.gmra.mrb[0].mxu0 %v427
        %v660 = vpop.f32.mrb[0].mxu0
        %v661 = vadd.f32 0.0, %v660
        %v662 = vpop.f32.mrb[0].mxu0
        %663 = vmatprep.mubr.f32.mxu0 0.0
        %664 = vmatmul.mubr.f32.gmra.mrb[0].mxu0 %v430
        %v665 = vpop.f32.mrb[0].mxu0
        %v666 = vadd.f32 0.0, %v665
        %v667 = vpop.f32.mrb[0].mxu0
        %668 = vmatprep.mubr.f32.mxu0 0.0
        %669 = vmatmul.mubr.f32.gmra.mrb[0].mxu0 %v433
        %v670 = vpop.f32.mrb[0].mxu0
        %v671 = vadd.f32 0.0, %v670
        %v672 = vpop.f32.mrb[0].mxu0
        %673 = vmatprep.mubr.f32.mxu0 0.0
        %674 = vmatmul.mubr.f32.gmra.mrb[0].mxu0 %v436
        %v675 = vpop.f32.mrb[0].mxu0
        %v676 = vadd.f32 0.0, %v675
        %v677 = vpop.f32.mrb[0].mxu0
        %678 = vmatprep.mubr.f32.mxu0 0.0
        %679 = vmatmul.mubr.f32.gmra.mrb[0].mxu0 %v439
        %v680 = vpop.f32.mrb[0].mxu0
        %v681 = vadd.f32 0.0, %v680
        %v682 = vpop.f32.mrb[0].mxu0
        %683 = vmatprep.mubr.f32.mxu0 0.0
        %684 = vmatmul.mubr.f32.gmra.mrb[0].mxu0 %v442
        %v685 = vpop.f32.mrb[0].mxu0
        %v686 = vadd.f32 0.0, %v685
        %v687 = vpop.f32.mrb[0].mxu0
        %688 = vmatprep.mubr.f32.mxu0 0.0
        %689 = vmatmul.mubr.f32.gmra.mrb[0].mxu0 %v445
        %v690 = vpop.f32.mrb[0].mxu0
        %v691 = vadd.f32 0.0, %v690
        %v692 = vpop.f32.mrb[0].mxu0
        %693 = vmatprep.mubr.f32.mxu0 0.0
        %694 = vmatmul.mubr.f32.gmra.mrb[0].mxu0 %v448
        %v695 = vpop.f32.mrb[0].mxu0
        %v696 = vadd.f32 0.0, %v695
        %v697 = vpop.f32.mrb[0].mxu0
        %698 = vdwg.mxu0
        %s699 = scalar_lea.vmem %s302, 288
        %v700 = vld [vmem:[%s699] sm:$0xff]
        %v701 = vld [vmem:[%s699 + $0x8] sm:$0xff]
        %v702 = vld [vmem:[%s699 + $0x10] sm:$0xff]
        %v703 = vld [vmem:[%s699 + $0x18] sm:$0xff]
        %v704 = vld [vmem:[%s699 + $0x20] sm:$0xff]
        %v705 = vld [vmem:[%s699 + $0x28] sm:$0xff]
        %v706 = vld [vmem:[%s699 + $0x30] sm:$0xff]
        %v707 = vld [vmem:[%s699 + $0x38] sm:$0xff]
        %v708 = vld [vmem:[%s699 + $0x40] sm:$0xff]
        %v709 = vld [vmem:[%s699 + $0x48] sm:$0xff]
        %v710 = vld [vmem:[%s699 + $0x50] sm:$0xff]
        %v711 = vld [vmem:[%s699 + $0x58] sm:$0xff]
        %v712 = vld [vmem:[%s699 + $0x60] sm:$0xff]
        %v713 = vld [vmem:[%s699 + $0x68] sm:$0xff]
        %v714 = vld [vmem:[%s699 + $0x70] sm:$0xff]
        %v715 = vld [vmem:[%s699 + $0x78] sm:$0xff]
        %v716 = vld [vmem:[%s699 + $0x80] sm:$0xff]
        %v717 = vld [vmem:[%s699 + $0x88] sm:$0xff]
        %v718 = vld [vmem:[%s699 + $0x90] sm:$0xff]
        %v719 = vld [vmem:[%s699 + $0x98] sm:$0xff]
        %v720 = vld [vmem:[%s699 + $0xa0] sm:$0xff]
        %v721 = vld [vmem:[%s699 + $0xa8] sm:$0xff]
        %v722 = vld [vmem:[%s699 + $0xb0] sm:$0xff]
        %v723 = vld [vmem:[%s699 + $0xb8] sm:$0xff]
        %v724 = vld [vmem:[%s699 + $0xc0] sm:$0xff]
        %v725 = vld [vmem:[%s699 + $0xc8] sm:$0xff]
        %v726 = vld [vmem:[%s699 + $0xd0] sm:$0xff]
        %v727 = vld [vmem:[%s699 + $0xd8] sm:$0xff]
        %v728 = vld [vmem:[%s699 + $0xe0] sm:$0xff]
        %v729 = vld [vmem:[%s699 + $0xe8] sm:$0xff]
        %v730 = vld [vmem:[%s699 + $0xf0] sm:$0xff]
        %v731 = vld [vmem:[%s699 + $0xf8] sm:$0xff]
        %v732 = vld [vmem:[%s699 + $0x100] sm:$0xff]
        %v733 = vld [vmem:[%s699 + $0x108] sm:$0xff]
        %v734 = vld [vmem:[%s699 + $0x110] sm:$0xff]
        %v735 = vld [vmem:[%s699 + $0x118] sm:$0xff]
        %v737 = vsel %vm341, %v700, 0
        %v740 = vsel %vm341, %v701, 0
        %v743 = vsel %vm341, %v702, 0
        %v746 = vsel %vm341, %v703, 0
        %v749 = vsel %vm341, %v704, 0
        %v752 = vsel %vm341, %v705, 0
        %v755 = vsel %vm341, %v706, 0
        %v758 = vsel %vm341, %v707, 0
        %v761 = vsel %vm341, %v708, 0
        %v764 = vsel %vm341, %v709, 0
        %v767 = vsel %vm341, %v710, 0
        %v770 = vsel %vm341, %v711, 0
        %v773 = vsel %vm341, %v712, 0
        %v776 = vsel %vm341, %v713, 0
        %v779 = vsel %vm341, %v714, 0
        %v782 = vsel %vm341, %v715, 0
        %v785 = vsel %vm341, %v716, 0
        %v788 = vsel %vm341, %v717, 0
        %v791 = vsel %vm341, %v718, 0
        %v794 = vsel %vm341, %v719, 0
        %v797 = vsel %vm341, %v720, 0
        %v800 = vsel %vm341, %v721, 0
        %v803 = vsel %vm341, %v722, 0
        %v806 = vsel %vm341, %v723, 0
        %v809 = vsel %vm341, %v724, 0
        %v812 = vsel %vm341, %v725, 0
        %v815 = vsel %vm341, %v726, 0
        %v818 = vsel %vm341, %v727, 0
        %v821 = vsel %vm341, %v728, 0
        %v824 = vsel %vm341, %v729, 0
        %v827 = vsel %vm341, %v730, 0
        %v830 = vsel %vm341, %v731, 0
        %v833 = vsel %vm341, %v732, 0
        %v836 = vsel %vm341, %v733, 0
        %v839 = vsel %vm341, %v734, 0
        %v842 = vsel %vm341, %v735, 0
        %844 = vmatprep.subr.mxu0 0.0
        %845 = vmatpush1.msra.mxu0 %v339
        %846 = vmatprep.subr.mxu0 0.0
        %847 = vmatpush1.msra.mxu0 %v452
        %848 = vmatprep.subr.mxu0 0.0
        %849 = vmatpush1.msra.mxu0 0.0
        %850 = vmatprep.subr.mxu0 0.0
        %851 = vmatpush1.msra.mxu0 0.0
        %852 = vmatprep.subr.mxu0 0.0
        %853 = vmatpush1.msra.mxu0 0.0
        %854 = vmatprep.subr.mxu0 0.0
        %855 = vmatpush1.msra.mxu0 0.0
        %856 = vmatprep.subr.mxu0 0.0
        %857 = vmatpush1.msra.mxu0 0.0
        %858 = vmatprep.subr.mxu0 0.0
        %859 = vmatpush1.msra.mxu0 0.0
        %860 = vmatprep.subr.mxu0 0.0
        %861 = vmatpush1.msra.mxu0 0.0
        %862 = vmatprep.subr.mxu0 0.0
        %863 = vmatpush1.msra.mxu0 0.0
        %864 = vmatprep.subr.mxu0 0.0
        %865 = vmatpush1.msra.mxu0 0.0
        %866 = vmatprep.subr.mxu0 0.0
        %867 = vmatpush1.msra.mxu0 0.0
        %868 = vmatprep.subr.mxu0 0.0
        %869 = vmatpush1.msra.mxu0 0.0
        %870 = vmatprep.subr.mxu0 0.0
        %871 = vmatpush1.msra.mxu0 0.0
        %872 = vmatprep.subr.mxu0 0.0
        %873 = vmatpush1.msra.mxu0 0.0
        %874 = vmatprep.subr.mxu0 0.0
        %875 = vmatpush1.msra.mxu0 0.0
        %876 = vmatprep.subr.mxu0 0.0
        %877 = vmatpush1.msra.mxu0 0.0
        %878 = vmatprep.subr.mxu0 0.0
        %879 = vmatpush1.msra.mxu0 0.0
        %880 = vmatprep.subr.mxu0 0.0
        %881 = vmatpush1.msra.mxu0 0.0
        %882 = vmatprep.subr.mxu0 0.0
        %883 = vmatpush1.msra.mxu0 0.0
        %884 = vmatprep.subr.mxu0 0.0
        %885 = vmatpush1.msra.mxu0 0.0
        %886 = vmatprep.subr.mxu0 0.0
        %887 = vmatpush1.msra.mxu0 0.0
        %888 = vmatprep.subr.mxu0 0.0
        %889 = vmatpush1.msra.mxu0 0.0
        %890 = vmatprep.subr.mxu0 0.0
        %891 = vmatpush1.msra.mxu0 0.0
        %892 = vmatprep.subr.mxu0 0.0
        %893 = vmatpush1.msra.mxu0 0.0
        %894 = vmatprep.subr.mxu0 0.0
        %895 = vmatpush1.msra.mxu0 0.0
        %896 = vmatprep.subr.mxu0 0.0
        %897 = vmatpush1.msra.mxu0 0.0
        %898 = vmatprep.subr.mxu0 0.0
        %899 = vmatpush1.msra.mxu0 0.0
        %900 = vmatprep.subr.mxu0 0.0
        %901 = vmatpush1.msra.mxu0 0.0
        %902 = vmatprep.subr.mxu0 0.0
        %903 = vmatpush1.msra.mxu0 0.0
        %904 = vmatprep.subr.mxu0 0.0
        %905 = vmatpush1.msra.mxu0 0.0
        %906 = vmatprep.subr.mxu0 0.0
        %907 = vmatpush1.msra.mxu0 0.0
        %908 = vmatprep.mubr.f32.mxu0 0.0
        %909 = vmatmul.mubr.f32.gmra.mrb[0].mxu0 %v737
        %v910 = vpop.f32.mrb[0].mxu0
        %v911 = vadd.f32 0.0, %v910
        %v912 = vpop.f32.mrb[0].mxu0
        %913 = vmatprep.mubr.f32.mxu0 0.0
        %914 = vmatmul.mubr.f32.gmra.mrb[0].mxu0 %v740
        %v915 = vpop.f32.mrb[0].mxu0
        %v916 = vadd.f32 0.0, %v915
        %v917 = vpop.f32.mrb[0].mxu0
        %918 = vmatprep.mubr.f32.mxu0 0.0
        %919 = vmatmul.mubr.f32.gmra.mrb[0].mxu0 %v743
        %v920 = vpop.f32.mrb[0].mxu0
        %v921 = vadd.f32 0.0, %v920
        %v922 = vpop.f32.mrb[0].mxu0
        %923 = vmatprep.mubr.f32.mxu0 0.0
        %924 = vmatmul.mubr.f32.gmra.mrb[0].mxu0 %v746
        %v925 = vpop.f32.mrb[0].mxu0
        %v926 = vadd.f32 0.0, %v925
        %v927 = vpop.f32.mrb[0].mxu0
        %928 = vmatprep.mubr.f32.mxu0 0.0
        %929 = vmatmul.mubr.f32.gmra.mrb[0].mxu0 %v749
        %v930 = vpop.f32.mrb[0].mxu0
        %v931 = vadd.f32 0.0, %v930
        %v932 = vpop.f32.mrb[0].mxu0
        %933 = vmatprep.mubr.f32.mxu0 0.0
        %934 = vmatmul.mubr.f32.gmra.mrb[0].mxu0 %v752
        %v935 = vpop.f32.mrb[0].mxu0
        %v936 = vadd.f32 0.0, %v935
        %v937 = vpop.f32.mrb[0].mxu0
        %938 = vmatprep.mubr.f32.mxu0 0.0
        %939 = vmatmul.mubr.f32.gmra.mrb[0].mxu0 %v755
        %v940 = vpop.f32.mrb[0].mxu0
        %v941 = vadd.f32 0.0, %v940
        %v942 = vpop.f32.mrb[0].mxu0
        %943 = vmatprep.mubr.f32.mxu0 0.0
        %944 = vmatmul.mubr.f32.gmra.mrb[0].mxu0 %v758
        %v945 = vpop.f32.mrb[0].mxu0
        %v946 = vadd.f32 0.0, %v945
        %v947 = vpop.f32.mrb[0].mxu0
        %948 = vmatprep.mubr.f32.mxu0 0.0
        %949 = vmatmul.mubr.f32.gmra.mrb[0].mxu0 %v761
        %v950 = vpop.f32.mrb[0].mxu0
        %v951 = vadd.f32 0.0, %v950
        %v952 = vpop.f32.mrb[0].mxu0
        %953 = vmatprep.mubr.f32.mxu0 0.0
        %954 = vmatmul.mubr.f32.gmra.mrb[0].mxu0 %v764
        %v955 = vpop.f32.mrb[0].mxu0
        %v956 = vadd.f32 0.0, %v955
        %v957 = vpop.f32.mrb[0].mxu0
        %958 = vmatprep.mubr.f32.mxu0 0.0
        %959 = vmatmul.mubr.f32.gmra.mrb[0].mxu0 %v767
        %v960 = vpop.f32.mrb[0].mxu0
        %v961 = vadd.f32 0.0, %v960
        %v962 = vpop.f32.mrb[0].mxu0
        %963 = vmatprep.mubr.f32.mxu0 0.0
        %964 = vmatmul.mubr.f32.gmra.mrb[0].mxu0 %v770
        %v965 = vpop.f32.mrb[0].mxu0
        %v966 = vadd.f32 0.0, %v965
        %v967 = vpop.f32.mrb[0].mxu0
        %968 = vmatprep.mubr.f32.mxu0 0.0
        %969 = vmatmul.mubr.f32.gmra.mrb[0].mxu0 %v773
        %v970 = vpop.f32.mrb[0].mxu0
        %v971 = vadd.f32 0.0, %v970
        %v972 = vpop.f32.mrb[0].mxu0
        %973 = vmatprep.mubr.f32.mxu0 0.0
        %974 = vmatmul.mubr.f32.gmra.mrb[0].mxu0 %v776
        %v975 = vpop.f32.mrb[0].mxu0
        %v976 = vadd.f32 0.0, %v975
        %v977 = vpop.f32.mrb[0].mxu0
        %978 = vmatprep.mubr.f32.mxu0 0.0
        %979 = vmatmul.mubr.f32.gmra.mrb[0].mxu0 %v779
        %v980 = vpop.f32.mrb[0].mxu0
        %v981 = vadd.f32 0.0, %v980
        %v982 = vpop.f32.mrb[0].mxu0
        %983 = vmatprep.mubr.f32.mxu0 0.0
        %984 = vmatmul.mubr.f32.gmra.mrb[0].mxu0 %v782
        %v985 = vpop.f32.mrb[0].mxu0
        %v986 = vadd.f32 0.0, %v985
        %v987 = vpop.f32.mrb[0].mxu0
        %988 = vmatprep.mubr.f32.mxu0 0.0
        %989 = vmatmul.mubr.f32.gmra.mrb[0].mxu0 %v785
        %v990 = vpop.f32.mrb[0].mxu0
        %v991 = vadd.f32 0.0, %v990
        %v992 = vpop.f32.mrb[0].mxu0
        %993 = vmatprep.mubr.f32.mxu0 0.0
        %994 = vmatmul.mubr.f32.gmra.mrb[0].mxu0 %v788
        %v995 = vpop.f32.mrb[0].mxu0
        %v996 = vadd.f32 0.0, %v995
        %v997 = vpop.f32.mrb[0].mxu0
        %998 = vmatprep.mubr.f32.mxu0 0.0
        %999 = vmatmul.mubr.f32.gmra.mrb[0].mxu0 %v791
        %v1000 = vpop.f32.mrb[0].mxu0
        %v1001 = vadd.f32 0.0, %v1000
        %v1002 = vpop.f32.mrb[0].mxu0
        %1003 = vmatprep.mubr.f32.mxu0 0.0
        %1004 = vmatmul.mubr.f32.gmra.mrb[0].mxu0 %v794
        %v1005 = vpop.f32.mrb[0].mxu0
        %v1006 = vadd.f32 0.0, %v1005
        %v1007 = vpop.f32.mrb[0].mxu0
        %1008 = vmatprep.mubr.f32.mxu0 0.0
        %1009 = vmatmul.mubr.f32.gmra.mrb[0].mxu0 %v797
        %v1010 = vpop.f32.mrb[0].mxu0
        %v1011 = vadd.f32 0.0, %v1010
        %v1012 = vpop.f32.mrb[0].mxu0
        %1013 = vmatprep.mubr.f32.mxu0 0.0
        %1014 = vmatmul.mubr.f32.gmra.mrb[0].mxu0 %v800
        %v1015 = vpop.f32.mrb[0].mxu0
        %v1016 = vadd.f32 0.0, %v1015
        %v1017 = vpop.f32.mrb[0].mxu0
        %1018 = vmatprep.mubr.f32.mxu0 0.0
        %1019 = vmatmul.mubr.f32.gmra.mrb[0].mxu0 %v803
        %v1020 = vpop.f32.mrb[0].mxu0
        %v1021 = vadd.f32 0.0, %v1020
        %v1022 = vpop.f32.mrb[0].mxu0
        %1023 = vmatprep.mubr.f32.mxu0 0.0
        %1024 = vmatmul.mubr.f32.gmra.mrb[0].mxu0 %v806
        %v1025 = vpop.f32.mrb[0].mxu0
        %v1026 = vadd.f32 0.0, %v1025
        %v1027 = vpop.f32.mrb[0].mxu0
        %1028 = vmatprep.mubr.f32.mxu0 0.0
        %1029 = vmatmul.mubr.f32.gmra.mrb[0].mxu0 %v809
        %v1030 = vpop.f32.mrb[0].mxu0
        %v1031 = vadd.f32 0.0, %v1030
        %v1032 = vpop.f32.mrb[0].mxu0
        %1033 = vmatprep.mubr.f32.mxu0 0.0
        %1034 = vmatmul.mubr.f32.gmra.mrb[0].mxu0 %v812
        %v1035 = vpop.f32.mrb[0].mxu0
        %v1036 = vadd.f32 0.0, %v1035
        %v1037 = vpop.f32.mrb[0].mxu0
        %1038 = vmatprep.mubr.f32.mxu0 0.0
        %1039 = vmatmul.mubr.f32.gmra.mrb[0].mxu0 %v815
        %v1040 = vpop.f32.mrb[0].mxu0
        %v1041 = vadd.f32 0.0, %v1040
        %v1042 = vpop.f32.mrb[0].mxu0
        %1043 = vmatprep.mubr.f32.mxu0 0.0
        %1044 = vmatmul.mubr.f32.gmra.mrb[0].mxu0 %v818
        %v1045 = vpop.f32.mrb[0].mxu0
        %v1046 = vadd.f32 0.0, %v1045
        %v1047 = vpop.f32.mrb[0].mxu0
        %1048 = vmatprep.mubr.f32.mxu0 0.0
        %1049 = vmatmul.mubr.f32.gmra.mrb[0].mxu0 %v821
        %v1050 = vpop.f32.mrb[0].mxu0
        %v1051 = vadd.f32 0.0, %v1050
        %v1052 = vpop.f32.mrb[0].mxu0
        %1053 = vmatprep.mubr.f32.mxu0 0.0
        %1054 = vmatmul.mubr.f32.gmra.mrb[0].mxu0 %v824
        %v1055 = vpop.f32.mrb[0].mxu0
        %v1056 = vadd.f32 0.0, %v1055
        %v1057 = vpop.f32.mrb[0].mxu0
        %1058 = vmatprep.mubr.f32.mxu0 0.0
        %1059 = vmatmul.mubr.f32.gmra.mrb[0].mxu0 %v827
        %v1060 = vpop.f32.mrb[0].mxu0
        %v1061 = vadd.f32 0.0, %v1060
        %v1062 = vpop.f32.mrb[0].mxu0
        %1063 = vmatprep.mubr.f32.mxu0 0.0
        %1064 = vmatmul.mubr.f32.gmra.mrb[0].mxu0 %v830
        %v1065 = vpop.f32.mrb[0].mxu0
        %v1066 = vadd.f32 0.0, %v1065
        %v1067 = vpop.f32.mrb[0].mxu0
        %1068 = vmatprep.mubr.f32.mxu0 0.0
        %1069 = vmatmul.mubr.f32.gmra.mrb[0].mxu0 %v833
        %v1070 = vpop.f32.mrb[0].mxu0
        %v1071 = vadd.f32 0.0, %v1070
        %v1072 = vpop.f32.mrb[0].mxu0
        %1073 = vmatprep.mubr.f32.mxu0 0.0
        %1074 = vmatmul.mubr.f32.gmra.mrb[0].mxu0 %v836
        %v1075 = vpop.f32.mrb[0].mxu0
        %v1076 = vadd.f32 0.0, %v1075
        %v1077 = vpop.f32.mrb[0].mxu0
        %1078 = vmatprep.mubr.f32.mxu0 0.0
        %1079 = vmatmul.mubr.f32.gmra.mrb[0].mxu0 %v839
        %v1080 = vpop.f32.mrb[0].mxu0
        %v1081 = vadd.f32 0.0, %v1080
        %v1082 = vpop.f32.mrb[0].mxu0
        %1083 = vmatprep.mubr.f32.mxu0 0.0
        %1084 = vmatmul.mubr.f32.gmra.mrb[0].mxu0 %v842
        %v1085 = vpop.f32.mrb[0].mxu0
        %v1086 = vadd.f32 0.0, %v1085
        %v1087 = vpop.f32.mrb[0].mxu0
        %1088 = vdwg.mxu0
        %v1089 = vmax.f32 %v521, %v911
        %v1090 = vmax.f32 %v526, %v916
        %v1091 = vmax.f32 %v531, %v921
        %v1092 = vmax.f32 %v536, %v926
        %v1093 = vmax.f32 %v541, %v931
        %v1094 = vmax.f32 %v546, %v936
        %v1095 = vmax.f32 %v551, %v941
        %v1096 = vmax.f32 %v556, %v946
        %v1097 = vmax.f32 %v561, %v951
        %v1098 = vmax.f32 %v566, %v956
        %v1099 = vmax.f32 %v571, %v961
        %v1100 = vmax.f32 %v576, %v966
        %v1101 = vmax.f32 %v581, %v971
        %v1102 = vmax.f32 %v586, %v976
        %v1103 = vmax.f32 %v591, %v981
        %v1104 = vmax.f32 %v596, %v986
        %v1105 = vmax.f32 %v601, %v991
        %v1106 = vmax.f32 %v606, %v996
        %v1107 = vmax.f32 %v611, %v1001
        %v1108 = vmax.f32 %v616, %v1006
        %v1109 = vmax.f32 %v621, %v1011
        %v1110 = vmax.f32 %v626, %v1016
        %v1111 = vmax.f32 %v631, %v1021
        %v1112 = vmax.f32 %v636, %v1026
        %v1113 = vmax.f32 %v641, %v1031
        %v1114 = vmax.f32 %v646, %v1036
        %v1115 = vmax.f32 %v651, %v1041
        %v1116 = vmax.f32 %v656, %v1046
        %v1117 = vmax.f32 %v661, %v1051
        %v1118 = vmax.f32 %v666, %v1056
        %v1119 = vmax.f32 %v671, %v1061
        %v1120 = vmax.f32 %v676, %v1066
        %v1121 = vmax.f32 %v681, %v1071
        %v1122 = vmax.f32 %v686, %v1076
        %v1123 = vmax.f32 %v691, %v1081
        %v1124 = vmax.f32 %v696, %v1086
        %s1125 = scalar_lea.vmem %s302, 576
        %v1126 = vld [vmem:[%s1125] sm:$0xff]
        %v1127 = vld [vmem:[%s1125 + $0x8] sm:$0xff]
        %v1128 = vld [vmem:[%s1125 + $0x10] sm:$0xff]
        %v1129 = vld [vmem:[%s1125 + $0x18] sm:$0xff]
        %v1130 = vld [vmem:[%s1125 + $0x20] sm:$0xff]
        %v1131 = vld [vmem:[%s1125 + $0x28] sm:$0xff]
        %v1132 = vld [vmem:[%s1125 + $0x30] sm:$0xff]
        %v1133 = vld [vmem:[%s1125 + $0x38] sm:$0xff]
        %v1134 = vld [vmem:[%s1125 + $0x40] sm:$0xff]
        %v1135 = vld [vmem:[%s1125 + $0x48] sm:$0xff]
        %v1136 = vld [vmem:[%s1125 + $0x50] sm:$0xff]
        %v1137 = vld [vmem:[%s1125 + $0x58] sm:$0xff]
        %v1138 = vld [vmem:[%s1125 + $0x60] sm:$0xff]
        %v1139 = vld [vmem:[%s1125 + $0x68] sm:$0xff]
        %v1140 = vld [vmem:[%s1125 + $0x70] sm:$0xff]
        %v1141 = vld [vmem:[%s1125 + $0x78] sm:$0xff]
        %v1142 = vld [vmem:[%s1125 + $0x80] sm:$0xff]
        %v1143 = vld [vmem:[%s1125 + $0x88] sm:$0xff]
        %v1144 = vld [vmem:[%s1125 + $0x90] sm:$0xff]
        %v1145 = vld [vmem:[%s1125 + $0x98] sm:$0xff]
        %v1146 = vld [vmem:[%s1125 + $0xa0] sm:$0xff]
        %v1147 = vld [vmem:[%s1125 + $0xa8] sm:$0xff]
        %v1148 = vld [vmem:[%s1125 + $0xb0] sm:$0xff]
        %v1149 = vld [vmem:[%s1125 + $0xb8] sm:$0xff]
        %v1150 = vld [vmem:[%s1125 + $0xc0] sm:$0xff]
        %v1151 = vld [vmem:[%s1125 + $0xc8] sm:$0xff]
        %v1152 = vld [vmem:[%s1125 + $0xd0] sm:$0xff]
        %v1153 = vld [vmem:[%s1125 + $0xd8] sm:$0xff]
        %v1154 = vld [vmem:[%s1125 + $0xe0] sm:$0xff]
        %v1155 = vld [vmem:[%s1125 + $0xe8] sm:$0xff]
        %v1156 = vld [vmem:[%s1125 + $0xf0] sm:$0xff]
        %v1157 = vld [vmem:[%s1125 + $0xf8] sm:$0xff]
        %v1158 = vld [vmem:[%s1125 + $0x100] sm:$0xff]
        %v1159 = vld [vmem:[%s1125 + $0x108] sm:$0xff]
        %v1160 = vld [vmem:[%s1125 + $0x110] sm:$0xff]
        %v1161 = vld [vmem:[%s1125 + $0x118] sm:$0xff]
        %v1163 = vsel %vm341, %v1126, 0
        %v1166 = vsel %vm341, %v1127, 0
        %v1169 = vsel %vm341, %v1128, 0
        %v1172 = vsel %vm341, %v1129, 0
        %v1175 = vsel %vm341, %v1130, 0
        %v1178 = vsel %vm341, %v1131, 0
        %v1181 = vsel %vm341, %v1132, 0
        %v1184 = vsel %vm341, %v1133, 0
        %v1187 = vsel %vm341, %v1134, 0
        %v1190 = vsel %vm341, %v1135, 0
        %v1193 = vsel %vm341, %v1136, 0
        %v1196 = vsel %vm341, %v1137, 0
        %v1199 = vsel %vm341, %v1138, 0
        %v1202 = vsel %vm341, %v1139, 0
        %v1205 = vsel %vm341, %v1140, 0
        %v1208 = vsel %vm341, %v1141, 0
        %v1211 = vsel %vm341, %v1142, 0
        %v1214 = vsel %vm341, %v1143, 0
        %v1217 = vsel %vm341, %v1144, 0
        %v1220 = vsel %vm341, %v1145, 0
        %v1223 = vsel %vm341, %v1146, 0
        %v1226 = vsel %vm341, %v1147, 0
        %v1229 = vsel %vm341, %v1148, 0
        %v1232 = vsel %vm341, %v1149, 0
        %v1235 = vsel %vm341, %v1150, 0
        %v1238 = vsel %vm341, %v1151, 0
        %v1241 = vsel %vm341, %v1152, 0
        %v1244 = vsel %vm341, %v1153, 0
        %v1247 = vsel %vm341, %v1154, 0
        %v1250 = vsel %vm341, %v1155, 0
        %v1253 = vsel %vm341, %v1156, 0
        %v1256 = vsel %vm341, %v1157, 0
        %v1259 = vsel %vm341, %v1158, 0
        %v1262 = vsel %vm341, %v1159, 0
        %v1265 = vsel %vm341, %v1160, 0
        %v1268 = vsel %vm341, %v1161, 0
        %1270 = vmatprep.subr.mxu0 0.0
        %1271 = vmatpush1.msra.mxu0 %v339
        %1272 = vmatprep.subr.mxu0 0.0
        %1273 = vmatpush1.msra.mxu0 %v452
        %1274 = vmatprep.subr.mxu0 0.0
        %1275 = vmatpush1.msra.mxu0 0.0
        %1276 = vmatprep.subr.mxu0 0.0
        %1277 = vmatpush1.msra.mxu0 0.0
        %1278 = vmatprep.subr.mxu0 0.0
        %1279 = vmatpush1.msra.mxu0 0.0
        %1280 = vmatprep.subr.mxu0 0.0
        %1281 = vmatpush1.msra.mxu0 0.0
        %1282 = vmatprep.subr.mxu0 0.0
        %1283 = vmatpush1.msra.mxu0 0.0
        %1284 = vmatprep.subr.mxu0 0.0
        %1285 = vmatpush1.msra.mxu0 0.0
        %1286 = vmatprep.subr.mxu0 0.0
        %1287 = vmatpush1.msra.mxu0 0.0
        %1288 = vmatprep.subr.mxu0 0.0
        %1289 = vmatpush1.msra.mxu0 0.0
        %1290 = vmatprep.subr.mxu0 0.0
        %1291 = vmatpush1.msra.mxu0 0.0
        %1292 = vmatprep.subr.mxu0 0.0
        %1293 = vmatpush1.msra.mxu0 0.0
        %1294 = vmatprep.subr.mxu0 0.0
        %1295 = vmatpush1.msra.mxu0 0.0
        %1296 = vmatprep.subr.mxu0 0.0
        %1297 = vmatpush1.msra.mxu0 0.0
        %1298 = vmatprep.subr.mxu0 0.0
        %1299 = vmatpush1.msra.mxu0 0.0
        %1300 = vmatprep.subr.mxu0 0.0
        %1301 = vmatpush1.msra.mxu0 0.0
        %1302 = vmatprep.subr.mxu0 0.0
        %1303 = vmatpush1.msra.mxu0 0.0
        %1304 = vmatprep.subr.mxu0 0.0
        %1305 = vmatpush1.msra.mxu0 0.0
        %1306 = vmatprep.subr.mxu0 0.0
        %1307 = vmatpush1.msra.mxu0 0.0
        %1308 = vmatprep.subr.mxu0 0.0
        %1309 = vmatpush1.msra.mxu0 0.0
        %1310 = vmatprep.subr.mxu0 0.0
        %1311 = vmatpush1.msra.mxu0 0.0
        %1312 = vmatprep.subr.mxu0 0.0
        %1313 = vmatpush1.msra.mxu0 0.0
        %1314 = vmatprep.subr.mxu0 0.0
        %1315 = vmatpush1.msra.mxu0 0.0
        %1316 = vmatprep.subr.mxu0 0.0
        %1317 = vmatpush1.msra.mxu0 0.0
        %1318 = vmatprep.subr.mxu0 0.0
        %1319 = vmatpush1.msra.mxu0 0.0
        %1320 = vmatprep.subr.mxu0 0.0
        %1321 = vmatpush1.msra.mxu0 0.0
        %1322 = vmatprep.subr.mxu0 0.0
        %1323 = vmatpush1.msra.mxu0 0.0
        %1324 = vmatprep.subr.mxu0 0.0
        %1325 = vmatpush1.msra.mxu0 0.0
        %1326 = vmatprep.subr.mxu0 0.0
        %1327 = vmatpush1.msra.mxu0 0.0
        %1328 = vmatprep.subr.mxu0 0.0
        %1329 = vmatpush1.msra.mxu0 0.0
        %1330 = vmatprep.subr.mxu0 0.0
        %1331 = vmatpush1.msra.mxu0 0.0
        %1332 = vmatprep.subr.mxu0 0.0
        %1333 = vmatpush1.msra.mxu0 0.0
        %1334 = vmatprep.mubr.f32.mxu0 0.0
        %1335 = vmatmul.mubr.f32.gmra.mrb[0].mxu0 %v1163
        %v1336 = vpop.f32.mrb[0].mxu0
        %v1337 = vadd.f32 0.0, %v1336
        %v1338 = vpop.f32.mrb[0].mxu0
        %1339 = vmatprep.mubr.f32.mxu0 0.0
        %1340 = vmatmul.mubr.f32.gmra.mrb[0].mxu0 %v1166
        %v1341 = vpop.f32.mrb[0].mxu0
        %v1342 = vadd.f32 0.0, %v1341
        %v1343 = vpop.f32.mrb[0].mxu0
        %1344 = vmatprep.mubr.f32.mxu0 0.0
        %1345 = vmatmul.mubr.f32.gmra.mrb[0].mxu0 %v1169
        %v1346 = vpop.f32.mrb[0].mxu0
        %v1347 = vadd.f32 0.0, %v1346
        %v1348 = vpop.f32.mrb[0].mxu0
        %1349 = vmatprep.mubr.f32.mxu0 0.0
        %1350 = vmatmul.mubr.f32.gmra.mrb[0].mxu0 %v1172
        %v1351 = vpop.f32.mrb[0].mxu0
        %v1352 = vadd.f32 0.0, %v1351
        %v1353 = vpop.f32.mrb[0].mxu0
        %1354 = vmatprep.mubr.f32.mxu0 0.0
        %1355 = vmatmul.mubr.f32.gmra.mrb[0].mxu0 %v1175
        %v1356 = vpop.f32.mrb[0].mxu0
        %v1357 = vadd.f32 0.0, %v1356
        %v1358 = vpop.f32.mrb[0].mxu0
        %1359 = vmatprep.mubr.f32.mxu0 0.0
        %1360 = vmatmul.mubr.f32.gmra.mrb[0].mxu0 %v1178
        %v1361 = vpop.f32.mrb[0].mxu0
        %v1362 = vadd.f32 0.0, %v1361
        %v1363 = vpop.f32.mrb[0].mxu0
        %1364 = vmatprep.mubr.f32.mxu0 0.0
        %1365 = vmatmul.mubr.f32.gmra.mrb[0].mxu0 %v1181
        %v1366 = vpop.f32.mrb[0].mxu0
        %v1367 = vadd.f32 0.0, %v1366
        %v1368 = vpop.f32.mrb[0].mxu0
        %1369 = vmatprep.mubr.f32.mxu0 0.0
        %1370 = vmatmul.mubr.f32.gmra.mrb[0].mxu0 %v1184
        %v1371 = vpop.f32.mrb[0].mxu0
        %v1372 = vadd.f32 0.0, %v1371
        %v1373 = vpop.f32.mrb[0].mxu0
        %1374 = vmatprep.mubr.f32.mxu0 0.0
        %1375 = vmatmul.mubr.f32.gmra.mrb[0].mxu0 %v1187
        %v1376 = vpop.f32.mrb[0].mxu0
        %v1377 = vadd.f32 0.0, %v1376
        %v1378 = vpop.f32.mrb[0].mxu0
        %1379 = vmatprep.mubr.f32.mxu0 0.0
        %1380 = vmatmul.mubr.f32.gmra.mrb[0].mxu0 %v1190
        %v1381 = vpop.f32.mrb[0].mxu0
        %v1382 = vadd.f32 0.0, %v1381
        %v1383 = vpop.f32.mrb[0].mxu0
        %1384 = vmatprep.mubr.f32.mxu0 0.0
        %1385 = vmatmul.mubr.f32.gmra.mrb[0].mxu0 %v1193
        %v1386 = vpop.f32.mrb[0].mxu0
        %v1387 = vadd.f32 0.0, %v1386
        %v1388 = vpop.f32.mrb[0].mxu0
        %1389 = vmatprep.mubr.f32.mxu0 0.0
        %1390 = vmatmul.mubr.f32.gmra.mrb[0].mxu0 %v1196
        %v1391 = vpop.f32.mrb[0].mxu0
        %v1392 = vadd.f32 0.0, %v1391
        %v1393 = vpop.f32.mrb[0].mxu0
        %1394 = vmatprep.mubr.f32.mxu0 0.0
        %1395 = vmatmul.mubr.f32.gmra.mrb[0].mxu0 %v1199
        %v1396 = vpop.f32.mrb[0].mxu0
        %v1397 = vadd.f32 0.0, %v1396
        %v1398 = vpop.f32.mrb[0].mxu0
        %1399 = vmatprep.mubr.f32.mxu0 0.0
        %1400 = vmatmul.mubr.f32.gmra.mrb[0].mxu0 %v1202
        %v1401 = vpop.f32.mrb[0].mxu0
        %v1402 = vadd.f32 0.0, %v1401
        %v1403 = vpop.f32.mrb[0].mxu0
        %1404 = vmatprep.mubr.f32.mxu0 0.0
        %1405 = vmatmul.mubr.f32.gmra.mrb[0].mxu0 %v1205
        %v1406 = vpop.f32.mrb[0].mxu0
        %v1407 = vadd.f32 0.0, %v1406
        %v1408 = vpop.f32.mrb[0].mxu0
        %1409 = vmatprep.mubr.f32.mxu0 0.0
        %1410 = vmatmul.mubr.f32.gmra.mrb[0].mxu0 %v1208
        %v1411 = vpop.f32.mrb[0].mxu0
        %v1412 = vadd.f32 0.0, %v1411
        %v1413 = vpop.f32.mrb[0].mxu0
        %1414 = vmatprep.mubr.f32.mxu0 0.0
        %1415 = vmatmul.mubr.f32.gmra.mrb[0].mxu0 %v1211
        %v1416 = vpop.f32.mrb[0].mxu0
        %v1417 = vadd.f32 0.0, %v1416
        %v1418 = vpop.f32.mrb[0].mxu0
        %1419 = vmatprep.mubr.f32.mxu0 0.0
        %1420 = vmatmul.mubr.f32.gmra.mrb[0].mxu0 %v1214
        %v1421 = vpop.f32.mrb[0].mxu0
        %v1422 = vadd.f32 0.0, %v1421
        %v1423 = vpop.f32.mrb[0].mxu0
        %1424 = vmatprep.mubr.f32.mxu0 0.0
        %1425 = vmatmul.mubr.f32.gmra.mrb[0].mxu0 %v1217
        %v1426 = vpop.f32.mrb[0].mxu0
        %v1427 = vadd.f32 0.0, %v1426
        %v1428 = vpop.f32.mrb[0].mxu0
        %1429 = vmatprep.mubr.f32.mxu0 0.0
        %1430 = vmatmul.mubr.f32.gmra.mrb[0].mxu0 %v1220
        %v1431 = vpop.f32.mrb[0].mxu0
        %v1432 = vadd.f32 0.0, %v1431
        %v1433 = vpop.f32.mrb[0].mxu0
        %1434 = vmatprep.mubr.f32.mxu0 0.0
        %1435 = vmatmul.mubr.f32.gmra.mrb[0].mxu0 %v1223
        %v1436 = vpop.f32.mrb[0].mxu0
        %v1437 = vadd.f32 0.0, %v1436
        %v1438 = vpop.f32.mrb[0].mxu0
        %1439 = vmatprep.mubr.f32.mxu0 0.0
        %1440 = vmatmul.mubr.f32.gmra.mrb[0].mxu0 %v1226
        %v1441 = vpop.f32.mrb[0].mxu0
        %v1442 = vadd.f32 0.0, %v1441
        %v1443 = vpop.f32.mrb[0].mxu0
        %1444 = vmatprep.mubr.f32.mxu0 0.0
        %1445 = vmatmul.mubr.f32.gmra.mrb[0].mxu0 %v1229
        %v1446 = vpop.f32.mrb[0].mxu0
        %v1447 = vadd.f32 0.0, %v1446
        %v1448 = vpop.f32.mrb[0].mxu0
        %1449 = vmatprep.mubr.f32.mxu0 0.0
        %1450 = vmatmul.mubr.f32.gmra.mrb[0].mxu0 %v1232
        %v1451 = vpop.f32.mrb[0].mxu0
        %v1452 = vadd.f32 0.0, %v1451
        %v1453 = vpop.f32.mrb[0].mxu0
        %1454 = vmatprep.mubr.f32.mxu0 0.0
        %1455 = vmatmul.mubr.f32.gmra.mrb[0].mxu0 %v1235
        %v1456 = vpop.f32.mrb[0].mxu0
        %v1457 = vadd.f32 0.0, %v1456
        %v1458 = vpop.f32.mrb[0].mxu0
        %1459 = vmatprep.mubr.f32.mxu0 0.0
        %1460 = vmatmul.mubr.f32.gmra.mrb[0].mxu0 %v1238
        %v1461 = vpop.f32.mrb[0].mxu0
        %v1462 = vadd.f32 0.0, %v1461
        %v1463 = vpop.f32.mrb[0].mxu0
        %1464 = vmatprep.mubr.f32.mxu0 0.0
        %1465 = vmatmul.mubr.f32.gmra.mrb[0].mxu0 %v1241
        %v1466 = vpop.f32.mrb[0].mxu0
        %v1467 = vadd.f32 0.0, %v1466
        %v1468 = vpop.f32.mrb[0].mxu0
        %1469 = vmatprep.mubr.f32.mxu0 0.0
        %1470 = vmatmul.mubr.f32.gmra.mrb[0].mxu0 %v1244
        %v1471 = vpop.f32.mrb[0].mxu0
        %v1472 = vadd.f32 0.0, %v1471
        %v1473 = vpop.f32.mrb[0].mxu0
        %1474 = vmatprep.mubr.f32.mxu0 0.0
        %1475 = vmatmul.mubr.f32.gmra.mrb[0].mxu0 %v1247
        %v1476 = vpop.f32.mrb[0].mxu0
        %v1477 = vadd.f32 0.0, %v1476
        %v1478 = vpop.f32.mrb[0].mxu0
        %1479 = vmatprep.mubr.f32.mxu0 0.0
        %1480 = vmatmul.mubr.f32.gmra.mrb[0].mxu0 %v1250
        %v1481 = vpop.f32.mrb[0].mxu0
        %v1482 = vadd.f32 0.0, %v1481
        %v1483 = vpop.f32.mrb[0].mxu0
        %1484 = vmatprep.mubr.f32.mxu0 0.0
        %1485 = vmatmul.mubr.f32.gmra.mrb[0].mxu0 %v1253
        %v1486 = vpop.f32.mrb[0].mxu0
        %v1487 = vadd.f32 0.0, %v1486
        %v1488 = vpop.f32.mrb[0].mxu0
        %1489 = vmatprep.mubr.f32.mxu0 0.0
        %1490 = vmatmul.mubr.f32.gmra.mrb[0].mxu0 %v1256
        %v1491 = vpop.f32.mrb[0].mxu0
        %v1492 = vadd.f32 0.0, %v1491
        %v1493 = vpop.f32.mrb[0].mxu0
        %1494 = vmatprep.mubr.f32.mxu0 0.0
        %1495 = vmatmul.mubr.f32.gmra.mrb[0].mxu0 %v1259
        %v1496 = vpop.f32.mrb[0].mxu0
        %v1497 = vadd.f32 0.0, %v1496
        %v1498 = vpop.f32.mrb[0].mxu0
        %1499 = vmatprep.mubr.f32.mxu0 0.0
        %1500 = vmatmul.mubr.f32.gmra.mrb[0].mxu0 %v1262
        %v1501 = vpop.f32.mrb[0].mxu0
        %v1502 = vadd.f32 0.0, %v1501
        %v1503 = vpop.f32.mrb[0].mxu0
        %1504 = vmatprep.mubr.f32.mxu0 0.0
        %1505 = vmatmul.mubr.f32.gmra.mrb[0].mxu0 %v1265
        %v1506 = vpop.f32.mrb[0].mxu0
        %v1507 = vadd.f32 0.0, %v1506
        %v1508 = vpop.f32.mrb[0].mxu0
        %1509 = vmatprep.mubr.f32.mxu0 0.0
        %1510 = vmatmul.mubr.f32.gmra.mrb[0].mxu0 %v1268
        %v1511 = vpop.f32.mrb[0].mxu0
        %v1512 = vadd.f32 0.0, %v1511
        %v1513 = vpop.f32.mrb[0].mxu0
        %1514 = vdwg.mxu0
        %v1515 = vmax.f32 %v1089, %v1337
        %v1516 = vmax.f32 %v1090, %v1342
        %v1517 = vmax.f32 %v1091, %v1347
        %v1518 = vmax.f32 %v1092, %v1352
        %v1519 = vmax.f32 %v1093, %v1357
        %v1520 = vmax.f32 %v1094, %v1362
        %v1521 = vmax.f32 %v1095, %v1367
        %v1522 = vmax.f32 %v1096, %v1372
        %v1523 = vmax.f32 %v1097, %v1377
        %v1524 = vmax.f32 %v1098, %v1382
        %v1525 = vmax.f32 %v1099, %v1387
        %v1526 = vmax.f32 %v1100, %v1392
        %v1527 = vmax.f32 %v1101, %v1397
        %v1528 = vmax.f32 %v1102, %v1402
        %v1529 = vmax.f32 %v1103, %v1407
        %v1530 = vmax.f32 %v1104, %v1412
        %v1531 = vmax.f32 %v1105, %v1417
        %v1532 = vmax.f32 %v1106, %v1422
        %v1533 = vmax.f32 %v1107, %v1427
        %v1534 = vmax.f32 %v1108, %v1432
        %v1535 = vmax.f32 %v1109, %v1437
        %v1536 = vmax.f32 %v1110, %v1442
        %v1537 = vmax.f32 %v1111, %v1447
        %v1538 = vmax.f32 %v1112, %v1452
        %v1539 = vmax.f32 %v1113, %v1457
        %v1540 = vmax.f32 %v1114, %v1462
        %v1541 = vmax.f32 %v1115, %v1467
        %v1542 = vmax.f32 %v1116, %v1472
        %v1543 = vmax.f32 %v1117, %v1477
        %v1544 = vmax.f32 %v1118, %v1482
        %v1545 = vmax.f32 %v1119, %v1487
        %v1546 = vmax.f32 %v1120, %v1492
        %v1547 = vmax.f32 %v1121, %v1497
        %v1548 = vmax.f32 %v1122, %v1502
        %v1549 = vmax.f32 %v1123, %v1507
        %v1550 = vmax.f32 %v1124, %v1512
        %s1551 = scalar_lea.vmem %s302, 864
        %v1552 = vld [vmem:[%s1551] sm:$0xff]
        %v1553 = vld [vmem:[%s1551 + $0x8] sm:$0xff]
        %v1554 = vld [vmem:[%s1551 + $0x10] sm:$0xff]
        %v1555 = vld [vmem:[%s1551 + $0x18] sm:$0xff]
        %v1556 = vld [vmem:[%s1551 + $0x20] sm:$0xff]
        %v1557 = vld [vmem:[%s1551 + $0x28] sm:$0xff]
        %v1558 = vld [vmem:[%s1551 + $0x30] sm:$0xff]
        %v1559 = vld [vmem:[%s1551 + $0x38] sm:$0xff]
        %v1560 = vld [vmem:[%s1551 + $0x40] sm:$0xff]
        %v1561 = vld [vmem:[%s1551 + $0x48] sm:$0xff]
        %v1562 = vld [vmem:[%s1551 + $0x50] sm:$0xff]
        %v1563 = vld [vmem:[%s1551 + $0x58] sm:$0xff]
        %v1564 = vld [vmem:[%s1551 + $0x60] sm:$0xff]
        %v1565 = vld [vmem:[%s1551 + $0x68] sm:$0xff]
        %v1566 = vld [vmem:[%s1551 + $0x70] sm:$0xff]
        %v1567 = vld [vmem:[%s1551 + $0x78] sm:$0xff]
        %v1568 = vld [vmem:[%s1551 + $0x80] sm:$0xff]
        %v1569 = vld [vmem:[%s1551 + $0x88] sm:$0xff]
        %v1570 = vld [vmem:[%s1551 + $0x90] sm:$0xff]
        %v1571 = vld [vmem:[%s1551 + $0x98] sm:$0xff]
        %v1572 = vld [vmem:[%s1551 + $0xa0] sm:$0xff]
        %v1573 = vld [vmem:[%s1551 + $0xa8] sm:$0xff]
        %v1574 = vld [vmem:[%s1551 + $0xb0] sm:$0xff]
        %v1575 = vld [vmem:[%s1551 + $0xb8] sm:$0xff]
        %v1576 = vld [vmem:[%s1551 + $0xc0] sm:$0xff]
        %v1577 = vld [vmem:[%s1551 + $0xc8] sm:$0xff]
        %v1578 = vld [vmem:[%s1551 + $0xd0] sm:$0xff]
        %v1579 = vld [vmem:[%s1551 + $0xd8] sm:$0xff]
        %v1580 = vld [vmem:[%s1551 + $0xe0] sm:$0xff]
        %v1581 = vld [vmem:[%s1551 + $0xe8] sm:$0xff]
        %v1582 = vld [vmem:[%s1551 + $0xf0] sm:$0xff]
        %v1583 = vld [vmem:[%s1551 + $0xf8] sm:$0xff]
        %v1584 = vld [vmem:[%s1551 + $0x100] sm:$0xff]
        %v1585 = vld [vmem:[%s1551 + $0x108] sm:$0xff]
        %v1586 = vld [vmem:[%s1551 + $0x110] sm:$0xff]
        %v1587 = vld [vmem:[%s1551 + $0x118] sm:$0xff]
        %v1589 = vsel %vm341, %v1552, 0
        %v1592 = vsel %vm341, %v1553, 0
        %v1595 = vsel %vm341, %v1554, 0
        %v1598 = vsel %vm341, %v1555, 0
        %v1601 = vsel %vm341, %v1556, 0
        %v1604 = vsel %vm341, %v1557, 0
        %v1607 = vsel %vm341, %v1558, 0
        %v1610 = vsel %vm341, %v1559, 0
        %v1613 = vsel %vm341, %v1560, 0
        %v1616 = vsel %vm341, %v1561, 0
        %v1619 = vsel %vm341, %v1562, 0
        %v1622 = vsel %vm341, %v1563, 0
        %v1625 = vsel %vm341, %v1564, 0
        %v1628 = vsel %vm341, %v1565, 0
        %v1631 = vsel %vm341, %v1566, 0
        %v1634 = vsel %vm341, %v1567, 0
        %v1637 = vsel %vm341, %v1568, 0
        %v1640 = vsel %vm341, %v1569, 0
        %v1643 = vsel %vm341, %v1570, 0
        %v1646 = vsel %vm341, %v1571, 0
        %v1649 = vsel %vm341, %v1572, 0
        %v1652 = vsel %vm341, %v1573, 0
        %v1655 = vsel %vm341, %v1574, 0
        %v1658 = vsel %vm341, %v1575, 0
        %v1661 = vsel %vm341, %v1576, 0
        %v1664 = vsel %vm341, %v1577, 0
        %v1667 = vsel %vm341, %v1578, 0
        %v1670 = vsel %vm341, %v1579, 0
        %v1673 = vsel %vm341, %v1580, 0
        %v1676 = vsel %vm341, %v1581, 0
        %v1679 = vsel %vm341, %v1582, 0
        %v1682 = vsel %vm341, %v1583, 0
        %v1685 = vsel %vm341, %v1584, 0
        %v1688 = vsel %vm341, %v1585, 0
        %v1691 = vsel %vm341, %v1586, 0
        %v1694 = vsel %vm341, %v1587, 0
        %1696 = vmatprep.subr.mxu0 0.0
        %1697 = vmatpush1.msra.mxu0 %v339
        %1698 = vmatprep.subr.mxu0 0.0
        %1699 = vmatpush1.msra.mxu0 %v452
        %1700 = vmatprep.subr.mxu0 0.0
        %1701 = vmatpush1.msra.mxu0 0.0
        %1702 = vmatprep.subr.mxu0 0.0
        %1703 = vmatpush1.msra.mxu0 0.0
        %1704 = vmatprep.subr.mxu0 0.0
        %1705 = vmatpush1.msra.mxu0 0.0
        %1706 = vmatprep.subr.mxu0 0.0
        %1707 = vmatpush1.msra.mxu0 0.0
        %1708 = vmatprep.subr.mxu0 0.0
        %1709 = vmatpush1.msra.mxu0 0.0
        %1710 = vmatprep.subr.mxu0 0.0
        %1711 = vmatpush1.msra.mxu0 0.0
        %1712 = vmatprep.subr.mxu0 0.0
        %1713 = vmatpush1.msra.mxu0 0.0
        %1714 = vmatprep.subr.mxu0 0.0
        %1715 = vmatpush1.msra.mxu0 0.0
        %1716 = vmatprep.subr.mxu0 0.0
        %1717 = vmatpush1.msra.mxu0 0.0
        %1718 = vmatprep.subr.mxu0 0.0
        %1719 = vmatpush1.msra.mxu0 0.0
        %1720 = vmatprep.subr.mxu0 0.0
        %1721 = vmatpush1.msra.mxu0 0.0
        %1722 = vmatprep.subr.mxu0 0.0
        %1723 = vmatpush1.msra.mxu0 0.0
        %1724 = vmatprep.subr.mxu0 0.0
        %1725 = vmatpush1.msra.mxu0 0.0
        %1726 = vmatprep.subr.mxu0 0.0
        %1727 = vmatpush1.msra.mxu0 0.0
        %1728 = vmatprep.subr.mxu0 0.0
        %1729 = vmatpush1.msra.mxu0 0.0
        %1730 = vmatprep.subr.mxu0 0.0
        %1731 = vmatpush1.msra.mxu0 0.0
        %1732 = vmatprep.subr.mxu0 0.0
        %1733 = vmatpush1.msra.mxu0 0.0
        %1734 = vmatprep.subr.mxu0 0.0
        %1735 = vmatpush1.msra.mxu0 0.0
        %1736 = vmatprep.subr.mxu0 0.0
        %1737 = vmatpush1.msra.mxu0 0.0
        %1738 = vmatprep.subr.mxu0 0.0
        %1739 = vmatpush1.msra.mxu0 0.0
        %1740 = vmatprep.subr.mxu0 0.0
        %1741 = vmatpush1.msra.mxu0 0.0
        %1742 = vmatprep.subr.mxu0 0.0
        %1743 = vmatpush1.msra.mxu0 0.0
        %1744 = vmatprep.subr.mxu0 0.0
        %1745 = vmatpush1.msra.mxu0 0.0
        %1746 = vmatprep.subr.mxu0 0.0
        %1747 = vmatpush1.msra.mxu0 0.0
        %1748 = vmatprep.subr.mxu0 0.0
        %1749 = vmatpush1.msra.mxu0 0.0
        %1750 = vmatprep.subr.mxu0 0.0
        %1751 = vmatpush1.msra.mxu0 0.0
        %1752 = vmatprep.subr.mxu0 0.0
        %1753 = vmatpush1.msra.mxu0 0.0
        %1754 = vmatprep.subr.mxu0 0.0
        %1755 = vmatpush1.msra.mxu0 0.0
        %1756 = vmatprep.subr.mxu0 0.0
        %1757 = vmatpush1.msra.mxu0 0.0
        %1758 = vmatprep.subr.mxu0 0.0
        %1759 = vmatpush1.msra.mxu0 0.0
        %1760 = vmatprep.mubr.f32.mxu0 0.0
        %1761 = vmatmul.mubr.f32.gmra.mrb[0].mxu0 %v1589
        %v1762 = vpop.f32.mrb[0].mxu0
        %v1763 = vadd.f32 0.0, %v1762
        %v1764 = vpop.f32.mrb[0].mxu0
        %1765 = vmatprep.mubr.f32.mxu0 0.0
        %1766 = vmatmul.mubr.f32.gmra.mrb[0].mxu0 %v1592
        %v1767 = vpop.f32.mrb[0].mxu0
        %v1768 = vadd.f32 0.0, %v1767
        %v1769 = vpop.f32.mrb[0].mxu0
        %1770 = vmatprep.mubr.f32.mxu0 0.0
        %1771 = vmatmul.mubr.f32.gmra.mrb[0].mxu0 %v1595
        %v1772 = vpop.f32.mrb[0].mxu0
        %v1773 = vadd.f32 0.0, %v1772
        %v1774 = vpop.f32.mrb[0].mxu0
        %1775 = vmatprep.mubr.f32.mxu0 0.0
        %1776 = vmatmul.mubr.f32.gmra.mrb[0].mxu0 %v1598
        %v1777 = vpop.f32.mrb[0].mxu0
        %v1778 = vadd.f32 0.0, %v1777
        %v1779 = vpop.f32.mrb[0].mxu0
        %1780 = vmatprep.mubr.f32.mxu0 0.0
        %1781 = vmatmul.mubr.f32.gmra.mrb[0].mxu0 %v1601
        %v1782 = vpop.f32.mrb[0].mxu0
        %v1783 = vadd.f32 0.0, %v1782
        %v1784 = vpop.f32.mrb[0].mxu0
        %1785 = vmatprep.mubr.f32.mxu0 0.0
        %1786 = vmatmul.mubr.f32.gmra.mrb[0].mxu0 %v1604
        %v1787 = vpop.f32.mrb[0].mxu0
        %v1788 = vadd.f32 0.0, %v1787
        %v1789 = vpop.f32.mrb[0].mxu0
        %1790 = vmatprep.mubr.f32.mxu0 0.0
        %1791 = vmatmul.mubr.f32.gmra.mrb[0].mxu0 %v1607
        %v1792 = vpop.f32.mrb[0].mxu0
        %v1793 = vadd.f32 0.0, %v1792
        %v1794 = vpop.f32.mrb[0].mxu0
        %1795 = vmatprep.mubr.f32.mxu0 0.0
        %1796 = vmatmul.mubr.f32.gmra.mrb[0].mxu0 %v1610
        %v1797 = vpop.f32.mrb[0].mxu0
        %v1798 = vadd.f32 0.0, %v1797
        %v1799 = vpop.f32.mrb[0].mxu0
        %1800 = vmatprep.mubr.f32.mxu0 0.0
        %1801 = vmatmul.mubr.f32.gmra.mrb[0].mxu0 %v1613
        %v1802 = vpop.f32.mrb[0].mxu0
        %v1803 = vadd.f32 0.0, %v1802
        %v1804 = vpop.f32.mrb[0].mxu0
        %1805 = vmatprep.mubr.f32.mxu0 0.0
        %1806 = vmatmul.mubr.f32.gmra.mrb[0].mxu0 %v1616
        %v1807 = vpop.f32.mrb[0].mxu0
        %v1808 = vadd.f32 0.0, %v1807
        %v1809 = vpop.f32.mrb[0].mxu0
        %1810 = vmatprep.mubr.f32.mxu0 0.0
        %1811 = vmatmul.mubr.f32.gmra.mrb[0].mxu0 %v1619
        %v1812 = vpop.f32.mrb[0].mxu0
        %v1813 = vadd.f32 0.0, %v1812
        %v1814 = vpop.f32.mrb[0].mxu0
        %1815 = vmatprep.mubr.f32.mxu0 0.0
        %1816 = vmatmul.mubr.f32.gmra.mrb[0].mxu0 %v1622
        %v1817 = vpop.f32.mrb[0].mxu0
        %v1818 = vadd.f32 0.0, %v1817
        %v1819 = vpop.f32.mrb[0].mxu0
        %1820 = vmatprep.mubr.f32.mxu0 0.0
        %1821 = vmatmul.mubr.f32.gmra.mrb[0].mxu0 %v1625
        %v1822 = vpop.f32.mrb[0].mxu0
        %v1823 = vadd.f32 0.0, %v1822
        %v1824 = vpop.f32.mrb[0].mxu0
        %1825 = vmatprep.mubr.f32.mxu0 0.0
        %1826 = vmatmul.mubr.f32.gmra.mrb[0].mxu0 %v1628
        %v1827 = vpop.f32.mrb[0].mxu0
        %v1828 = vadd.f32 0.0, %v1827
        %v1829 = vpop.f32.mrb[0].mxu0
        %1830 = vmatprep.mubr.f32.mxu0 0.0
        %1831 = vmatmul.mubr.f32.gmra.mrb[0].mxu0 %v1631
        %v1832 = vpop.f32.mrb[0].mxu0
        %v1833 = vadd.f32 0.0, %v1832
        %v1834 = vpop.f32.mrb[0].mxu0
        %1835 = vmatprep.mubr.f32.mxu0 0.0
        %1836 = vmatmul.mubr.f32.gmra.mrb[0].mxu0 %v1634
        %v1837 = vpop.f32.mrb[0].mxu0
        %v1838 = vadd.f32 0.0, %v1837
        %v1839 = vpop.f32.mrb[0].mxu0
        %1840 = vmatprep.mubr.f32.mxu0 0.0
        %1841 = vmatmul.mubr.f32.gmra.mrb[0].mxu0 %v1637
        %v1842 = vpop.f32.mrb[0].mxu0
        %v1843 = vadd.f32 0.0, %v1842
        %v1844 = vpop.f32.mrb[0].mxu0
        %1845 = vmatprep.mubr.f32.mxu0 0.0
        %1846 = vmatmul.mubr.f32.gmra.mrb[0].mxu0 %v1640
        %v1847 = vpop.f32.mrb[0].mxu0
        %v1848 = vadd.f32 0.0, %v1847
        %v1849 = vpop.f32.mrb[0].mxu0
        %1850 = vmatprep.mubr.f32.mxu0 0.0
        %1851 = vmatmul.mubr.f32.gmra.mrb[0].mxu0 %v1643
        %v1852 = vpop.f32.mrb[0].mxu0
        %v1853 = vadd.f32 0.0, %v1852
        %v1854 = vpop.f32.mrb[0].mxu0
        %1855 = vmatprep.mubr.f32.mxu0 0.0
        %1856 = vmatmul.mubr.f32.gmra.mrb[0].mxu0 %v1646
        %v1857 = vpop.f32.mrb[0].mxu0
        %v1858 = vadd.f32 0.0, %v1857
        %v1859 = vpop.f32.mrb[0].mxu0
        %1860 = vmatprep.mubr.f32.mxu0 0.0
        %1861 = vmatmul.mubr.f32.gmra.mrb[0].mxu0 %v1649
        %v1862 = vpop.f32.mrb[0].mxu0
        %v1863 = vadd.f32 0.0, %v1862
        %v1864 = vpop.f32.mrb[0].mxu0
        %1865 = vmatprep.mubr.f32.mxu0 0.0
        %1866 = vmatmul.mubr.f32.gmra.mrb[0].mxu0 %v1652
        %v1867 = vpop.f32.mrb[0].mxu0
        %v1868 = vadd.f32 0.0, %v1867
        %v1869 = vpop.f32.mrb[0].mxu0
        %1870 = vmatprep.mubr.f32.mxu0 0.0
        %1871 = vmatmul.mubr.f32.gmra.mrb[0].mxu0 %v1655
        %v1872 = vpop.f32.mrb[0].mxu0
        %v1873 = vadd.f32 0.0, %v1872
        %v1874 = vpop.f32.mrb[0].mxu0
        %1875 = vmatprep.mubr.f32.mxu0 0.0
        %1876 = vmatmul.mubr.f32.gmra.mrb[0].mxu0 %v1658
        %v1877 = vpop.f32.mrb[0].mxu0
        %v1878 = vadd.f32 0.0, %v1877
        %v1879 = vpop.f32.mrb[0].mxu0
        %1880 = vmatprep.mubr.f32.mxu0 0.0
        %1881 = vmatmul.mubr.f32.gmra.mrb[0].mxu0 %v1661
        %v1882 = vpop.f32.mrb[0].mxu0
        %v1883 = vadd.f32 0.0, %v1882
        %v1884 = vpop.f32.mrb[0].mxu0
        %1885 = vmatprep.mubr.f32.mxu0 0.0
        %1886 = vmatmul.mubr.f32.gmra.mrb[0].mxu0 %v1664
        %v1887 = vpop.f32.mrb[0].mxu0
        %v1888 = vadd.f32 0.0, %v1887
        %v1889 = vpop.f32.mrb[0].mxu0
        %1890 = vmatprep.mubr.f32.mxu0 0.0
        %1891 = vmatmul.mubr.f32.gmra.mrb[0].mxu0 %v1667
        %v1892 = vpop.f32.mrb[0].mxu0
        %v1893 = vadd.f32 0.0, %v1892
        %v1894 = vpop.f32.mrb[0].mxu0
        %1895 = vmatprep.mubr.f32.mxu0 0.0
        %1896 = vmatmul.mubr.f32.gmra.mrb[0].mxu0 %v1670
        %v1897 = vpop.f32.mrb[0].mxu0
        %v1898 = vadd.f32 0.0, %v1897
        %v1899 = vpop.f32.mrb[0].mxu0
        %1900 = vmatprep.mubr.f32.mxu0 0.0
        %1901 = vmatmul.mubr.f32.gmra.mrb[0].mxu0 %v1673
        %v1902 = vpop.f32.mrb[0].mxu0
        %v1903 = vadd.f32 0.0, %v1902
        %v1904 = vpop.f32.mrb[0].mxu0
        %1905 = vmatprep.mubr.f32.mxu0 0.0
        %1906 = vmatmul.mubr.f32.gmra.mrb[0].mxu0 %v1676
        %v1907 = vpop.f32.mrb[0].mxu0
        %v1908 = vadd.f32 0.0, %v1907
        %v1909 = vpop.f32.mrb[0].mxu0
        %1910 = vmatprep.mubr.f32.mxu0 0.0
        %1911 = vmatmul.mubr.f32.gmra.mrb[0].mxu0 %v1679
        %v1912 = vpop.f32.mrb[0].mxu0
        %v1913 = vadd.f32 0.0, %v1912
        %v1914 = vpop.f32.mrb[0].mxu0
        %1915 = vmatprep.mubr.f32.mxu0 0.0
        %1916 = vmatmul.mubr.f32.gmra.mrb[0].mxu0 %v1682
        %v1917 = vpop.f32.mrb[0].mxu0
        %v1918 = vadd.f32 0.0, %v1917
        %v1919 = vpop.f32.mrb[0].mxu0
        %1920 = vmatprep.mubr.f32.mxu0 0.0
        %1921 = vmatmul.mubr.f32.gmra.mrb[0].mxu0 %v1685
        %v1922 = vpop.f32.mrb[0].mxu0
        %v1923 = vadd.f32 0.0, %v1922
        %v1924 = vpop.f32.mrb[0].mxu0
        %1925 = vmatprep.mubr.f32.mxu0 0.0
        %1926 = vmatmul.mubr.f32.gmra.mrb[0].mxu0 %v1688
        %v1927 = vpop.f32.mrb[0].mxu0
        %v1928 = vadd.f32 0.0, %v1927
        %v1929 = vpop.f32.mrb[0].mxu0
        %1930 = vmatprep.mubr.f32.mxu0 0.0
        %1931 = vmatmul.mubr.f32.gmra.mrb[0].mxu0 %v1691
        %v1932 = vpop.f32.mrb[0].mxu0
        %v1933 = vadd.f32 0.0, %v1932
        %v1934 = vpop.f32.mrb[0].mxu0
        %1935 = vmatprep.mubr.f32.mxu0 0.0
        %1936 = vmatmul.mubr.f32.gmra.mrb[0].mxu0 %v1694
        %v1937 = vpop.f32.mrb[0].mxu0
        %v1938 = vadd.f32 0.0, %v1937
        %v1939 = vpop.f32.mrb[0].mxu0
        %1940 = vdwg.mxu0
        %v1941 = vmax.f32 %v1515, %v1763
        %v1942 = vmax.f32 %v1516, %v1768
        %v1943 = vmax.f32 %v1517, %v1773
        %v1944 = vmax.f32 %v1518, %v1778
        %v1945 = vmax.f32 %v1519, %v1783
        %v1946 = vmax.f32 %v1520, %v1788
        %v1947 = vmax.f32 %v1521, %v1793
        %v1948 = vmax.f32 %v1522, %v1798
        %v1949 = vmax.f32 %v1523, %v1803
        %v1950 = vmax.f32 %v1524, %v1808
        %v1951 = vmax.f32 %v1525, %v1813
        %v1952 = vmax.f32 %v1526, %v1818
        %v1953 = vmax.f32 %v1527, %v1823
        %v1954 = vmax.f32 %v1528, %v1828
        %v1955 = vmax.f32 %v1529, %v1833
        %v1956 = vmax.f32 %v1530, %v1838
        %v1957 = vmax.f32 %v1531, %v1843
        %v1958 = vmax.f32 %v1532, %v1848
        %v1959 = vmax.f32 %v1533, %v1853
        %v1960 = vmax.f32 %v1534, %v1858
        %v1961 = vmax.f32 %v1535, %v1863
        %v1962 = vmax.f32 %v1536, %v1868
        %v1963 = vmax.f32 %v1537, %v1873
        %v1964 = vmax.f32 %v1538, %v1878
        %v1965 = vmax.f32 %v1539, %v1883
        %v1966 = vmax.f32 %v1540, %v1888
        %v1967 = vmax.f32 %v1541, %v1893
        %v1968 = vmax.f32 %v1542, %v1898
        %v1969 = vmax.f32 %v1543, %v1903
        %v1970 = vmax.f32 %v1544, %v1908
        %v1971 = vmax.f32 %v1545, %v1913
        %v1972 = vmax.f32 %v1546, %v1918
        %v1973 = vmax.f32 %v1547, %v1923
        %v1974 = vmax.f32 %v1548, %v1928
        %v1975 = vmax.f32 %v1549, %v1933
        %v1976 = vmax.f32 %v1550, %v1938
        %v1977 = vld [vmem:[%s3] sm:$0x1]
        %v1979 = vlaneseq
        %v1980 = vshrl.u32 %v1979, 7
        %v1981 = vsub.s32 0, %v1980
        %v1982 = vrot.slane %v1977, %v1981
        %v1984 = vadd.f32 %v1941, %v1982
        %v1985 = vadd.f32 %v1942, %v1982
        %v1986 = vadd.f32 %v1943, %v1982
        %v1987 = vadd.f32 %v1944, %v1982
        %v1988 = vadd.f32 %v1945, %v1982
        %v1989 = vadd.f32 %v1946, %v1982
        %v1990 = vadd.f32 %v1947, %v1982
        %v1991 = vadd.f32 %v1948, %v1982
        %v1992 = vadd.f32 %v1949, %v1982
        %v1993 = vadd.f32 %v1950, %v1982
        %v1994 = vadd.f32 %v1951, %v1982
        %v1995 = vadd.f32 %v1952, %v1982
        %v1996 = vadd.f32 %v1953, %v1982
        %v1997 = vadd.f32 %v1954, %v1982
        %v1998 = vadd.f32 %v1955, %v1982
        %v1999 = vadd.f32 %v1956, %v1982
        %v2000 = vadd.f32 %v1957, %v1982
        %v2001 = vadd.f32 %v1958, %v1982
        %v2002 = vadd.f32 %v1959, %v1982
        %v2003 = vadd.f32 %v1960, %v1982
        %v2004 = vadd.f32 %v1961, %v1982
        %v2005 = vadd.f32 %v1962, %v1982
        %v2006 = vadd.f32 %v1963, %v1982
        %v2007 = vadd.f32 %v1964, %v1982
        %v2008 = vadd.f32 %v1965, %v1982
        %v2009 = vadd.f32 %v1966, %v1982
        %v2010 = vadd.f32 %v1967, %v1982
        %v2011 = vadd.f32 %v1968, %v1982
        %v2012 = vadd.f32 %v1969, %v1982
        %v2013 = vadd.f32 %v1970, %v1982
        %v2014 = vadd.f32 %v1971, %v1982
        %v2015 = vadd.f32 %v1972, %v1982
        %v2016 = vadd.f32 %v1973, %v1982
        %v2017 = vadd.f32 %v1974, %v1982
        %v2018 = vadd.f32 %v1975, %v1982
        %v2019 = vadd.f32 %v1976, %v1982
        %v2020 = vmax.f32 %v1984, 0.0
        %v2021 = vmax.f32 %v1985, 0.0
        %v2022 = vmax.f32 %v1986, 0.0
        %v2023 = vmax.f32 %v1987, 0.0
        %v2024 = vmax.f32 %v1988, 0.0
        %v2025 = vmax.f32 %v1989, 0.0
        %v2026 = vmax.f32 %v1990, 0.0
        %v2027 = vmax.f32 %v1991, 0.0
        %v2028 = vmax.f32 %v1992, 0.0
        %v2029 = vmax.f32 %v1993, 0.0
        %v2030 = vmax.f32 %v1994, 0.0
        %v2031 = vmax.f32 %v1995, 0.0
        %v2032 = vmax.f32 %v1996, 0.0
        %v2033 = vmax.f32 %v1997, 0.0
        %v2034 = vmax.f32 %v1998, 0.0
        %v2035 = vmax.f32 %v1999, 0.0
        %v2036 = vmax.f32 %v2000, 0.0
        %v2037 = vmax.f32 %v2001, 0.0
        %v2038 = vmax.f32 %v2002, 0.0
        %v2039 = vmax.f32 %v2003, 0.0
        %v2040 = vmax.f32 %v2004, 0.0
        %v2041 = vmax.f32 %v2005, 0.0
        %v2042 = vmax.f32 %v2006, 0.0
        %v2043 = vmax.f32 %v2007, 0.0
        %v2044 = vmax.f32 %v2008, 0.0
        %v2045 = vmax.f32 %v2009, 0.0
        %v2046 = vmax.f32 %v2010, 0.0
        %v2047 = vmax.f32 %v2011, 0.0
        %v2048 = vmax.f32 %v2012, 0.0
        %v2049 = vmax.f32 %v2013, 0.0
        %v2050 = vmax.f32 %v2014, 0.0
        %v2051 = vmax.f32 %v2015, 0.0
        %v2052 = vmax.f32 %v2016, 0.0
        %v2053 = vmax.f32 %v2017, 0.0
        %v2054 = vmax.f32 %v2018, 0.0
        %v2055 = vmax.f32 %v2019, 0.0
        %v2056 = vld [vmem:[%s1] sm:$0xff]
        %v2057 = vld [vmem:[%s1 + $0x8] sm:$0xff]
        %v2058 = vld [vmem:[%s1 + $0x10] sm:$0xff]
        %v2059 = vld [vmem:[%s1 + $0x18] sm:$0xff]
        %v2060 = vld [vmem:[%s1 + $0x20] sm:$0xff]
        %v2061 = vld [vmem:[%s1 + $0x28] sm:$0xff]
        %v2062 = vld [vmem:[%s1 + $0x30] sm:$0xff]
        %v2063 = vld [vmem:[%s1 + $0x38] sm:$0xff]
        %v2064 = vld [vmem:[%s1 + $0x40] sm:$0xff]
        %v2065 = vld [vmem:[%s1 + $0x48] sm:$0xff]
        %v2066 = vld [vmem:[%s1 + $0x50] sm:$0xff]
        %v2067 = vld [vmem:[%s1 + $0x58] sm:$0xff]
        %v2068 = vld [vmem:[%s1 + $0x60] sm:$0xff]
        %v2069 = vld [vmem:[%s1 + $0x68] sm:$0xff]
        %v2070 = vld [vmem:[%s1 + $0x70] sm:$0xff]
        %v2071 = vld [vmem:[%s1 + $0x78] sm:$0xff]
        %v2072 = vld [vmem:[%s1 + $0x80] sm:$0xff]
        %v2073 = vld [vmem:[%s1 + $0x88] sm:$0xff]
        %v2074 = vld [vmem:[%s1 + $0x90] sm:$0xff]
        %v2075 = vld [vmem:[%s1 + $0x98] sm:$0xff]
        %v2076 = vld [vmem:[%s1 + $0xa0] sm:$0xff]
        %v2077 = vld [vmem:[%s1 + $0xa8] sm:$0xff]
        %v2078 = vld [vmem:[%s1 + $0xb0] sm:$0xff]
        %v2079 = vld [vmem:[%s1 + $0xb8] sm:$0xff]
        %v2080 = vld [vmem:[%s1 + $0xc0] sm:$0xff]
        %v2081 = vld [vmem:[%s1 + $0xc8] sm:$0xff]
        %v2082 = vld [vmem:[%s1 + $0xd0] sm:$0xff]
        %v2083 = vld [vmem:[%s1 + $0xd8] sm:$0xff]
        %v2084 = vld [vmem:[%s1 + $0xe0] sm:$0xff]
        %v2085 = vld [vmem:[%s1 + $0xe8] sm:$0xff]
        %v2086 = vld [vmem:[%s1 + $0xf0] sm:$0xff]
        %v2087 = vld [vmem:[%s1 + $0xf8] sm:$0xff]
        %v2088 = vld [vmem:[%s1 + $0x100] sm:$0xff]
        %v2089 = vld [vmem:[%s1 + $0x108] sm:$0xff]
        %v2090 = vld [vmem:[%s1 + $0x110] sm:$0xff]
        %v2091 = vld [vmem:[%s1 + $0x118] sm:$0xff]
        %2093 = vset.pattern.permute.xlu0 0
        %2094 = vperm.xlu0 %2093, %v2056
        %v2095 = vpop.permute.xlu0 %2094
        %2098 = vset.pattern.permute.xlu0 0
        %2099 = vperm.xlu0 %2098, %v2057
        %v2100 = vpop.permute.xlu0 %2099
        %2103 = vset.pattern.permute.xlu0 0
        %2104 = vperm.xlu0 %2103, %v2058
        %v2105 = vpop.permute.xlu0 %2104
        %2108 = vset.pattern.permute.xlu0 0
        %2109 = vperm.xlu0 %2108, %v2059
        %v2110 = vpop.permute.xlu0 %2109
        %2113 = vset.pattern.permute.xlu0 0
        %2114 = vperm.xlu0 %2113, %v2060
        %v2115 = vpop.permute.xlu0 %2114
        %2118 = vset.pattern.permute.xlu0 0
        %2119 = vperm.xlu0 %2118, %v2061
        %v2120 = vpop.permute.xlu0 %2119
        %2123 = vset.pattern.permute.xlu0 0
        %2124 = vperm.xlu0 %2123, %v2062
        %v2125 = vpop.permute.xlu0 %2124
        %2128 = vset.pattern.permute.xlu0 0
        %2129 = vperm.xlu0 %2128, %v2063
        %v2130 = vpop.permute.xlu0 %2129
        %2133 = vset.pattern.permute.xlu0 0
        %2134 = vperm.xlu0 %2133, %v2064
        %v2135 = vpop.permute.xlu0 %2134
        %2138 = vset.pattern.permute.xlu0 0
        %2139 = vperm.xlu0 %2138, %v2065
        %v2140 = vpop.permute.xlu0 %2139
        %2143 = vset.pattern.permute.xlu0 0
        %2144 = vperm.xlu0 %2143, %v2066
        %v2145 = vpop.permute.xlu0 %2144
        %2148 = vset.pattern.permute.xlu0 0
        %2149 = vperm.xlu0 %2148, %v2067
        %v2150 = vpop.permute.xlu0 %2149
        %2153 = vset.pattern.permute.xlu0 0
        %2154 = vperm.xlu0 %2153, %v2068
        %v2155 = vpop.permute.xlu0 %2154
        %2158 = vset.pattern.permute.xlu0 0
        %2159 = vperm.xlu0 %2158, %v2069
        %v2160 = vpop.permute.xlu0 %2159
        %2163 = vset.pattern.permute.xlu0 0
        %2164 = vperm.xlu0 %2163, %v2070
        %v2165 = vpop.permute.xlu0 %2164
        %2168 = vset.pattern.permute.xlu0 0
        %2169 = vperm.xlu0 %2168, %v2071
        %v2170 = vpop.permute.xlu0 %2169
        %2173 = vset.pattern.permute.xlu0 0
        %2174 = vperm.xlu0 %2173, %v2072
        %v2175 = vpop.permute.xlu0 %2174
        %2178 = vset.pattern.permute.xlu0 0
        %2179 = vperm.xlu0 %2178, %v2073
        %v2180 = vpop.permute.xlu0 %2179
        %2183 = vset.pattern.permute.xlu0 0
        %2184 = vperm.xlu0 %2183, %v2074
        %v2185 = vpop.permute.xlu0 %2184
        %2188 = vset.pattern.permute.xlu0 0
        %2189 = vperm.xlu0 %2188, %v2075
        %v2190 = vpop.permute.xlu0 %2189
        %2193 = vset.pattern.permute.xlu0 0
        %2194 = vperm.xlu0 %2193, %v2076
        %v2195 = vpop.permute.xlu0 %2194
        %2198 = vset.pattern.permute.xlu0 0
        %2199 = vperm.xlu0 %2198, %v2077
        %v2200 = vpop.permute.xlu0 %2199
        %2203 = vset.pattern.permute.xlu0 0
        %2204 = vperm.xlu0 %2203, %v2078
        %v2205 = vpop.permute.xlu0 %2204
        %2208 = vset.pattern.permute.xlu0 0
        %2209 = vperm.xlu0 %2208, %v2079
        %v2210 = vpop.permute.xlu0 %2209
        %2213 = vset.pattern.permute.xlu0 0
        %2214 = vperm.xlu0 %2213, %v2080
        %v2215 = vpop.permute.xlu0 %2214
        %2218 = vset.pattern.permute.xlu0 0
        %2219 = vperm.xlu0 %2218, %v2081
        %v2220 = vpop.permute.xlu0 %2219
        %2223 = vset.pattern.permute.xlu0 0
        %2224 = vperm.xlu0 %2223, %v2082
        %v2225 = vpop.permute.xlu0 %2224
        %2228 = vset.pattern.permute.xlu0 0
        %2229 = vperm.xlu0 %2228, %v2083
        %v2230 = vpop.permute.xlu0 %2229
        %2233 = vset.pattern.permute.xlu0 0
        %2234 = vperm.xlu0 %2233, %v2084
        %v2235 = vpop.permute.xlu0 %2234
        %2238 = vset.pattern.permute.xlu0 0
        %2239 = vperm.xlu0 %2238, %v2085
        %v2240 = vpop.permute.xlu0 %2239
        %2243 = vset.pattern.permute.xlu0 0
        %2244 = vperm.xlu0 %2243, %v2086
        %v2245 = vpop.permute.xlu0 %2244
        %2248 = vset.pattern.permute.xlu0 0
        %2249 = vperm.xlu0 %2248, %v2087
        %v2250 = vpop.permute.xlu0 %2249
        %2253 = vset.pattern.permute.xlu0 0
        %2254 = vperm.xlu0 %2253, %v2088
        %v2255 = vpop.permute.xlu0 %2254
        %2258 = vset.pattern.permute.xlu0 0
        %2259 = vperm.xlu0 %2258, %v2089
        %v2260 = vpop.permute.xlu0 %2259
        %2263 = vset.pattern.permute.xlu0 0
        %2264 = vperm.xlu0 %2263, %v2090
        %v2265 = vpop.permute.xlu0 %2264
        %2268 = vset.pattern.permute.xlu0 0
        %2269 = vperm.xlu0 %2268, %v2091
        %v2270 = vpop.permute.xlu0 %2269
        %v2272 = vmul.f32 %v2020, %v2095
        %v2273 = vmul.f32 %v2021, %v2100
        %v2274 = vmul.f32 %v2022, %v2105
        %v2275 = vmul.f32 %v2023, %v2110
        %v2276 = vmul.f32 %v2024, %v2115
        %v2277 = vmul.f32 %v2025, %v2120
        %v2278 = vmul.f32 %v2026, %v2125
        %v2279 = vmul.f32 %v2027, %v2130
        %v2280 = vmul.f32 %v2028, %v2135
        %v2281 = vmul.f32 %v2029, %v2140
        %v2282 = vmul.f32 %v2030, %v2145
        %v2283 = vmul.f32 %v2031, %v2150
        %v2284 = vmul.f32 %v2032, %v2155
        %v2285 = vmul.f32 %v2033, %v2160
        %v2286 = vmul.f32 %v2034, %v2165
        %v2287 = vmul.f32 %v2035, %v2170
        %v2288 = vmul.f32 %v2036, %v2175
        %v2289 = vmul.f32 %v2037, %v2180
        %v2290 = vmul.f32 %v2038, %v2185
        %v2291 = vmul.f32 %v2039, %v2190
        %v2292 = vmul.f32 %v2040, %v2195
        %v2293 = vmul.f32 %v2041, %v2200
        %v2294 = vmul.f32 %v2042, %v2205
        %v2295 = vmul.f32 %v2043, %v2210
        %v2296 = vmul.f32 %v2044, %v2215
        %v2297 = vmul.f32 %v2045, %v2220
        %v2298 = vmul.f32 %v2046, %v2225
        %v2299 = vmul.f32 %v2047, %v2230
        %v2300 = vmul.f32 %v2048, %v2235
        %v2301 = vmul.f32 %v2049, %v2240
        %v2302 = vmul.f32 %v2050, %v2245
        %v2303 = vmul.f32 %v2051, %v2250
        %v2304 = vmul.f32 %v2052, %v2255
        %v2305 = vmul.f32 %v2053, %v2260
        %v2306 = vmul.f32 %v2054, %v2265
        %v2307 = vmul.f32 %v2055, %v2270
        %vm2308 = vcmask 130048
        %2309 = vst.msk [vmem:[#allocation2] sm:$0xff] %vm2308, %v2272
        %2310 = vst.msk [vmem:[#allocation2 + $0x8] sm:$0xff] %vm2308, %v2273
        %2311 = vst.msk [vmem:[#allocation2 + $0x10] sm:$0xff] %vm2308, %v2274
        %2312 = vst.msk [vmem:[#allocation2 + $0x18] sm:$0xff] %vm2308, %v2275
        %2313 = vst.msk [vmem:[#allocation2 + $0x20] sm:$0xff] %vm2308, %v2276
        %2314 = vst.msk [vmem:[#allocation2 + $0x28] sm:$0xff] %vm2308, %v2277
        %2315 = vst.msk [vmem:[#allocation2 + $0x30] sm:$0xff] %vm2308, %v2278
        %2316 = vst.msk [vmem:[#allocation2 + $0x38] sm:$0xff] %vm2308, %v2279
        %2317 = vst.msk [vmem:[#allocation2 + $0x40] sm:$0xff] %vm2308, %v2280
        %2318 = vst.msk [vmem:[#allocation2 + $0x48] sm:$0xff] %vm2308, %v2281
        %2319 = vst.msk [vmem:[#allocation2 + $0x50] sm:$0xff] %vm2308, %v2282
        %2320 = vst.msk [vmem:[#allocation2 + $0x58] sm:$0xff] %vm2308, %v2283
        %2321 = vst.msk [vmem:[#allocation2 + $0x60] sm:$0xff] %vm2308, %v2284
        %2322 = vst.msk [vmem:[#allocation2 + $0x68] sm:$0xff] %vm2308, %v2285
        %2323 = vst.msk [vmem:[#allocation2 + $0x70] sm:$0xff] %vm2308, %v2286
        %2324 = vst.msk [vmem:[#allocation2 + $0x78] sm:$0xff] %vm2308, %v2287
        %2325 = vst.msk [vmem:[#allocation2 + $0x80] sm:$0xff] %vm2308, %v2288
        %2326 = vst.msk [vmem:[#allocation2 + $0x88] sm:$0xff] %vm2308, %v2289
        %2327 = vst.msk [vmem:[#allocation2 + $0x90] sm:$0xff] %vm2308, %v2290
        %2328 = vst.msk [vmem:[#allocation2 + $0x98] sm:$0xff] %vm2308, %v2291
        %2329 = vst.msk [vmem:[#allocation2 + $0xa0] sm:$0xff] %vm2308, %v2292
        %2330 = vst.msk [vmem:[#allocation2 + $0xa8] sm:$0xff] %vm2308, %v2293
        %2331 = vst.msk [vmem:[#allocation2 + $0xb0] sm:$0xff] %vm2308, %v2294
        %2332 = vst.msk [vmem:[#allocation2 + $0xb8] sm:$0xff] %vm2308, %v2295
        %2333 = vst.msk [vmem:[#allocation2 + $0xc0] sm:$0xff] %vm2308, %v2296
        %2334 = vst.msk [vmem:[#allocation2 + $0xc8] sm:$0xff] %vm2308, %v2297
        %2335 = vst.msk [vmem:[#allocation2 + $0xd0] sm:$0xff] %vm2308, %v2298
        %2336 = vst.msk [vmem:[#allocation2 + $0xd8] sm:$0xff] %vm2308, %v2299
        %2337 = vst.msk [vmem:[#allocation2 + $0xe0] sm:$0xff] %vm2308, %v2300
        %2338 = vst.msk [vmem:[#allocation2 + $0xe8] sm:$0xff] %vm2308, %v2301
        %2339 = vst.msk [vmem:[#allocation2 + $0xf0] sm:$0xff] %vm2308, %v2302
        %2340 = vst.msk [vmem:[#allocation2 + $0xf8] sm:$0xff] %vm2308, %v2303
        %2341 = vst.msk [vmem:[#allocation2 + $0x100] sm:$0xff] %vm2308, %v2304
        %2342 = vst.msk [vmem:[#allocation2 + $0x108] sm:$0xff] %vm2308, %v2305
        %2343 = vst.msk [vmem:[#allocation2 + $0x110] sm:$0xff] %vm2308, %v2306
        %2344 = vst.msk [vmem:[#allocation2 + $0x118] sm:$0xff] %vm2308, %v2307
        %v2345 = vld [vmem:[#allocation2] sm:$0xff]
        %v2346 = vld [vmem:[#allocation2 + $0x8] sm:$0xff]
        %v2347 = vld [vmem:[#allocation2 + $0x10] sm:$0xff]
        %v2348 = vld [vmem:[#allocation2 + $0x18] sm:$0xff]
        %v2349 = vld [vmem:[#allocation2 + $0x20] sm:$0xff]
        %v2350 = vld [vmem:[#allocation2 + $0x28] sm:$0xff]
        %v2351 = vld [vmem:[#allocation2 + $0x30] sm:$0xff]
        %v2352 = vld [vmem:[#allocation2 + $0x38] sm:$0xff]
        %v2353 = vld [vmem:[#allocation2 + $0x40] sm:$0xff]
        %v2354 = vld [vmem:[#allocation2 + $0x48] sm:$0xff]
        %v2355 = vld [vmem:[#allocation2 + $0x50] sm:$0xff]
        %v2356 = vld [vmem:[#allocation2 + $0x58] sm:$0xff]
        %v2357 = vld [vmem:[#allocation2 + $0x60] sm:$0xff]
        %v2358 = vld [vmem:[#allocation2 + $0x68] sm:$0xff]
        %v2359 = vld [vmem:[#allocation2 + $0x70] sm:$0xff]
        %v2360 = vld [vmem:[#allocation2 + $0x78] sm:$0xff]
        %v2361 = vld [vmem:[#allocation2 + $0x80] sm:$0xff]
        %v2362 = vld [vmem:[#allocation2 + $0x88] sm:$0xff]
        %v2363 = vld [vmem:[#allocation2 + $0x90] sm:$0xff]
        %v2364 = vld [vmem:[#allocation2 + $0x98] sm:$0xff]
        %v2365 = vld [vmem:[#allocation2 + $0xa0] sm:$0xff]
        %v2366 = vld [vmem:[#allocation2 + $0xa8] sm:$0xff]
        %v2367 = vld [vmem:[#allocation2 + $0xb0] sm:$0xff]
        %v2368 = vld [vmem:[#allocation2 + $0xb8] sm:$0xff]
        %v2369 = vld [vmem:[#allocation2 + $0xc0] sm:$0xff]
        %v2370 = vld [vmem:[#allocation2 + $0xc8] sm:$0xff]
        %v2371 = vld [vmem:[#allocation2 + $0xd0] sm:$0xff]
        %v2372 = vld [vmem:[#allocation2 + $0xd8] sm:$0xff]
        %v2373 = vld [vmem:[#allocation2 + $0xe0] sm:$0xff]
        %v2374 = vld [vmem:[#allocation2 + $0xe8] sm:$0xff]
        %v2375 = vld [vmem:[#allocation2 + $0xf0] sm:$0xff]
        %v2376 = vld [vmem:[%s4] sm:$0xff]
        %v2377 = vld [vmem:[%s4 + $0x8] sm:$0xff]
        %v2378 = vld [vmem:[#allocation2 + $0x1] sm:$0xff]
        %v2379 = vld [vmem:[#allocation2 + $0x9] sm:$0xff]
        %v2380 = vld [vmem:[#allocation2 + $0x11] sm:$0xff]
        %v2381 = vld [vmem:[#allocation2 + $0x19] sm:$0xff]
        %v2382 = vld [vmem:[#allocation2 + $0x21] sm:$0xff]
        %v2383 = vld [vmem:[#allocation2 + $0x29] sm:$0xff]
        %v2384 = vld [vmem:[#allocation2 + $0x31] sm:$0xff]
        %v2385 = vld [vmem:[#allocation2 + $0x39] sm:$0xff]
        %v2386 = vld [vmem:[#allocation2 + $0x41] sm:$0xff]
        %v2387 = vld [vmem:[#allocation2 + $0x49] sm:$0xff]
        %v2388 = vld [vmem:[#allocation2 + $0x51] sm:$0xff]
        %v2389 = vld [vmem:[#allocation2 + $0x59] sm:$0xff]
        %v2390 = vld [vmem:[#allocation2 + $0x61] sm:$0xff]
        %v2391 = vld [vmem:[#allocation2 + $0x69] sm:$0xff]
        %v2392 = vld [vmem:[#allocation2 + $0x71] sm:$0xff]
        %v2393 = vld [vmem:[#allocation2 + $0x79] sm:$0xff]
        %v2394 = vld [vmem:[#allocation2 + $0x81] sm:$0xff]
        %v2395 = vld [vmem:[#allocation2 + $0x89] sm:$0xff]
        %v2396 = vld [vmem:[#allocation2 + $0x91] sm:$0xff]
        %v2397 = vld [vmem:[#allocation2 + $0x99] sm:$0xff]
        %v2398 = vld [vmem:[#allocation2 + $0xa1] sm:$0xff]
        %v2399 = vld [vmem:[#allocation2 + $0xa9] sm:$0xff]
        %v2400 = vld [vmem:[#allocation2 + $0xb1] sm:$0xff]
        %v2401 = vld [vmem:[#allocation2 + $0xb9] sm:$0xff]
        %v2402 = vld [vmem:[#allocation2 + $0xc1] sm:$0xff]
        %v2403 = vld [vmem:[#allocation2 + $0xc9] sm:$0xff]
        %v2404 = vld [vmem:[#allocation2 + $0xd1] sm:$0xff]
        %v2405 = vld [vmem:[#allocation2 + $0xd9] sm:$0xff]
        %v2406 = vld [vmem:[#allocation2 + $0xe1] sm:$0xff]
        %v2407 = vld [vmem:[#allocation2 + $0xe9] sm:$0xff]
        %v2408 = vld [vmem:[#allocation2 + $0xf1] sm:$0xff]
        %s2409 = scalar_lea.vmem %s4, 16
        %v2410 = vld [vmem:[%s2409] sm:$0xff]
        %v2411 = vld [vmem:[%s2409 + $0x8] sm:$0xff]
        %v2413 = vsel %vm2308, %v2378, 0
        %v2416 = vsel %vm2308, %v2379, 0
        %v2419 = vsel %vm2308, %v2380, 0
        %v2422 = vsel %vm2308, %v2381, 0
        %v2425 = vsel %vm2308, %v2382, 0
        %v2428 = vsel %vm2308, %v2383, 0
        %v2431 = vsel %vm2308, %v2384, 0
        %v2434 = vsel %vm2308, %v2385, 0
        %v2437 = vsel %vm2308, %v2386, 0
        %v2440 = vsel %vm2308, %v2387, 0
        %v2443 = vsel %vm2308, %v2388, 0
        %v2446 = vsel %vm2308, %v2389, 0
        %v2449 = vsel %vm2308, %v2390, 0
        %v2452 = vsel %vm2308, %v2391, 0
        %v2455 = vsel %vm2308, %v2392, 0
        %v2458 = vsel %vm2308, %v2393, 0
        %v2461 = vsel %vm2308, %v2394, 0
        %v2464 = vsel %vm2308, %v2395, 0
        %v2467 = vsel %vm2308, %v2396, 0
        %v2470 = vsel %vm2308, %v2397, 0
        %v2473 = vsel %vm2308, %v2398, 0
        %v2476 = vsel %vm2308, %v2399, 0
        %v2479 = vsel %vm2308, %v2400, 0
        %v2482 = vsel %vm2308, %v2401, 0
        %v2485 = vsel %vm2308, %v2402, 0
        %v2488 = vsel %vm2308, %v2403, 0
        %v2491 = vsel %vm2308, %v2404, 0
        %v2494 = vsel %vm2308, %v2405, 0
        %v2497 = vsel %vm2308, %v2406, 0
        %v2500 = vsel %vm2308, %v2407, 0
        %v2503 = vsel %vm2308, %v2408, 0
        %2505 = vmatprep.subr.mxu0 0.0
        %2506 = vmatpush1.msra.mxu0 %v2410
        %2507 = vmatprep.subr.mxu0 0.0
        %2508 = vmatpush1.msra.mxu0 %v2411
        %2509 = vmatprep.subr.mxu0 0.0
        %2510 = vmatpush1.msra.mxu0 0.0
        %2511 = vmatprep.subr.mxu0 0.0
        %2512 = vmatpush1.msra.mxu0 0.0
        %2513 = vmatprep.subr.mxu0 0.0
        %2514 = vmatpush1.msra.mxu0 0.0
        %2515 = vmatprep.subr.mxu0 0.0
        %2516 = vmatpush1.msra.mxu0 0.0
        %2517 = vmatprep.subr.mxu0 0.0
        %2518 = vmatpush1.msra.mxu0 0.0
        %2519 = vmatprep.subr.mxu0 0.0
        %2520 = vmatpush1.msra.mxu0 0.0
        %2521 = vmatprep.subr.mxu0 0.0
        %2522 = vmatpush1.msra.mxu0 0.0
        %2523 = vmatprep.subr.mxu0 0.0
        %2524 = vmatpush1.msra.mxu0 0.0
        %2525 = vmatprep.subr.mxu0 0.0
        %2526 = vmatpush1.msra.mxu0 0.0
        %2527 = vmatprep.subr.mxu0 0.0
        %2528 = vmatpush1.msra.mxu0 0.0
        %2529 = vmatprep.subr.mxu0 0.0
        %2530 = vmatpush1.msra.mxu0 0.0
        %2531 = vmatprep.subr.mxu0 0.0
        %2532 = vmatpush1.msra.mxu0 0.0
        %2533 = vmatprep.subr.mxu0 0.0
        %2534 = vmatpush1.msra.mxu0 0.0
        %2535 = vmatprep.subr.mxu0 0.0
        %2536 = vmatpush1.msra.mxu0 0.0
        %2537 = vmatprep.subr.mxu0 0.0
        %2538 = vmatpush1.msra.mxu0 0.0
        %2539 = vmatprep.subr.mxu0 0.0
        %2540 = vmatpush1.msra.mxu0 0.0
        %2541 = vmatprep.subr.mxu0 0.0
        %2542 = vmatpush1.msra.mxu0 0.0
        %2543 = vmatprep.subr.mxu0 0.0
        %2544 = vmatpush1.msra.mxu0 0.0
        %2545 = vmatprep.subr.mxu0 0.0
        %2546 = vmatpush1.msra.mxu0 0.0
        %2547 = vmatprep.subr.mxu0 0.0
        %2548 = vmatpush1.msra.mxu0 0.0
        %2549 = vmatprep.subr.mxu0 0.0
        %2550 = vmatpush1.msra.mxu0 0.0
        %2551 = vmatprep.subr.mxu0 0.0
        %2552 = vmatpush1.msra.mxu0 0.0
        %2553 = vmatprep.subr.mxu0 0.0
        %2554 = vmatpush1.msra.mxu0 0.0
        %2555 = vmatprep.subr.mxu0 0.0
        %2556 = vmatpush1.msra.mxu0 0.0
        %2557 = vmatprep.subr.mxu0 0.0
        %2558 = vmatpush1.msra.mxu0 0.0
        %2559 = vmatprep.subr.mxu0 0.0
        %2560 = vmatpush1.msra.mxu0 0.0
        %2561 = vmatprep.subr.mxu0 0.0
        %2562 = vmatpush1.msra.mxu0 0.0
        %2563 = vmatprep.subr.mxu0 0.0
        %2564 = vmatpush1.msra.mxu0 0.0
        %2565 = vmatprep.subr.mxu0 0.0
        %2566 = vmatpush1.msra.mxu0 0.0
        %2567 = vmatprep.subr.mxu0 0.0
        %2568 = vmatpush1.msra.mxu0 0.0
        %2569 = vmatprep.mubr.f32.mxu0 0.0
        %2570 = vmatmul.mubr.f32.gmra.mrb[0].mxu0 %v2413
        %v2571 = vpop.f32.mrb[0].mxu0
        %v2572 = vadd.f32 0.0, %v2571
        %v2573 = vpop.f32.mrb[0].mxu0
        %2574 = vmatprep.mubr.f32.mxu0 0.0
        %2575 = vmatmul.mubr.f32.gmra.mrb[0].mxu0 %v2416
        %v2576 = vpop.f32.mrb[0].mxu0
        %v2577 = vadd.f32 0.0, %v2576
        %v2578 = vpop.f32.mrb[0].mxu0
        %2579 = vmatprep.mubr.f32.mxu0 0.0
        %2580 = vmatmul.mubr.f32.gmra.mrb[0].mxu0 %v2419
        %v2581 = vpop.f32.mrb[0].mxu0
        %v2582 = vadd.f32 0.0, %v2581
        %v2583 = vpop.f32.mrb[0].mxu0
        %2584 = vmatprep.mubr.f32.mxu0 0.0
        %2585 = vmatmul.mubr.f32.gmra.mrb[0].mxu0 %v2422
        %v2586 = vpop.f32.mrb[0].mxu0
        %v2587 = vadd.f32 0.0, %v2586
        %v2588 = vpop.f32.mrb[0].mxu0
        %2589 = vmatprep.mubr.f32.mxu0 0.0
        %2590 = vmatmul.mubr.f32.gmra.mrb[0].mxu0 %v2425
        %v2591 = vpop.f32.mrb[0].mxu0
        %v2592 = vadd.f32 0.0, %v2591
        %v2593 = vpop.f32.mrb[0].mxu0
        %2594 = vmatprep.mubr.f32.mxu0 0.0
        %2595 = vmatmul.mubr.f32.gmra.mrb[0].mxu0 %v2428
        %v2596 = vpop.f32.mrb[0].mxu0
        %v2597 = vadd.f32 0.0, %v2596
        %v2598 = vpop.f32.mrb[0].mxu0
        %2599 = vmatprep.mubr.f32.mxu0 0.0
        %2600 = vmatmul.mubr.f32.gmra.mrb[0].mxu0 %v2431
        %v2601 = vpop.f32.mrb[0].mxu0
        %v2602 = vadd.f32 0.0, %v2601
        %v2603 = vpop.f32.mrb[0].mxu0
        %2604 = vmatprep.mubr.f32.mxu0 0.0
        %2605 = vmatmul.mubr.f32.gmra.mrb[0].mxu0 %v2434
        %v2606 = vpop.f32.mrb[0].mxu0
        %v2607 = vadd.f32 0.0, %v2606
        %v2608 = vpop.f32.mrb[0].mxu0
        %2609 = vmatprep.mubr.f32.mxu0 0.0
        %2610 = vmatmul.mubr.f32.gmra.mrb[0].mxu0 %v2437
        %v2611 = vpop.f32.mrb[0].mxu0
        %v2612 = vadd.f32 0.0, %v2611
        %v2613 = vpop.f32.mrb[0].mxu0
        %2614 = vmatprep.mubr.f32.mxu0 0.0
        %2615 = vmatmul.mubr.f32.gmra.mrb[0].mxu0 %v2440
        %v2616 = vpop.f32.mrb[0].mxu0
        %v2617 = vadd.f32 0.0, %v2616
        %v2618 = vpop.f32.mrb[0].mxu0
        %2619 = vmatprep.mubr.f32.mxu0 0.0
        %2620 = vmatmul.mubr.f32.gmra.mrb[0].mxu0 %v2443
        %v2621 = vpop.f32.mrb[0].mxu0
        %v2622 = vadd.f32 0.0, %v2621
        %v2623 = vpop.f32.mrb[0].mxu0
        %2624 = vmatprep.mubr.f32.mxu0 0.0
        %2625 = vmatmul.mubr.f32.gmra.mrb[0].mxu0 %v2446
        %v2626 = vpop.f32.mrb[0].mxu0
        %v2627 = vadd.f32 0.0, %v2626
        %v2628 = vpop.f32.mrb[0].mxu0
        %2629 = vmatprep.mubr.f32.mxu0 0.0
        %2630 = vmatmul.mubr.f32.gmra.mrb[0].mxu0 %v2449
        %v2631 = vpop.f32.mrb[0].mxu0
        %v2632 = vadd.f32 0.0, %v2631
        %v2633 = vpop.f32.mrb[0].mxu0
        %2634 = vmatprep.mubr.f32.mxu0 0.0
        %2635 = vmatmul.mubr.f32.gmra.mrb[0].mxu0 %v2452
        %v2636 = vpop.f32.mrb[0].mxu0
        %v2637 = vadd.f32 0.0, %v2636
        %v2638 = vpop.f32.mrb[0].mxu0
        %2639 = vmatprep.mubr.f32.mxu0 0.0
        %2640 = vmatmul.mubr.f32.gmra.mrb[0].mxu0 %v2455
        %v2641 = vpop.f32.mrb[0].mxu0
        %v2642 = vadd.f32 0.0, %v2641
        %v2643 = vpop.f32.mrb[0].mxu0
        %2644 = vmatprep.mubr.f32.mxu0 0.0
        %2645 = vmatmul.mubr.f32.gmra.mrb[0].mxu0 %v2458
        %v2646 = vpop.f32.mrb[0].mxu0
        %v2647 = vadd.f32 0.0, %v2646
        %v2648 = vpop.f32.mrb[0].mxu0
        %2649 = vmatprep.mubr.f32.mxu0 0.0
        %2650 = vmatmul.mubr.f32.gmra.mrb[0].mxu0 %v2461
        %v2651 = vpop.f32.mrb[0].mxu0
        %v2652 = vadd.f32 0.0, %v2651
        %v2653 = vpop.f32.mrb[0].mxu0
        %2654 = vmatprep.mubr.f32.mxu0 0.0
        %2655 = vmatmul.mubr.f32.gmra.mrb[0].mxu0 %v2464
        %v2656 = vpop.f32.mrb[0].mxu0
        %v2657 = vadd.f32 0.0, %v2656
        %v2658 = vpop.f32.mrb[0].mxu0
        %2659 = vmatprep.mubr.f32.mxu0 0.0
        %2660 = vmatmul.mubr.f32.gmra.mrb[0].mxu0 %v2467
        %v2661 = vpop.f32.mrb[0].mxu0
        %v2662 = vadd.f32 0.0, %v2661
        %v2663 = vpop.f32.mrb[0].mxu0
        %2664 = vmatprep.mubr.f32.mxu0 0.0
        %2665 = vmatmul.mubr.f32.gmra.mrb[0].mxu0 %v2470
        %v2666 = vpop.f32.mrb[0].mxu0
        %v2667 = vadd.f32 0.0, %v2666
        %v2668 = vpop.f32.mrb[0].mxu0
        %2669 = vmatprep.mubr.f32.mxu0 0.0
        %2670 = vmatmul.mubr.f32.gmra.mrb[0].mxu0 %v2473
        %v2671 = vpop.f32.mrb[0].mxu0
        %v2672 = vadd.f32 0.0, %v2671
        %v2673 = vpop.f32.mrb[0].mxu0
        %2674 = vmatprep.mubr.f32.mxu0 0.0
        %2675 = vmatmul.mubr.f32.gmra.mrb[0].mxu0 %v2476
        %v2676 = vpop.f32.mrb[0].mxu0
        %v2677 = vadd.f32 0.0, %v2676
        %v2678 = vpop.f32.mrb[0].mxu0
        %2679 = vmatprep.mubr.f32.mxu0 0.0
        %2680 = vmatmul.mubr.f32.gmra.mrb[0].mxu0 %v2479
        %v2681 = vpop.f32.mrb[0].mxu0
        %v2682 = vadd.f32 0.0, %v2681
        %v2683 = vpop.f32.mrb[0].mxu0
        %2684 = vmatprep.mubr.f32.mxu0 0.0
        %2685 = vmatmul.mubr.f32.gmra.mrb[0].mxu0 %v2482
        %v2686 = vpop.f32.mrb[0].mxu0
        %v2687 = vadd.f32 0.0, %v2686
        %v2688 = vpop.f32.mrb[0].mxu0
        %2689 = vmatprep.mubr.f32.mxu0 0.0
        %2690 = vmatmul.mubr.f32.gmra.mrb[0].mxu0 %v2485
        %v2691 = vpop.f32.mrb[0].mxu0
        %v2692 = vadd.f32 0.0, %v2691
        %v2693 = vpop.f32.mrb[0].mxu0
        %2694 = vmatprep.mubr.f32.mxu0 0.0
        %2695 = vmatmul.mubr.f32.gmra.mrb[0].mxu0 %v2488
        %v2696 = vpop.f32.mrb[0].mxu0
        %v2697 = vadd.f32 0.0, %v2696
        %v2698 = vpop.f32.mrb[0].mxu0
        %2699 = vmatprep.mubr.f32.mxu0 0.0
        %2700 = vmatmul.mubr.f32.gmra.mrb[0].mxu0 %v2491
        %v2701 = vpop.f32.mrb[0].mxu0
        %v2702 = vadd.f32 0.0, %v2701
        %v2703 = vpop.f32.mrb[0].mxu0
        %2704 = vmatprep.mubr.f32.mxu0 0.0
        %2705 = vmatmul.mubr.f32.gmra.mrb[0].mxu0 %v2494
        %v2706 = vpop.f32.mrb[0].mxu0
        %v2707 = vadd.f32 0.0, %v2706
        %v2708 = vpop.f32.mrb[0].mxu0
        %2709 = vmatprep.mubr.f32.mxu0 0.0
        %2710 = vmatmul.mubr.f32.gmra.mrb[0].mxu0 %v2497
        %v2711 = vpop.f32.mrb[0].mxu0
        %v2712 = vadd.f32 0.0, %v2711
        %v2713 = vpop.f32.mrb[0].mxu0
        %2714 = vmatprep.mubr.f32.mxu0 0.0
        %2715 = vmatmul.mubr.f32.gmra.mrb[0].mxu0 %v2500
        %v2716 = vpop.f32.mrb[0].mxu0
        %v2717 = vadd.f32 0.0, %v2716
        %v2718 = vpop.f32.mrb[0].mxu0
        %2719 = vmatprep.mubr.f32.mxu0 0.0
        %2720 = vmatmul.mubr.f32.gmra.mrb[0].mxu0 %v2503
        %v2721 = vpop.f32.mrb[0].mxu0
        %v2722 = vadd.f32 0.0, %v2721
        %v2723 = vpop.f32.mrb[0].mxu0
        %2724 = vdwg.mxu0
        %v2726 = vsel %vm2308, %v2345, 0
        %v2729 = vsel %vm2308, %v2346, 0
        %v2732 = vsel %vm2308, %v2347, 0
        %v2735 = vsel %vm2308, %v2348, 0
        %v2738 = vsel %vm2308, %v2349, 0
        %v2741 = vsel %vm2308, %v2350, 0
        %v2744 = vsel %vm2308, %v2351, 0
        %v2747 = vsel %vm2308, %v2352, 0
        %v2750 = vsel %vm2308, %v2353, 0
        %v2753 = vsel %vm2308, %v2354, 0
        %v2756 = vsel %vm2308, %v2355, 0
        %v2759 = vsel %vm2308, %v2356, 0
        %v2762 = vsel %vm2308, %v2357, 0
        %v2765 = vsel %vm2308, %v2358, 0
        %v2768 = vsel %vm2308, %v2359, 0
        %v2771 = vsel %vm2308, %v2360, 0
        %v2774 = vsel %vm2308, %v2361, 0
        %v2777 = vsel %vm2308, %v2362, 0
        %v2780 = vsel %vm2308, %v2363, 0
        %v2783 = vsel %vm2308, %v2364, 0
        %v2786 = vsel %vm2308, %v2365, 0
        %v2789 = vsel %vm2308, %v2366, 0
        %v2792 = vsel %vm2308, %v2367, 0
        %v2795 = vsel %vm2308, %v2368, 0
        %v2798 = vsel %vm2308, %v2369, 0
        %v2801 = vsel %vm2308, %v2370, 0
        %v2804 = vsel %vm2308, %v2371, 0
        %v2807 = vsel %vm2308, %v2372, 0
        %v2810 = vsel %vm2308, %v2373, 0
        %v2813 = vsel %vm2308, %v2374, 0
        %v2816 = vsel %vm2308, %v2375, 0
        %2818 = vmatprep.subr.mxu0 0.0
        %2819 = vmatpush1.msra.mxu0 %v2376
        %2820 = vmatprep.subr.mxu0 0.0
        %2821 = vmatpush1.msra.mxu0 %v2377
        %2822 = vmatprep.subr.mxu0 0.0
        %2823 = vmatpush1.msra.mxu0 0.0
        %2824 = vmatprep.subr.mxu0 0.0
        %2825 = vmatpush1.msra.mxu0 0.0
        %2826 = vmatprep.subr.mxu0 0.0
        %2827 = vmatpush1.msra.mxu0 0.0
        %2828 = vmatprep.subr.mxu0 0.0
        %2829 = vmatpush1.msra.mxu0 0.0
        %2830 = vmatprep.subr.mxu0 0.0
        %2831 = vmatpush1.msra.mxu0 0.0
        %2832 = vmatprep.subr.mxu0 0.0
        %2833 = vmatpush1.msra.mxu0 0.0
        %2834 = vmatprep.subr.mxu0 0.0
        %2835 = vmatpush1.msra.mxu0 0.0
        %2836 = vmatprep.subr.mxu0 0.0
        %2837 = vmatpush1.msra.mxu0 0.0
        %2838 = vmatprep.subr.mxu0 0.0
        %2839 = vmatpush1.msra.mxu0 0.0
        %2840 = vmatprep.subr.mxu0 0.0
        %2841 = vmatpush1.msra.mxu0 0.0
        %2842 = vmatprep.subr.mxu0 0.0
        %2843 = vmatpush1.msra.mxu0 0.0
        %2844 = vmatprep.subr.mxu0 0.0
        %2845 = vmatpush1.msra.mxu0 0.0
        %2846 = vmatprep.subr.mxu0 0.0
        %2847 = vmatpush1.msra.mxu0 0.0
        %2848 = vmatprep.subr.mxu0 0.0
        %2849 = vmatpush1.msra.mxu0 0.0
        %2850 = vmatprep.subr.mxu0 0.0
        %2851 = vmatpush1.msra.mxu0 0.0
        %2852 = vmatprep.subr.mxu0 0.0
        %2853 = vmatpush1.msra.mxu0 0.0
        %2854 = vmatprep.subr.mxu0 0.0
        %2855 = vmatpush1.msra.mxu0 0.0
        %2856 = vmatprep.subr.mxu0 0.0
        %2857 = vmatpush1.msra.mxu0 0.0
        %2858 = vmatprep.subr.mxu0 0.0
        %2859 = vmatpush1.msra.mxu0 0.0
        %2860 = vmatprep.subr.mxu0 0.0
        %2861 = vmatpush1.msra.mxu0 0.0
        %2862 = vmatprep.subr.mxu0 0.0
        %2863 = vmatpush1.msra.mxu0 0.0
        %2864 = vmatprep.subr.mxu0 0.0
        %2865 = vmatpush1.msra.mxu0 0.0
        %2866 = vmatprep.subr.mxu0 0.0
        %2867 = vmatpush1.msra.mxu0 0.0
        %2868 = vmatprep.subr.mxu0 0.0
        %2869 = vmatpush1.msra.mxu0 0.0
        %2870 = vmatprep.subr.mxu0 0.0
        %2871 = vmatpush1.msra.mxu0 0.0
        %2872 = vmatprep.subr.mxu0 0.0
        %2873 = vmatpush1.msra.mxu0 0.0
        %2874 = vmatprep.subr.mxu0 0.0
        %2875 = vmatpush1.msra.mxu0 0.0
        %2876 = vmatprep.subr.mxu0 0.0
        %2877 = vmatpush1.msra.mxu0 0.0
        %2878 = vmatprep.subr.mxu0 0.0
        %2879 = vmatpush1.msra.mxu0 0.0
        %2880 = vmatprep.subr.mxu0 0.0
        %2881 = vmatpush1.msra.mxu0 0.0
        %2882 = vmatprep.mubr.f32.mxu0 0.0
        %2883 = vmatmul.mubr.f32.gmra.mrb[0].mxu0 %v2726
        %v2884 = vpop.f32.mrb[0].mxu0
        %v2885 = vadd.f32 %v2572, %v2884
        %v2886 = vpop.f32.mrb[0].mxu0
        %2887 = vmatprep.mubr.f32.mxu0 0.0
        %2888 = vmatmul.mubr.f32.gmra.mrb[0].mxu0 %v2729
        %v2889 = vpop.f32.mrb[0].mxu0
        %v2890 = vadd.f32 %v2577, %v2889
        %v2891 = vpop.f32.mrb[0].mxu0
        %2892 = vmatprep.mubr.f32.mxu0 0.0
        %2893 = vmatmul.mubr.f32.gmra.mrb[0].mxu0 %v2732
        %v2894 = vpop.f32.mrb[0].mxu0
        %v2895 = vadd.f32 %v2582, %v2894
        %v2896 = vpop.f32.mrb[0].mxu0
        %2897 = vmatprep.mubr.f32.mxu0 0.0
        %2898 = vmatmul.mubr.f32.gmra.mrb[0].mxu0 %v2735
        %v2899 = vpop.f32.mrb[0].mxu0
        %v2900 = vadd.f32 %v2587, %v2899
        %v2901 = vpop.f32.mrb[0].mxu0
        %2902 = vmatprep.mubr.f32.mxu0 0.0
        %2903 = vmatmul.mubr.f32.gmra.mrb[0].mxu0 %v2738
        %v2904 = vpop.f32.mrb[0].mxu0
        %v2905 = vadd.f32 %v2592, %v2904
        %v2906 = vpop.f32.mrb[0].mxu0
        %2907 = vmatprep.mubr.f32.mxu0 0.0
        %2908 = vmatmul.mubr.f32.gmra.mrb[0].mxu0 %v2741
        %v2909 = vpop.f32.mrb[0].mxu0
        %v2910 = vadd.f32 %v2597, %v2909
        %v2911 = vpop.f32.mrb[0].mxu0
        %2912 = vmatprep.mubr.f32.mxu0 0.0
        %2913 = vmatmul.mubr.f32.gmra.mrb[0].mxu0 %v2744
        %v2914 = vpop.f32.mrb[0].mxu0
        %v2915 = vadd.f32 %v2602, %v2914
        %v2916 = vpop.f32.mrb[0].mxu0
        %2917 = vmatprep.mubr.f32.mxu0 0.0
        %2918 = vmatmul.mubr.f32.gmra.mrb[0].mxu0 %v2747
        %v2919 = vpop.f32.mrb[0].mxu0
        %v2920 = vadd.f32 %v2607, %v2919
        %v2921 = vpop.f32.mrb[0].mxu0
        %2922 = vmatprep.mubr.f32.mxu0 0.0
        %2923 = vmatmul.mubr.f32.gmra.mrb[0].mxu0 %v2750
        %v2924 = vpop.f32.mrb[0].mxu0
        %v2925 = vadd.f32 %v2612, %v2924
        %v2926 = vpop.f32.mrb[0].mxu0
        %2927 = vmatprep.mubr.f32.mxu0 0.0
        %2928 = vmatmul.mubr.f32.gmra.mrb[0].mxu0 %v2753
        %v2929 = vpop.f32.mrb[0].mxu0
        %v2930 = vadd.f32 %v2617, %v2929
        %v2931 = vpop.f32.mrb[0].mxu0
        %2932 = vmatprep.mubr.f32.mxu0 0.0
        %2933 = vmatmul.mubr.f32.gmra.mrb[0].mxu0 %v2756
        %v2934 = vpop.f32.mrb[0].mxu0
        %v2935 = vadd.f32 %v2622, %v2934
        %v2936 = vpop.f32.mrb[0].mxu0
        %2937 = vmatprep.mubr.f32.mxu0 0.0
        %2938 = vmatmul.mubr.f32.gmra.mrb[0].mxu0 %v2759
        %v2939 = vpop.f32.mrb[0].mxu0
        %v2940 = vadd.f32 %v2627, %v2939
        %v2941 = vpop.f32.mrb[0].mxu0
        %2942 = vmatprep.mubr.f32.mxu0 0.0
        %2943 = vmatmul.mubr.f32.gmra.mrb[0].mxu0 %v2762
        %v2944 = vpop.f32.mrb[0].mxu0
        %v2945 = vadd.f32 %v2632, %v2944
        %v2946 = vpop.f32.mrb[0].mxu0
        %2947 = vmatprep.mubr.f32.mxu0 0.0
        %2948 = vmatmul.mubr.f32.gmra.mrb[0].mxu0 %v2765
        %v2949 = vpop.f32.mrb[0].mxu0
        %v2950 = vadd.f32 %v2637, %v2949
        %v2951 = vpop.f32.mrb[0].mxu0
        %2952 = vmatprep.mubr.f32.mxu0 0.0
        %2953 = vmatmul.mubr.f32.gmra.mrb[0].mxu0 %v2768
        %v2954 = vpop.f32.mrb[0].mxu0
        %v2955 = vadd.f32 %v2642, %v2954
        %v2956 = vpop.f32.mrb[0].mxu0
        %2957 = vmatprep.mubr.f32.mxu0 0.0
        %2958 = vmatmul.mubr.f32.gmra.mrb[0].mxu0 %v2771
        %v2959 = vpop.f32.mrb[0].mxu0
        %v2960 = vadd.f32 %v2647, %v2959
        %v2961 = vpop.f32.mrb[0].mxu0
        %2962 = vmatprep.mubr.f32.mxu0 0.0
        %2963 = vmatmul.mubr.f32.gmra.mrb[0].mxu0 %v2774
        %v2964 = vpop.f32.mrb[0].mxu0
        %v2965 = vadd.f32 %v2652, %v2964
        %v2966 = vpop.f32.mrb[0].mxu0
        %2967 = vmatprep.mubr.f32.mxu0 0.0
        %2968 = vmatmul.mubr.f32.gmra.mrb[0].mxu0 %v2777
        %v2969 = vpop.f32.mrb[0].mxu0
        %v2970 = vadd.f32 %v2657, %v2969
        %v2971 = vpop.f32.mrb[0].mxu0
        %2972 = vmatprep.mubr.f32.mxu0 0.0
        %2973 = vmatmul.mubr.f32.gmra.mrb[0].mxu0 %v2780
        %v2974 = vpop.f32.mrb[0].mxu0
        %v2975 = vadd.f32 %v2662, %v2974
        %v2976 = vpop.f32.mrb[0].mxu0
        %2977 = vmatprep.mubr.f32.mxu0 0.0
        %2978 = vmatmul.mubr.f32.gmra.mrb[0].mxu0 %v2783
        %v2979 = vpop.f32.mrb[0].mxu0
        %v2980 = vadd.f32 %v2667, %v2979
        %v2981 = vpop.f32.mrb[0].mxu0
        %2982 = vmatprep.mubr.f32.mxu0 0.0
        %2983 = vmatmul.mubr.f32.gmra.mrb[0].mxu0 %v2786
        %v2984 = vpop.f32.mrb[0].mxu0
        %v2985 = vadd.f32 %v2672, %v2984
        %v2986 = vpop.f32.mrb[0].mxu0
        %2987 = vmatprep.mubr.f32.mxu0 0.0
        %2988 = vmatmul.mubr.f32.gmra.mrb[0].mxu0 %v2789
        %v2989 = vpop.f32.mrb[0].mxu0
        %v2990 = vadd.f32 %v2677, %v2989
        %v2991 = vpop.f32.mrb[0].mxu0
        %2992 = vmatprep.mubr.f32.mxu0 0.0
        %2993 = vmatmul.mubr.f32.gmra.mrb[0].mxu0 %v2792
        %v2994 = vpop.f32.mrb[0].mxu0
        %v2995 = vadd.f32 %v2682, %v2994
        %v2996 = vpop.f32.mrb[0].mxu0
        %2997 = vmatprep.mubr.f32.mxu0 0.0
        %2998 = vmatmul.mubr.f32.gmra.mrb[0].mxu0 %v2795
        %v2999 = vpop.f32.mrb[0].mxu0
        %v3000 = vadd.f32 %v2687, %v2999
        %v3001 = vpop.f32.mrb[0].mxu0
        %3002 = vmatprep.mubr.f32.mxu0 0.0
        %3003 = vmatmul.mubr.f32.gmra.mrb[0].mxu0 %v2798
        %v3004 = vpop.f32.mrb[0].mxu0
        %v3005 = vadd.f32 %v2692, %v3004
        %v3006 = vpop.f32.mrb[0].mxu0
        %3007 = vmatprep.mubr.f32.mxu0 0.0
        %3008 = vmatmul.mubr.f32.gmra.mrb[0].mxu0 %v2801
        %v3009 = vpop.f32.mrb[0].mxu0
        %v3010 = vadd.f32 %v2697, %v3009
        %v3011 = vpop.f32.mrb[0].mxu0
        %3012 = vmatprep.mubr.f32.mxu0 0.0
        %3013 = vmatmul.mubr.f32.gmra.mrb[0].mxu0 %v2804
        %v3014 = vpop.f32.mrb[0].mxu0
        %v3015 = vadd.f32 %v2702, %v3014
        %v3016 = vpop.f32.mrb[0].mxu0
        %3017 = vmatprep.mubr.f32.mxu0 0.0
        %3018 = vmatmul.mubr.f32.gmra.mrb[0].mxu0 %v2807
        %v3019 = vpop.f32.mrb[0].mxu0
        %v3020 = vadd.f32 %v2707, %v3019
        %v3021 = vpop.f32.mrb[0].mxu0
        %3022 = vmatprep.mubr.f32.mxu0 0.0
        %3023 = vmatmul.mubr.f32.gmra.mrb[0].mxu0 %v2810
        %v3024 = vpop.f32.mrb[0].mxu0
        %v3025 = vadd.f32 %v2712, %v3024
        %v3026 = vpop.f32.mrb[0].mxu0
        %3027 = vmatprep.mubr.f32.mxu0 0.0
        %3028 = vmatmul.mubr.f32.gmra.mrb[0].mxu0 %v2813
        %v3029 = vpop.f32.mrb[0].mxu0
        %v3030 = vadd.f32 %v2717, %v3029
        %v3031 = vpop.f32.mrb[0].mxu0
        %3032 = vmatprep.mubr.f32.mxu0 0.0
        %3033 = vmatmul.mubr.f32.gmra.mrb[0].mxu0 %v2816
        %v3034 = vpop.f32.mrb[0].mxu0
        %v3035 = vadd.f32 %v2722, %v3034
        %v3036 = vpop.f32.mrb[0].mxu0
        %3037 = vdwg.mxu0
        %v3038 = vld [vmem:[#allocation2 + $0x2] sm:$0xff]
        %v3039 = vld [vmem:[#allocation2 + $0xa] sm:$0xff]
        %v3040 = vld [vmem:[#allocation2 + $0x12] sm:$0xff]
        %v3041 = vld [vmem:[#allocation2 + $0x1a] sm:$0xff]
        %v3042 = vld [vmem:[#allocation2 + $0x22] sm:$0xff]
        %v3043 = vld [vmem:[#allocation2 + $0x2a] sm:$0xff]
        %v3044 = vld [vmem:[#allocation2 + $0x32] sm:$0xff]
        %v3045 = vld [vmem:[#allocation2 + $0x3a] sm:$0xff]
        %v3046 = vld [vmem:[#allocation2 + $0x42] sm:$0xff]
        %v3047 = vld [vmem:[#allocation2 + $0x4a] sm:$0xff]
        %v3048 = vld [vmem:[#allocation2 + $0x52] sm:$0xff]
        %v3049 = vld [vmem:[#allocation2 + $0x5a] sm:$0xff]
        %v3050 = vld [vmem:[#allocation2 + $0x62] sm:$0xff]
        %v3051 = vld [vmem:[#allocation2 + $0x6a] sm:$0xff]
        %v3052 = vld [vmem:[#allocation2 + $0x72] sm:$0xff]
        %v3053 = vld [vmem:[#allocation2 + $0x7a] sm:$0xff]
        %v3054 = vld [vmem:[#allocation2 + $0x82] sm:$0xff]
        %v3055 = vld [vmem:[#allocation2 + $0x8a] sm:$0xff]
        %v3056 = vld [vmem:[#allocation2 + $0x92] sm:$0xff]
        %v3057 = vld [vmem:[#allocation2 + $0x9a] sm:$0xff]
        %v3058 = vld [vmem:[#allocation2 + $0xa2] sm:$0xff]
        %v3059 = vld [vmem:[#allocation2 + $0xaa] sm:$0xff]
        %v3060 = vld [vmem:[#allocation2 + $0xb2] sm:$0xff]
        %v3061 = vld [vmem:[#allocation2 + $0xba] sm:$0xff]
        %v3062 = vld [vmem:[#allocation2 + $0xc2] sm:$0xff]
        %v3063 = vld [vmem:[#allocation2 + $0xca] sm:$0xff]
        %v3064 = vld [vmem:[#allocation2 + $0xd2] sm:$0xff]
        %v3065 = vld [vmem:[#allocation2 + $0xda] sm:$0xff]
        %v3066 = vld [vmem:[#allocation2 + $0xe2] sm:$0xff]
        %v3067 = vld [vmem:[#allocation2 + $0xea] sm:$0xff]
        %v3068 = vld [vmem:[#allocation2 + $0xf2] sm:$0xff]
        %s3069 = scalar_lea.vmem %s4, 32
        %v3070 = vld [vmem:[%s3069] sm:$0xff]
        %v3071 = vld [vmem:[%s3069 + $0x8] sm:$0xff]
        %v3073 = vsel %vm2308, %v3038, 0
        %v3076 = vsel %vm2308, %v3039, 0
        %v3079 = vsel %vm2308, %v3040, 0
        %v3082 = vsel %vm2308, %v3041, 0
        %v3085 = vsel %vm2308, %v3042, 0
        %v3088 = vsel %vm2308, %v3043, 0
        %v3091 = vsel %vm2308, %v3044, 0
        %v3094 = vsel %vm2308, %v3045, 0
        %v3097 = vsel %vm2308, %v3046, 0
        %v3100 = vsel %vm2308, %v3047, 0
        %v3103 = vsel %vm2308, %v3048, 0
        %v3106 = vsel %vm2308, %v3049, 0
        %v3109 = vsel %vm2308, %v3050, 0
        %v3112 = vsel %vm2308, %v3051, 0
        %v3115 = vsel %vm2308, %v3052, 0
        %v3118 = vsel %vm2308, %v3053, 0
        %v3121 = vsel %vm2308, %v3054, 0
        %v3124 = vsel %vm2308, %v3055, 0
        %v3127 = vsel %vm2308, %v3056, 0
        %v3130 = vsel %vm2308, %v3057, 0
        %v3133 = vsel %vm2308, %v3058, 0
        %v3136 = vsel %vm2308, %v3059, 0
        %v3139 = vsel %vm2308, %v3060, 0
        %v3142 = vsel %vm2308, %v3061, 0
        %v3145 = vsel %vm2308, %v3062, 0
        %v3148 = vsel %vm2308, %v3063, 0
        %v3151 = vsel %vm2308, %v3064, 0
        %v3154 = vsel %vm2308, %v3065, 0
        %v3157 = vsel %vm2308, %v3066, 0
        %v3160 = vsel %vm2308, %v3067, 0
        %v3163 = vsel %vm2308, %v3068, 0
        %3165 = vmatprep.subr.mxu0 0.0
        %3166 = vmatpush1.msra.mxu0 %v3070
        %3167 = vmatprep.subr.mxu0 0.0
        %3168 = vmatpush1.msra.mxu0 %v3071
        %3169 = vmatprep.subr.mxu0 0.0
        %3170 = vmatpush1.msra.mxu0 0.0
        %3171 = vmatprep.subr.mxu0 0.0
        %3172 = vmatpush1.msra.mxu0 0.0
        %3173 = vmatprep.subr.mxu0 0.0
        %3174 = vmatpush1.msra.mxu0 0.0
        %3175 = vmatprep.subr.mxu0 0.0
        %3176 = vmatpush1.msra.mxu0 0.0
        %3177 = vmatprep.subr.mxu0 0.0
        %3178 = vmatpush1.msra.mxu0 0.0
        %3179 = vmatprep.subr.mxu0 0.0
        %3180 = vmatpush1.msra.mxu0 0.0
        %3181 = vmatprep.subr.mxu0 0.0
        %3182 = vmatpush1.msra.mxu0 0.0
        %3183 = vmatprep.subr.mxu0 0.0
        %3184 = vmatpush1.msra.mxu0 0.0
        %3185 = vmatprep.subr.mxu0 0.0
        %3186 = vmatpush1.msra.mxu0 0.0
        %3187 = vmatprep.subr.mxu0 0.0
        %3188 = vmatpush1.msra.mxu0 0.0
        %3189 = vmatprep.subr.mxu0 0.0
        %3190 = vmatpush1.msra.mxu0 0.0
        %3191 = vmatprep.subr.mxu0 0.0
        %3192 = vmatpush1.msra.mxu0 0.0
        %3193 = vmatprep.subr.mxu0 0.0
        %3194 = vmatpush1.msra.mxu0 0.0
        %3195 = vmatprep.subr.mxu0 0.0
        %3196 = vmatpush1.msra.mxu0 0.0
        %3197 = vmatprep.subr.mxu0 0.0
        %3198 = vmatpush1.msra.mxu0 0.0
        %3199 = vmatprep.subr.mxu0 0.0
        %3200 = vmatpush1.msra.mxu0 0.0
        %3201 = vmatprep.subr.mxu0 0.0
        %3202 = vmatpush1.msra.mxu0 0.0
        %3203 = vmatprep.subr.mxu0 0.0
        %3204 = vmatpush1.msra.mxu0 0.0
        %3205 = vmatprep.subr.mxu0 0.0
        %3206 = vmatpush1.msra.mxu0 0.0
        %3207 = vmatprep.subr.mxu0 0.0
        %3208 = vmatpush1.msra.mxu0 0.0
        %3209 = vmatprep.subr.mxu0 0.0
        %3210 = vmatpush1.msra.mxu0 0.0
        %3211 = vmatprep.subr.mxu0 0.0
        %3212 = vmatpush1.msra.mxu0 0.0
        %3213 = vmatprep.subr.mxu0 0.0
        %3214 = vmatpush1.msra.mxu0 0.0
        %3215 = vmatprep.subr.mxu0 0.0
        %3216 = vmatpush1.msra.mxu0 0.0
        %3217 = vmatprep.subr.mxu0 0.0
        %3218 = vmatpush1.msra.mxu0 0.0
        %3219 = vmatprep.subr.mxu0 0.0
        %3220 = vmatpush1.msra.mxu0 0.0
        %3221 = vmatprep.subr.mxu0 0.0
        %3222 = vmatpush1.msra.mxu0 0.0
        %3223 = vmatprep.subr.mxu0 0.0
        %3224 = vmatpush1.msra.mxu0 0.0
        %3225 = vmatprep.subr.mxu0 0.0
        %3226 = vmatpush1.msra.mxu0 0.0
        %3227 = vmatprep.subr.mxu0 0.0
        %3228 = vmatpush1.msra.mxu0 0.0
        %3229 = vmatprep.mubr.f32.mxu0 0.0
        %3230 = vmatmul.mubr.f32.gmra.mrb[0].mxu0 %v3073
        %v3231 = vpop.f32.mrb[0].mxu0
        %v3232 = vadd.f32 0.0, %v3231
        %v3233 = vpop.f32.mrb[0].mxu0
        %3234 = vmatprep.mubr.f32.mxu0 0.0
        %3235 = vmatmul.mubr.f32.gmra.mrb[0].mxu0 %v3076
        %v3236 = vpop.f32.mrb[0].mxu0
        %v3237 = vadd.f32 0.0, %v3236
        %v3238 = vpop.f32.mrb[0].mxu0
        %3239 = vmatprep.mubr.f32.mxu0 0.0
        %3240 = vmatmul.mubr.f32.gmra.mrb[0].mxu0 %v3079
        %v3241 = vpop.f32.mrb[0].mxu0
        %v3242 = vadd.f32 0.0, %v3241
        %v3243 = vpop.f32.mrb[0].mxu0
        %3244 = vmatprep.mubr.f32.mxu0 0.0
        %3245 = vmatmul.mubr.f32.gmra.mrb[0].mxu0 %v3082
        %v3246 = vpop.f32.mrb[0].mxu0
        %v3247 = vadd.f32 0.0, %v3246
        %v3248 = vpop.f32.mrb[0].mxu0
        %3249 = vmatprep.mubr.f32.mxu0 0.0
        %3250 = vmatmul.mubr.f32.gmra.mrb[0].mxu0 %v3085
        %v3251 = vpop.f32.mrb[0].mxu0
        %v3252 = vadd.f32 0.0, %v3251
        %v3253 = vpop.f32.mrb[0].mxu0
        %3254 = vmatprep.mubr.f32.mxu0 0.0
        %3255 = vmatmul.mubr.f32.gmra.mrb[0].mxu0 %v3088
        %v3256 = vpop.f32.mrb[0].mxu0
        %v3257 = vadd.f32 0.0, %v3256
        %v3258 = vpop.f32.mrb[0].mxu0
        %3259 = vmatprep.mubr.f32.mxu0 0.0
        %3260 = vmatmul.mubr.f32.gmra.mrb[0].mxu0 %v3091
        %v3261 = vpop.f32.mrb[0].mxu0
        %v3262 = vadd.f32 0.0, %v3261
        %v3263 = vpop.f32.mrb[0].mxu0
        %3264 = vmatprep.mubr.f32.mxu0 0.0
        %3265 = vmatmul.mubr.f32.gmra.mrb[0].mxu0 %v3094
        %v3266 = vpop.f32.mrb[0].mxu0
        %v3267 = vadd.f32 0.0, %v3266
        %v3268 = vpop.f32.mrb[0].mxu0
        %3269 = vmatprep.mubr.f32.mxu0 0.0
        %3270 = vmatmul.mubr.f32.gmra.mrb[0].mxu0 %v3097
        %v3271 = vpop.f32.mrb[0].mxu0
        %v3272 = vadd.f32 0.0, %v3271
        %v3273 = vpop.f32.mrb[0].mxu0
        %3274 = vmatprep.mubr.f32.mxu0 0.0
        %3275 = vmatmul.mubr.f32.gmra.mrb[0].mxu0 %v3100
        %v3276 = vpop.f32.mrb[0].mxu0
        %v3277 = vadd.f32 0.0, %v3276
        %v3278 = vpop.f32.mrb[0].mxu0
        %3279 = vmatprep.mubr.f32.mxu0 0.0
        %3280 = vmatmul.mubr.f32.gmra.mrb[0].mxu0 %v3103
        %v3281 = vpop.f32.mrb[0].mxu0
        %v3282 = vadd.f32 0.0, %v3281
        %v3283 = vpop.f32.mrb[0].mxu0
        %3284 = vmatprep.mubr.f32.mxu0 0.0
        %3285 = vmatmul.mubr.f32.gmra.mrb[0].mxu0 %v3106
        %v3286 = vpop.f32.mrb[0].mxu0
        %v3287 = vadd.f32 0.0, %v3286
        %v3288 = vpop.f32.mrb[0].mxu0
        %3289 = vmatprep.mubr.f32.mxu0 0.0
        %3290 = vmatmul.mubr.f32.gmra.mrb[0].mxu0 %v3109
        %v3291 = vpop.f32.mrb[0].mxu0
        %v3292 = vadd.f32 0.0, %v3291
        %v3293 = vpop.f32.mrb[0].mxu0
        %3294 = vmatprep.mubr.f32.mxu0 0.0
        %3295 = vmatmul.mubr.f32.gmra.mrb[0].mxu0 %v3112
        %v3296 = vpop.f32.mrb[0].mxu0
        %v3297 = vadd.f32 0.0, %v3296
        %v3298 = vpop.f32.mrb[0].mxu0
        %3299 = vmatprep.mubr.f32.mxu0 0.0
        %3300 = vmatmul.mubr.f32.gmra.mrb[0].mxu0 %v3115
        %v3301 = vpop.f32.mrb[0].mxu0
        %v3302 = vadd.f32 0.0, %v3301
        %v3303 = vpop.f32.mrb[0].mxu0
        %3304 = vmatprep.mubr.f32.mxu0 0.0
        %3305 = vmatmul.mubr.f32.gmra.mrb[0].mxu0 %v3118
        %v3306 = vpop.f32.mrb[0].mxu0
        %v3307 = vadd.f32 0.0, %v3306
        %v3308 = vpop.f32.mrb[0].mxu0
        %3309 = vmatprep.mubr.f32.mxu0 0.0
        %3310 = vmatmul.mubr.f32.gmra.mrb[0].mxu0 %v3121
        %v3311 = vpop.f32.mrb[0].mxu0
        %v3312 = vadd.f32 0.0, %v3311
        %v3313 = vpop.f32.mrb[0].mxu0
        %3314 = vmatprep.mubr.f32.mxu0 0.0
        %3315 = vmatmul.mubr.f32.gmra.mrb[0].mxu0 %v3124
        %v3316 = vpop.f32.mrb[0].mxu0
        %v3317 = vadd.f32 0.0, %v3316
        %v3318 = vpop.f32.mrb[0].mxu0
        %3319 = vmatprep.mubr.f32.mxu0 0.0
        %3320 = vmatmul.mubr.f32.gmra.mrb[0].mxu0 %v3127
        %v3321 = vpop.f32.mrb[0].mxu0
        %v3322 = vadd.f32 0.0, %v3321
        %v3323 = vpop.f32.mrb[0].mxu0
        %3324 = vmatprep.mubr.f32.mxu0 0.0
        %3325 = vmatmul.mubr.f32.gmra.mrb[0].mxu0 %v3130
        %v3326 = vpop.f32.mrb[0].mxu0
        %v3327 = vadd.f32 0.0, %v3326
        %v3328 = vpop.f32.mrb[0].mxu0
        %3329 = vmatprep.mubr.f32.mxu0 0.0
        %3330 = vmatmul.mubr.f32.gmra.mrb[0].mxu0 %v3133
        %v3331 = vpop.f32.mrb[0].mxu0
        %v3332 = vadd.f32 0.0, %v3331
        %v3333 = vpop.f32.mrb[0].mxu0
        %3334 = vmatprep.mubr.f32.mxu0 0.0
        %3335 = vmatmul.mubr.f32.gmra.mrb[0].mxu0 %v3136
        %v3336 = vpop.f32.mrb[0].mxu0
        %v3337 = vadd.f32 0.0, %v3336
        %v3338 = vpop.f32.mrb[0].mxu0
        %3339 = vmatprep.mubr.f32.mxu0 0.0
        %3340 = vmatmul.mubr.f32.gmra.mrb[0].mxu0 %v3139
        %v3341 = vpop.f32.mrb[0].mxu0
        %v3342 = vadd.f32 0.0, %v3341
        %v3343 = vpop.f32.mrb[0].mxu0
        %3344 = vmatprep.mubr.f32.mxu0 0.0
        %3345 = vmatmul.mubr.f32.gmra.mrb[0].mxu0 %v3142
        %v3346 = vpop.f32.mrb[0].mxu0
        %v3347 = vadd.f32 0.0, %v3346
        %v3348 = vpop.f32.mrb[0].mxu0
        %3349 = vmatprep.mubr.f32.mxu0 0.0
        %3350 = vmatmul.mubr.f32.gmra.mrb[0].mxu0 %v3145
        %v3351 = vpop.f32.mrb[0].mxu0
        %v3352 = vadd.f32 0.0, %v3351
        %v3353 = vpop.f32.mrb[0].mxu0
        %3354 = vmatprep.mubr.f32.mxu0 0.0
        %3355 = vmatmul.mubr.f32.gmra.mrb[0].mxu0 %v3148
        %v3356 = vpop.f32.mrb[0].mxu0
        %v3357 = vadd.f32 0.0, %v3356
        %v3358 = vpop.f32.mrb[0].mxu0
        %3359 = vmatprep.mubr.f32.mxu0 0.0
        %3360 = vmatmul.mubr.f32.gmra.mrb[0].mxu0 %v3151
        %v3361 = vpop.f32.mrb[0].mxu0
        %v3362 = vadd.f32 0.0, %v3361
        %v3363 = vpop.f32.mrb[0].mxu0
        %3364 = vmatprep.mubr.f32.mxu0 0.0
        %3365 = vmatmul.mubr.f32.gmra.mrb[0].mxu0 %v3154
        %v3366 = vpop.f32.mrb[0].mxu0
        %v3367 = vadd.f32 0.0, %v3366
        %v3368 = vpop.f32.mrb[0].mxu0
        %3369 = vmatprep.mubr.f32.mxu0 0.0
        %3370 = vmatmul.mubr.f32.gmra.mrb[0].mxu0 %v3157
        %v3371 = vpop.f32.mrb[0].mxu0
        %v3372 = vadd.f32 0.0, %v3371
        %v3373 = vpop.f32.mrb[0].mxu0
        %3374 = vmatprep.mubr.f32.mxu0 0.0
        %3375 = vmatmul.mubr.f32.gmra.mrb[0].mxu0 %v3160
        %v3376 = vpop.f32.mrb[0].mxu0
        %v3377 = vadd.f32 0.0, %v3376
        %v3378 = vpop.f32.mrb[0].mxu0
        %3379 = vmatprep.mubr.f32.mxu0 0.0
        %3380 = vmatmul.mubr.f32.gmra.mrb[0].mxu0 %v3163
        %v3381 = vpop.f32.mrb[0].mxu0
        %v3382 = vadd.f32 0.0, %v3381
        %v3383 = vpop.f32.mrb[0].mxu0
        %3384 = vdwg.mxu0
        %v3385 = vadd.f32 %v2885, %v3232
        %v3386 = vadd.f32 %v2890, %v3237
        %v3387 = vadd.f32 %v2895, %v3242
        %v3388 = vadd.f32 %v2900, %v3247
        %v3389 = vadd.f32 %v2905, %v3252
        %v3390 = vadd.f32 %v2910, %v3257
        %v3391 = vadd.f32 %v2915, %v3262
        %v3392 = vadd.f32 %v2920, %v3267
        %v3393 = vadd.f32 %v2925, %v3272
        %v3394 = vadd.f32 %v2930, %v3277
        %v3395 = vadd.f32 %v2935, %v3282
        %v3396 = vadd.f32 %v2940, %v3287
        %v3397 = vadd.f32 %v2945, %v3292
        %v3398 = vadd.f32 %v2950, %v3297
        %v3399 = vadd.f32 %v2955, %v3302
        %v3400 = vadd.f32 %v2960, %v3307
        %v3401 = vadd.f32 %v2965, %v3312
        %v3402 = vadd.f32 %v2970, %v3317
        %v3403 = vadd.f32 %v2975, %v3322
        %v3404 = vadd.f32 %v2980, %v3327
        %v3405 = vadd.f32 %v2985, %v3332
        %v3406 = vadd.f32 %v2990, %v3337
        %v3407 = vadd.f32 %v2995, %v3342
        %v3408 = vadd.f32 %v3000, %v3347
        %v3409 = vadd.f32 %v3005, %v3352
        %v3410 = vadd.f32 %v3010, %v3357
        %v3411 = vadd.f32 %v3015, %v3362
        %v3412 = vadd.f32 %v3020, %v3367
        %v3413 = vadd.f32 %v3025, %v3372
        %v3414 = vadd.f32 %v3030, %v3377
        %v3415 = vadd.f32 %v3035, %v3382
        %v3416 = vld [vmem:[#allocation2 + $0x10] sm:$0xff]
        %v3417 = vld [vmem:[#allocation2 + $0x18] sm:$0xff]
        %v3418 = vld [vmem:[#allocation2 + $0x20] sm:$0xff]
        %v3419 = vld [vmem:[#allocation2 + $0x28] sm:$0xff]
        %v3420 = vld [vmem:[#allocation2 + $0x30] sm:$0xff]
        %v3421 = vld [vmem:[#allocation2 + $0x38] sm:$0xff]
        %v3422 = vld [vmem:[#allocation2 + $0x40] sm:$0xff]
        %v3423 = vld [vmem:[#allocation2 + $0x48] sm:$0xff]
        %v3424 = vld [vmem:[#allocation2 + $0x50] sm:$0xff]
        %v3425 = vld [vmem:[#allocation2 + $0x58] sm:$0xff]
        %v3426 = vld [vmem:[#allocation2 + $0x60] sm:$0xff]
        %v3427 = vld [vmem:[#allocation2 + $0x68] sm:$0xff]
        %v3428 = vld [vmem:[#allocation2 + $0x70] sm:$0xff]
        %v3429 = vld [vmem:[#allocation2 + $0x78] sm:$0xff]
        %v3430 = vld [vmem:[#allocation2 + $0x80] sm:$0xff]
        %v3431 = vld [vmem:[#allocation2 + $0x88] sm:$0xff]
        %v3432 = vld [vmem:[#allocation2 + $0x90] sm:$0xff]
        %v3433 = vld [vmem:[#allocation2 + $0x98] sm:$0xff]
        %v3434 = vld [vmem:[#allocation2 + $0xa0] sm:$0xff]
        %v3435 = vld [vmem:[#allocation2 + $0xa8] sm:$0xff]
        %v3436 = vld [vmem:[#allocation2 + $0xb0] sm:$0xff]
        %v3437 = vld [vmem:[#allocation2 + $0xb8] sm:$0xff]
        %v3438 = vld [vmem:[#allocation2 + $0xc0] sm:$0xff]
        %v3439 = vld [vmem:[#allocation2 + $0xc8] sm:$0xff]
        %v3440 = vld [vmem:[#allocation2 + $0xd0] sm:$0xff]
        %v3441 = vld [vmem:[#allocation2 + $0xd8] sm:$0xff]
        %v3442 = vld [vmem:[#allocation2 + $0xe0] sm:$0xff]
        %v3443 = vld [vmem:[#allocation2 + $0xe8] sm:$0xff]
        %v3444 = vld [vmem:[#allocation2 + $0xf0] sm:$0xff]
        %v3445 = vld [vmem:[#allocation2 + $0xf8] sm:$0xff]
        %v3446 = vld [vmem:[#allocation2 + $0x100] sm:$0xff]
        %s3447 = scalar_lea.vmem %s4, 48
        %v3448 = vld [vmem:[%s3447] sm:$0xff]
        %v3449 = vld [vmem:[%s3447 + $0x8] sm:$0xff]
        %v3451 = vsel %vm2308, %v3416, 0
        %v3454 = vsel %vm2308, %v3417, 0
        %v3457 = vsel %vm2308, %v3418, 0
        %v3460 = vsel %vm2308, %v3419, 0
        %v3463 = vsel %vm2308, %v3420, 0
        %v3466 = vsel %vm2308, %v3421, 0
        %v3469 = vsel %vm2308, %v3422, 0
        %v3472 = vsel %vm2308, %v3423, 0
        %v3475 = vsel %vm2308, %v3424, 0
        %v3478 = vsel %vm2308, %v3425, 0
        %v3481 = vsel %vm2308, %v3426, 0
        %v3484 = vsel %vm2308, %v3427, 0
        %v3487 = vsel %vm2308, %v3428, 0
        %v3490 = vsel %vm2308, %v3429, 0
        %v3493 = vsel %vm2308, %v3430, 0
        %v3496 = vsel %vm2308, %v3431, 0
        %v3499 = vsel %vm2308, %v3432, 0
        %v3502 = vsel %vm2308, %v3433, 0
        %v3505 = vsel %vm2308, %v3434, 0
        %v3508 = vsel %vm2308, %v3435, 0
        %v3511 = vsel %vm2308, %v3436, 0
        %v3514 = vsel %vm2308, %v3437, 0
        %v3517 = vsel %vm2308, %v3438, 0
        %v3520 = vsel %vm2308, %v3439, 0
        %v3523 = vsel %vm2308, %v3440, 0
        %v3526 = vsel %vm2308, %v3441, 0
        %v3529 = vsel %vm2308, %v3442, 0
        %v3532 = vsel %vm2308, %v3443, 0
        %v3535 = vsel %vm2308, %v3444, 0
        %v3538 = vsel %vm2308, %v3445, 0
        %v3541 = vsel %vm2308, %v3446, 0
        %3543 = vmatprep.subr.mxu0 0.0
        %3544 = vmatpush1.msra.mxu0 %v3448
        %3545 = vmatprep.subr.mxu0 0.0
        %3546 = vmatpush1.msra.mxu0 %v3449
        %3547 = vmatprep.subr.mxu0 0.0
        %3548 = vmatpush1.msra.mxu0 0.0
        %3549 = vmatprep.subr.mxu0 0.0
        %3550 = vmatpush1.msra.mxu0 0.0
        %3551 = vmatprep.subr.mxu0 0.0
        %3552 = vmatpush1.msra.mxu0 0.0
        %3553 = vmatprep.subr.mxu0 0.0
        %3554 = vmatpush1.msra.mxu0 0.0
        %3555 = vmatprep.subr.mxu0 0.0
        %3556 = vmatpush1.msra.mxu0 0.0
        %3557 = vmatprep.subr.mxu0 0.0
        %3558 = vmatpush1.msra.mxu0 0.0
        %3559 = vmatprep.subr.mxu0 0.0
        %3560 = vmatpush1.msra.mxu0 0.0
        %3561 = vmatprep.subr.mxu0 0.0
        %3562 = vmatpush1.msra.mxu0 0.0
        %3563 = vmatprep.subr.mxu0 0.0
        %3564 = vmatpush1.msra.mxu0 0.0
        %3565 = vmatprep.subr.mxu0 0.0
        %3566 = vmatpush1.msra.mxu0 0.0
        %3567 = vmatprep.subr.mxu0 0.0
        %3568 = vmatpush1.msra.mxu0 0.0
        %3569 = vmatprep.subr.mxu0 0.0
        %3570 = vmatpush1.msra.mxu0 0.0
        %3571 = vmatprep.subr.mxu0 0.0
        %3572 = vmatpush1.msra.mxu0 0.0
        %3573 = vmatprep.subr.mxu0 0.0
        %3574 = vmatpush1.msra.mxu0 0.0
        %3575 = vmatprep.subr.mxu0 0.0
        %3576 = vmatpush1.msra.mxu0 0.0
        %3577 = vmatprep.subr.mxu0 0.0
        %3578 = vmatpush1.msra.mxu0 0.0
        %3579 = vmatprep.subr.mxu0 0.0
        %3580 = vmatpush1.msra.mxu0 0.0
        %3581 = vmatprep.subr.mxu0 0.0
        %3582 = vmatpush1.msra.mxu0 0.0
        %3583 = vmatprep.subr.mxu0 0.0
        %3584 = vmatpush1.msra.mxu0 0.0
        %3585 = vmatprep.subr.mxu0 0.0
        %3586 = vmatpush1.msra.mxu0 0.0
        %3587 = vmatprep.subr.mxu0 0.0
        %3588 = vmatpush1.msra.mxu0 0.0
        %3589 = vmatprep.subr.mxu0 0.0
        %3590 = vmatpush1.msra.mxu0 0.0
        %3591 = vmatprep.subr.mxu0 0.0
        %3592 = vmatpush1.msra.mxu0 0.0
        %3593 = vmatprep.subr.mxu0 0.0
        %3594 = vmatpush1.msra.mxu0 0.0
        %3595 = vmatprep.subr.mxu0 0.0
        %3596 = vmatpush1.msra.mxu0 0.0
        %3597 = vmatprep.subr.mxu0 0.0
        %3598 = vmatpush1.msra.mxu0 0.0
        %3599 = vmatprep.subr.mxu0 0.0
        %3600 = vmatpush1.msra.mxu0 0.0
        %3601 = vmatprep.subr.mxu0 0.0
        %3602 = vmatpush1.msra.mxu0 0.0
        %3603 = vmatprep.subr.mxu0 0.0
        %3604 = vmatpush1.msra.mxu0 0.0
        %3605 = vmatprep.subr.mxu0 0.0
        %3606 = vmatpush1.msra.mxu0 0.0
        %3607 = vmatprep.mubr.f32.mxu0 0.0
        %3608 = vmatmul.mubr.f32.gmra.mrb[0].mxu0 %v3451
        %v3609 = vpop.f32.mrb[0].mxu0
        %v3610 = vadd.f32 0.0, %v3609
        %v3611 = vpop.f32.mrb[0].mxu0
        %3612 = vmatprep.mubr.f32.mxu0 0.0
        %3613 = vmatmul.mubr.f32.gmra.mrb[0].mxu0 %v3454
        %v3614 = vpop.f32.mrb[0].mxu0
        %v3615 = vadd.f32 0.0, %v3614
        %v3616 = vpop.f32.mrb[0].mxu0
        %3617 = vmatprep.mubr.f32.mxu0 0.0
        %3618 = vmatmul.mubr.f32.gmra.mrb[0].mxu0 %v3457
        %v3619 = vpop.f32.mrb[0].mxu0
        %v3620 = vadd.f32 0.0, %v3619
        %v3621 = vpop.f32.mrb[0].mxu0
        %3622 = vmatprep.mubr.f32.mxu0 0.0
        %3623 = vmatmul.mubr.f32.gmra.mrb[0].mxu0 %v3460
        %v3624 = vpop.f32.mrb[0].mxu0
        %v3625 = vadd.f32 0.0, %v3624
        %v3626 = vpop.f32.mrb[0].mxu0
        %3627 = vmatprep.mubr.f32.mxu0 0.0
        %3628 = vmatmul.mubr.f32.gmra.mrb[0].mxu0 %v3463
        %v3629 = vpop.f32.mrb[0].mxu0
        %v3630 = vadd.f32 0.0, %v3629
        %v3631 = vpop.f32.mrb[0].mxu0
        %3632 = vmatprep.mubr.f32.mxu0 0.0
        %3633 = vmatmul.mubr.f32.gmra.mrb[0].mxu0 %v3466
        %v3634 = vpop.f32.mrb[0].mxu0
        %v3635 = vadd.f32 0.0, %v3634
        %v3636 = vpop.f32.mrb[0].mxu0
        %3637 = vmatprep.mubr.f32.mxu0 0.0
        %3638 = vmatmul.mubr.f32.gmra.mrb[0].mxu0 %v3469
        %v3639 = vpop.f32.mrb[0].mxu0
        %v3640 = vadd.f32 0.0, %v3639
        %v3641 = vpop.f32.mrb[0].mxu0
        %3642 = vmatprep.mubr.f32.mxu0 0.0
        %3643 = vmatmul.mubr.f32.gmra.mrb[0].mxu0 %v3472
        %v3644 = vpop.f32.mrb[0].mxu0
        %v3645 = vadd.f32 0.0, %v3644
        %v3646 = vpop.f32.mrb[0].mxu0
        %3647 = vmatprep.mubr.f32.mxu0 0.0
        %3648 = vmatmul.mubr.f32.gmra.mrb[0].mxu0 %v3475
        %v3649 = vpop.f32.mrb[0].mxu0
        %v3650 = vadd.f32 0.0, %v3649
        %v3651 = vpop.f32.mrb[0].mxu0
        %3652 = vmatprep.mubr.f32.mxu0 0.0
        %3653 = vmatmul.mubr.f32.gmra.mrb[0].mxu0 %v3478
        %v3654 = vpop.f32.mrb[0].mxu0
        %v3655 = vadd.f32 0.0, %v3654
        %v3656 = vpop.f32.mrb[0].mxu0
        %3657 = vmatprep.mubr.f32.mxu0 0.0
        %3658 = vmatmul.mubr.f32.gmra.mrb[0].mxu0 %v3481
        %v3659 = vpop.f32.mrb[0].mxu0
        %v3660 = vadd.f32 0.0, %v3659
        %v3661 = vpop.f32.mrb[0].mxu0
        %3662 = vmatprep.mubr.f32.mxu0 0.0
        %3663 = vmatmul.mubr.f32.gmra.mrb[0].mxu0 %v3484
        %v3664 = vpop.f32.mrb[0].mxu0
        %v3665 = vadd.f32 0.0, %v3664
        %v3666 = vpop.f32.mrb[0].mxu0
        %3667 = vmatprep.mubr.f32.mxu0 0.0
        %3668 = vmatmul.mubr.f32.gmra.mrb[0].mxu0 %v3487
        %v3669 = vpop.f32.mrb[0].mxu0
        %v3670 = vadd.f32 0.0, %v3669
        %v3671 = vpop.f32.mrb[0].mxu0
        %3672 = vmatprep.mubr.f32.mxu0 0.0
        %3673 = vmatmul.mubr.f32.gmra.mrb[0].mxu0 %v3490
        %v3674 = vpop.f32.mrb[0].mxu0
        %v3675 = vadd.f32 0.0, %v3674
        %v3676 = vpop.f32.mrb[0].mxu0
        %3677 = vmatprep.mubr.f32.mxu0 0.0
        %3678 = vmatmul.mubr.f32.gmra.mrb[0].mxu0 %v3493
        %v3679 = vpop.f32.mrb[0].mxu0
        %v3680 = vadd.f32 0.0, %v3679
        %v3681 = vpop.f32.mrb[0].mxu0
        %3682 = vmatprep.mubr.f32.mxu0 0.0
        %3683 = vmatmul.mubr.f32.gmra.mrb[0].mxu0 %v3496
        %v3684 = vpop.f32.mrb[0].mxu0
        %v3685 = vadd.f32 0.0, %v3684
        %v3686 = vpop.f32.mrb[0].mxu0
        %3687 = vmatprep.mubr.f32.mxu0 0.0
        %3688 = vmatmul.mubr.f32.gmra.mrb[0].mxu0 %v3499
        %v3689 = vpop.f32.mrb[0].mxu0
        %v3690 = vadd.f32 0.0, %v3689
        %v3691 = vpop.f32.mrb[0].mxu0
        %3692 = vmatprep.mubr.f32.mxu0 0.0
        %3693 = vmatmul.mubr.f32.gmra.mrb[0].mxu0 %v3502
        %v3694 = vpop.f32.mrb[0].mxu0
        %v3695 = vadd.f32 0.0, %v3694
        %v3696 = vpop.f32.mrb[0].mxu0
        %3697 = vmatprep.mubr.f32.mxu0 0.0
        %3698 = vmatmul.mubr.f32.gmra.mrb[0].mxu0 %v3505
        %v3699 = vpop.f32.mrb[0].mxu0
        %v3700 = vadd.f32 0.0, %v3699
        %v3701 = vpop.f32.mrb[0].mxu0
        %3702 = vmatprep.mubr.f32.mxu0 0.0
        %3703 = vmatmul.mubr.f32.gmra.mrb[0].mxu0 %v3508
        %v3704 = vpop.f32.mrb[0].mxu0
        %v3705 = vadd.f32 0.0, %v3704
        %v3706 = vpop.f32.mrb[0].mxu0
        %3707 = vmatprep.mubr.f32.mxu0 0.0
        %3708 = vmatmul.mubr.f32.gmra.mrb[0].mxu0 %v3511
        %v3709 = vpop.f32.mrb[0].mxu0
        %v3710 = vadd.f32 0.0, %v3709
        %v3711 = vpop.f32.mrb[0].mxu0
        %3712 = vmatprep.mubr.f32.mxu0 0.0
        %3713 = vmatmul.mubr.f32.gmra.mrb[0].mxu0 %v3514
        %v3714 = vpop.f32.mrb[0].mxu0
        %v3715 = vadd.f32 0.0, %v3714
        %v3716 = vpop.f32.mrb[0].mxu0
        %3717 = vmatprep.mubr.f32.mxu0 0.0
        %3718 = vmatmul.mubr.f32.gmra.mrb[0].mxu0 %v3517
        %v3719 = vpop.f32.mrb[0].mxu0
        %v3720 = vadd.f32 0.0, %v3719
        %v3721 = vpop.f32.mrb[0].mxu0
        %3722 = vmatprep.mubr.f32.mxu0 0.0
        %3723 = vmatmul.mubr.f32.gmra.mrb[0].mxu0 %v3520
        %v3724 = vpop.f32.mrb[0].mxu0
        %v3725 = vadd.f32 0.0, %v3724
        %v3726 = vpop.f32.mrb[0].mxu0
        %3727 = vmatprep.mubr.f32.mxu0 0.0
        %3728 = vmatmul.mubr.f32.gmra.mrb[0].mxu0 %v3523
        %v3729 = vpop.f32.mrb[0].mxu0
        %v3730 = vadd.f32 0.0, %v3729
        %v3731 = vpop.f32.mrb[0].mxu0
        %3732 = vmatprep.mubr.f32.mxu0 0.0
        %3733 = vmatmul.mubr.f32.gmra.mrb[0].mxu0 %v3526
        %v3734 = vpop.f32.mrb[0].mxu0
        %v3735 = vadd.f32 0.0, %v3734
        %v3736 = vpop.f32.mrb[0].mxu0
        %3737 = vmatprep.mubr.f32.mxu0 0.0
        %3738 = vmatmul.mubr.f32.gmra.mrb[0].mxu0 %v3529
        %v3739 = vpop.f32.mrb[0].mxu0
        %v3740 = vadd.f32 0.0, %v3739
        %v3741 = vpop.f32.mrb[0].mxu0
        %3742 = vmatprep.mubr.f32.mxu0 0.0
        %3743 = vmatmul.mubr.f32.gmra.mrb[0].mxu0 %v3532
        %v3744 = vpop.f32.mrb[0].mxu0
        %v3745 = vadd.f32 0.0, %v3744
        %v3746 = vpop.f32.mrb[0].mxu0
        %3747 = vmatprep.mubr.f32.mxu0 0.0
        %3748 = vmatmul.mubr.f32.gmra.mrb[0].mxu0 %v3535
        %v3749 = vpop.f32.mrb[0].mxu0
        %v3750 = vadd.f32 0.0, %v3749
        %v3751 = vpop.f32.mrb[0].mxu0
        %3752 = vmatprep.mubr.f32.mxu0 0.0
        %3753 = vmatmul.mubr.f32.gmra.mrb[0].mxu0 %v3538
        %v3754 = vpop.f32.mrb[0].mxu0
        %v3755 = vadd.f32 0.0, %v3754
        %v3756 = vpop.f32.mrb[0].mxu0
        %3757 = vmatprep.mubr.f32.mxu0 0.0
        %3758 = vmatmul.mubr.f32.gmra.mrb[0].mxu0 %v3541
        %v3759 = vpop.f32.mrb[0].mxu0
        %v3760 = vadd.f32 0.0, %v3759
        %v3761 = vpop.f32.mrb[0].mxu0
        %3762 = vdwg.mxu0
        %v3763 = vadd.f32 %v3385, %v3610
        %v3764 = vadd.f32 %v3386, %v3615
        %v3765 = vadd.f32 %v3387, %v3620
        %v3766 = vadd.f32 %v3388, %v3625
        %v3767 = vadd.f32 %v3389, %v3630
        %v3768 = vadd.f32 %v3390, %v3635
        %v3769 = vadd.f32 %v3391, %v3640
        %v3770 = vadd.f32 %v3392, %v3645
        %v3771 = vadd.f32 %v3393, %v3650
        %v3772 = vadd.f32 %v3394, %v3655
        %v3773 = vadd.f32 %v3395, %v3660
        %v3774 = vadd.f32 %v3396, %v3665
        %v3775 = vadd.f32 %v3397, %v3670
        %v3776 = vadd.f32 %v3398, %v3675
        %v3777 = vadd.f32 %v3399, %v3680
        %v3778 = vadd.f32 %v3400, %v3685
        %v3779 = vadd.f32 %v3401, %v3690
        %v3780 = vadd.f32 %v3402, %v3695
        %v3781 = vadd.f32 %v3403, %v3700
        %v3782 = vadd.f32 %v3404, %v3705
        %v3783 = vadd.f32 %v3405, %v3710
        %v3784 = vadd.f32 %v3406, %v3715
        %v3785 = vadd.f32 %v3407, %v3720
        %v3786 = vadd.f32 %v3408, %v3725
        %v3787 = vadd.f32 %v3409, %v3730
        %v3788 = vadd.f32 %v3410, %v3735
        %v3789 = vadd.f32 %v3411, %v3740
        %v3790 = vadd.f32 %v3412, %v3745
        %v3791 = vadd.f32 %v3413, %v3750
        %v3792 = vadd.f32 %v3414, %v3755
        %v3793 = vadd.f32 %v3415, %v3760
        %v3794 = vld [vmem:[#allocation2 + $0x11] sm:$0xff]
        %v3795 = vld [vmem:[#allocation2 + $0x19] sm:$0xff]
        %v3796 = vld [vmem:[#allocation2 + $0x21] sm:$0xff]
        %v3797 = vld [vmem:[#allocation2 + $0x29] sm:$0xff]
        %v3798 = vld [vmem:[#allocation2 + $0x31] sm:$0xff]
        %v3799 = vld [vmem:[#allocation2 + $0x39] sm:$0xff]
        %v3800 = vld [vmem:[#allocation2 + $0x41] sm:$0xff]
        %v3801 = vld [vmem:[#allocation2 + $0x49] sm:$0xff]
        %v3802 = vld [vmem:[#allocation2 + $0x51] sm:$0xff]
        %v3803 = vld [vmem:[#allocation2 + $0x59] sm:$0xff]
        %v3804 = vld [vmem:[#allocation2 + $0x61] sm:$0xff]
        %v3805 = vld [vmem:[#allocation2 + $0x69] sm:$0xff]
        %v3806 = vld [vmem:[#allocation2 + $0x71] sm:$0xff]
        %v3807 = vld [vmem:[#allocation2 + $0x79] sm:$0xff]
        %v3808 = vld [vmem:[#allocation2 + $0x81] sm:$0xff]
        %v3809 = vld [vmem:[#allocation2 + $0x89] sm:$0xff]
        %v3810 = vld [vmem:[#allocation2 + $0x91] sm:$0xff]
        %v3811 = vld [vmem:[#allocation2 + $0x99] sm:$0xff]
        %v3812 = vld [vmem:[#allocation2 + $0xa1] sm:$0xff]
        %v3813 = vld [vmem:[#allocation2 + $0xa9] sm:$0xff]
        %v3814 = vld [vmem:[#allocation2 + $0xb1] sm:$0xff]
        %v3815 = vld [vmem:[#allocation2 + $0xb9] sm:$0xff]
        %v3816 = vld [vmem:[#allocation2 + $0xc1] sm:$0xff]
        %v3817 = vld [vmem:[#allocation2 + $0xc9] sm:$0xff]
        %v3818 = vld [vmem:[#allocation2 + $0xd1] sm:$0xff]
        %v3819 = vld [vmem:[#allocation2 + $0xd9] sm:$0xff]
        %v3820 = vld [vmem:[#allocation2 + $0xe1] sm:$0xff]
        %v3821 = vld [vmem:[#allocation2 + $0xe9] sm:$0xff]
        %v3822 = vld [vmem:[#allocation2 + $0xf1] sm:$0xff]
        %v3823 = vld [vmem:[#allocation2 + $0xf9] sm:$0xff]
        %v3824 = vld [vmem:[#allocation2 + $0x101] sm:$0xff]
        %s3825 = scalar_lea.vmem %s4, 64
        %v3826 = vld [vmem:[%s3825] sm:$0xff]
        %v3827 = vld [vmem:[%s3825 + $0x8] sm:$0xff]
        %v3829 = vsel %vm2308, %v3794, 0
        %v3832 = vsel %vm2308, %v3795, 0
        %v3835 = vsel %vm2308, %v3796, 0
        %v3838 = vsel %vm2308, %v3797, 0
        %v3841 = vsel %vm2308, %v3798, 0
        %v3844 = vsel %vm2308, %v3799, 0
        %v3847 = vsel %vm2308, %v3800, 0
        %v3850 = vsel %vm2308, %v3801, 0
        %v3853 = vsel %vm2308, %v3802, 0
        %v3856 = vsel %vm2308, %v3803, 0
        %v3859 = vsel %vm2308, %v3804, 0
        %v3862 = vsel %vm2308, %v3805, 0
        %v3865 = vsel %vm2308, %v3806, 0
        %v3868 = vsel %vm2308, %v3807, 0
        %v3871 = vsel %vm2308, %v3808, 0
        %v3874 = vsel %vm2308, %v3809, 0
        %v3877 = vsel %vm2308, %v3810, 0
        %v3880 = vsel %vm2308, %v3811, 0
        %v3883 = vsel %vm2308, %v3812, 0
        %v3886 = vsel %vm2308, %v3813, 0
        %v3889 = vsel %vm2308, %v3814, 0
        %v3892 = vsel %vm2308, %v3815, 0
        %v3895 = vsel %vm2308, %v3816, 0
        %v3898 = vsel %vm2308, %v3817, 0
        %v3901 = vsel %vm2308, %v3818, 0
        %v3904 = vsel %vm2308, %v3819, 0
        %v3907 = vsel %vm2308, %v3820, 0
        %v3910 = vsel %vm2308, %v3821, 0
        %v3913 = vsel %vm2308, %v3822, 0
        %v3916 = vsel %vm2308, %v3823, 0
        %v3919 = vsel %vm2308, %v3824, 0
        %3921 = vmatprep.subr.mxu0 0.0
        %3922 = vmatpush1.msra.mxu0 %v3826
        %3923 = vmatprep.subr.mxu0 0.0
        %3924 = vmatpush1.msra.mxu0 %v3827
        %3925 = vmatprep.subr.mxu0 0.0
        %3926 = vmatpush1.msra.mxu0 0.0
        %3927 = vmatprep.subr.mxu0 0.0
        %3928 = vmatpush1.msra.mxu0 0.0
        %3929 = vmatprep.subr.mxu0 0.0
        %3930 = vmatpush1.msra.mxu0 0.0
        %3931 = vmatprep.subr.mxu0 0.0
        %3932 = vmatpush1.msra.mxu0 0.0
        %3933 = vmatprep.subr.mxu0 0.0
        %3934 = vmatpush1.msra.mxu0 0.0
        %3935 = vmatprep.subr.mxu0 0.0
        %3936 = vmatpush1.msra.mxu0 0.0
        %3937 = vmatprep.subr.mxu0 0.0
        %3938 = vmatpush1.msra.mxu0 0.0
        %3939 = vmatprep.subr.mxu0 0.0
        %3940 = vmatpush1.msra.mxu0 0.0
        %3941 = vmatprep.subr.mxu0 0.0
        %3942 = vmatpush1.msra.mxu0 0.0
        %3943 = vmatprep.subr.mxu0 0.0
        %3944 = vmatpush1.msra.mxu0 0.0
        %3945 = vmatprep.subr.mxu0 0.0
        %3946 = vmatpush1.msra.mxu0 0.0
        %3947 = vmatprep.subr.mxu0 0.0
        %3948 = vmatpush1.msra.mxu0 0.0
        %3949 = vmatprep.subr.mxu0 0.0
        %3950 = vmatpush1.msra.mxu0 0.0
        %3951 = vmatprep.subr.mxu0 0.0
        %3952 = vmatpush1.msra.mxu0 0.0
        %3953 = vmatprep.subr.mxu0 0.0
        %3954 = vmatpush1.msra.mxu0 0.0
        %3955 = vmatprep.subr.mxu0 0.0
        %3956 = vmatpush1.msra.mxu0 0.0
        %3957 = vmatprep.subr.mxu0 0.0
        %3958 = vmatpush1.msra.mxu0 0.0
        %3959 = vmatprep.subr.mxu0 0.0
        %3960 = vmatpush1.msra.mxu0 0.0
        %3961 = vmatprep.subr.mxu0 0.0
        %3962 = vmatpush1.msra.mxu0 0.0
        %3963 = vmatprep.subr.mxu0 0.0
        %3964 = vmatpush1.msra.mxu0 0.0
        %3965 = vmatprep.subr.mxu0 0.0
        %3966 = vmatpush1.msra.mxu0 0.0
        %3967 = vmatprep.subr.mxu0 0.0
        %3968 = vmatpush1.msra.mxu0 0.0
        %3969 = vmatprep.subr.mxu0 0.0
        %3970 = vmatpush1.msra.mxu0 0.0
        %3971 = vmatprep.subr.mxu0 0.0
        %3972 = vmatpush1.msra.mxu0 0.0
        %3973 = vmatprep.subr.mxu0 0.0
        %3974 = vmatpush1.msra.mxu0 0.0
        %3975 = vmatprep.subr.mxu0 0.0
        %3976 = vmatpush1.msra.mxu0 0.0
        %3977 = vmatprep.subr.mxu0 0.0
        %3978 = vmatpush1.msra.mxu0 0.0
        %3979 = vmatprep.subr.mxu0 0.0
        %3980 = vmatpush1.msra.mxu0 0.0
        %3981 = vmatprep.subr.mxu0 0.0
        %3982 = vmatpush1.msra.mxu0 0.0
        %3983 = vmatprep.subr.mxu0 0.0
        %3984 = vmatpush1.msra.mxu0 0.0
        %3985 = vmatprep.mubr.f32.mxu0 0.0
        %3986 = vmatmul.mubr.f32.gmra.mrb[0].mxu0 %v3829
        %v3987 = vpop.f32.mrb[0].mxu0
        %v3988 = vadd.f32 0.0, %v3987
        %v3989 = vpop.f32.mrb[0].mxu0
        %3990 = vmatprep.mubr.f32.mxu0 0.0
        %3991 = vmatmul.mubr.f32.gmra.mrb[0].mxu0 %v3832
        %v3992 = vpop.f32.mrb[0].mxu0
        %v3993 = vadd.f32 0.0, %v3992
        %v3994 = vpop.f32.mrb[0].mxu0
        %3995 = vmatprep.mubr.f32.mxu0 0.0
        %3996 = vmatmul.mubr.f32.gmra.mrb[0].mxu0 %v3835
        %v3997 = vpop.f32.mrb[0].mxu0
        %v3998 = vadd.f32 0.0, %v3997
        %v3999 = vpop.f32.mrb[0].mxu0
        %4000 = vmatprep.mubr.f32.mxu0 0.0
        %4001 = vmatmul.mubr.f32.gmra.mrb[0].mxu0 %v3838
        %v4002 = vpop.f32.mrb[0].mxu0
        %v4003 = vadd.f32 0.0, %v4002
        %v4004 = vpop.f32.mrb[0].mxu0
        %4005 = vmatprep.mubr.f32.mxu0 0.0
        %4006 = vmatmul.mubr.f32.gmra.mrb[0].mxu0 %v3841
        %v4007 = vpop.f32.mrb[0].mxu0
        %v4008 = vadd.f32 0.0, %v4007
        %v4009 = vpop.f32.mrb[0].mxu0
        %4010 = vmatprep.mubr.f32.mxu0 0.0
        %4011 = vmatmul.mubr.f32.gmra.mrb[0].mxu0 %v3844
        %v4012 = vpop.f32.mrb[0].mxu0
        %v4013 = vadd.f32 0.0, %v4012
        %v4014 = vpop.f32.mrb[0].mxu0
        %4015 = vmatprep.mubr.f32.mxu0 0.0
        %4016 = vmatmul.mubr.f32.gmra.mrb[0].mxu0 %v3847
        %v4017 = vpop.f32.mrb[0].mxu0
        %v4018 = vadd.f32 0.0, %v4017
        %v4019 = vpop.f32.mrb[0].mxu0
        %4020 = vmatprep.mubr.f32.mxu0 0.0
        %4021 = vmatmul.mubr.f32.gmra.mrb[0].mxu0 %v3850
        %v4022 = vpop.f32.mrb[0].mxu0
        %v4023 = vadd.f32 0.0, %v4022
        %v4024 = vpop.f32.mrb[0].mxu0
        %4025 = vmatprep.mubr.f32.mxu0 0.0
        %4026 = vmatmul.mubr.f32.gmra.mrb[0].mxu0 %v3853
        %v4027 = vpop.f32.mrb[0].mxu0
        %v4028 = vadd.f32 0.0, %v4027
        %v4029 = vpop.f32.mrb[0].mxu0
        %4030 = vmatprep.mubr.f32.mxu0 0.0
        %4031 = vmatmul.mubr.f32.gmra.mrb[0].mxu0 %v3856
        %v4032 = vpop.f32.mrb[0].mxu0
        %v4033 = vadd.f32 0.0, %v4032
        %v4034 = vpop.f32.mrb[0].mxu0
        %4035 = vmatprep.mubr.f32.mxu0 0.0
        %4036 = vmatmul.mubr.f32.gmra.mrb[0].mxu0 %v3859
        %v4037 = vpop.f32.mrb[0].mxu0
        %v4038 = vadd.f32 0.0, %v4037
        %v4039 = vpop.f32.mrb[0].mxu0
        %4040 = vmatprep.mubr.f32.mxu0 0.0
        %4041 = vmatmul.mubr.f32.gmra.mrb[0].mxu0 %v3862
        %v4042 = vpop.f32.mrb[0].mxu0
        %v4043 = vadd.f32 0.0, %v4042
        %v4044 = vpop.f32.mrb[0].mxu0
        %4045 = vmatprep.mubr.f32.mxu0 0.0
        %4046 = vmatmul.mubr.f32.gmra.mrb[0].mxu0 %v3865
        %v4047 = vpop.f32.mrb[0].mxu0
        %v4048 = vadd.f32 0.0, %v4047
        %v4049 = vpop.f32.mrb[0].mxu0
        %4050 = vmatprep.mubr.f32.mxu0 0.0
        %4051 = vmatmul.mubr.f32.gmra.mrb[0].mxu0 %v3868
        %v4052 = vpop.f32.mrb[0].mxu0
        %v4053 = vadd.f32 0.0, %v4052
        %v4054 = vpop.f32.mrb[0].mxu0
        %4055 = vmatprep.mubr.f32.mxu0 0.0
        %4056 = vmatmul.mubr.f32.gmra.mrb[0].mxu0 %v3871
        %v4057 = vpop.f32.mrb[0].mxu0
        %v4058 = vadd.f32 0.0, %v4057
        %v4059 = vpop.f32.mrb[0].mxu0
        %4060 = vmatprep.mubr.f32.mxu0 0.0
        %4061 = vmatmul.mubr.f32.gmra.mrb[0].mxu0 %v3874
        %v4062 = vpop.f32.mrb[0].mxu0
        %v4063 = vadd.f32 0.0, %v4062
        %v4064 = vpop.f32.mrb[0].mxu0
        %4065 = vmatprep.mubr.f32.mxu0 0.0
        %4066 = vmatmul.mubr.f32.gmra.mrb[0].mxu0 %v3877
        %v4067 = vpop.f32.mrb[0].mxu0
        %v4068 = vadd.f32 0.0, %v4067
        %v4069 = vpop.f32.mrb[0].mxu0
        %4070 = vmatprep.mubr.f32.mxu0 0.0
        %4071 = vmatmul.mubr.f32.gmra.mrb[0].mxu0 %v3880
        %v4072 = vpop.f32.mrb[0].mxu0
        %v4073 = vadd.f32 0.0, %v4072
        %v4074 = vpop.f32.mrb[0].mxu0
        %4075 = vmatprep.mubr.f32.mxu0 0.0
        %4076 = vmatmul.mubr.f32.gmra.mrb[0].mxu0 %v3883
        %v4077 = vpop.f32.mrb[0].mxu0
        %v4078 = vadd.f32 0.0, %v4077
        %v4079 = vpop.f32.mrb[0].mxu0
        %4080 = vmatprep.mubr.f32.mxu0 0.0
        %4081 = vmatmul.mubr.f32.gmra.mrb[0].mxu0 %v3886
        %v4082 = vpop.f32.mrb[0].mxu0
        %v4083 = vadd.f32 0.0, %v4082
        %v4084 = vpop.f32.mrb[0].mxu0
        %4085 = vmatprep.mubr.f32.mxu0 0.0
        %4086 = vmatmul.mubr.f32.gmra.mrb[0].mxu0 %v3889
        %v4087 = vpop.f32.mrb[0].mxu0
        %v4088 = vadd.f32 0.0, %v4087
        %v4089 = vpop.f32.mrb[0].mxu0
        %4090 = vmatprep.mubr.f32.mxu0 0.0
        %4091 = vmatmul.mubr.f32.gmra.mrb[0].mxu0 %v3892
        %v4092 = vpop.f32.mrb[0].mxu0
        %v4093 = vadd.f32 0.0, %v4092
        %v4094 = vpop.f32.mrb[0].mxu0
        %4095 = vmatprep.mubr.f32.mxu0 0.0
        %4096 = vmatmul.mubr.f32.gmra.mrb[0].mxu0 %v3895
        %v4097 = vpop.f32.mrb[0].mxu0
        %v4098 = vadd.f32 0.0, %v4097
        %v4099 = vpop.f32.mrb[0].mxu0
        %4100 = vmatprep.mubr.f32.mxu0 0.0
        %4101 = vmatmul.mubr.f32.gmra.mrb[0].mxu0 %v3898
        %v4102 = vpop.f32.mrb[0].mxu0
        %v4103 = vadd.f32 0.0, %v4102
        %v4104 = vpop.f32.mrb[0].mxu0
        %4105 = vmatprep.mubr.f32.mxu0 0.0
        %4106 = vmatmul.mubr.f32.gmra.mrb[0].mxu0 %v3901
        %v4107 = vpop.f32.mrb[0].mxu0
        %v4108 = vadd.f32 0.0, %v4107
        %v4109 = vpop.f32.mrb[0].mxu0
        %4110 = vmatprep.mubr.f32.mxu0 0.0
        %4111 = vmatmul.mubr.f32.gmra.mrb[0].mxu0 %v3904
        %v4112 = vpop.f32.mrb[0].mxu0
        %v4113 = vadd.f32 0.0, %v4112
        %v4114 = vpop.f32.mrb[0].mxu0
        %4115 = vmatprep.mubr.f32.mxu0 0.0
        %4116 = vmatmul.mubr.f32.gmra.mrb[0].mxu0 %v3907
        %v4117 = vpop.f32.mrb[0].mxu0
        %v4118 = vadd.f32 0.0, %v4117
        %v4119 = vpop.f32.mrb[0].mxu0
        %4120 = vmatprep.mubr.f32.mxu0 0.0
        %4121 = vmatmul.mubr.f32.gmra.mrb[0].mxu0 %v3910
        %v4122 = vpop.f32.mrb[0].mxu0
        %v4123 = vadd.f32 0.0, %v4122
        %v4124 = vpop.f32.mrb[0].mxu0
        %4125 = vmatprep.mubr.f32.mxu0 0.0
        %4126 = vmatmul.mubr.f32.gmra.mrb[0].mxu0 %v3913
        %v4127 = vpop.f32.mrb[0].mxu0
        %v4128 = vadd.f32 0.0, %v4127
        %v4129 = vpop.f32.mrb[0].mxu0
        %4130 = vmatprep.mubr.f32.mxu0 0.0
        %4131 = vmatmul.mubr.f32.gmra.mrb[0].mxu0 %v3916
        %v4132 = vpop.f32.mrb[0].mxu0
        %v4133 = vadd.f32 0.0, %v4132
        %v4134 = vpop.f32.mrb[0].mxu0
        %4135 = vmatprep.mubr.f32.mxu0 0.0
        %4136 = vmatmul.mubr.f32.gmra.mrb[0].mxu0 %v3919
        %v4137 = vpop.f32.mrb[0].mxu0
        %v4138 = vadd.f32 0.0, %v4137
        %v4139 = vpop.f32.mrb[0].mxu0
        %4140 = vdwg.mxu0
        %v4141 = vadd.f32 %v3763, %v3988
        %v4142 = vadd.f32 %v3764, %v3993
        %v4143 = vadd.f32 %v3765, %v3998
        %v4144 = vadd.f32 %v3766, %v4003
        %v4145 = vadd.f32 %v3767, %v4008
        %v4146 = vadd.f32 %v3768, %v4013
        %v4147 = vadd.f32 %v3769, %v4018
        %v4148 = vadd.f32 %v3770, %v4023
        %v4149 = vadd.f32 %v3771, %v4028
        %v4150 = vadd.f32 %v3772, %v4033
        %v4151 = vadd.f32 %v3773, %v4038
        %v4152 = vadd.f32 %v3774, %v4043
        %v4153 = vadd.f32 %v3775, %v4048
        %v4154 = vadd.f32 %v3776, %v4053
        %v4155 = vadd.f32 %v3777, %v4058
        %v4156 = vadd.f32 %v3778, %v4063
        %v4157 = vadd.f32 %v3779, %v4068
        %v4158 = vadd.f32 %v3780, %v4073
        %v4159 = vadd.f32 %v3781, %v4078
        %v4160 = vadd.f32 %v3782, %v4083
        %v4161 = vadd.f32 %v3783, %v4088
        %v4162 = vadd.f32 %v3784, %v4093
        %v4163 = vadd.f32 %v3785, %v4098
        %v4164 = vadd.f32 %v3786, %v4103
        %v4165 = vadd.f32 %v3787, %v4108
        %v4166 = vadd.f32 %v3788, %v4113
        %v4167 = vadd.f32 %v3789, %v4118
        %v4168 = vadd.f32 %v3790, %v4123
        %v4169 = vadd.f32 %v3791, %v4128
        %v4170 = vadd.f32 %v3792, %v4133
        %v4171 = vadd.f32 %v3793, %v4138
        %v4172 = vld [vmem:[#allocation2 + $0x12] sm:$0xff]
        %v4173 = vld [vmem:[#allocation2 + $0x1a] sm:$0xff]
        %v4174 = vld [vmem:[#allocation2 + $0x22] sm:$0xff]
        %v4175 = vld [vmem:[#allocation2 + $0x2a] sm:$0xff]
        %v4176 = vld [vmem:[#allocation2 + $0x32] sm:$0xff]
        %v4177 = vld [vmem:[#allocation2 + $0x3a] sm:$0xff]
        %v4178 = vld [vmem:[#allocation2 + $0x42] sm:$0xff]
        %v4179 = vld [vmem:[#allocation2 + $0x4a] sm:$0xff]
        %v4180 = vld [vmem:[#allocation2 + $0x52] sm:$0xff]
        %v4181 = vld [vmem:[#allocation2 + $0x5a] sm:$0xff]
        %v4182 = vld [vmem:[#allocation2 + $0x62] sm:$0xff]
        %v4183 = vld [vmem:[#allocation2 + $0x6a] sm:$0xff]
        %v4184 = vld [vmem:[#allocation2 + $0x72] sm:$0xff]
        %v4185 = vld [vmem:[#allocation2 + $0x7a] sm:$0xff]
        %v4186 = vld [vmem:[#allocation2 + $0x82] sm:$0xff]
        %v4187 = vld [vmem:[#allocation2 + $0x8a] sm:$0xff]
        %v4188 = vld [vmem:[#allocation2 + $0x92] sm:$0xff]
        %v4189 = vld [vmem:[#allocation2 + $0x9a] sm:$0xff]
        %v4190 = vld [vmem:[#allocation2 + $0xa2] sm:$0xff]
        %v4191 = vld [vmem:[#allocation2 + $0xaa] sm:$0xff]
        %v4192 = vld [vmem:[#allocation2 + $0xb2] sm:$0xff]
        %v4193 = vld [vmem:[#allocation2 + $0xba] sm:$0xff]
        %v4194 = vld [vmem:[#allocation2 + $0xc2] sm:$0xff]
        %v4195 = vld [vmem:[#allocation2 + $0xca] sm:$0xff]
        %v4196 = vld [vmem:[#allocation2 + $0xd2] sm:$0xff]
        %v4197 = vld [vmem:[#allocation2 + $0xda] sm:$0xff]
        %v4198 = vld [vmem:[#allocation2 + $0xe2] sm:$0xff]
        %v4199 = vld [vmem:[#allocation2 + $0xea] sm:$0xff]
        %v4200 = vld [vmem:[#allocation2 + $0xf2] sm:$0xff]
        %v4201 = vld [vmem:[#allocation2 + $0xfa] sm:$0xff]
        %v4202 = vld [vmem:[#allocation2 + $0x102] sm:$0xff]
        %s4203 = scalar_lea.vmem %s4, 80
        %v4204 = vld [vmem:[%s4203] sm:$0xff]
        %v4205 = vld [vmem:[%s4203 + $0x8] sm:$0xff]
        %v4207 = vsel %vm2308, %v4172, 0
        %v4210 = vsel %vm2308, %v4173, 0
        %v4213 = vsel %vm2308, %v4174, 0
        %v4216 = vsel %vm2308, %v4175, 0
        %v4219 = vsel %vm2308, %v4176, 0
        %v4222 = vsel %vm2308, %v4177, 0
        %v4225 = vsel %vm2308, %v4178, 0
        %v4228 = vsel %vm2308, %v4179, 0
        %v4231 = vsel %vm2308, %v4180, 0
        %v4234 = vsel %vm2308, %v4181, 0
        %v4237 = vsel %vm2308, %v4182, 0
        %v4240 = vsel %vm2308, %v4183, 0
        %v4243 = vsel %vm2308, %v4184, 0
        %v4246 = vsel %vm2308, %v4185, 0
        %v4249 = vsel %vm2308, %v4186, 0
        %v4252 = vsel %vm2308, %v4187, 0
        %v4255 = vsel %vm2308, %v4188, 0
        %v4258 = vsel %vm2308, %v4189, 0
        %v4261 = vsel %vm2308, %v4190, 0
        %v4264 = vsel %vm2308, %v4191, 0
        %v4267 = vsel %vm2308, %v4192, 0
        %v4270 = vsel %vm2308, %v4193, 0
        %v4273 = vsel %vm2308, %v4194, 0
        %v4276 = vsel %vm2308, %v4195, 0
        %v4279 = vsel %vm2308, %v4196, 0
        %v4282 = vsel %vm2308, %v4197, 0
        %v4285 = vsel %vm2308, %v4198, 0
        %v4288 = vsel %vm2308, %v4199, 0
        %v4291 = vsel %vm2308, %v4200, 0
        %v4294 = vsel %vm2308, %v4201, 0
        %v4297 = vsel %vm2308, %v4202, 0
        %4299 = vmatprep.subr.mxu0 0.0
        %4300 = vmatpush1.msra.mxu0 %v4204
        %4301 = vmatprep.subr.mxu0 0.0
        %4302 = vmatpush1.msra.mxu0 %v4205
        %4303 = vmatprep.subr.mxu0 0.0
        %4304 = vmatpush1.msra.mxu0 0.0
        %4305 = vmatprep.subr.mxu0 0.0
        %4306 = vmatpush1.msra.mxu0 0.0
        %4307 = vmatprep.subr.mxu0 0.0
        %4308 = vmatpush1.msra.mxu0 0.0
        %4309 = vmatprep.subr.mxu0 0.0
        %4310 = vmatpush1.msra.mxu0 0.0
        %4311 = vmatprep.subr.mxu0 0.0
        %4312 = vmatpush1.msra.mxu0 0.0
        %4313 = vmatprep.subr.mxu0 0.0
        %4314 = vmatpush1.msra.mxu0 0.0
        %4315 = vmatprep.subr.mxu0 0.0
        %4316 = vmatpush1.msra.mxu0 0.0
        %4317 = vmatprep.subr.mxu0 0.0
        %4318 = vmatpush1.msra.mxu0 0.0
        %4319 = vmatprep.subr.mxu0 0.0
        %4320 = vmatpush1.msra.mxu0 0.0
        %4321 = vmatprep.subr.mxu0 0.0
        %4322 = vmatpush1.msra.mxu0 0.0
        %4323 = vmatprep.subr.mxu0 0.0
        %4324 = vmatpush1.msra.mxu0 0.0
        %4325 = vmatprep.subr.mxu0 0.0
        %4326 = vmatpush1.msra.mxu0 0.0
        %4327 = vmatprep.subr.mxu0 0.0
        %4328 = vmatpush1.msra.mxu0 0.0
        %4329 = vmatprep.subr.mxu0 0.0
        %4330 = vmatpush1.msra.mxu0 0.0
        %4331 = vmatprep.subr.mxu0 0.0
        %4332 = vmatpush1.msra.mxu0 0.0
        %4333 = vmatprep.subr.mxu0 0.0
        %4334 = vmatpush1.msra.mxu0 0.0
        %4335 = vmatprep.subr.mxu0 0.0
        %4336 = vmatpush1.msra.mxu0 0.0
        %4337 = vmatprep.subr.mxu0 0.0
        %4338 = vmatpush1.msra.mxu0 0.0
        %4339 = vmatprep.subr.mxu0 0.0
        %4340 = vmatpush1.msra.mxu0 0.0
        %4341 = vmatprep.subr.mxu0 0.0
        %4342 = vmatpush1.msra.mxu0 0.0
        %4343 = vmatprep.subr.mxu0 0.0
        %4344 = vmatpush1.msra.mxu0 0.0
        %4345 = vmatprep.subr.mxu0 0.0
        %4346 = vmatpush1.msra.mxu0 0.0
        %4347 = vmatprep.subr.mxu0 0.0
        %4348 = vmatpush1.msra.mxu0 0.0
        %4349 = vmatprep.subr.mxu0 0.0
        %4350 = vmatpush1.msra.mxu0 0.0
        %4351 = vmatprep.subr.mxu0 0.0
        %4352 = vmatpush1.msra.mxu0 0.0
        %4353 = vmatprep.subr.mxu0 0.0
        %4354 = vmatpush1.msra.mxu0 0.0
        %4355 = vmatprep.subr.mxu0 0.0
        %4356 = vmatpush1.msra.mxu0 0.0
        %4357 = vmatprep.subr.mxu0 0.0
        %4358 = vmatpush1.msra.mxu0 0.0
        %4359 = vmatprep.subr.mxu0 0.0
        %4360 = vmatpush1.msra.mxu0 0.0
        %4361 = vmatprep.subr.mxu0 0.0
        %4362 = vmatpush1.msra.mxu0 0.0
        %4363 = vmatprep.mubr.f32.mxu0 0.0
        %4364 = vmatmul.mubr.f32.gmra.mrb[0].mxu0 %v4207
        %v4365 = vpop.f32.mrb[0].mxu0
        %v4366 = vadd.f32 0.0, %v4365
        %v4367 = vpop.f32.mrb[0].mxu0
        %4368 = vmatprep.mubr.f32.mxu0 0.0
        %4369 = vmatmul.mubr.f32.gmra.mrb[0].mxu0 %v4210
        %v4370 = vpop.f32.mrb[0].mxu0
        %v4371 = vadd.f32 0.0, %v4370
        %v4372 = vpop.f32.mrb[0].mxu0
        %4373 = vmatprep.mubr.f32.mxu0 0.0
        %4374 = vmatmul.mubr.f32.gmra.mrb[0].mxu0 %v4213
        %v4375 = vpop.f32.mrb[0].mxu0
        %v4376 = vadd.f32 0.0, %v4375
        %v4377 = vpop.f32.mrb[0].mxu0
        %4378 = vmatprep.mubr.f32.mxu0 0.0
        %4379 = vmatmul.mubr.f32.gmra.mrb[0].mxu0 %v4216
        %v4380 = vpop.f32.mrb[0].mxu0
        %v4381 = vadd.f32 0.0, %v4380
        %v4382 = vpop.f32.mrb[0].mxu0
        %4383 = vmatprep.mubr.f32.mxu0 0.0
        %4384 = vmatmul.mubr.f32.gmra.mrb[0].mxu0 %v4219
        %v4385 = vpop.f32.mrb[0].mxu0
        %v4386 = vadd.f32 0.0, %v4385
        %v4387 = vpop.f32.mrb[0].mxu0
        %4388 = vmatprep.mubr.f32.mxu0 0.0
        %4389 = vmatmul.mubr.f32.gmra.mrb[0].mxu0 %v4222
        %v4390 = vpop.f32.mrb[0].mxu0
        %v4391 = vadd.f32 0.0, %v4390
        %v4392 = vpop.f32.mrb[0].mxu0
        %4393 = vmatprep.mubr.f32.mxu0 0.0
        %4394 = vmatmul.mubr.f32.gmra.mrb[0].mxu0 %v4225
        %v4395 = vpop.f32.mrb[0].mxu0
        %v4396 = vadd.f32 0.0, %v4395
        %v4397 = vpop.f32.mrb[0].mxu0
        %4398 = vmatprep.mubr.f32.mxu0 0.0
        %4399 = vmatmul.mubr.f32.gmra.mrb[0].mxu0 %v4228
        %v4400 = vpop.f32.mrb[0].mxu0
        %v4401 = vadd.f32 0.0, %v4400
        %v4402 = vpop.f32.mrb[0].mxu0
        %4403 = vmatprep.mubr.f32.mxu0 0.0
        %4404 = vmatmul.mubr.f32.gmra.mrb[0].mxu0 %v4231
        %v4405 = vpop.f32.mrb[0].mxu0
        %v4406 = vadd.f32 0.0, %v4405
        %v4407 = vpop.f32.mrb[0].mxu0
        %4408 = vmatprep.mubr.f32.mxu0 0.0
        %4409 = vmatmul.mubr.f32.gmra.mrb[0].mxu0 %v4234
        %v4410 = vpop.f32.mrb[0].mxu0
        %v4411 = vadd.f32 0.0, %v4410
        %v4412 = vpop.f32.mrb[0].mxu0
        %4413 = vmatprep.mubr.f32.mxu0 0.0
        %4414 = vmatmul.mubr.f32.gmra.mrb[0].mxu0 %v4237
        %v4415 = vpop.f32.mrb[0].mxu0
        %v4416 = vadd.f32 0.0, %v4415
        %v4417 = vpop.f32.mrb[0].mxu0
        %4418 = vmatprep.mubr.f32.mxu0 0.0
        %4419 = vmatmul.mubr.f32.gmra.mrb[0].mxu0 %v4240
        %v4420 = vpop.f32.mrb[0].mxu0
        %v4421 = vadd.f32 0.0, %v4420
        %v4422 = vpop.f32.mrb[0].mxu0
        %4423 = vmatprep.mubr.f32.mxu0 0.0
        %4424 = vmatmul.mubr.f32.gmra.mrb[0].mxu0 %v4243
        %v4425 = vpop.f32.mrb[0].mxu0
        %v4426 = vadd.f32 0.0, %v4425
        %v4427 = vpop.f32.mrb[0].mxu0
        %4428 = vmatprep.mubr.f32.mxu0 0.0
        %4429 = vmatmul.mubr.f32.gmra.mrb[0].mxu0 %v4246
        %v4430 = vpop.f32.mrb[0].mxu0
        %v4431 = vadd.f32 0.0, %v4430
        %v4432 = vpop.f32.mrb[0].mxu0
        %4433 = vmatprep.mubr.f32.mxu0 0.0
        %4434 = vmatmul.mubr.f32.gmra.mrb[0].mxu0 %v4249
        %v4435 = vpop.f32.mrb[0].mxu0
        %v4436 = vadd.f32 0.0, %v4435
        %v4437 = vpop.f32.mrb[0].mxu0
        %4438 = vmatprep.mubr.f32.mxu0 0.0
        %4439 = vmatmul.mubr.f32.gmra.mrb[0].mxu0 %v4252
        %v4440 = vpop.f32.mrb[0].mxu0
        %v4441 = vadd.f32 0.0, %v4440
        %v4442 = vpop.f32.mrb[0].mxu0
        %4443 = vmatprep.mubr.f32.mxu0 0.0
        %4444 = vmatmul.mubr.f32.gmra.mrb[0].mxu0 %v4255
        %v4445 = vpop.f32.mrb[0].mxu0
        %v4446 = vadd.f32 0.0, %v4445
        %v4447 = vpop.f32.mrb[0].mxu0
        %4448 = vmatprep.mubr.f32.mxu0 0.0
        %4449 = vmatmul.mubr.f32.gmra.mrb[0].mxu0 %v4258
        %v4450 = vpop.f32.mrb[0].mxu0
        %v4451 = vadd.f32 0.0, %v4450
        %v4452 = vpop.f32.mrb[0].mxu0
        %4453 = vmatprep.mubr.f32.mxu0 0.0
        %4454 = vmatmul.mubr.f32.gmra.mrb[0].mxu0 %v4261
        %v4455 = vpop.f32.mrb[0].mxu0
        %v4456 = vadd.f32 0.0, %v4455
        %v4457 = vpop.f32.mrb[0].mxu0
        %4458 = vmatprep.mubr.f32.mxu0 0.0
        %4459 = vmatmul.mubr.f32.gmra.mrb[0].mxu0 %v4264
        %v4460 = vpop.f32.mrb[0].mxu0
        %v4461 = vadd.f32 0.0, %v4460
        %v4462 = vpop.f32.mrb[0].mxu0
        %4463 = vmatprep.mubr.f32.mxu0 0.0
        %4464 = vmatmul.mubr.f32.gmra.mrb[0].mxu0 %v4267
        %v4465 = vpop.f32.mrb[0].mxu0
        %v4466 = vadd.f32 0.0, %v4465
        %v4467 = vpop.f32.mrb[0].mxu0
        %4468 = vmatprep.mubr.f32.mxu0 0.0
        %4469 = vmatmul.mubr.f32.gmra.mrb[0].mxu0 %v4270
        %v4470 = vpop.f32.mrb[0].mxu0
        %v4471 = vadd.f32 0.0, %v4470
        %v4472 = vpop.f32.mrb[0].mxu0
        %4473 = vmatprep.mubr.f32.mxu0 0.0
        %4474 = vmatmul.mubr.f32.gmra.mrb[0].mxu0 %v4273
        %v4475 = vpop.f32.mrb[0].mxu0
        %v4476 = vadd.f32 0.0, %v4475
        %v4477 = vpop.f32.mrb[0].mxu0
        %4478 = vmatprep.mubr.f32.mxu0 0.0
        %4479 = vmatmul.mubr.f32.gmra.mrb[0].mxu0 %v4276
        %v4480 = vpop.f32.mrb[0].mxu0
        %v4481 = vadd.f32 0.0, %v4480
        %v4482 = vpop.f32.mrb[0].mxu0
        %4483 = vmatprep.mubr.f32.mxu0 0.0
        %4484 = vmatmul.mubr.f32.gmra.mrb[0].mxu0 %v4279
        %v4485 = vpop.f32.mrb[0].mxu0
        %v4486 = vadd.f32 0.0, %v4485
        %v4487 = vpop.f32.mrb[0].mxu0
        %4488 = vmatprep.mubr.f32.mxu0 0.0
        %4489 = vmatmul.mubr.f32.gmra.mrb[0].mxu0 %v4282
        %v4490 = vpop.f32.mrb[0].mxu0
        %v4491 = vadd.f32 0.0, %v4490
        %v4492 = vpop.f32.mrb[0].mxu0
        %4493 = vmatprep.mubr.f32.mxu0 0.0
        %4494 = vmatmul.mubr.f32.gmra.mrb[0].mxu0 %v4285
        %v4495 = vpop.f32.mrb[0].mxu0
        %v4496 = vadd.f32 0.0, %v4495
        %v4497 = vpop.f32.mrb[0].mxu0
        %4498 = vmatprep.mubr.f32.mxu0 0.0
        %4499 = vmatmul.mubr.f32.gmra.mrb[0].mxu0 %v4288
        %v4500 = vpop.f32.mrb[0].mxu0
        %v4501 = vadd.f32 0.0, %v4500
        %v4502 = vpop.f32.mrb[0].mxu0
        %4503 = vmatprep.mubr.f32.mxu0 0.0
        %4504 = vmatmul.mubr.f32.gmra.mrb[0].mxu0 %v4291
        %v4505 = vpop.f32.mrb[0].mxu0
        %v4506 = vadd.f32 0.0, %v4505
        %v4507 = vpop.f32.mrb[0].mxu0
        %4508 = vmatprep.mubr.f32.mxu0 0.0
        %4509 = vmatmul.mubr.f32.gmra.mrb[0].mxu0 %v4294
        %v4510 = vpop.f32.mrb[0].mxu0
        %v4511 = vadd.f32 0.0, %v4510
        %v4512 = vpop.f32.mrb[0].mxu0
        %4513 = vmatprep.mubr.f32.mxu0 0.0
        %4514 = vmatmul.mubr.f32.gmra.mrb[0].mxu0 %v4297
        %v4515 = vpop.f32.mrb[0].mxu0
        %v4516 = vadd.f32 0.0, %v4515
        %v4517 = vpop.f32.mrb[0].mxu0
        %4518 = vdwg.mxu0
        %v4519 = vadd.f32 %v4141, %v4366
        %v4520 = vadd.f32 %v4142, %v4371
        %v4521 = vadd.f32 %v4143, %v4376
        %v4522 = vadd.f32 %v4144, %v4381
        %v4523 = vadd.f32 %v4145, %v4386
        %v4524 = vadd.f32 %v4146, %v4391
        %v4525 = vadd.f32 %v4147, %v4396
        %v4526 = vadd.f32 %v4148, %v4401
        %v4527 = vadd.f32 %v4149, %v4406
        %v4528 = vadd.f32 %v4150, %v4411
        %v4529 = vadd.f32 %v4151, %v4416
        %v4530 = vadd.f32 %v4152, %v4421
        %v4531 = vadd.f32 %v4153, %v4426
        %v4532 = vadd.f32 %v4154, %v4431
        %v4533 = vadd.f32 %v4155, %v4436
        %v4534 = vadd.f32 %v4156, %v4441
        %v4535 = vadd.f32 %v4157, %v4446
        %v4536 = vadd.f32 %v4158, %v4451
        %v4537 = vadd.f32 %v4159, %v4456
        %v4538 = vadd.f32 %v4160, %v4461
        %v4539 = vadd.f32 %v4161, %v4466
        %v4540 = vadd.f32 %v4162, %v4471
        %v4541 = vadd.f32 %v4163, %v4476
        %v4542 = vadd.f32 %v4164, %v4481
        %v4543 = vadd.f32 %v4165, %v4486
        %v4544 = vadd.f32 %v4166, %v4491
        %v4545 = vadd.f32 %v4167, %v4496
        %v4546 = vadd.f32 %v4168, %v4501
        %v4547 = vadd.f32 %v4169, %v4506
        %v4548 = vadd.f32 %v4170, %v4511
        %v4549 = vadd.f32 %v4171, %v4516
        %v4550 = vld [vmem:[#allocation2 + $0x20] sm:$0xff]
        %v4551 = vld [vmem:[#allocation2 + $0x28] sm:$0xff]
        %v4552 = vld [vmem:[#allocation2 + $0x30] sm:$0xff]
        %v4553 = vld [vmem:[#allocation2 + $0x38] sm:$0xff]
        %v4554 = vld [vmem:[#allocation2 + $0x40] sm:$0xff]
        %v4555 = vld [vmem:[#allocation2 + $0x48] sm:$0xff]
        %v4556 = vld [vmem:[#allocation2 + $0x50] sm:$0xff]
        %v4557 = vld [vmem:[#allocation2 + $0x58] sm:$0xff]
        %v4558 = vld [vmem:[#allocation2 + $0x60] sm:$0xff]
        %v4559 = vld [vmem:[#allocation2 + $0x68] sm:$0xff]
        %v4560 = vld [vmem:[#allocation2 + $0x70] sm:$0xff]
        %v4561 = vld [vmem:[#allocation2 + $0x78] sm:$0xff]
        %v4562 = vld [vmem:[#allocation2 + $0x80] sm:$0xff]
        %v4563 = vld [vmem:[#allocation2 + $0x88] sm:$0xff]
        %v4564 = vld [vmem:[#allocation2 + $0x90] sm:$0xff]
        %v4565 = vld [vmem:[#allocation2 + $0x98] sm:$0xff]
        %v4566 = vld [vmem:[#allocation2 + $0xa0] sm:$0xff]
        %v4567 = vld [vmem:[#allocation2 + $0xa8] sm:$0xff]
        %v4568 = vld [vmem:[#allocation2 + $0xb0] sm:$0xff]
        %v4569 = vld [vmem:[#allocation2 + $0xb8] sm:$0xff]
        %v4570 = vld [vmem:[#allocation2 + $0xc0] sm:$0xff]
        %v4571 = vld [vmem:[#allocation2 + $0xc8] sm:$0xff]
        %v4572 = vld [vmem:[#allocation2 + $0xd0] sm:$0xff]
        %v4573 = vld [vmem:[#allocation2 + $0xd8] sm:$0xff]
        %v4574 = vld [vmem:[#allocation2 + $0xe0] sm:$0xff]
        %v4575 = vld [vmem:[#allocation2 + $0xe8] sm:$0xff]
        %v4576 = vld [vmem:[#allocation2 + $0xf0] sm:$0xff]
        %v4577 = vld [vmem:[#allocation2 + $0xf8] sm:$0xff]
        %v4578 = vld [vmem:[#allocation2 + $0x100] sm:$0xff]
        %v4579 = vld [vmem:[#allocation2 + $0x108] sm:$0xff]
        %v4580 = vld [vmem:[#allocation2 + $0x110] sm:$0xff]
        %s4581 = scalar_lea.vmem %s4, 96
        %v4582 = vld [vmem:[%s4581] sm:$0xff]
        %v4583 = vld [vmem:[%s4581 + $0x8] sm:$0xff]
        %v4585 = vsel %vm2308, %v4550, 0
        %v4588 = vsel %vm2308, %v4551, 0
        %v4591 = vsel %vm2308, %v4552, 0
        %v4594 = vsel %vm2308, %v4553, 0
        %v4597 = vsel %vm2308, %v4554, 0
        %v4600 = vsel %vm2308, %v4555, 0
        %v4603 = vsel %vm2308, %v4556, 0
        %v4606 = vsel %vm2308, %v4557, 0
        %v4609 = vsel %vm2308, %v4558, 0
        %v4612 = vsel %vm2308, %v4559, 0
        %v4615 = vsel %vm2308, %v4560, 0
        %v4618 = vsel %vm2308, %v4561, 0
        %v4621 = vsel %vm2308, %v4562, 0
        %v4624 = vsel %vm2308, %v4563, 0
        %v4627 = vsel %vm2308, %v4564, 0
        %v4630 = vsel %vm2308, %v4565, 0
        %v4633 = vsel %vm2308, %v4566, 0
        %v4636 = vsel %vm2308, %v4567, 0
        %v4639 = vsel %vm2308, %v4568, 0
        %v4642 = vsel %vm2308, %v4569, 0
        %v4645 = vsel %vm2308, %v4570, 0
        %v4648 = vsel %vm2308, %v4571, 0
        %v4651 = vsel %vm2308, %v4572, 0
        %v4654 = vsel %vm2308, %v4573, 0
        %v4657 = vsel %vm2308, %v4574, 0
        %v4660 = vsel %vm2308, %v4575, 0
        %v4663 = vsel %vm2308, %v4576, 0
        %v4666 = vsel %vm2308, %v4577, 0
        %v4669 = vsel %vm2308, %v4578, 0
        %v4672 = vsel %vm2308, %v4579, 0
        %v4675 = vsel %vm2308, %v4580, 0
        %4677 = vmatprep.subr.mxu0 0.0
        %4678 = vmatpush1.msra.mxu0 %v4582
        %4679 = vmatprep.subr.mxu0 0.0
        %4680 = vmatpush1.msra.mxu0 %v4583
        %4681 = vmatprep.subr.mxu0 0.0
        %4682 = vmatpush1.msra.mxu0 0.0
        %4683 = vmatprep.subr.mxu0 0.0
        %4684 = vmatpush1.msra.mxu0 0.0
        %4685 = vmatprep.subr.mxu0 0.0
        %4686 = vmatpush1.msra.mxu0 0.0
        %4687 = vmatprep.subr.mxu0 0.0
        %4688 = vmatpush1.msra.mxu0 0.0
        %4689 = vmatprep.subr.mxu0 0.0
        %4690 = vmatpush1.msra.mxu0 0.0
        %4691 = vmatprep.subr.mxu0 0.0
        %4692 = vmatpush1.msra.mxu0 0.0
        %4693 = vmatprep.subr.mxu0 0.0
        %4694 = vmatpush1.msra.mxu0 0.0
        %4695 = vmatprep.subr.mxu0 0.0
        %4696 = vmatpush1.msra.mxu0 0.0
        %4697 = vmatprep.subr.mxu0 0.0
        %4698 = vmatpush1.msra.mxu0 0.0
        %4699 = vmatprep.subr.mxu0 0.0
        %4700 = vmatpush1.msra.mxu0 0.0
        %4701 = vmatprep.subr.mxu0 0.0
        %4702 = vmatpush1.msra.mxu0 0.0
        %4703 = vmatprep.subr.mxu0 0.0
        %4704 = vmatpush1.msra.mxu0 0.0
        %4705 = vmatprep.subr.mxu0 0.0
        %4706 = vmatpush1.msra.mxu0 0.0
        %4707 = vmatprep.subr.mxu0 0.0
        %4708 = vmatpush1.msra.mxu0 0.0
        %4709 = vmatprep.subr.mxu0 0.0
        %4710 = vmatpush1.msra.mxu0 0.0
        %4711 = vmatprep.subr.mxu0 0.0
        %4712 = vmatpush1.msra.mxu0 0.0
        %4713 = vmatprep.subr.mxu0 0.0
        %4714 = vmatpush1.msra.mxu0 0.0
        %4715 = vmatprep.subr.mxu0 0.0
        %4716 = vmatpush1.msra.mxu0 0.0
        %4717 = vmatprep.subr.mxu0 0.0
        %4718 = vmatpush1.msra.mxu0 0.0
        %4719 = vmatprep.subr.mxu0 0.0
        %4720 = vmatpush1.msra.mxu0 0.0
        %4721 = vmatprep.subr.mxu0 0.0
        %4722 = vmatpush1.msra.mxu0 0.0
        %4723 = vmatprep.subr.mxu0 0.0
        %4724 = vmatpush1.msra.mxu0 0.0
        %4725 = vmatprep.subr.mxu0 0.0
        %4726 = vmatpush1.msra.mxu0 0.0
        %4727 = vmatprep.subr.mxu0 0.0
        %4728 = vmatpush1.msra.mxu0 0.0
        %4729 = vmatprep.subr.mxu0 0.0
        %4730 = vmatpush1.msra.mxu0 0.0
        %4731 = vmatprep.subr.mxu0 0.0
        %4732 = vmatpush1.msra.mxu0 0.0
        %4733 = vmatprep.subr.mxu0 0.0
        %4734 = vmatpush1.msra.mxu0 0.0
        %4735 = vmatprep.subr.mxu0 0.0
        %4736 = vmatpush1.msra.mxu0 0.0
        %4737 = vmatprep.subr.mxu0 0.0
        %4738 = vmatpush1.msra.mxu0 0.0
        %4739 = vmatprep.subr.mxu0 0.0
        %4740 = vmatpush1.msra.mxu0 0.0
        %4741 = vmatprep.mubr.f32.mxu0 0.0
        %4742 = vmatmul.mubr.f32.gmra.mrb[0].mxu0 %v4585
        %v4743 = vpop.f32.mrb[0].mxu0
        %v4744 = vadd.f32 0.0, %v4743
        %v4745 = vpop.f32.mrb[0].mxu0
        %4746 = vmatprep.mubr.f32.mxu0 0.0
        %4747 = vmatmul.mubr.f32.gmra.mrb[0].mxu0 %v4588
        %v4748 = vpop.f32.mrb[0].mxu0
        %v4749 = vadd.f32 0.0, %v4748
        %v4750 = vpop.f32.mrb[0].mxu0
        %4751 = vmatprep.mubr.f32.mxu0 0.0
        %4752 = vmatmul.mubr.f32.gmra.mrb[0].mxu0 %v4591
        %v4753 = vpop.f32.mrb[0].mxu0
        %v4754 = vadd.f32 0.0, %v4753
        %v4755 = vpop.f32.mrb[0].mxu0
        %4756 = vmatprep.mubr.f32.mxu0 0.0
        %4757 = vmatmul.mubr.f32.gmra.mrb[0].mxu0 %v4594
        %v4758 = vpop.f32.mrb[0].mxu0
        %v4759 = vadd.f32 0.0, %v4758
        %v4760 = vpop.f32.mrb[0].mxu0
        %4761 = vmatprep.mubr.f32.mxu0 0.0
        %4762 = vmatmul.mubr.f32.gmra.mrb[0].mxu0 %v4597
        %v4763 = vpop.f32.mrb[0].mxu0
        %v4764 = vadd.f32 0.0, %v4763
        %v4765 = vpop.f32.mrb[0].mxu0
        %4766 = vmatprep.mubr.f32.mxu0 0.0
        %4767 = vmatmul.mubr.f32.gmra.mrb[0].mxu0 %v4600
        %v4768 = vpop.f32.mrb[0].mxu0
        %v4769 = vadd.f32 0.0, %v4768
        %v4770 = vpop.f32.mrb[0].mxu0
        %4771 = vmatprep.mubr.f32.mxu0 0.0
        %4772 = vmatmul.mubr.f32.gmra.mrb[0].mxu0 %v4603
        %v4773 = vpop.f32.mrb[0].mxu0
        %v4774 = vadd.f32 0.0, %v4773
        %v4775 = vpop.f32.mrb[0].mxu0
        %4776 = vmatprep.mubr.f32.mxu0 0.0
        %4777 = vmatmul.mubr.f32.gmra.mrb[0].mxu0 %v4606
        %v4778 = vpop.f32.mrb[0].mxu0
        %v4779 = vadd.f32 0.0, %v4778
        %v4780 = vpop.f32.mrb[0].mxu0
        %4781 = vmatprep.mubr.f32.mxu0 0.0
        %4782 = vmatmul.mubr.f32.gmra.mrb[0].mxu0 %v4609
        %v4783 = vpop.f32.mrb[0].mxu0
        %v4784 = vadd.f32 0.0, %v4783
        %v4785 = vpop.f32.mrb[0].mxu0
        %4786 = vmatprep.mubr.f32.mxu0 0.0
        %4787 = vmatmul.mubr.f32.gmra.mrb[0].mxu0 %v4612
        %v4788 = vpop.f32.mrb[0].mxu0
        %v4789 = vadd.f32 0.0, %v4788
        %v4790 = vpop.f32.mrb[0].mxu0
        %4791 = vmatprep.mubr.f32.mxu0 0.0
        %4792 = vmatmul.mubr.f32.gmra.mrb[0].mxu0 %v4615
        %v4793 = vpop.f32.mrb[0].mxu0
        %v4794 = vadd.f32 0.0, %v4793
        %v4795 = vpop.f32.mrb[0].mxu0
        %4796 = vmatprep.mubr.f32.mxu0 0.0
        %4797 = vmatmul.mubr.f32.gmra.mrb[0].mxu0 %v4618
        %v4798 = vpop.f32.mrb[0].mxu0
        %v4799 = vadd.f32 0.0, %v4798
        %v4800 = vpop.f32.mrb[0].mxu0
        %4801 = vmatprep.mubr.f32.mxu0 0.0
        %4802 = vmatmul.mubr.f32.gmra.mrb[0].mxu0 %v4621
        %v4803 = vpop.f32.mrb[0].mxu0
        %v4804 = vadd.f32 0.0, %v4803
        %v4805 = vpop.f32.mrb[0].mxu0
        %4806 = vmatprep.mubr.f32.mxu0 0.0
        %4807 = vmatmul.mubr.f32.gmra.mrb[0].mxu0 %v4624
        %v4808 = vpop.f32.mrb[0].mxu0
        %v4809 = vadd.f32 0.0, %v4808
        %v4810 = vpop.f32.mrb[0].mxu0
        %4811 = vmatprep.mubr.f32.mxu0 0.0
        %4812 = vmatmul.mubr.f32.gmra.mrb[0].mxu0 %v4627
        %v4813 = vpop.f32.mrb[0].mxu0
        %v4814 = vadd.f32 0.0, %v4813
        %v4815 = vpop.f32.mrb[0].mxu0
        %4816 = vmatprep.mubr.f32.mxu0 0.0
        %4817 = vmatmul.mubr.f32.gmra.mrb[0].mxu0 %v4630
        %v4818 = vpop.f32.mrb[0].mxu0
        %v4819 = vadd.f32 0.0, %v4818
        %v4820 = vpop.f32.mrb[0].mxu0
        %4821 = vmatprep.mubr.f32.mxu0 0.0
        %4822 = vmatmul.mubr.f32.gmra.mrb[0].mxu0 %v4633
        %v4823 = vpop.f32.mrb[0].mxu0
        %v4824 = vadd.f32 0.0, %v4823
        %v4825 = vpop.f32.mrb[0].mxu0
        %4826 = vmatprep.mubr.f32.mxu0 0.0
        %4827 = vmatmul.mubr.f32.gmra.mrb[0].mxu0 %v4636
        %v4828 = vpop.f32.mrb[0].mxu0
        %v4829 = vadd.f32 0.0, %v4828
        %v4830 = vpop.f32.mrb[0].mxu0
        %4831 = vmatprep.mubr.f32.mxu0 0.0
        %4832 = vmatmul.mubr.f32.gmra.mrb[0].mxu0 %v4639
        %v4833 = vpop.f32.mrb[0].mxu0
        %v4834 = vadd.f32 0.0, %v4833
        %v4835 = vpop.f32.mrb[0].mxu0
        %4836 = vmatprep.mubr.f32.mxu0 0.0
        %4837 = vmatmul.mubr.f32.gmra.mrb[0].mxu0 %v4642
        %v4838 = vpop.f32.mrb[0].mxu0
        %v4839 = vadd.f32 0.0, %v4838
        %v4840 = vpop.f32.mrb[0].mxu0
        %4841 = vmatprep.mubr.f32.mxu0 0.0
        %4842 = vmatmul.mubr.f32.gmra.mrb[0].mxu0 %v4645
        %v4843 = vpop.f32.mrb[0].mxu0
        %v4844 = vadd.f32 0.0, %v4843
        %v4845 = vpop.f32.mrb[0].mxu0
        %4846 = vmatprep.mubr.f32.mxu0 0.0
        %4847 = vmatmul.mubr.f32.gmra.mrb[0].mxu0 %v4648
        %v4848 = vpop.f32.mrb[0].mxu0
        %v4849 = vadd.f32 0.0, %v4848
        %v4850 = vpop.f32.mrb[0].mxu0
        %4851 = vmatprep.mubr.f32.mxu0 0.0
        %4852 = vmatmul.mubr.f32.gmra.mrb[0].mxu0 %v4651
        %v4853 = vpop.f32.mrb[0].mxu0
        %v4854 = vadd.f32 0.0, %v4853
        %v4855 = vpop.f32.mrb[0].mxu0
        %4856 = vmatprep.mubr.f32.mxu0 0.0
        %4857 = vmatmul.mubr.f32.gmra.mrb[0].mxu0 %v4654
        %v4858 = vpop.f32.mrb[0].mxu0
        %v4859 = vadd.f32 0.0, %v4858
        %v4860 = vpop.f32.mrb[0].mxu0
        %4861 = vmatprep.mubr.f32.mxu0 0.0
        %4862 = vmatmul.mubr.f32.gmra.mrb[0].mxu0 %v4657
        %v4863 = vpop.f32.mrb[0].mxu0
        %v4864 = vadd.f32 0.0, %v4863
        %v4865 = vpop.f32.mrb[0].mxu0
        %4866 = vmatprep.mubr.f32.mxu0 0.0
        %4867 = vmatmul.mubr.f32.gmra.mrb[0].mxu0 %v4660
        %v4868 = vpop.f32.mrb[0].mxu0
        %v4869 = vadd.f32 0.0, %v4868
        %v4870 = vpop.f32.mrb[0].mxu0
        %4871 = vmatprep.mubr.f32.mxu0 0.0
        %4872 = vmatmul.mubr.f32.gmra.mrb[0].mxu0 %v4663
        %v4873 = vpop.f32.mrb[0].mxu0
        %v4874 = vadd.f32 0.0, %v4873
        %v4875 = vpop.f32.mrb[0].mxu0
        %4876 = vmatprep.mubr.f32.mxu0 0.0
        %4877 = vmatmul.mubr.f32.gmra.mrb[0].mxu0 %v4666
        %v4878 = vpop.f32.mrb[0].mxu0
        %v4879 = vadd.f32 0.0, %v4878
        %v4880 = vpop.f32.mrb[0].mxu0
        %4881 = vmatprep.mubr.f32.mxu0 0.0
        %4882 = vmatmul.mubr.f32.gmra.mrb[0].mxu0 %v4669
        %v4883 = vpop.f32.mrb[0].mxu0
        %v4884 = vadd.f32 0.0, %v4883
        %v4885 = vpop.f32.mrb[0].mxu0
        %4886 = vmatprep.mubr.f32.mxu0 0.0
        %4887 = vmatmul.mubr.f32.gmra.mrb[0].mxu0 %v4672
        %v4888 = vpop.f32.mrb[0].mxu0
        %v4889 = vadd.f32 0.0, %v4888
        %v4890 = vpop.f32.mrb[0].mxu0
        %4891 = vmatprep.mubr.f32.mxu0 0.0
        %4892 = vmatmul.mubr.f32.gmra.mrb[0].mxu0 %v4675
        %v4893 = vpop.f32.mrb[0].mxu0
        %v4894 = vadd.f32 0.0, %v4893
        %v4895 = vpop.f32.mrb[0].mxu0
        %4896 = vdwg.mxu0
        %v4897 = vadd.f32 %v4519, %v4744
        %v4898 = vadd.f32 %v4520, %v4749
        %v4899 = vadd.f32 %v4521, %v4754
        %v4900 = vadd.f32 %v4522, %v4759
        %v4901 = vadd.f32 %v4523, %v4764
        %v4902 = vadd.f32 %v4524, %v4769
        %v4903 = vadd.f32 %v4525, %v4774
        %v4904 = vadd.f32 %v4526, %v4779
        %v4905 = vadd.f32 %v4527, %v4784
        %v4906 = vadd.f32 %v4528, %v4789
        %v4907 = vadd.f32 %v4529, %v4794
        %v4908 = vadd.f32 %v4530, %v4799
        %v4909 = vadd.f32 %v4531, %v4804
        %v4910 = vadd.f32 %v4532, %v4809
        %v4911 = vadd.f32 %v4533, %v4814
        %v4912 = vadd.f32 %v4534, %v4819
        %v4913 = vadd.f32 %v4535, %v4824
        %v4914 = vadd.f32 %v4536, %v4829
        %v4915 = vadd.f32 %v4537, %v4834
        %v4916 = vadd.f32 %v4538, %v4839
        %v4917 = vadd.f32 %v4539, %v4844
        %v4918 = vadd.f32 %v4540, %v4849
        %v4919 = vadd.f32 %v4541, %v4854
        %v4920 = vadd.f32 %v4542, %v4859
        %v4921 = vadd.f32 %v4543, %v4864
        %v4922 = vadd.f32 %v4544, %v4869
        %v4923 = vadd.f32 %v4545, %v4874
        %v4924 = vadd.f32 %v4546, %v4879
        %v4925 = vadd.f32 %v4547, %v4884
        %v4926 = vadd.f32 %v4548, %v4889
        %v4927 = vadd.f32 %v4549, %v4894
        %v4928 = vld [vmem:[#allocation2 + $0x21] sm:$0xff]
        %v4929 = vld [vmem:[#allocation2 + $0x29] sm:$0xff]
        %v4930 = vld [vmem:[#allocation2 + $0x31] sm:$0xff]
        %v4931 = vld [vmem:[#allocation2 + $0x39] sm:$0xff]
        %v4932 = vld [vmem:[#allocation2 + $0x41] sm:$0xff]
        %v4933 = vld [vmem:[#allocation2 + $0x49] sm:$0xff]
        %v4934 = vld [vmem:[#allocation2 + $0x51] sm:$0xff]
        %v4935 = vld [vmem:[#allocation2 + $0x59] sm:$0xff]
        %v4936 = vld [vmem:[#allocation2 + $0x61] sm:$0xff]
        %v4937 = vld [vmem:[#allocation2 + $0x69] sm:$0xff]
        %v4938 = vld [vmem:[#allocation2 + $0x71] sm:$0xff]
        %v4939 = vld [vmem:[#allocation2 + $0x79] sm:$0xff]
        %v4940 = vld [vmem:[#allocation2 + $0x81] sm:$0xff]
        %v4941 = vld [vmem:[#allocation2 + $0x89] sm:$0xff]
        %v4942 = vld [vmem:[#allocation2 + $0x91] sm:$0xff]
        %v4943 = vld [vmem:[#allocation2 + $0x99] sm:$0xff]
        %v4944 = vld [vmem:[#allocation2 + $0xa1] sm:$0xff]
        %v4945 = vld [vmem:[#allocation2 + $0xa9] sm:$0xff]
        %v4946 = vld [vmem:[#allocation2 + $0xb1] sm:$0xff]
        %v4947 = vld [vmem:[#allocation2 + $0xb9] sm:$0xff]
        %v4948 = vld [vmem:[#allocation2 + $0xc1] sm:$0xff]
        %v4949 = vld [vmem:[#allocation2 + $0xc9] sm:$0xff]
        %v4950 = vld [vmem:[#allocation2 + $0xd1] sm:$0xff]
        %v4951 = vld [vmem:[#allocation2 + $0xd9] sm:$0xff]
        %v4952 = vld [vmem:[#allocation2 + $0xe1] sm:$0xff]
        %v4953 = vld [vmem:[#allocation2 + $0xe9] sm:$0xff]
        %v4954 = vld [vmem:[#allocation2 + $0xf1] sm:$0xff]
        %v4955 = vld [vmem:[#allocation2 + $0xf9] sm:$0xff]
        %v4956 = vld [vmem:[#allocation2 + $0x101] sm:$0xff]
        %v4957 = vld [vmem:[#allocation2 + $0x109] sm:$0xff]
        %v4958 = vld [vmem:[#allocation2 + $0x111] sm:$0xff]
        %s4959 = scalar_lea.vmem %s4, 112
        %v4960 = vld [vmem:[%s4959] sm:$0xff]
        %v4961 = vld [vmem:[%s4959 + $0x8] sm:$0xff]
        %v4963 = vsel %vm2308, %v4928, 0
        %v4966 = vsel %vm2308, %v4929, 0
        %v4969 = vsel %vm2308, %v4930, 0
        %v4972 = vsel %vm2308, %v4931, 0
        %v4975 = vsel %vm2308, %v4932, 0
        %v4978 = vsel %vm2308, %v4933, 0
        %v4981 = vsel %vm2308, %v4934, 0
        %v4984 = vsel %vm2308, %v4935, 0
        %v4987 = vsel %vm2308, %v4936, 0
        %v4990 = vsel %vm2308, %v4937, 0
        %v4993 = vsel %vm2308, %v4938, 0
        %v4996 = vsel %vm2308, %v4939, 0
        %v4999 = vsel %vm2308, %v4940, 0
        %v5002 = vsel %vm2308, %v4941, 0
        %v5005 = vsel %vm2308, %v4942, 0
        %v5008 = vsel %vm2308, %v4943, 0
        %v5011 = vsel %vm2308, %v4944, 0
        %v5014 = vsel %vm2308, %v4945, 0
        %v5017 = vsel %vm2308, %v4946, 0
        %v5020 = vsel %vm2308, %v4947, 0
        %v5023 = vsel %vm2308, %v4948, 0
        %v5026 = vsel %vm2308, %v4949, 0
        %v5029 = vsel %vm2308, %v4950, 0
        %v5032 = vsel %vm2308, %v4951, 0
        %v5035 = vsel %vm2308, %v4952, 0
        %v5038 = vsel %vm2308, %v4953, 0
        %v5041 = vsel %vm2308, %v4954, 0
        %v5044 = vsel %vm2308, %v4955, 0
        %v5047 = vsel %vm2308, %v4956, 0
        %v5050 = vsel %vm2308, %v4957, 0
        %v5053 = vsel %vm2308, %v4958, 0
        %5055 = vmatprep.subr.mxu0 0.0
        %5056 = vmatpush1.msra.mxu0 %v4960
        %5057 = vmatprep.subr.mxu0 0.0
        %5058 = vmatpush1.msra.mxu0 %v4961
        %5059 = vmatprep.subr.mxu0 0.0
        %5060 = vmatpush1.msra.mxu0 0.0
        %5061 = vmatprep.subr.mxu0 0.0
        %5062 = vmatpush1.msra.mxu0 0.0
        %5063 = vmatprep.subr.mxu0 0.0
        %5064 = vmatpush1.msra.mxu0 0.0
        %5065 = vmatprep.subr.mxu0 0.0
        %5066 = vmatpush1.msra.mxu0 0.0
        %5067 = vmatprep.subr.mxu0 0.0
        %5068 = vmatpush1.msra.mxu0 0.0
        %5069 = vmatprep.subr.mxu0 0.0
        %5070 = vmatpush1.msra.mxu0 0.0
        %5071 = vmatprep.subr.mxu0 0.0
        %5072 = vmatpush1.msra.mxu0 0.0
        %5073 = vmatprep.subr.mxu0 0.0
        %5074 = vmatpush1.msra.mxu0 0.0
        %5075 = vmatprep.subr.mxu0 0.0
        %5076 = vmatpush1.msra.mxu0 0.0
        %5077 = vmatprep.subr.mxu0 0.0
        %5078 = vmatpush1.msra.mxu0 0.0
        %5079 = vmatprep.subr.mxu0 0.0
        %5080 = vmatpush1.msra.mxu0 0.0
        %5081 = vmatprep.subr.mxu0 0.0
        %5082 = vmatpush1.msra.mxu0 0.0
        %5083 = vmatprep.subr.mxu0 0.0
        %5084 = vmatpush1.msra.mxu0 0.0
        %5085 = vmatprep.subr.mxu0 0.0
        %5086 = vmatpush1.msra.mxu0 0.0
        %5087 = vmatprep.subr.mxu0 0.0
        %5088 = vmatpush1.msra.mxu0 0.0
        %5089 = vmatprep.subr.mxu0 0.0
        %5090 = vmatpush1.msra.mxu0 0.0
        %5091 = vmatprep.subr.mxu0 0.0
        %5092 = vmatpush1.msra.mxu0 0.0
        %5093 = vmatprep.subr.mxu0 0.0
        %5094 = vmatpush1.msra.mxu0 0.0
        %5095 = vmatprep.subr.mxu0 0.0
        %5096 = vmatpush1.msra.mxu0 0.0
        %5097 = vmatprep.subr.mxu0 0.0
        %5098 = vmatpush1.msra.mxu0 0.0
        %5099 = vmatprep.subr.mxu0 0.0
        %5100 = vmatpush1.msra.mxu0 0.0
        %5101 = vmatprep.subr.mxu0 0.0
        %5102 = vmatpush1.msra.mxu0 0.0
        %5103 = vmatprep.subr.mxu0 0.0
        %5104 = vmatpush1.msra.mxu0 0.0
        %5105 = vmatprep.subr.mxu0 0.0
        %5106 = vmatpush1.msra.mxu0 0.0
        %5107 = vmatprep.subr.mxu0 0.0
        %5108 = vmatpush1.msra.mxu0 0.0
        %5109 = vmatprep.subr.mxu0 0.0
        %5110 = vmatpush1.msra.mxu0 0.0
        %5111 = vmatprep.subr.mxu0 0.0
        %5112 = vmatpush1.msra.mxu0 0.0
        %5113 = vmatprep.subr.mxu0 0.0
        %5114 = vmatpush1.msra.mxu0 0.0
        %5115 = vmatprep.subr.mxu0 0.0
        %5116 = vmatpush1.msra.mxu0 0.0
        %5117 = vmatprep.subr.mxu0 0.0
        %5118 = vmatpush1.msra.mxu0 0.0
        %5119 = vmatprep.mubr.f32.mxu0 0.0
        %5120 = vmatmul.mubr.f32.gmra.mrb[0].mxu0 %v4963
        %v5121 = vpop.f32.mrb[0].mxu0
        %v5122 = vadd.f32 0.0, %v5121
        %v5123 = vpop.f32.mrb[0].mxu0
        %5124 = vmatprep.mubr.f32.mxu0 0.0
        %5125 = vmatmul.mubr.f32.gmra.mrb[0].mxu0 %v4966
        %v5126 = vpop.f32.mrb[0].mxu0
        %v5127 = vadd.f32 0.0, %v5126
        %v5128 = vpop.f32.mrb[0].mxu0
        %5129 = vmatprep.mubr.f32.mxu0 0.0
        %5130 = vmatmul.mubr.f32.gmra.mrb[0].mxu0 %v4969
        %v5131 = vpop.f32.mrb[0].mxu0
        %v5132 = vadd.f32 0.0, %v5131
        %v5133 = vpop.f32.mrb[0].mxu0
        %5134 = vmatprep.mubr.f32.mxu0 0.0
        %5135 = vmatmul.mubr.f32.gmra.mrb[0].mxu0 %v4972
        %v5136 = vpop.f32.mrb[0].mxu0
        %v5137 = vadd.f32 0.0, %v5136
        %v5138 = vpop.f32.mrb[0].mxu0
        %5139 = vmatprep.mubr.f32.mxu0 0.0
        %5140 = vmatmul.mubr.f32.gmra.mrb[0].mxu0 %v4975
        %v5141 = vpop.f32.mrb[0].mxu0
        %v5142 = vadd.f32 0.0, %v5141
        %v5143 = vpop.f32.mrb[0].mxu0
        %5144 = vmatprep.mubr.f32.mxu0 0.0
        %5145 = vmatmul.mubr.f32.gmra.mrb[0].mxu0 %v4978
        %v5146 = vpop.f32.mrb[0].mxu0
        %v5147 = vadd.f32 0.0, %v5146
        %v5148 = vpop.f32.mrb[0].mxu0
        %5149 = vmatprep.mubr.f32.mxu0 0.0
        %5150 = vmatmul.mubr.f32.gmra.mrb[0].mxu0 %v4981
        %v5151 = vpop.f32.mrb[0].mxu0
        %v5152 = vadd.f32 0.0, %v5151
        %v5153 = vpop.f32.mrb[0].mxu0
        %5154 = vmatprep.mubr.f32.mxu0 0.0
        %5155 = vmatmul.mubr.f32.gmra.mrb[0].mxu0 %v4984
        %v5156 = vpop.f32.mrb[0].mxu0
        %v5157 = vadd.f32 0.0, %v5156
        %v5158 = vpop.f32.mrb[0].mxu0
        %5159 = vmatprep.mubr.f32.mxu0 0.0
        %5160 = vmatmul.mubr.f32.gmra.mrb[0].mxu0 %v4987
        %v5161 = vpop.f32.mrb[0].mxu0
        %v5162 = vadd.f32 0.0, %v5161
        %v5163 = vpop.f32.mrb[0].mxu0
        %5164 = vmatprep.mubr.f32.mxu0 0.0
        %5165 = vmatmul.mubr.f32.gmra.mrb[0].mxu0 %v4990
        %v5166 = vpop.f32.mrb[0].mxu0
        %v5167 = vadd.f32 0.0, %v5166
        %v5168 = vpop.f32.mrb[0].mxu0
        %5169 = vmatprep.mubr.f32.mxu0 0.0
        %5170 = vmatmul.mubr.f32.gmra.mrb[0].mxu0 %v4993
        %v5171 = vpop.f32.mrb[0].mxu0
        %v5172 = vadd.f32 0.0, %v5171
        %v5173 = vpop.f32.mrb[0].mxu0
        %5174 = vmatprep.mubr.f32.mxu0 0.0
        %5175 = vmatmul.mubr.f32.gmra.mrb[0].mxu0 %v4996
        %v5176 = vpop.f32.mrb[0].mxu0
        %v5177 = vadd.f32 0.0, %v5176
        %v5178 = vpop.f32.mrb[0].mxu0
        %5179 = vmatprep.mubr.f32.mxu0 0.0
        %5180 = vmatmul.mubr.f32.gmra.mrb[0].mxu0 %v4999
        %v5181 = vpop.f32.mrb[0].mxu0
        %v5182 = vadd.f32 0.0, %v5181
        %v5183 = vpop.f32.mrb[0].mxu0
        %5184 = vmatprep.mubr.f32.mxu0 0.0
        %5185 = vmatmul.mubr.f32.gmra.mrb[0].mxu0 %v5002
        %v5186 = vpop.f32.mrb[0].mxu0
        %v5187 = vadd.f32 0.0, %v5186
        %v5188 = vpop.f32.mrb[0].mxu0
        %5189 = vmatprep.mubr.f32.mxu0 0.0
        %5190 = vmatmul.mubr.f32.gmra.mrb[0].mxu0 %v5005
        %v5191 = vpop.f32.mrb[0].mxu0
        %v5192 = vadd.f32 0.0, %v5191
        %v5193 = vpop.f32.mrb[0].mxu0
        %5194 = vmatprep.mubr.f32.mxu0 0.0
        %5195 = vmatmul.mubr.f32.gmra.mrb[0].mxu0 %v5008
        %v5196 = vpop.f32.mrb[0].mxu0
        %v5197 = vadd.f32 0.0, %v5196
        %v5198 = vpop.f32.mrb[0].mxu0
        %5199 = vmatprep.mubr.f32.mxu0 0.0
        %5200 = vmatmul.mubr.f32.gmra.mrb[0].mxu0 %v5011
        %v5201 = vpop.f32.mrb[0].mxu0
        %v5202 = vadd.f32 0.0, %v5201
        %v5203 = vpop.f32.mrb[0].mxu0
        %5204 = vmatprep.mubr.f32.mxu0 0.0
        %5205 = vmatmul.mubr.f32.gmra.mrb[0].mxu0 %v5014
        %v5206 = vpop.f32.mrb[0].mxu0
        %v5207 = vadd.f32 0.0, %v5206
        %v5208 = vpop.f32.mrb[0].mxu0
        %5209 = vmatprep.mubr.f32.mxu0 0.0
        %5210 = vmatmul.mubr.f32.gmra.mrb[0].mxu0 %v5017
        %v5211 = vpop.f32.mrb[0].mxu0
        %v5212 = vadd.f32 0.0, %v5211
        %v5213 = vpop.f32.mrb[0].mxu0
        %5214 = vmatprep.mubr.f32.mxu0 0.0
        %5215 = vmatmul.mubr.f32.gmra.mrb[0].mxu0 %v5020
        %v5216 = vpop.f32.mrb[0].mxu0
        %v5217 = vadd.f32 0.0, %v5216
        %v5218 = vpop.f32.mrb[0].mxu0
        %5219 = vmatprep.mubr.f32.mxu0 0.0
        %5220 = vmatmul.mubr.f32.gmra.mrb[0].mxu0 %v5023
        %v5221 = vpop.f32.mrb[0].mxu0
        %v5222 = vadd.f32 0.0, %v5221
        %v5223 = vpop.f32.mrb[0].mxu0
        %5224 = vmatprep.mubr.f32.mxu0 0.0
        %5225 = vmatmul.mubr.f32.gmra.mrb[0].mxu0 %v5026
        %v5226 = vpop.f32.mrb[0].mxu0
        %v5227 = vadd.f32 0.0, %v5226
        %v5228 = vpop.f32.mrb[0].mxu0
        %5229 = vmatprep.mubr.f32.mxu0 0.0
        %5230 = vmatmul.mubr.f32.gmra.mrb[0].mxu0 %v5029
        %v5231 = vpop.f32.mrb[0].mxu0
        %v5232 = vadd.f32 0.0, %v5231
        %v5233 = vpop.f32.mrb[0].mxu0
        %5234 = vmatprep.mubr.f32.mxu0 0.0
        %5235 = vmatmul.mubr.f32.gmra.mrb[0].mxu0 %v5032
        %v5236 = vpop.f32.mrb[0].mxu0
        %v5237 = vadd.f32 0.0, %v5236
        %v5238 = vpop.f32.mrb[0].mxu0
        %5239 = vmatprep.mubr.f32.mxu0 0.0
        %5240 = vmatmul.mubr.f32.gmra.mrb[0].mxu0 %v5035
        %v5241 = vpop.f32.mrb[0].mxu0
        %v5242 = vadd.f32 0.0, %v5241
        %v5243 = vpop.f32.mrb[0].mxu0
        %5244 = vmatprep.mubr.f32.mxu0 0.0
        %5245 = vmatmul.mubr.f32.gmra.mrb[0].mxu0 %v5038
        %v5246 = vpop.f32.mrb[0].mxu0
        %v5247 = vadd.f32 0.0, %v5246
        %v5248 = vpop.f32.mrb[0].mxu0
        %5249 = vmatprep.mubr.f32.mxu0 0.0
        %5250 = vmatmul.mubr.f32.gmra.mrb[0].mxu0 %v5041
        %v5251 = vpop.f32.mrb[0].mxu0
        %v5252 = vadd.f32 0.0, %v5251
        %v5253 = vpop.f32.mrb[0].mxu0
        %5254 = vmatprep.mubr.f32.mxu0 0.0
        %5255 = vmatmul.mubr.f32.gmra.mrb[0].mxu0 %v5044
        %v5256 = vpop.f32.mrb[0].mxu0
        %v5257 = vadd.f32 0.0, %v5256
        %v5258 = vpop.f32.mrb[0].mxu0
        %5259 = vmatprep.mubr.f32.mxu0 0.0
        %5260 = vmatmul.mubr.f32.gmra.mrb[0].mxu0 %v5047
        %v5261 = vpop.f32.mrb[0].mxu0
        %v5262 = vadd.f32 0.0, %v5261
        %v5263 = vpop.f32.mrb[0].mxu0
        %5264 = vmatprep.mubr.f32.mxu0 0.0
        %5265 = vmatmul.mubr.f32.gmra.mrb[0].mxu0 %v5050
        %v5266 = vpop.f32.mrb[0].mxu0
        %v5267 = vadd.f32 0.0, %v5266
        %v5268 = vpop.f32.mrb[0].mxu0
        %5269 = vmatprep.mubr.f32.mxu0 0.0
        %5270 = vmatmul.mubr.f32.gmra.mrb[0].mxu0 %v5053
        %v5271 = vpop.f32.mrb[0].mxu0
        %v5272 = vadd.f32 0.0, %v5271
        %v5273 = vpop.f32.mrb[0].mxu0
        %5274 = vdwg.mxu0
        %v5275 = vadd.f32 %v4897, %v5122
        %v5276 = vadd.f32 %v4898, %v5127
        %v5277 = vadd.f32 %v4899, %v5132
        %v5278 = vadd.f32 %v4900, %v5137
        %v5279 = vadd.f32 %v4901, %v5142
        %v5280 = vadd.f32 %v4902, %v5147
        %v5281 = vadd.f32 %v4903, %v5152
        %v5282 = vadd.f32 %v4904, %v5157
        %v5283 = vadd.f32 %v4905, %v5162
        %v5284 = vadd.f32 %v4906, %v5167
        %v5285 = vadd.f32 %v4907, %v5172
        %v5286 = vadd.f32 %v4908, %v5177
        %v5287 = vadd.f32 %v4909, %v5182
        %v5288 = vadd.f32 %v4910, %v5187
        %v5289 = vadd.f32 %v4911, %v5192
        %v5290 = vadd.f32 %v4912, %v5197
        %v5291 = vadd.f32 %v4913, %v5202
        %v5292 = vadd.f32 %v4914, %v5207
        %v5293 = vadd.f32 %v4915, %v5212
        %v5294 = vadd.f32 %v4916, %v5217
        %v5295 = vadd.f32 %v4917, %v5222
        %v5296 = vadd.f32 %v4918, %v5227
        %v5297 = vadd.f32 %v4919, %v5232
        %v5298 = vadd.f32 %v4920, %v5237
        %v5299 = vadd.f32 %v4921, %v5242
        %v5300 = vadd.f32 %v4922, %v5247
        %v5301 = vadd.f32 %v4923, %v5252
        %v5302 = vadd.f32 %v4924, %v5257
        %v5303 = vadd.f32 %v4925, %v5262
        %v5304 = vadd.f32 %v4926, %v5267
        %v5305 = vadd.f32 %v4927, %v5272
        %v5306 = vld [vmem:[#allocation2 + $0x22] sm:$0xff]
        %v5307 = vld [vmem:[#allocation2 + $0x2a] sm:$0xff]
        %v5308 = vld [vmem:[#allocation2 + $0x32] sm:$0xff]
        %v5309 = vld [vmem:[#allocation2 + $0x3a] sm:$0xff]
        %v5310 = vld [vmem:[#allocation2 + $0x42] sm:$0xff]
        %v5311 = vld [vmem:[#allocation2 + $0x4a] sm:$0xff]
        %v5312 = vld [vmem:[#allocation2 + $0x52] sm:$0xff]
        %v5313 = vld [vmem:[#allocation2 + $0x5a] sm:$0xff]
        %v5314 = vld [vmem:[#allocation2 + $0x62] sm:$0xff]
        %v5315 = vld [vmem:[#allocation2 + $0x6a] sm:$0xff]
        %v5316 = vld [vmem:[#allocation2 + $0x72] sm:$0xff]
        %v5317 = vld [vmem:[#allocation2 + $0x7a] sm:$0xff]
        %v5318 = vld [vmem:[#allocation2 + $0x82] sm:$0xff]
        %v5319 = vld [vmem:[#allocation2 + $0x8a] sm:$0xff]
        %v5320 = vld [vmem:[#allocation2 + $0x92] sm:$0xff]
        %v5321 = vld [vmem:[#allocation2 + $0x9a] sm:$0xff]
        %v5322 = vld [vmem:[#allocation2 + $0xa2] sm:$0xff]
        %v5323 = vld [vmem:[#allocation2 + $0xaa] sm:$0xff]
        %v5324 = vld [vmem:[#allocation2 + $0xb2] sm:$0xff]
        %v5325 = vld [vmem:[#allocation2 + $0xba] sm:$0xff]
        %v5326 = vld [vmem:[#allocation2 + $0xc2] sm:$0xff]
        %v5327 = vld [vmem:[#allocation2 + $0xca] sm:$0xff]
        %v5328 = vld [vmem:[#allocation2 + $0xd2] sm:$0xff]
        %v5329 = vld [vmem:[#allocation2 + $0xda] sm:$0xff]
        %v5330 = vld [vmem:[#allocation2 + $0xe2] sm:$0xff]
        %v5331 = vld [vmem:[#allocation2 + $0xea] sm:$0xff]
        %v5332 = vld [vmem:[#allocation2 + $0xf2] sm:$0xff]
        %v5333 = vld [vmem:[#allocation2 + $0xfa] sm:$0xff]
        %v5334 = vld [vmem:[#allocation2 + $0x102] sm:$0xff]
        %v5335 = vld [vmem:[#allocation2 + $0x10a] sm:$0xff]
        %v5336 = vld [vmem:[#allocation2 + $0x112] sm:$0xff]
        %s5337 = scalar_lea.vmem %s4, 128
        %v5338 = vld [vmem:[%s5337] sm:$0xff]
        %v5339 = vld [vmem:[%s5337 + $0x8] sm:$0xff]
        %v5341 = vsel %vm2308, %v5306, 0
        %v5344 = vsel %vm2308, %v5307, 0
        %v5347 = vsel %vm2308, %v5308, 0
        %v5350 = vsel %vm2308, %v5309, 0
        %v5353 = vsel %vm2308, %v5310, 0
        %v5356 = vsel %vm2308, %v5311, 0
        %v5359 = vsel %vm2308, %v5312, 0
        %v5362 = vsel %vm2308, %v5313, 0
        %v5365 = vsel %vm2308, %v5314, 0
        %v5368 = vsel %vm2308, %v5315, 0
        %v5371 = vsel %vm2308, %v5316, 0
        %v5374 = vsel %vm2308, %v5317, 0
        %v5377 = vsel %vm2308, %v5318, 0
        %v5380 = vsel %vm2308, %v5319, 0
        %v5383 = vsel %vm2308, %v5320, 0
        %v5386 = vsel %vm2308, %v5321, 0
        %v5389 = vsel %vm2308, %v5322, 0
        %v5392 = vsel %vm2308, %v5323, 0
        %v5395 = vsel %vm2308, %v5324, 0
        %v5398 = vsel %vm2308, %v5325, 0
        %v5401 = vsel %vm2308, %v5326, 0
        %v5404 = vsel %vm2308, %v5327, 0
        %v5407 = vsel %vm2308, %v5328, 0
        %v5410 = vsel %vm2308, %v5329, 0
        %v5413 = vsel %vm2308, %v5330, 0
        %v5416 = vsel %vm2308, %v5331, 0
        %v5419 = vsel %vm2308, %v5332, 0
        %v5422 = vsel %vm2308, %v5333, 0
        %v5425 = vsel %vm2308, %v5334, 0
        %v5428 = vsel %vm2308, %v5335, 0
        %v5431 = vsel %vm2308, %v5336, 0
        %5433 = vmatprep.subr.mxu0 0.0
        %5434 = vmatpush1.msra.mxu0 %v5338
        %5435 = vmatprep.subr.mxu0 0.0
        %5436 = vmatpush1.msra.mxu0 %v5339
        %5437 = vmatprep.subr.mxu0 0.0
        %5438 = vmatpush1.msra.mxu0 0.0
        %5439 = vmatprep.subr.mxu0 0.0
        %5440 = vmatpush1.msra.mxu0 0.0
        %5441 = vmatprep.subr.mxu0 0.0
        %5442 = vmatpush1.msra.mxu0 0.0
        %5443 = vmatprep.subr.mxu0 0.0
        %5444 = vmatpush1.msra.mxu0 0.0
        %5445 = vmatprep.subr.mxu0 0.0
        %5446 = vmatpush1.msra.mxu0 0.0
        %5447 = vmatprep.subr.mxu0 0.0
        %5448 = vmatpush1.msra.mxu0 0.0
        %5449 = vmatprep.subr.mxu0 0.0
        %5450 = vmatpush1.msra.mxu0 0.0
        %5451 = vmatprep.subr.mxu0 0.0
        %5452 = vmatpush1.msra.mxu0 0.0
        %5453 = vmatprep.subr.mxu0 0.0
        %5454 = vmatpush1.msra.mxu0 0.0
        %5455 = vmatprep.subr.mxu0 0.0
        %5456 = vmatpush1.msra.mxu0 0.0
        %5457 = vmatprep.subr.mxu0 0.0
        %5458 = vmatpush1.msra.mxu0 0.0
        %5459 = vmatprep.subr.mxu0 0.0
        %5460 = vmatpush1.msra.mxu0 0.0
        %5461 = vmatprep.subr.mxu0 0.0
        %5462 = vmatpush1.msra.mxu0 0.0
        %5463 = vmatprep.subr.mxu0 0.0
        %5464 = vmatpush1.msra.mxu0 0.0
        %5465 = vmatprep.subr.mxu0 0.0
        %5466 = vmatpush1.msra.mxu0 0.0
        %5467 = vmatprep.subr.mxu0 0.0
        %5468 = vmatpush1.msra.mxu0 0.0
        %5469 = vmatprep.subr.mxu0 0.0
        %5470 = vmatpush1.msra.mxu0 0.0
        %5471 = vmatprep.subr.mxu0 0.0
        %5472 = vmatpush1.msra.mxu0 0.0
        %5473 = vmatprep.subr.mxu0 0.0
        %5474 = vmatpush1.msra.mxu0 0.0
        %5475 = vmatprep.subr.mxu0 0.0
        %5476 = vmatpush1.msra.mxu0 0.0
        %5477 = vmatprep.subr.mxu0 0.0
        %5478 = vmatpush1.msra.mxu0 0.0
        %5479 = vmatprep.subr.mxu0 0.0
        %5480 = vmatpush1.msra.mxu0 0.0
        %5481 = vmatprep.subr.mxu0 0.0
        %5482 = vmatpush1.msra.mxu0 0.0
        %5483 = vmatprep.subr.mxu0 0.0
        %5484 = vmatpush1.msra.mxu0 0.0
        %5485 = vmatprep.subr.mxu0 0.0
        %5486 = vmatpush1.msra.mxu0 0.0
        %5487 = vmatprep.subr.mxu0 0.0
        %5488 = vmatpush1.msra.mxu0 0.0
        %5489 = vmatprep.subr.mxu0 0.0
        %5490 = vmatpush1.msra.mxu0 0.0
        %5491 = vmatprep.subr.mxu0 0.0
        %5492 = vmatpush1.msra.mxu0 0.0
        %5493 = vmatprep.subr.mxu0 0.0
        %5494 = vmatpush1.msra.mxu0 0.0
        %5495 = vmatprep.subr.mxu0 0.0
        %5496 = vmatpush1.msra.mxu0 0.0
        %5497 = vmatprep.mubr.f32.mxu0 0.0
        %5498 = vmatmul.mubr.f32.gmra.mrb[0].mxu0 %v5341
        %v5499 = vpop.f32.mrb[0].mxu0
        %v5500 = vadd.f32 0.0, %v5499
        %v5501 = vpop.f32.mrb[0].mxu0
        %5502 = vmatprep.mubr.f32.mxu0 0.0
        %5503 = vmatmul.mubr.f32.gmra.mrb[0].mxu0 %v5344
        %v5504 = vpop.f32.mrb[0].mxu0
        %v5505 = vadd.f32 0.0, %v5504
        %v5506 = vpop.f32.mrb[0].mxu0
        %5507 = vmatprep.mubr.f32.mxu0 0.0
        %5508 = vmatmul.mubr.f32.gmra.mrb[0].mxu0 %v5347
        %v5509 = vpop.f32.mrb[0].mxu0
        %v5510 = vadd.f32 0.0, %v5509
        %v5511 = vpop.f32.mrb[0].mxu0
        %5512 = vmatprep.mubr.f32.mxu0 0.0
        %5513 = vmatmul.mubr.f32.gmra.mrb[0].mxu0 %v5350
        %v5514 = vpop.f32.mrb[0].mxu0
        %v5515 = vadd.f32 0.0, %v5514
        %v5516 = vpop.f32.mrb[0].mxu0
        %5517 = vmatprep.mubr.f32.mxu0 0.0
        %5518 = vmatmul.mubr.f32.gmra.mrb[0].mxu0 %v5353
        %v5519 = vpop.f32.mrb[0].mxu0
        %v5520 = vadd.f32 0.0, %v5519
        %v5521 = vpop.f32.mrb[0].mxu0
        %5522 = vmatprep.mubr.f32.mxu0 0.0
        %5523 = vmatmul.mubr.f32.gmra.mrb[0].mxu0 %v5356
        %v5524 = vpop.f32.mrb[0].mxu0
        %v5525 = vadd.f32 0.0, %v5524
        %v5526 = vpop.f32.mrb[0].mxu0
        %5527 = vmatprep.mubr.f32.mxu0 0.0
        %5528 = vmatmul.mubr.f32.gmra.mrb[0].mxu0 %v5359
        %v5529 = vpop.f32.mrb[0].mxu0
        %v5530 = vadd.f32 0.0, %v5529
        %v5531 = vpop.f32.mrb[0].mxu0
        %5532 = vmatprep.mubr.f32.mxu0 0.0
        %5533 = vmatmul.mubr.f32.gmra.mrb[0].mxu0 %v5362
        %v5534 = vpop.f32.mrb[0].mxu0
        %v5535 = vadd.f32 0.0, %v5534
        %v5536 = vpop.f32.mrb[0].mxu0
        %5537 = vmatprep.mubr.f32.mxu0 0.0
        %5538 = vmatmul.mubr.f32.gmra.mrb[0].mxu0 %v5365
        %v5539 = vpop.f32.mrb[0].mxu0
        %v5540 = vadd.f32 0.0, %v5539
        %v5541 = vpop.f32.mrb[0].mxu0
        %5542 = vmatprep.mubr.f32.mxu0 0.0
        %5543 = vmatmul.mubr.f32.gmra.mrb[0].mxu0 %v5368
        %v5544 = vpop.f32.mrb[0].mxu0
        %v5545 = vadd.f32 0.0, %v5544
        %v5546 = vpop.f32.mrb[0].mxu0
        %5547 = vmatprep.mubr.f32.mxu0 0.0
        %5548 = vmatmul.mubr.f32.gmra.mrb[0].mxu0 %v5371
        %v5549 = vpop.f32.mrb[0].mxu0
        %v5550 = vadd.f32 0.0, %v5549
        %v5551 = vpop.f32.mrb[0].mxu0
        %5552 = vmatprep.mubr.f32.mxu0 0.0
        %5553 = vmatmul.mubr.f32.gmra.mrb[0].mxu0 %v5374
        %v5554 = vpop.f32.mrb[0].mxu0
        %v5555 = vadd.f32 0.0, %v5554
        %v5556 = vpop.f32.mrb[0].mxu0
        %5557 = vmatprep.mubr.f32.mxu0 0.0
        %5558 = vmatmul.mubr.f32.gmra.mrb[0].mxu0 %v5377
        %v5559 = vpop.f32.mrb[0].mxu0
        %v5560 = vadd.f32 0.0, %v5559
        %v5561 = vpop.f32.mrb[0].mxu0
        %5562 = vmatprep.mubr.f32.mxu0 0.0
        %5563 = vmatmul.mubr.f32.gmra.mrb[0].mxu0 %v5380
        %v5564 = vpop.f32.mrb[0].mxu0
        %v5565 = vadd.f32 0.0, %v5564
        %v5566 = vpop.f32.mrb[0].mxu0
        %5567 = vmatprep.mubr.f32.mxu0 0.0
        %5568 = vmatmul.mubr.f32.gmra.mrb[0].mxu0 %v5383
        %v5569 = vpop.f32.mrb[0].mxu0
        %v5570 = vadd.f32 0.0, %v5569
        %v5571 = vpop.f32.mrb[0].mxu0
        %5572 = vmatprep.mubr.f32.mxu0 0.0
        %5573 = vmatmul.mubr.f32.gmra.mrb[0].mxu0 %v5386
        %v5574 = vpop.f32.mrb[0].mxu0
        %v5575 = vadd.f32 0.0, %v5574
        %v5576 = vpop.f32.mrb[0].mxu0
        %5577 = vmatprep.mubr.f32.mxu0 0.0
        %5578 = vmatmul.mubr.f32.gmra.mrb[0].mxu0 %v5389
        %v5579 = vpop.f32.mrb[0].mxu0
        %v5580 = vadd.f32 0.0, %v5579
        %v5581 = vpop.f32.mrb[0].mxu0
        %5582 = vmatprep.mubr.f32.mxu0 0.0
        %5583 = vmatmul.mubr.f32.gmra.mrb[0].mxu0 %v5392
        %v5584 = vpop.f32.mrb[0].mxu0
        %v5585 = vadd.f32 0.0, %v5584
        %v5586 = vpop.f32.mrb[0].mxu0
        %5587 = vmatprep.mubr.f32.mxu0 0.0
        %5588 = vmatmul.mubr.f32.gmra.mrb[0].mxu0 %v5395
        %v5589 = vpop.f32.mrb[0].mxu0
        %v5590 = vadd.f32 0.0, %v5589
        %v5591 = vpop.f32.mrb[0].mxu0
        %5592 = vmatprep.mubr.f32.mxu0 0.0
        %5593 = vmatmul.mubr.f32.gmra.mrb[0].mxu0 %v5398
        %v5594 = vpop.f32.mrb[0].mxu0
        %v5595 = vadd.f32 0.0, %v5594
        %v5596 = vpop.f32.mrb[0].mxu0
        %5597 = vmatprep.mubr.f32.mxu0 0.0
        %5598 = vmatmul.mubr.f32.gmra.mrb[0].mxu0 %v5401
        %v5599 = vpop.f32.mrb[0].mxu0
        %v5600 = vadd.f32 0.0, %v5599
        %v5601 = vpop.f32.mrb[0].mxu0
        %5602 = vmatprep.mubr.f32.mxu0 0.0
        %5603 = vmatmul.mubr.f32.gmra.mrb[0].mxu0 %v5404
        %v5604 = vpop.f32.mrb[0].mxu0
        %v5605 = vadd.f32 0.0, %v5604
        %v5606 = vpop.f32.mrb[0].mxu0
        %5607 = vmatprep.mubr.f32.mxu0 0.0
        %5608 = vmatmul.mubr.f32.gmra.mrb[0].mxu0 %v5407
        %v5609 = vpop.f32.mrb[0].mxu0
        %v5610 = vadd.f32 0.0, %v5609
        %v5611 = vpop.f32.mrb[0].mxu0
        %5612 = vmatprep.mubr.f32.mxu0 0.0
        %5613 = vmatmul.mubr.f32.gmra.mrb[0].mxu0 %v5410
        %v5614 = vpop.f32.mrb[0].mxu0
        %v5615 = vadd.f32 0.0, %v5614
        %v5616 = vpop.f32.mrb[0].mxu0
        %5617 = vmatprep.mubr.f32.mxu0 0.0
        %5618 = vmatmul.mubr.f32.gmra.mrb[0].mxu0 %v5413
        %v5619 = vpop.f32.mrb[0].mxu0
        %v5620 = vadd.f32 0.0, %v5619
        %v5621 = vpop.f32.mrb[0].mxu0
        %5622 = vmatprep.mubr.f32.mxu0 0.0
        %5623 = vmatmul.mubr.f32.gmra.mrb[0].mxu0 %v5416
        %v5624 = vpop.f32.mrb[0].mxu0
        %v5625 = vadd.f32 0.0, %v5624
        %v5626 = vpop.f32.mrb[0].mxu0
        %5627 = vmatprep.mubr.f32.mxu0 0.0
        %5628 = vmatmul.mubr.f32.gmra.mrb[0].mxu0 %v5419
        %v5629 = vpop.f32.mrb[0].mxu0
        %v5630 = vadd.f32 0.0, %v5629
        %v5631 = vpop.f32.mrb[0].mxu0
        %5632 = vmatprep.mubr.f32.mxu0 0.0
        %5633 = vmatmul.mubr.f32.gmra.mrb[0].mxu0 %v5422
        %v5634 = vpop.f32.mrb[0].mxu0
        %v5635 = vadd.f32 0.0, %v5634
        %v5636 = vpop.f32.mrb[0].mxu0
        %5637 = vmatprep.mubr.f32.mxu0 0.0
        %5638 = vmatmul.mubr.f32.gmra.mrb[0].mxu0 %v5425
        %v5639 = vpop.f32.mrb[0].mxu0
        %v5640 = vadd.f32 0.0, %v5639
        %v5641 = vpop.f32.mrb[0].mxu0
        %5642 = vmatprep.mubr.f32.mxu0 0.0
        %5643 = vmatmul.mubr.f32.gmra.mrb[0].mxu0 %v5428
        %v5644 = vpop.f32.mrb[0].mxu0
        %v5645 = vadd.f32 0.0, %v5644
        %v5646 = vpop.f32.mrb[0].mxu0
        %5647 = vmatprep.mubr.f32.mxu0 0.0
        %5648 = vmatmul.mubr.f32.gmra.mrb[0].mxu0 %v5431
        %v5649 = vpop.f32.mrb[0].mxu0
        %v5650 = vadd.f32 0.0, %v5649
        %v5651 = vpop.f32.mrb[0].mxu0
        %5652 = vdwg.mxu0
        %v5653 = vadd.f32 %v5275, %v5500
        %v5654 = vadd.f32 %v5276, %v5505
        %v5655 = vadd.f32 %v5277, %v5510
        %v5656 = vadd.f32 %v5278, %v5515
        %v5657 = vadd.f32 %v5279, %v5520
        %v5658 = vadd.f32 %v5280, %v5525
        %v5659 = vadd.f32 %v5281, %v5530
        %v5660 = vadd.f32 %v5282, %v5535
        %v5661 = vadd.f32 %v5283, %v5540
        %v5662 = vadd.f32 %v5284, %v5545
        %v5663 = vadd.f32 %v5285, %v5550
        %v5664 = vadd.f32 %v5286, %v5555
        %v5665 = vadd.f32 %v5287, %v5560
        %v5666 = vadd.f32 %v5288, %v5565
        %v5667 = vadd.f32 %v5289, %v5570
        %v5668 = vadd.f32 %v5290, %v5575
        %v5669 = vadd.f32 %v5291, %v5580
        %v5670 = vadd.f32 %v5292, %v5585
        %v5671 = vadd.f32 %v5293, %v5590
        %v5672 = vadd.f32 %v5294, %v5595
        %v5673 = vadd.f32 %v5295, %v5600
        %v5674 = vadd.f32 %v5296, %v5605
        %v5675 = vadd.f32 %v5297, %v5610
        %v5676 = vadd.f32 %v5298, %v5615
        %v5677 = vadd.f32 %v5299, %v5620
        %v5678 = vadd.f32 %v5300, %v5625
        %v5679 = vadd.f32 %v5301, %v5630
        %v5680 = vadd.f32 %v5302, %v5635
        %v5681 = vadd.f32 %v5303, %v5640
        %v5682 = vadd.f32 %v5304, %v5645
        %v5683 = vadd.f32 %v5305, %v5650
        %v5684 = vld [vmem:[%s5] sm:$0x1]
        %v5686 = vlaneseq
        %v5687 = vshrl.u32 %v5686, 7
        %v5688 = vsub.s32 0, %v5687
        %v5689 = vrot.slane %v5684, %v5688
        %v5691 = vadd.f32 %v5653, %v5689
        %v5692 = vadd.f32 %v5654, %v5689
        %v5693 = vadd.f32 %v5655, %v5689
        %v5694 = vadd.f32 %v5656, %v5689
        %v5695 = vadd.f32 %v5657, %v5689
        %v5696 = vadd.f32 %v5658, %v5689
        %v5697 = vadd.f32 %v5659, %v5689
        %v5698 = vadd.f32 %v5660, %v5689
        %v5699 = vadd.f32 %v5661, %v5689
        %v5700 = vadd.f32 %v5662, %v5689
        %v5701 = vadd.f32 %v5663, %v5689
        %v5702 = vadd.f32 %v5664, %v5689
        %v5703 = vadd.f32 %v5665, %v5689
        %v5704 = vadd.f32 %v5666, %v5689
        %v5705 = vadd.f32 %v5667, %v5689
        %v5706 = vadd.f32 %v5668, %v5689
        %v5707 = vadd.f32 %v5669, %v5689
        %v5708 = vadd.f32 %v5670, %v5689
        %v5709 = vadd.f32 %v5671, %v5689
        %v5710 = vadd.f32 %v5672, %v5689
        %v5711 = vadd.f32 %v5673, %v5689
        %v5712 = vadd.f32 %v5674, %v5689
        %v5713 = vadd.f32 %v5675, %v5689
        %v5714 = vadd.f32 %v5676, %v5689
        %v5715 = vadd.f32 %v5677, %v5689
        %v5716 = vadd.f32 %v5678, %v5689
        %v5717 = vadd.f32 %v5679, %v5689
        %v5718 = vadd.f32 %v5680, %v5689
        %v5719 = vadd.f32 %v5681, %v5689
        %v5720 = vadd.f32 %v5682, %v5689
        %v5721 = vadd.f32 %v5683, %v5689
        %v5722 = vmax.f32 %v5691, 0.0
        %v5723 = vmax.f32 %v5692, 0.0
        %v5724 = vmax.f32 %v5693, 0.0
        %v5725 = vmax.f32 %v5694, 0.0
        %v5726 = vmax.f32 %v5695, 0.0
        %v5727 = vmax.f32 %v5696, 0.0
        %v5728 = vmax.f32 %v5697, 0.0
        %v5729 = vmax.f32 %v5698, 0.0
        %v5730 = vmax.f32 %v5699, 0.0
        %v5731 = vmax.f32 %v5700, 0.0
        %v5732 = vmax.f32 %v5701, 0.0
        %v5733 = vmax.f32 %v5702, 0.0
        %v5734 = vmax.f32 %v5703, 0.0
        %v5735 = vmax.f32 %v5704, 0.0
        %v5736 = vmax.f32 %v5705, 0.0
        %v5737 = vmax.f32 %v5706, 0.0
        %v5738 = vmax.f32 %v5707, 0.0
        %v5739 = vmax.f32 %v5708, 0.0
        %v5740 = vmax.f32 %v5709, 0.0
        %v5741 = vmax.f32 %v5710, 0.0
        %v5742 = vmax.f32 %v5711, 0.0
        %v5743 = vmax.f32 %v5712, 0.0
        %v5744 = vmax.f32 %v5713, 0.0
        %v5745 = vmax.f32 %v5714, 0.0
        %v5746 = vmax.f32 %v5715, 0.0
        %v5747 = vmax.f32 %v5716, 0.0
        %v5748 = vmax.f32 %v5717, 0.0
        %v5749 = vmax.f32 %v5718, 0.0
        %v5750 = vmax.f32 %v5719, 0.0
        %v5751 = vmax.f32 %v5720, 0.0
        %v5752 = vmax.f32 %v5721, 0.0
        %vm5753 = vcmask 261120
        %5754 = vst.msk [vmem:[#allocation3] sm:$0xff] %vm5753, %v5722
        %5755 = vst.msk [vmem:[#allocation3 + $0x8] sm:$0xff] %vm5753, %v5723
        %5756 = vst.msk [vmem:[#allocation3 + $0x10] sm:$0xff] %vm5753, %v5724
        %5757 = vst.msk [vmem:[#allocation3 + $0x18] sm:$0xff] %vm5753, %v5725
        %5758 = vst.msk [vmem:[#allocation3 + $0x20] sm:$0xff] %vm5753, %v5726
        %5759 = vst.msk [vmem:[#allocation3 + $0x28] sm:$0xff] %vm5753, %v5727
        %5760 = vst.msk [vmem:[#allocation3 + $0x30] sm:$0xff] %vm5753, %v5728
        %5761 = vst.msk [vmem:[#allocation3 + $0x38] sm:$0xff] %vm5753, %v5729
        %5762 = vst.msk [vmem:[#allocation3 + $0x40] sm:$0xff] %vm5753, %v5730
        %5763 = vst.msk [vmem:[#allocation3 + $0x48] sm:$0xff] %vm5753, %v5731
        %5764 = vst.msk [vmem:[#allocation3 + $0x50] sm:$0xff] %vm5753, %v5732
        %5765 = vst.msk [vmem:[#allocation3 + $0x58] sm:$0xff] %vm5753, %v5733
        %5766 = vst.msk [vmem:[#allocation3 + $0x60] sm:$0xff] %vm5753, %v5734
        %5767 = vst.msk [vmem:[#allocation3 + $0x68] sm:$0xff] %vm5753, %v5735
        %5768 = vst.msk [vmem:[#allocation3 + $0x70] sm:$0xff] %vm5753, %v5736
        %5769 = vst.msk [vmem:[#allocation3 + $0x78] sm:$0xff] %vm5753, %v5737
        %5770 = vst.msk [vmem:[#allocation3 + $0x80] sm:$0xff] %vm5753, %v5738
        %5771 = vst.msk [vmem:[#allocation3 + $0x88] sm:$0xff] %vm5753, %v5739
        %5772 = vst.msk [vmem:[#allocation3 + $0x90] sm:$0xff] %vm5753, %v5740
        %5773 = vst.msk [vmem:[#allocation3 + $0x98] sm:$0xff] %vm5753, %v5741
        %5774 = vst.msk [vmem:[#allocation3 + $0xa0] sm:$0xff] %vm5753, %v5742
        %5775 = vst.msk [vmem:[#allocation3 + $0xa8] sm:$0xff] %vm5753, %v5743
        %5776 = vst.msk [vmem:[#allocation3 + $0xb0] sm:$0xff] %vm5753, %v5744
        %5777 = vst.msk [vmem:[#allocation3 + $0xb8] sm:$0xff] %vm5753, %v5745
        %5778 = vst.msk [vmem:[#allocation3 + $0xc0] sm:$0xff] %vm5753, %v5746
        %5779 = vst.msk [vmem:[#allocation3 + $0xc8] sm:$0xff] %vm5753, %v5747
        %5780 = vst.msk [vmem:[#allocation3 + $0xd0] sm:$0xff] %vm5753, %v5748
        %5781 = vst.msk [vmem:[#allocation3 + $0xd8] sm:$0xff] %vm5753, %v5749
        %5782 = vst.msk [vmem:[#allocation3 + $0xe0] sm:$0xff] %vm5753, %v5750
        %5783 = vst.msk [vmem:[#allocation3 + $0xe8] sm:$0xff] %vm5753, %v5751
        %5784 = vst.msk [vmem:[#allocation3 + $0xf0] sm:$0xff] %vm5753, %v5752
        %v5785 = vld [vmem:[#allocation3] sm:$0xff]
        %v5786 = vld [vmem:[#allocation3 + $0x8] sm:$0xff]
        %v5787 = vld [vmem:[#allocation3 + $0x10] sm:$0xff]
        %v5788 = vld [vmem:[#allocation3 + $0x18] sm:$0xff]
        %v5789 = vld [vmem:[#allocation3 + $0x20] sm:$0xff]
        %v5790 = vld [vmem:[#allocation3 + $0x28] sm:$0xff]
        %v5791 = vld [vmem:[#allocation3 + $0x30] sm:$0xff]
        %v5792 = vld [vmem:[#allocation3 + $0x38] sm:$0xff]
        %v5793 = vld [vmem:[#allocation3 + $0x40] sm:$0xff]
        %v5794 = vld [vmem:[#allocation3 + $0x48] sm:$0xff]
        %v5795 = vld [vmem:[#allocation3 + $0x50] sm:$0xff]
        %v5796 = vld [vmem:[#allocation3 + $0x58] sm:$0xff]
        %v5797 = vld [vmem:[#allocation3 + $0x60] sm:$0xff]
        %v5798 = vld [vmem:[#allocation3 + $0x68] sm:$0xff]
        %v5799 = vld [vmem:[#allocation3 + $0x70] sm:$0xff]
        %v5800 = vld [vmem:[#allocation3 + $0x78] sm:$0xff]
        %v5801 = vld [vmem:[#allocation3 + $0x80] sm:$0xff]
        %v5802 = vld [vmem:[#allocation3 + $0x88] sm:$0xff]
        %v5803 = vld [vmem:[#allocation3 + $0x90] sm:$0xff]
        %v5804 = vld [vmem:[#allocation3 + $0x98] sm:$0xff]
        %v5805 = vld [vmem:[#allocation3 + $0xa0] sm:$0xff]
        %v5806 = vld [vmem:[#allocation3 + $0xa8] sm:$0xff]
        %v5807 = vld [vmem:[#allocation3 + $0xb0] sm:$0xff]
        %v5808 = vld [vmem:[#allocation3 + $0xb8] sm:$0xff]
        %v5809 = vld [vmem:[#allocation3 + $0xc0] sm:$0xff]
        %v5810 = vld [vmem:[#allocation3 + $0xc8] sm:$0xff]
        %v5811 = vld [vmem:[#allocation3 + $0xd0] sm:$0xff]
        %v5812 = vld [vmem:[#allocation3 + $0xd8] sm:$0xff]
        %v5813 = vld [vmem:[#allocation3 + $0x1] sm:$0xff]
        %v5814 = vld [vmem:[#allocation3 + $0x9] sm:$0xff]
        %v5815 = vld [vmem:[#allocation3 + $0x11] sm:$0xff]
        %v5816 = vld [vmem:[#allocation3 + $0x19] sm:$0xff]
        %v5817 = vld [vmem:[#allocation3 + $0x21] sm:$0xff]
        %v5818 = vld [vmem:[#allocation3 + $0x29] sm:$0xff]
        %v5819 = vld [vmem:[#allocation3 + $0x31] sm:$0xff]
        %v5820 = vld [vmem:[#allocation3 + $0x39] sm:$0xff]
        %v5821 = vld [vmem:[#allocation3 + $0x41] sm:$0xff]
        %v5822 = vld [vmem:[#allocation3 + $0x49] sm:$0xff]
        %v5823 = vld [vmem:[#allocation3 + $0x51] sm:$0xff]
        %v5824 = vld [vmem:[#allocation3 + $0x59] sm:$0xff]
        %v5825 = vld [vmem:[#allocation3 + $0x61] sm:$0xff]
        %v5826 = vld [vmem:[#allocation3 + $0x69] sm:$0xff]
        %v5827 = vld [vmem:[#allocation3 + $0x71] sm:$0xff]
        %v5828 = vld [vmem:[#allocation3 + $0x79] sm:$0xff]
        %v5829 = vld [vmem:[#allocation3 + $0x81] sm:$0xff]
        %v5830 = vld [vmem:[#allocation3 + $0x89] sm:$0xff]
        %v5831 = vld [vmem:[#allocation3 + $0x91] sm:$0xff]
        %v5832 = vld [vmem:[#allocation3 + $0x99] sm:$0xff]
        %v5833 = vld [vmem:[#allocation3 + $0xa1] sm:$0xff]
        %v5834 = vld [vmem:[#allocation3 + $0xa9] sm:$0xff]
        %v5835 = vld [vmem:[#allocation3 + $0xb1] sm:$0xff]
        %v5836 = vld [vmem:[#allocation3 + $0xb9] sm:$0xff]
        %v5837 = vld [vmem:[#allocation3 + $0xc1] sm:$0xff]
        %v5838 = vld [vmem:[#allocation3 + $0xc9] sm:$0xff]
        %v5839 = vld [vmem:[#allocation3 + $0xd1] sm:$0xff]
        %v5840 = vld [vmem:[#allocation3 + $0xd9] sm:$0xff]
        %v5841 = vmax.f32 %v5785, %v5813
        %v5842 = vmax.f32 %v5786, %v5814
        %v5843 = vmax.f32 %v5787, %v5815
        %v5844 = vmax.f32 %v5788, %v5816
        %v5845 = vmax.f32 %v5789, %v5817
        %v5846 = vmax.f32 %v5790, %v5818
        %v5847 = vmax.f32 %v5791, %v5819
        %v5848 = vmax.f32 %v5792, %v5820
        %v5849 = vmax.f32 %v5793, %v5821
        %v5850 = vmax.f32 %v5794, %v5822
        %v5851 = vmax.f32 %v5795, %v5823
        %v5852 = vmax.f32 %v5796, %v5824
        %v5853 = vmax.f32 %v5797, %v5825
        %v5854 = vmax.f32 %v5798, %v5826
        %v5855 = vmax.f32 %v5799, %v5827
        %v5856 = vmax.f32 %v5800, %v5828
        %v5857 = vmax.f32 %v5801, %v5829
        %v5858 = vmax.f32 %v5802, %v5830
        %v5859 = vmax.f32 %v5803, %v5831
        %v5860 = vmax.f32 %v5804, %v5832
        %v5861 = vmax.f32 %v5805, %v5833
        %v5862 = vmax.f32 %v5806, %v5834
        %v5863 = vmax.f32 %v5807, %v5835
        %v5864 = vmax.f32 %v5808, %v5836
        %v5865 = vmax.f32 %v5809, %v5837
        %v5866 = vmax.f32 %v5810, %v5838
        %v5867 = vmax.f32 %v5811, %v5839
        %v5868 = vmax.f32 %v5812, %v5840
        %v5869 = vld [vmem:[#allocation3 + $0xe0] sm:$0xff]
        %v5870 = vld [vmem:[#allocation3 + $0xe8] sm:$0xff]
        %v5871 = vld [vmem:[#allocation3 + $0xe1] sm:$0xff]
        %v5872 = vld [vmem:[#allocation3 + $0xe9] sm:$0xff]
        %v5873 = vmax.f32 %v5869, %v5871
        %v5874 = vmax.f32 %v5870, %v5872
        %v5875 = vmax.f32 %v5841, %v5843
        %v5876 = vmax.f32 %v5842, %v5844
        %v5877 = vmax.f32 %v5843, %v5845
        %v5878 = vmax.f32 %v5844, %v5846
        %v5879 = vmax.f32 %v5845, %v5847
        %v5880 = vmax.f32 %v5846, %v5848
        %v5881 = vmax.f32 %v5847, %v5849
        %v5882 = vmax.f32 %v5848, %v5850
        %v5883 = vmax.f32 %v5849, %v5851
        %v5884 = vmax.f32 %v5850, %v5852
        %v5885 = vmax.f32 %v5851, %v5853
        %v5886 = vmax.f32 %v5852, %v5854
        %v5887 = vmax.f32 %v5853, %v5855
        %v5888 = vmax.f32 %v5854, %v5856
        %v5889 = vmax.f32 %v5855, %v5857
        %v5890 = vmax.f32 %v5856, %v5858
        %v5891 = vmax.f32 %v5857, %v5859
        %v5892 = vmax.f32 %v5858, %v5860
        %v5893 = vmax.f32 %v5859, %v5861
        %v5894 = vmax.f32 %v5860, %v5862
        %v5895 = vmax.f32 %v5861, %v5863
        %v5896 = vmax.f32 %v5862, %v5864
        %v5897 = vmax.f32 %v5863, %v5865
        %v5898 = vmax.f32 %v5864, %v5866
        %v5899 = vmax.f32 %v5865, %v5867
        %v5900 = vmax.f32 %v5866, %v5868
        %v5901 = vmax.f32 %v5867, %v5873
        %v5902 = vmax.f32 %v5868, %v5874
        %v5903 = vld [vmem:[%s6] sm:$0xff]
        %v5904 = vld [vmem:[%s6 + $0x8] sm:$0xff]
        %v5905 = vld [vmem:[%s6 + $0x10] sm:$0xff]
        %v5906 = vld [vmem:[%s6 + $0x18] sm:$0xff]
        %v5907 = vld [vmem:[%s6 + $0x20] sm:$0xff]
        %v5908 = vld [vmem:[%s6 + $0x28] sm:$0xff]
        %v5909 = vld [vmem:[%s6 + $0x30] sm:$0xff]
        %v5910 = vld [vmem:[%s6 + $0x38] sm:$0xff]
        %v5911 = vld [vmem:[%s6 + $0x40] sm:$0xff]
        %v5912 = vld [vmem:[%s6 + $0x48] sm:$0xff]
        %v5913 = vld [vmem:[%s6 + $0x50] sm:$0xff]
        %v5914 = vld [vmem:[%s6 + $0x58] sm:$0xff]
        %v5915 = vld [vmem:[%s6 + $0x60] sm:$0xff]
        %v5916 = vld [vmem:[%s6 + $0x68] sm:$0xff]
        %v5917 = vld [vmem:[%s6 + $0x70] sm:$0xff]
        %v5918 = vld [vmem:[%s6 + $0x78] sm:$0xff]
        %v5919 = vld [vmem:[%s6 + $0x80] sm:$0xff]
        %v5920 = vld [vmem:[%s6 + $0x88] sm:$0xff]
        %v5921 = vld [vmem:[%s6 + $0x90] sm:$0xff]
        %v5922 = vld [vmem:[%s6 + $0x98] sm:$0xff]
        %v5923 = vld [vmem:[%s6 + $0xa0] sm:$0xff]
        %v5924 = vld [vmem:[%s6 + $0xa8] sm:$0xff]
        %v5925 = vld [vmem:[%s6 + $0xb0] sm:$0xff]
        %v5926 = vld [vmem:[%s6 + $0xb8] sm:$0xff]
        %v5927 = vld [vmem:[%s6 + $0xc0] sm:$0xff]
        %v5928 = vld [vmem:[%s6 + $0xc8] sm:$0xff]
        %v5929 = vld [vmem:[%s6 + $0xd0] sm:$0xff]
        %v5930 = vld [vmem:[%s6 + $0xd8] sm:$0xff]
        %v5931 = vld [vmem:[%s6 + $0xe0] sm:$0xff]
        %v5932 = vld [vmem:[%s6 + $0xe8] sm:$0xff]
        %v5933 = vld [vmem:[%s6 + $0xf0] sm:$0xff]
        %v5934 = vld [vmem:[%s6 + $0xf8] sm:$0xff]
        %v5935 = vld [vmem:[%s6 + $0x100] sm:$0xff]
        %v5936 = vld [vmem:[%s6 + $0x108] sm:$0xff]
        %v5937 = vld [vmem:[%s6 + $0x110] sm:$0xff]
        %v5938 = vld [vmem:[%s6 + $0x118] sm:$0xff]
        %v5939 = vld [vmem:[%s6 + $0x120] sm:$0xff]
        %v5940 = vld [vmem:[%s6 + $0x128] sm:$0xff]
        %v5941 = vld [vmem:[%s6 + $0x130] sm:$0xff]
        %v5942 = vld [vmem:[%s6 + $0x138] sm:$0xff]
        %v5943 = vld [vmem:[%s6 + $0x140] sm:$0xff]
        %v5944 = vld [vmem:[%s6 + $0x148] sm:$0xff]
        %v5945 = vld [vmem:[%s6 + $0x150] sm:$0xff]
        %v5946 = vld [vmem:[%s6 + $0x158] sm:$0xff]
        %v5947 = vld [vmem:[%s6 + $0x160] sm:$0xff]
        %v5948 = vld [vmem:[%s6 + $0x168] sm:$0xff]
        %v5949 = vld [vmem:[%s6 + $0x170] sm:$0xff]
        %v5950 = vld [vmem:[%s6 + $0x178] sm:$0xff]
        %v5951 = vld [vmem:[%s6 + $0x180] sm:$0xff]
        %v5952 = vld [vmem:[%s6 + $0x188] sm:$0xff]
        %v5953 = vld [vmem:[%s6 + $0x190] sm:$0xff]
        %v5954 = vld [vmem:[%s6 + $0x198] sm:$0xff]
        %v5955 = vld [vmem:[%s6 + $0x1a0] sm:$0xff]
        %v5956 = vld [vmem:[%s6 + $0x1a8] sm:$0xff]
        %v5957 = vld [vmem:[%s6 + $0x1b0] sm:$0xff]
        %v5958 = vld [vmem:[%s6 + $0x1b8] sm:$0xff]
        %v5959 = vld [vmem:[%s6 + $0x1c0] sm:$0xff]
        %v5960 = vld [vmem:[%s6 + $0x1c8] sm:$0xff]
        %v5961 = vld [vmem:[%s6 + $0x1d0] sm:$0xff]
        %v5962 = vld [vmem:[%s6 + $0x1d8] sm:$0xff]
        %v5963 = vld [vmem:[%s6 + $0x1e0] sm:$0xff]
        %v5964 = vld [vmem:[%s6 + $0x1e8] sm:$0xff]
        %v5965 = vld [vmem:[%s6 + $0x1f0] sm:$0xff]
        %v5966 = vld [vmem:[%s6 + $0x1f8] sm:$0xff]
        %v5967 = vld [vmem:[%s6 + $0x200] sm:$0xff]
        %v5968 = vld [vmem:[%s6 + $0x208] sm:$0xff]
        %v5969 = vld [vmem:[%s6 + $0x210] sm:$0xff]
        %v5970 = vld [vmem:[%s6 + $0x218] sm:$0xff]
        %v5971 = vld [vmem:[%s6 + $0x220] sm:$0xff]
        %v5972 = vld [vmem:[%s6 + $0x228] sm:$0xff]
        %v5973 = vld [vmem:[%s6 + $0x230] sm:$0xff]
        %v5974 = vld [vmem:[%s6 + $0x238] sm:$0xff]
        %v5975 = vld [vmem:[%s6 + $0x240] sm:$0xff]
        %v5976 = vld [vmem:[%s6 + $0x248] sm:$0xff]
        %v5977 = vld [vmem:[%s6 + $0x250] sm:$0xff]
        %v5978 = vld [vmem:[%s6 + $0x258] sm:$0xff]
        %v5979 = vld [vmem:[%s6 + $0x260] sm:$0xff]
        %v5980 = vld [vmem:[%s6 + $0x268] sm:$0xff]
        %v5981 = vld [vmem:[%s6 + $0x270] sm:$0xff]
        %v5982 = vld [vmem:[%s6 + $0x278] sm:$0xff]
        %v5983 = vld [vmem:[%s6 + $0x280] sm:$0xff]
        %v5984 = vld [vmem:[%s6 + $0x288] sm:$0xff]
        %v5985 = vld [vmem:[%s6 + $0x290] sm:$0xff]
        %v5986 = vld [vmem:[%s6 + $0x298] sm:$0xff]
        %v5987 = vld [vmem:[%s6 + $0x2a0] sm:$0xff]
        %v5988 = vld [vmem:[%s6 + $0x2a8] sm:$0xff]
        %v5989 = vld [vmem:[%s6 + $0x2b0] sm:$0xff]
        %v5990 = vld [vmem:[%s6 + $0x2b8] sm:$0xff]
        %v5991 = vld [vmem:[%s6 + $0x2c0] sm:$0xff]
        %v5992 = vld [vmem:[%s6 + $0x2c8] sm:$0xff]
        %v5993 = vld [vmem:[%s6 + $0x2d0] sm:$0xff]
        %v5994 = vld [vmem:[%s6 + $0x2d8] sm:$0xff]
        %v5995 = vld [vmem:[%s6 + $0x2e0] sm:$0xff]
        %v5996 = vld [vmem:[%s6 + $0x2e8] sm:$0xff]
        %v5997 = vld [vmem:[%s6 + $0x2f0] sm:$0xff]
        %v5998 = vld [vmem:[%s6 + $0x2f8] sm:$0xff]
        %v5999 = vld [vmem:[%s6 + $0x300] sm:$0xff]
        %v6000 = vld [vmem:[%s6 + $0x308] sm:$0xff]
        %v6001 = vld [vmem:[%s6 + $0x310] sm:$0xff]
        %v6002 = vld [vmem:[%s6 + $0x318] sm:$0xff]
        %v6003 = vld [vmem:[%s6 + $0x320] sm:$0xff]
        %v6004 = vld [vmem:[%s6 + $0x328] sm:$0xff]
        %v6005 = vld [vmem:[%s6 + $0x330] sm:$0xff]
        %v6006 = vld [vmem:[%s6 + $0x338] sm:$0xff]
        %v6007 = vld [vmem:[%s6 + $0x340] sm:$0xff]
        %v6008 = vld [vmem:[%s6 + $0x348] sm:$0xff]
        %v6009 = vld [vmem:[%s6 + $0x350] sm:$0xff]
        %v6010 = vld [vmem:[%s6 + $0x358] sm:$0xff]
        %v6011 = vld [vmem:[%s6 + $0x360] sm:$0xff]
        %v6012 = vld [vmem:[%s6 + $0x368] sm:$0xff]
        %v6013 = vld [vmem:[%s6 + $0x370] sm:$0xff]
        %v6014 = vld [vmem:[%s6 + $0x378] sm:$0xff]
        %v6015 = vld [vmem:[%s6 + $0x380] sm:$0xff]
        %v6016 = vld [vmem:[%s6 + $0x388] sm:$0xff]
        %v6017 = vld [vmem:[%s6 + $0x390] sm:$0xff]
        %v6018 = vld [vmem:[%s6 + $0x398] sm:$0xff]
        %v6019 = vld [vmem:[%s6 + $0x3a0] sm:$0xff]
        %v6020 = vld [vmem:[%s6 + $0x3a8] sm:$0xff]
        %v6021 = vld [vmem:[%s6 + $0x3b0] sm:$0xff]
        %v6022 = vld [vmem:[%s6 + $0x3b8] sm:$0xff]
        %v6023 = vld [vmem:[%s6 + $0x3c0] sm:$0xff]
        %v6024 = vld [vmem:[%s6 + $0x3c8] sm:$0xff]
        %v6025 = vld [vmem:[%s6 + $0x3d0] sm:$0xff]
        %v6026 = vld [vmem:[%s6 + $0x3d8] sm:$0xff]
        %v6027 = vld [vmem:[%s6 + $0x3e0] sm:$0xff]
        %v6028 = vld [vmem:[%s6 + $0x3e8] sm:$0xff]
        %v6029 = vld [vmem:[%s6 + $0x3f0] sm:$0xff]
        %v6030 = vld [vmem:[%s6 + $0x3f8] sm:$0xff]
        %v6031 = vld [vmem:[%s6 + $0x400] sm:$0xff]
        %v6032 = vld [vmem:[%s6 + $0x408] sm:$0xff]
        %v6033 = vld [vmem:[%s6 + $0x410] sm:$0xff]
        %v6034 = vld [vmem:[%s6 + $0x418] sm:$0xff]
        %v6035 = vld [vmem:[%s6 + $0x420] sm:$0xff]
        %v6036 = vld [vmem:[%s6 + $0x428] sm:$0xff]
        %v6037 = vld [vmem:[%s6 + $0x430] sm:$0xff]
        %v6038 = vld [vmem:[%s6 + $0x438] sm:$0xff]
        %v6039 = vld [vmem:[%s6 + $0x440] sm:$0xff]
        %v6040 = vld [vmem:[%s6 + $0x448] sm:$0xff]
        %v6041 = vld [vmem:[%s6 + $0x450] sm:$0xff]
        %v6042 = vld [vmem:[%s6 + $0x458] sm:$0xff]
        %v6043 = vld [vmem:[%s6 + $0x460] sm:$0xff]
        %v6044 = vld [vmem:[%s6 + $0x468] sm:$0xff]
        %v6045 = vld [vmem:[%s6 + $0x470] sm:$0xff]
        %v6046 = vld [vmem:[%s6 + $0x478] sm:$0xff]
        %v6047 = vld [vmem:[%s6 + $0x480] sm:$0xff]
        %v6048 = vld [vmem:[%s6 + $0x488] sm:$0xff]
        %v6049 = vld [vmem:[%s6 + $0x490] sm:$0xff]
        %v6050 = vld [vmem:[%s6 + $0x498] sm:$0xff]
        %v6051 = vld [vmem:[%s6 + $0x4a0] sm:$0xff]
        %v6052 = vld [vmem:[%s6 + $0x4a8] sm:$0xff]
        %v6053 = vld [vmem:[%s6 + $0x4b0] sm:$0xff]
        %v6054 = vld [vmem:[%s6 + $0x4b8] sm:$0xff]
        %v6055 = vld [vmem:[%s6 + $0x4c0] sm:$0xff]
        %v6056 = vld [vmem:[%s6 + $0x4c8] sm:$0xff]
        %v6057 = vld [vmem:[%s6 + $0x4d0] sm:$0xff]
        %v6058 = vld [vmem:[%s6 + $0x4d8] sm:$0xff]
        %v6059 = vld [vmem:[%s6 + $0x4e0] sm:$0xff]
        %v6060 = vld [vmem:[%s6 + $0x4e8] sm:$0xff]
        %v6061 = vld [vmem:[%s6 + $0x4f0] sm:$0xff]
        %v6062 = vld [vmem:[%s6 + $0x4f8] sm:$0xff]
        %v6063 = vld [vmem:[%s6 + $0x500] sm:$0xff]
        %v6064 = vld [vmem:[%s6 + $0x508] sm:$0xff]
        %v6065 = vld [vmem:[%s6 + $0x510] sm:$0xff]
        %v6066 = vld [vmem:[%s6 + $0x518] sm:$0xff]
        %v6067 = vld [vmem:[%s6 + $0x520] sm:$0xff]
        %v6068 = vld [vmem:[%s6 + $0x528] sm:$0xff]
        %v6069 = vld [vmem:[%s6 + $0x530] sm:$0xff]
        %v6070 = vld [vmem:[%s6 + $0x538] sm:$0xff]
        %v6071 = vld [vmem:[%s6 + $0x540] sm:$0xff]
        %v6072 = vld [vmem:[%s6 + $0x548] sm:$0xff]
        %v6073 = vld [vmem:[%s6 + $0x550] sm:$0xff]
        %v6074 = vld [vmem:[%s6 + $0x558] sm:$0xff]
        %v6075 = vld [vmem:[%s6 + $0x560] sm:$0xff]
        %v6076 = vld [vmem:[%s6 + $0x568] sm:$0xff]
        %v6077 = vld [vmem:[%s6 + $0x570] sm:$0xff]
        %v6078 = vld [vmem:[%s6 + $0x578] sm:$0xff]
        %v6079 = vld [vmem:[%s6 + $0x580] sm:$0xff]
        %v6080 = vld [vmem:[%s6 + $0x588] sm:$0xff]
        %v6081 = vld [vmem:[%s6 + $0x590] sm:$0xff]
        %v6082 = vld [vmem:[%s6 + $0x598] sm:$0xff]
        %v6083 = vld [vmem:[%s6 + $0x5a0] sm:$0xff]
        %v6084 = vld [vmem:[%s6 + $0x5a8] sm:$0xff]
        %v6085 = vld [vmem:[%s6 + $0x5b0] sm:$0xff]
        %v6086 = vld [vmem:[%s6 + $0x5b8] sm:$0xff]
        %v6087 = vld [vmem:[%s6 + $0x5c0] sm:$0xff]
        %v6088 = vld [vmem:[%s6 + $0x5c8] sm:$0xff]
        %v6089 = vld [vmem:[%s6 + $0x5d0] sm:$0xff]
        %v6090 = vld [vmem:[%s6 + $0x5d8] sm:$0xff]
        %v6091 = vld [vmem:[%s6 + $0x5e0] sm:$0xff]
        %v6092 = vld [vmem:[%s6 + $0x5e8] sm:$0xff]
        %v6093 = vld [vmem:[%s6 + $0x5f0] sm:$0xff]
        %v6094 = vld [vmem:[%s6 + $0x5f8] sm:$0xff]
        %v6095 = vld [vmem:[%s6 + $0x600] sm:$0xff]
        %v6096 = vld [vmem:[%s6 + $0x608] sm:$0xff]
        %v6097 = vld [vmem:[%s6 + $0x610] sm:$0xff]
        %v6098 = vld [vmem:[%s6 + $0x618] sm:$0xff]
        %v6099 = vld [vmem:[%s6 + $0x620] sm:$0xff]
        %v6100 = vld [vmem:[%s6 + $0x628] sm:$0xff]
        %v6101 = vld [vmem:[%s6 + $0x630] sm:$0xff]
        %v6102 = vld [vmem:[%s6 + $0x638] sm:$0xff]
        %v6103 = vld [vmem:[%s6 + $0x640] sm:$0xff]
        %v6104 = vld [vmem:[%s6 + $0x648] sm:$0xff]
        %v6105 = vld [vmem:[%s6 + $0x650] sm:$0xff]
        %v6106 = vld [vmem:[%s6 + $0x658] sm:$0xff]
        %v6107 = vld [vmem:[%s6 + $0x660] sm:$0xff]
        %v6108 = vld [vmem:[%s6 + $0x668] sm:$0xff]
        %v6109 = vld [vmem:[%s6 + $0x670] sm:$0xff]
        %v6110 = vld [vmem:[%s6 + $0x678] sm:$0xff]
        %v6111 = vld [vmem:[%s6 + $0x680] sm:$0xff]
        %v6112 = vld [vmem:[%s6 + $0x688] sm:$0xff]
        %v6113 = vld [vmem:[%s6 + $0x690] sm:$0xff]
        %v6114 = vld [vmem:[%s6 + $0x698] sm:$0xff]
        %v6115 = vld [vmem:[%s6 + $0x6a0] sm:$0xff]
        %v6116 = vld [vmem:[%s6 + $0x6a8] sm:$0xff]
        %v6117 = vld [vmem:[%s6 + $0x6b0] sm:$0xff]
        %v6118 = vld [vmem:[%s6 + $0x6b8] sm:$0xff]
        %v6119 = vld [vmem:[%s6 + $0x6c0] sm:$0xff]
        %v6120 = vld [vmem:[%s6 + $0x6c8] sm:$0xff]
        %v6121 = vld [vmem:[%s6 + $0x6d0] sm:$0xff]
        %v6122 = vld [vmem:[%s6 + $0x6d8] sm:$0xff]
        %v6123 = vld [vmem:[%s6 + $0x6e0] sm:$0xff]
        %v6124 = vld [vmem:[%s6 + $0x6e8] sm:$0xff]
        %v6125 = vld [vmem:[%s6 + $0x6f0] sm:$0xff]
        %v6126 = vld [vmem:[%s6 + $0x6f8] sm:$0xff]
        %v6127 = vld [vmem:[%s6 + $0x700] sm:$0xff]
        %v6128 = vld [vmem:[%s6 + $0x708] sm:$0xff]
        %v6129 = vld [vmem:[%s6 + $0x710] sm:$0xff]
        %v6130 = vld [vmem:[%s6 + $0x718] sm:$0xff]
        %v6131 = vld [vmem:[%s6 + $0x720] sm:$0xff]
        %v6132 = vld [vmem:[%s6 + $0x728] sm:$0xff]
        %v6133 = vld [vmem:[%s6 + $0x730] sm:$0xff]
        %v6134 = vld [vmem:[%s6 + $0x738] sm:$0xff]
        %v6135 = vld [vmem:[%s6 + $0x740] sm:$0xff]
        %v6136 = vld [vmem:[%s6 + $0x748] sm:$0xff]
        %v6137 = vld [vmem:[%s6 + $0x750] sm:$0xff]
        %v6138 = vld [vmem:[%s6 + $0x758] sm:$0xff]
        %v6139 = vld [vmem:[%s6 + $0x760] sm:$0xff]
        %v6140 = vld [vmem:[%s6 + $0x768] sm:$0xff]
        %v6141 = vld [vmem:[%s6 + $0x770] sm:$0xff]
        %v6142 = vld [vmem:[%s6 + $0x778] sm:$0xff]
        %v6143 = vld [vmem:[%s6 + $0x780] sm:$0xff]
        %v6144 = vld [vmem:[%s6 + $0x788] sm:$0xff]
        %v6145 = vld [vmem:[%s6 + $0x790] sm:$0xff]
        %v6146 = vld [vmem:[%s6 + $0x798] sm:$0xff]
        %v6147 = vld [vmem:[%s6 + $0x7a0] sm:$0xff]
        %v6148 = vld [vmem:[%s6 + $0x7a8] sm:$0xff]
        %v6149 = vld [vmem:[%s6 + $0x7b0] sm:$0xff]
        %v6150 = vld [vmem:[%s6 + $0x7b8] sm:$0xff]
        %v6151 = vld [vmem:[%s6 + $0x7c0] sm:$0xff]
        %v6152 = vld [vmem:[%s6 + $0x7c8] sm:$0xff]
        %v6153 = vld [vmem:[%s6 + $0x7d0] sm:$0xff]
        %v6154 = vld [vmem:[%s6 + $0x7d8] sm:$0xff]
        %v6155 = vld [vmem:[%s6 + $0x7e0] sm:$0xff]
        %v6156 = vld [vmem:[%s6 + $0x7e8] sm:$0xff]
        %v6157 = vld [vmem:[%s6 + $0x7f0] sm:$0xff]
        %v6158 = vld [vmem:[%s6 + $0x7f8] sm:$0xff]
        %v6159 = vld [vmem:[%s6 + $0x800] sm:$0xff]
        %v6160 = vld [vmem:[%s6 + $0x808] sm:$0xff]
        %v6161 = vld [vmem:[%s6 + $0x810] sm:$0xff]
        %v6162 = vld [vmem:[%s6 + $0x818] sm:$0xff]
        %v6163 = vld [vmem:[%s6 + $0x820] sm:$0xff]
        %v6164 = vld [vmem:[%s6 + $0x828] sm:$0xff]
        %v6165 = vld [vmem:[%s6 + $0x830] sm:$0xff]
        %v6166 = vld [vmem:[%s6 + $0x838] sm:$0xff]
        %v6167 = vld [vmem:[%s6 + $0x840] sm:$0xff]
        %v6168 = vld [vmem:[%s6 + $0x848] sm:$0xff]
        %v6169 = vld [vmem:[%s6 + $0x850] sm:$0xff]
        %v6170 = vld [vmem:[%s6 + $0x858] sm:$0xff]
        %v6171 = vld [vmem:[%s6 + $0x860] sm:$0xff]
        %v6172 = vld [vmem:[%s6 + $0x868] sm:$0xff]
        %v6173 = vld [vmem:[%s6 + $0x870] sm:$0xff]
        %v6174 = vld [vmem:[%s6 + $0x878] sm:$0xff]
        %v6175 = vld [vmem:[%s6 + $0x880] sm:$0xff]
        %v6176 = vld [vmem:[%s6 + $0x888] sm:$0xff]
        %v6177 = vld [vmem:[%s6 + $0x890] sm:$0xff]
        %v6178 = vld [vmem:[%s6 + $0x898] sm:$0xff]
        %v6179 = vld [vmem:[%s6 + $0x8a0] sm:$0xff]
        %v6180 = vld [vmem:[%s6 + $0x8a8] sm:$0xff]
        %v6181 = vld [vmem:[%s6 + $0x8b0] sm:$0xff]
        %v6182 = vld [vmem:[%s6 + $0x8b8] sm:$0xff]
        %v6183 = vmul.f32 %v5875, %v5903
        %v6184 = vmul.f32 %v5876, %v5904
        %v6185 = vmul.f32 %v5877, %v5905
        %v6186 = vmul.f32 %v5878, %v5906
        %v6187 = vmul.f32 %v5879, %v5907
        %v6188 = vmul.f32 %v5880, %v5908
        %v6189 = vmul.f32 %v5881, %v5909
        %v6190 = vmul.f32 %v5882, %v5910
        %v6191 = vmul.f32 %v5883, %v5911
        %v6192 = vmul.f32 %v5884, %v5912
        %v6193 = vmul.f32 %v5885, %v5913
        %v6194 = vmul.f32 %v5886, %v5914
        %v6195 = vmul.f32 %v5887, %v5915
        %v6196 = vmul.f32 %v5888, %v5916
        %v6197 = vmul.f32 %v5889, %v5917
        %v6198 = vmul.f32 %v5890, %v5918
        %v6199 = vmul.f32 %v5891, %v5919
        %v6200 = vmul.f32 %v5892, %v5920
        %v6201 = vmul.f32 %v5893, %v5921
        %v6202 = vmul.f32 %v5894, %v5922
        %v6203 = vmul.f32 %v5895, %v5923
        %v6204 = vmul.f32 %v5896, %v5924
        %v6205 = vmul.f32 %v5897, %v5925
        %v6206 = vmul.f32 %v5898, %v5926
        %v6207 = vmul.f32 %v5899, %v5927
        %v6208 = vmul.f32 %v5900, %v5928
        %v6209 = vmul.f32 %v5901, %v5929
        %v6210 = vmul.f32 %v5902, %v5930
        %v6211 = vmul.f32 %v5875, %v5931
        %v6212 = vmul.f32 %v5876, %v5932
        %v6213 = vmul.f32 %v5877, %v5933
        %v6214 = vmul.f32 %v5878, %v5934
        %v6215 = vmul.f32 %v5879, %v5935
        %v6216 = vmul.f32 %v5880, %v5936
        %v6217 = vmul.f32 %v5881, %v5937
        %v6218 = vmul.f32 %v5882, %v5938
        %v6219 = vmul.f32 %v5883, %v5939
        %v6220 = vmul.f32 %v5884, %v5940
        %v6221 = vmul.f32 %v5885, %v5941
        %v6222 = vmul.f32 %v5886, %v5942
        %v6223 = vmul.f32 %v5887, %v5943
        %v6224 = vmul.f32 %v5888, %v5944
        %v6225 = vmul.f32 %v5889, %v5945
        %v6226 = vmul.f32 %v5890, %v5946
        %v6227 = vmul.f32 %v5891, %v5947
        %v6228 = vmul.f32 %v5892, %v5948
        %v6229 = vmul.f32 %v5893, %v5949
        %v6230 = vmul.f32 %v5894, %v5950
        %v6231 = vmul.f32 %v5895, %v5951
        %v6232 = vmul.f32 %v5896, %v5952
        %v6233 = vmul.f32 %v5897, %v5953
        %v6234 = vmul.f32 %v5898, %v5954
        %v6235 = vmul.f32 %v5899, %v5955
        %v6236 = vmul.f32 %v5900, %v5956
        %v6237 = vmul.f32 %v5901, %v5957
        %v6238 = vmul.f32 %v5902, %v5958
        %v6239 = vmul.f32 %v5875, %v5959
        %v6240 = vmul.f32 %v5876, %v5960
        %v6241 = vmul.f32 %v5877, %v5961
        %v6242 = vmul.f32 %v5878, %v5962
        %v6243 = vmul.f32 %v5879, %v5963
        %v6244 = vmul.f32 %v5880, %v5964
        %v6245 = vmul.f32 %v5881, %v5965
        %v6246 = vmul.f32 %v5882, %v5966
        %v6247 = vmul.f32 %v5883, %v5967
        %v6248 = vmul.f32 %v5884, %v5968
        %v6249 = vmul.f32 %v5885, %v5969
        %v6250 = vmul.f32 %v5886, %v5970
        %v6251 = vmul.f32 %v5887, %v5971
        %v6252 = vmul.f32 %v5888, %v5972
        %v6253 = vmul.f32 %v5889, %v5973
        %v6254 = vmul.f32 %v5890, %v5974
        %v6255 = vmul.f32 %v5891, %v5975
        %v6256 = vmul.f32 %v5892, %v5976
        %v6257 = vmul.f32 %v5893, %v5977
        %v6258 = vmul.f32 %v5894, %v5978
        %v6259 = vmul.f32 %v5895, %v5979
        %v6260 = vmul.f32 %v5896, %v5980
        %v6261 = vmul.f32 %v5897, %v5981
        %v6262 = vmul.f32 %v5898, %v5982
        %v6263 = vmul.f32 %v5899, %v5983
        %v6264 = vmul.f32 %v5900, %v5984
        %v6265 = vmul.f32 %v5901, %v5985
        %v6266 = vmul.f32 %v5902, %v5986
        %v6267 = vmul.f32 %v5875, %v5987
        %v6268 = vmul.f32 %v5876, %v5988
        %v6269 = vmul.f32 %v5877, %v5989
        %v6270 = vmul.f32 %v5878, %v5990
        %v6271 = vmul.f32 %v5879, %v5991
        %v6272 = vmul.f32 %v5880, %v5992
        %v6273 = vmul.f32 %v5881, %v5993
        %v6274 = vmul.f32 %v5882, %v5994
        %v6275 = vmul.f32 %v5883, %v5995
        %v6276 = vmul.f32 %v5884, %v5996
        %v6277 = vmul.f32 %v5885, %v5997
        %v6278 = vmul.f32 %v5886, %v5998
        %v6279 = vmul.f32 %v5887, %v5999
        %v6280 = vmul.f32 %v5888, %v6000
        %v6281 = vmul.f32 %v5889, %v6001
        %v6282 = vmul.f32 %v5890, %v6002
        %v6283 = vmul.f32 %v5891, %v6003
        %v6284 = vmul.f32 %v5892, %v6004
        %v6285 = vmul.f32 %v5893, %v6005
        %v6286 = vmul.f32 %v5894, %v6006
        %v6287 = vmul.f32 %v5895, %v6007
        %v6288 = vmul.f32 %v5896, %v6008
        %v6289 = vmul.f32 %v5897, %v6009
        %v6290 = vmul.f32 %v5898, %v6010
        %v6291 = vmul.f32 %v5899, %v6011
        %v6292 = vmul.f32 %v5900, %v6012
        %v6293 = vmul.f32 %v5901, %v6013
        %v6294 = vmul.f32 %v5902, %v6014
        %v6295 = vmul.f32 %v5875, %v6015
        %v6296 = vmul.f32 %v5876, %v6016
        %v6297 = vmul.f32 %v5877, %v6017
        %v6298 = vmul.f32 %v5878, %v6018
        %v6299 = vmul.f32 %v5879, %v6019
        %v6300 = vmul.f32 %v5880, %v6020
        %v6301 = vmul.f32 %v5881, %v6021
        %v6302 = vmul.f32 %v5882, %v6022
        %v6303 = vmul.f32 %v5883, %v6023
        %v6304 = vmul.f32 %v5884, %v6024
        %v6305 = vmul.f32 %v5885, %v6025
        %v6306 = vmul.f32 %v5886, %v6026
        %v6307 = vmul.f32 %v5887, %v6027
        %v6308 = vmul.f32 %v5888, %v6028
        %v6309 = vmul.f32 %v5889, %v6029
        %v6310 = vmul.f32 %v5890, %v6030
        %v6311 = vmul.f32 %v5891, %v6031
        %v6312 = vmul.f32 %v5892, %v6032
        %v6313 = vmul.f32 %v5893, %v6033
        %v6314 = vmul.f32 %v5894, %v6034
        %v6315 = vmul.f32 %v5895, %v6035
        %v6316 = vmul.f32 %v5896, %v6036
        %v6317 = vmul.f32 %v5897, %v6037
        %v6318 = vmul.f32 %v5898, %v6038
        %v6319 = vmul.f32 %v5899, %v6039
        %v6320 = vmul.f32 %v5900, %v6040
        %v6321 = vmul.f32 %v5901, %v6041
        %v6322 = vmul.f32 %v5902, %v6042
        %v6323 = vmul.f32 %v5875, %v6043
        %v6324 = vmul.f32 %v5876, %v6044
        %v6325 = vmul.f32 %v5877, %v6045
        %v6326 = vmul.f32 %v5878, %v6046
        %v6327 = vmul.f32 %v5879, %v6047
        %v6328 = vmul.f32 %v5880, %v6048
        %v6329 = vmul.f32 %v5881, %v6049
        %v6330 = vmul.f32 %v5882, %v6050
        %v6331 = vmul.f32 %v5883, %v6051
        %v6332 = vmul.f32 %v5884, %v6052
        %v6333 = vmul.f32 %v5885, %v6053
        %v6334 = vmul.f32 %v5886, %v6054
        %v6335 = vmul.f32 %v5887, %v6055
        %v6336 = vmul.f32 %v5888, %v6056
        %v6337 = vmul.f32 %v5889, %v6057
        %v6338 = vmul.f32 %v5890, %v6058
        %v6339 = vmul.f32 %v5891, %v6059
        %v6340 = vmul.f32 %v5892, %v6060
        %v6341 = vmul.f32 %v5893, %v6061
        %v6342 = vmul.f32 %v5894, %v6062
        %v6343 = vmul.f32 %v5895, %v6063
        %v6344 = vmul.f32 %v5896, %v6064
        %v6345 = vmul.f32 %v5897, %v6065
        %v6346 = vmul.f32 %v5898, %v6066
        %v6347 = vmul.f32 %v5899, %v6067
        %v6348 = vmul.f32 %v5900, %v6068
        %v6349 = vmul.f32 %v5901, %v6069
        %v6350 = vmul.f32 %v5902, %v6070
        %v6351 = vmul.f32 %v5875, %v6071
        %v6352 = vmul.f32 %v5876, %v6072
        %v6353 = vmul.f32 %v5877, %v6073
        %v6354 = vmul.f32 %v5878, %v6074
        %v6355 = vmul.f32 %v5879, %v6075
        %v6356 = vmul.f32 %v5880, %v6076
        %v6357 = vmul.f32 %v5881, %v6077
        %v6358 = vmul.f32 %v5882, %v6078
        %v6359 = vmul.f32 %v5883, %v6079
        %v6360 = vmul.f32 %v5884, %v6080
        %v6361 = vmul.f32 %v5885, %v6081
        %v6362 = vmul.f32 %v5886, %v6082
        %v6363 = vmul.f32 %v5887, %v6083
        %v6364 = vmul.f32 %v5888, %v6084
        %v6365 = vmul.f32 %v5889, %v6085
        %v6366 = vmul.f32 %v5890, %v6086
        %v6367 = vmul.f32 %v5891, %v6087
        %v6368 = vmul.f32 %v5892, %v6088
        %v6369 = vmul.f32 %v5893, %v6089
        %v6370 = vmul.f32 %v5894, %v6090
        %v6371 = vmul.f32 %v5895, %v6091
        %v6372 = vmul.f32 %v5896, %v6092
        %v6373 = vmul.f32 %v5897, %v6093
        %v6374 = vmul.f32 %v5898, %v6094
        %v6375 = vmul.f32 %v5899, %v6095
        %v6376 = vmul.f32 %v5900, %v6096
        %v6377 = vmul.f32 %v5901, %v6097
        %v6378 = vmul.f32 %v5902, %v6098
        %v6379 = vmul.f32 %v5875, %v6099
        %v6380 = vmul.f32 %v5876, %v6100
        %v6381 = vmul.f32 %v5877, %v6101
        %v6382 = vmul.f32 %v5878, %v6102
        %v6383 = vmul.f32 %v5879, %v6103
        %v6384 = vmul.f32 %v5880, %v6104
        %v6385 = vmul.f32 %v5881, %v6105
        %v6386 = vmul.f32 %v5882, %v6106
        %v6387 = vmul.f32 %v5883, %v6107
        %v6388 = vmul.f32 %v5884, %v6108
        %v6389 = vmul.f32 %v5885, %v6109
        %v6390 = vmul.f32 %v5886, %v6110
        %v6391 = vmul.f32 %v5887, %v6111
        %v6392 = vmul.f32 %v5888, %v6112
        %v6393 = vmul.f32 %v5889, %v6113
        %v6394 = vmul.f32 %v5890, %v6114
        %v6395 = vmul.f32 %v5891, %v6115
        %v6396 = vmul.f32 %v5892, %v6116
        %v6397 = vmul.f32 %v5893, %v6117
        %v6398 = vmul.f32 %v5894, %v6118
        %v6399 = vmul.f32 %v5895, %v6119
        %v6400 = vmul.f32 %v5896, %v6120
        %v6401 = vmul.f32 %v5897, %v6121
        %v6402 = vmul.f32 %v5898, %v6122
        %v6403 = vmul.f32 %v5899, %v6123
        %v6404 = vmul.f32 %v5900, %v6124
        %v6405 = vmul.f32 %v5901, %v6125
        %v6406 = vmul.f32 %v5902, %v6126
        %v6407 = vmul.f32 %v5875, %v6127
        %v6408 = vmul.f32 %v5876, %v6128
        %v6409 = vmul.f32 %v5877, %v6129
        %v6410 = vmul.f32 %v5878, %v6130
        %v6411 = vmul.f32 %v5879, %v6131
        %v6412 = vmul.f32 %v5880, %v6132
        %v6413 = vmul.f32 %v5881, %v6133
        %v6414 = vmul.f32 %v5882, %v6134
        %v6415 = vmul.f32 %v5883, %v6135
        %v6416 = vmul.f32 %v5884, %v6136
        %v6417 = vmul.f32 %v5885, %v6137
        %v6418 = vmul.f32 %v5886, %v6138
        %v6419 = vmul.f32 %v5887, %v6139
        %v6420 = vmul.f32 %v5888, %v6140
        %v6421 = vmul.f32 %v5889, %v6141
        %v6422 = vmul.f32 %v5890, %v6142
        %v6423 = vmul.f32 %v5891, %v6143
        %v6424 = vmul.f32 %v5892, %v6144
        %v6425 = vmul.f32 %v5893, %v6145
        %v6426 = vmul.f32 %v5894, %v6146
        %v6427 = vmul.f32 %v5895, %v6147
        %v6428 = vmul.f32 %v5896, %v6148
        %v6429 = vmul.f32 %v5897, %v6149
        %v6430 = vmul.f32 %v5898, %v6150
        %v6431 = vmul.f32 %v5899, %v6151
        %v6432 = vmul.f32 %v5900, %v6152
        %v6433 = vmul.f32 %v5901, %v6153
        %v6434 = vmul.f32 %v5902, %v6154
        %v6435 = vmul.f32 %v5875, %v6155
        %v6436 = vmul.f32 %v5876, %v6156
        %v6437 = vmul.f32 %v5877, %v6157
        %v6438 = vmul.f32 %v5878, %v6158
        %v6439 = vmul.f32 %v5879, %v6159
        %v6440 = vmul.f32 %v5880, %v6160
        %v6441 = vmul.f32 %v5881, %v6161
        %v6442 = vmul.f32 %v5882, %v6162
        %v6443 = vmul.f32 %v5883, %v6163
        %v6444 = vmul.f32 %v5884, %v6164
        %v6445 = vmul.f32 %v5885, %v6165
        %v6446 = vmul.f32 %v5886, %v6166
        %v6447 = vmul.f32 %v5887, %v6167
        %v6448 = vmul.f32 %v5888, %v6168
        %v6449 = vmul.f32 %v5889, %v6169
        %v6450 = vmul.f32 %v5890, %v6170
        %v6451 = vmul.f32 %v5891, %v6171
        %v6452 = vmul.f32 %v5892, %v6172
        %v6453 = vmul.f32 %v5893, %v6173
        %v6454 = vmul.f32 %v5894, %v6174
        %v6455 = vmul.f32 %v5895, %v6175
        %v6456 = vmul.f32 %v5896, %v6176
        %v6457 = vmul.f32 %v5897, %v6177
        %v6458 = vmul.f32 %v5898, %v6178
        %v6459 = vmul.f32 %v5899, %v6179
        %v6460 = vmul.f32 %v5900, %v6180
        %v6461 = vmul.f32 %v5901, %v6181
        %v6462 = vmul.f32 %v5902, %v6182
        %v6463 = vsel %vm5753, %v6183, 0.0
        %6464 = vadd.xlane.f32.xlu0 %v6463
        %v6465 = vpop.xlane.xlu0 %6464
        %v6466 = vsel %vm5753, %v6184, 0.0
        %6467 = vadd.xlane.f32.xlu0 %v6466
        %v6468 = vpop.xlane.xlu0 %6467
        %v6469 = vsel %vm5753, %v6185, 0.0
        %6470 = vadd.xlane.f32.xlu0 %v6469
        %v6471 = vpop.xlane.xlu0 %6470
        %v6472 = vsel %vm5753, %v6186, 0.0
        %6473 = vadd.xlane.f32.xlu0 %v6472
        %v6474 = vpop.xlane.xlu0 %6473
        %v6475 = vsel %vm5753, %v6187, 0.0
        %6476 = vadd.xlane.f32.xlu0 %v6475
        %v6477 = vpop.xlane.xlu0 %6476
        %v6478 = vsel %vm5753, %v6188, 0.0
        %6479 = vadd.xlane.f32.xlu0 %v6478
        %v6480 = vpop.xlane.xlu0 %6479
        %v6481 = vsel %vm5753, %v6189, 0.0
        %6482 = vadd.xlane.f32.xlu0 %v6481
        %v6483 = vpop.xlane.xlu0 %6482
        %v6484 = vsel %vm5753, %v6190, 0.0
        %6485 = vadd.xlane.f32.xlu0 %v6484
        %v6486 = vpop.xlane.xlu0 %6485
        %v6487 = vsel %vm5753, %v6191, 0.0
        %6488 = vadd.xlane.f32.xlu0 %v6487
        %v6489 = vpop.xlane.xlu0 %6488
        %v6490 = vsel %vm5753, %v6192, 0.0
        %6491 = vadd.xlane.f32.xlu0 %v6490
        %v6492 = vpop.xlane.xlu0 %6491
        %v6493 = vsel %vm5753, %v6193, 0.0
        %6494 = vadd.xlane.f32.xlu0 %v6493
        %v6495 = vpop.xlane.xlu0 %6494
        %v6496 = vsel %vm5753, %v6194, 0.0
        %6497 = vadd.xlane.f32.xlu0 %v6496
        %v6498 = vpop.xlane.xlu0 %6497
        %v6499 = vsel %vm5753, %v6195, 0.0
        %6500 = vadd.xlane.f32.xlu0 %v6499
        %v6501 = vpop.xlane.xlu0 %6500
        %v6502 = vsel %vm5753, %v6196, 0.0
        %6503 = vadd.xlane.f32.xlu0 %v6502
        %v6504 = vpop.xlane.xlu0 %6503
        %v6505 = vsel %vm5753, %v6197, 0.0
        %6506 = vadd.xlane.f32.xlu0 %v6505
        %v6507 = vpop.xlane.xlu0 %6506
        %v6508 = vsel %vm5753, %v6198, 0.0
        %6509 = vadd.xlane.f32.xlu0 %v6508
        %v6510 = vpop.xlane.xlu0 %6509
        %v6511 = vsel %vm5753, %v6199, 0.0
        %6512 = vadd.xlane.f32.xlu0 %v6511
        %v6513 = vpop.xlane.xlu0 %6512
        %v6514 = vsel %vm5753, %v6200, 0.0
        %6515 = vadd.xlane.f32.xlu0 %v6514
        %v6516 = vpop.xlane.xlu0 %6515
        %v6517 = vsel %vm5753, %v6201, 0.0
        %6518 = vadd.xlane.f32.xlu0 %v6517
        %v6519 = vpop.xlane.xlu0 %6518
        %v6520 = vsel %vm5753, %v6202, 0.0
        %6521 = vadd.xlane.f32.xlu0 %v6520
        %v6522 = vpop.xlane.xlu0 %6521
        %v6523 = vsel %vm5753, %v6203, 0.0
        %6524 = vadd.xlane.f32.xlu0 %v6523
        %v6525 = vpop.xlane.xlu0 %6524
        %v6526 = vsel %vm5753, %v6204, 0.0
        %6527 = vadd.xlane.f32.xlu0 %v6526
        %v6528 = vpop.xlane.xlu0 %6527
        %v6529 = vsel %vm5753, %v6205, 0.0
        %6530 = vadd.xlane.f32.xlu0 %v6529
        %v6531 = vpop.xlane.xlu0 %6530
        %v6532 = vsel %vm5753, %v6206, 0.0
        %6533 = vadd.xlane.f32.xlu0 %v6532
        %v6534 = vpop.xlane.xlu0 %6533
        %v6535 = vsel %vm5753, %v6207, 0.0
        %6536 = vadd.xlane.f32.xlu0 %v6535
        %v6537 = vpop.xlane.xlu0 %6536
        %v6538 = vsel %vm5753, %v6208, 0.0
        %6539 = vadd.xlane.f32.xlu0 %v6538
        %v6540 = vpop.xlane.xlu0 %6539
        %v6541 = vsel %vm5753, %v6209, 0.0
        %6542 = vadd.xlane.f32.xlu0 %v6541
        %v6543 = vpop.xlane.xlu0 %6542
        %v6544 = vsel %vm5753, %v6210, 0.0
        %6545 = vadd.xlane.f32.xlu0 %v6544
        %v6546 = vpop.xlane.xlu0 %6545
        %v6547 = vsel %vm5753, %v6211, 0.0
        %6548 = vadd.xlane.f32.xlu0 %v6547
        %v6549 = vpop.xlane.xlu0 %6548
        %v6550 = vsel %vm5753, %v6212, 0.0
        %6551 = vadd.xlane.f32.xlu0 %v6550
        %v6552 = vpop.xlane.xlu0 %6551
        %v6553 = vsel %vm5753, %v6213, 0.0
        %6554 = vadd.xlane.f32.xlu0 %v6553
        %v6555 = vpop.xlane.xlu0 %6554
        %v6556 = vsel %vm5753, %v6214, 0.0
        %6557 = vadd.xlane.f32.xlu0 %v6556
        %v6558 = vpop.xlane.xlu0 %6557
        %v6559 = vsel %vm5753, %v6215, 0.0
        %6560 = vadd.xlane.f32.xlu0 %v6559
        %v6561 = vpop.xlane.xlu0 %6560
        %v6562 = vsel %vm5753, %v6216, 0.0
        %6563 = vadd.xlane.f32.xlu0 %v6562
        %v6564 = vpop.xlane.xlu0 %6563
        %v6565 = vsel %vm5753, %v6217, 0.0
        %6566 = vadd.xlane.f32.xlu0 %v6565
        %v6567 = vpop.xlane.xlu0 %6566
        %v6568 = vsel %vm5753, %v6218, 0.0
        %6569 = vadd.xlane.f32.xlu0 %v6568
        %v6570 = vpop.xlane.xlu0 %6569
        %v6571 = vsel %vm5753, %v6219, 0.0
        %6572 = vadd.xlane.f32.xlu0 %v6571
        %v6573 = vpop.xlane.xlu0 %6572
        %v6574 = vsel %vm5753, %v6220, 0.0
        %6575 = vadd.xlane.f32.xlu0 %v6574
        %v6576 = vpop.xlane.xlu0 %6575
        %v6577 = vsel %vm5753, %v6221, 0.0
        %6578 = vadd.xlane.f32.xlu0 %v6577
        %v6579 = vpop.xlane.xlu0 %6578
        %v6580 = vsel %vm5753, %v6222, 0.0
        %6581 = vadd.xlane.f32.xlu0 %v6580
        %v6582 = vpop.xlane.xlu0 %6581
        %v6583 = vsel %vm5753, %v6223, 0.0
        %6584 = vadd.xlane.f32.xlu0 %v6583
        %v6585 = vpop.xlane.xlu0 %6584
        %v6586 = vsel %vm5753, %v6224, 0.0
        %6587 = vadd.xlane.f32.xlu0 %v6586
        %v6588 = vpop.xlane.xlu0 %6587
        %v6589 = vsel %vm5753, %v6225, 0.0
        %6590 = vadd.xlane.f32.xlu0 %v6589
        %v6591 = vpop.xlane.xlu0 %6590
        %v6592 = vsel %vm5753, %v6226, 0.0
        %6593 = vadd.xlane.f32.xlu0 %v6592
        %v6594 = vpop.xlane.xlu0 %6593
        %v6595 = vsel %vm5753, %v6227, 0.0
        %6596 = vadd.xlane.f32.xlu0 %v6595
        %v6597 = vpop.xlane.xlu0 %6596
        %v6598 = vsel %vm5753, %v6228, 0.0
        %6599 = vadd.xlane.f32.xlu0 %v6598
        %v6600 = vpop.xlane.xlu0 %6599
        %v6601 = vsel %vm5753, %v6229, 0.0
        %6602 = vadd.xlane.f32.xlu0 %v6601
        %v6603 = vpop.xlane.xlu0 %6602
        %v6604 = vsel %vm5753, %v6230, 0.0
        %6605 = vadd.xlane.f32.xlu0 %v6604
        %v6606 = vpop.xlane.xlu0 %6605
        %v6607 = vsel %vm5753, %v6231, 0.0
        %6608 = vadd.xlane.f32.xlu0 %v6607
        %v6609 = vpop.xlane.xlu0 %6608
        %v6610 = vsel %vm5753, %v6232, 0.0
        %6611 = vadd.xlane.f32.xlu0 %v6610
        %v6612 = vpop.xlane.xlu0 %6611
        %v6613 = vsel %vm5753, %v6233, 0.0
        %6614 = vadd.xlane.f32.xlu0 %v6613
        %v6615 = vpop.xlane.xlu0 %6614
        %v6616 = vsel %vm5753, %v6234, 0.0
        %6617 = vadd.xlane.f32.xlu0 %v6616
        %v6618 = vpop.xlane.xlu0 %6617
        %v6619 = vsel %vm5753, %v6235, 0.0
        %6620 = vadd.xlane.f32.xlu0 %v6619
        %v6621 = vpop.xlane.xlu0 %6620
        %v6622 = vsel %vm5753, %v6236, 0.0
        %6623 = vadd.xlane.f32.xlu0 %v6622
        %v6624 = vpop.xlane.xlu0 %6623
        %v6625 = vsel %vm5753, %v6237, 0.0
        %6626 = vadd.xlane.f32.xlu0 %v6625
        %v6627 = vpop.xlane.xlu0 %6626
        %v6628 = vsel %vm5753, %v6238, 0.0
        %6629 = vadd.xlane.f32.xlu0 %v6628
        %v6630 = vpop.xlane.xlu0 %6629
        %v6631 = vsel %vm5753, %v6239, 0.0
        %6632 = vadd.xlane.f32.xlu0 %v6631
        %v6633 = vpop.xlane.xlu0 %6632
        %v6634 = vsel %vm5753, %v6240, 0.0
        %6635 = vadd.xlane.f32.xlu0 %v6634
        %v6636 = vpop.xlane.xlu0 %6635
        %v6637 = vsel %vm5753, %v6241, 0.0
        %6638 = vadd.xlane.f32.xlu0 %v6637
        %v6639 = vpop.xlane.xlu0 %6638
        %v6640 = vsel %vm5753, %v6242, 0.0
        %6641 = vadd.xlane.f32.xlu0 %v6640
        %v6642 = vpop.xlane.xlu0 %6641
        %v6643 = vsel %vm5753, %v6243, 0.0
        %6644 = vadd.xlane.f32.xlu0 %v6643
        %v6645 = vpop.xlane.xlu0 %6644
        %v6646 = vsel %vm5753, %v6244, 0.0
        %6647 = vadd.xlane.f32.xlu0 %v6646
        %v6648 = vpop.xlane.xlu0 %6647
        %v6649 = vsel %vm5753, %v6245, 0.0
        %6650 = vadd.xlane.f32.xlu0 %v6649
        %v6651 = vpop.xlane.xlu0 %6650
        %v6652 = vsel %vm5753, %v6246, 0.0
        %6653 = vadd.xlane.f32.xlu0 %v6652
        %v6654 = vpop.xlane.xlu0 %6653
        %v6655 = vsel %vm5753, %v6247, 0.0
        %6656 = vadd.xlane.f32.xlu0 %v6655
        %v6657 = vpop.xlane.xlu0 %6656
        %v6658 = vsel %vm5753, %v6248, 0.0
        %6659 = vadd.xlane.f32.xlu0 %v6658
        %v6660 = vpop.xlane.xlu0 %6659
        %v6661 = vsel %vm5753, %v6249, 0.0
        %6662 = vadd.xlane.f32.xlu0 %v6661
        %v6663 = vpop.xlane.xlu0 %6662
        %v6664 = vsel %vm5753, %v6250, 0.0
        %6665 = vadd.xlane.f32.xlu0 %v6664
        %v6666 = vpop.xlane.xlu0 %6665
        %v6667 = vsel %vm5753, %v6251, 0.0
        %6668 = vadd.xlane.f32.xlu0 %v6667
        %v6669 = vpop.xlane.xlu0 %6668
        %v6670 = vsel %vm5753, %v6252, 0.0
        %6671 = vadd.xlane.f32.xlu0 %v6670
        %v6672 = vpop.xlane.xlu0 %6671
        %v6673 = vsel %vm5753, %v6253, 0.0
        %6674 = vadd.xlane.f32.xlu0 %v6673
        %v6675 = vpop.xlane.xlu0 %6674
        %v6676 = vsel %vm5753, %v6254, 0.0
        %6677 = vadd.xlane.f32.xlu0 %v6676
        %v6678 = vpop.xlane.xlu0 %6677
        %v6679 = vsel %vm5753, %v6255, 0.0
        %6680 = vadd.xlane.f32.xlu0 %v6679
        %v6681 = vpop.xlane.xlu0 %6680
        %v6682 = vsel %vm5753, %v6256, 0.0
        %6683 = vadd.xlane.f32.xlu0 %v6682
        %v6684 = vpop.xlane.xlu0 %6683
        %v6685 = vsel %vm5753, %v6257, 0.0
        %6686 = vadd.xlane.f32.xlu0 %v6685
        %v6687 = vpop.xlane.xlu0 %6686
        %v6688 = vsel %vm5753, %v6258, 0.0
        %6689 = vadd.xlane.f32.xlu0 %v6688
        %v6690 = vpop.xlane.xlu0 %6689
        %v6691 = vsel %vm5753, %v6259, 0.0
        %6692 = vadd.xlane.f32.xlu0 %v6691
        %v6693 = vpop.xlane.xlu0 %6692
        %v6694 = vsel %vm5753, %v6260, 0.0
        %6695 = vadd.xlane.f32.xlu0 %v6694
        %v6696 = vpop.xlane.xlu0 %6695
        %v6697 = vsel %vm5753, %v6261, 0.0
        %6698 = vadd.xlane.f32.xlu0 %v6697
        %v6699 = vpop.xlane.xlu0 %6698
        %v6700 = vsel %vm5753, %v6262, 0.0
        %6701 = vadd.xlane.f32.xlu0 %v6700
        %v6702 = vpop.xlane.xlu0 %6701
        %v6703 = vsel %vm5753, %v6263, 0.0
        %6704 = vadd.xlane.f32.xlu0 %v6703
        %v6705 = vpop.xlane.xlu0 %6704
        %v6706 = vsel %vm5753, %v6264, 0.0
        %6707 = vadd.xlane.f32.xlu0 %v6706
        %v6708 = vpop.xlane.xlu0 %6707
        %v6709 = vsel %vm5753, %v6265, 0.0
        %6710 = vadd.xlane.f32.xlu0 %v6709
        %v6711 = vpop.xlane.xlu0 %6710
        %v6712 = vsel %vm5753, %v6266, 0.0
        %6713 = vadd.xlane.f32.xlu0 %v6712
        %v6714 = vpop.xlane.xlu0 %6713
        %v6715 = vsel %vm5753, %v6267, 0.0
        %6716 = vadd.xlane.f32.xlu0 %v6715
        %v6717 = vpop.xlane.xlu0 %6716
        %v6718 = vsel %vm5753, %v6268, 0.0
        %6719 = vadd.xlane.f32.xlu0 %v6718
        %v6720 = vpop.xlane.xlu0 %6719
        %v6721 = vsel %vm5753, %v6269, 0.0
        %6722 = vadd.xlane.f32.xlu0 %v6721
        %v6723 = vpop.xlane.xlu0 %6722
        %v6724 = vsel %vm5753, %v6270, 0.0
        %6725 = vadd.xlane.f32.xlu0 %v6724
        %v6726 = vpop.xlane.xlu0 %6725
        %v6727 = vsel %vm5753, %v6271, 0.0
        %6728 = vadd.xlane.f32.xlu0 %v6727
        %v6729 = vpop.xlane.xlu0 %6728
        %v6730 = vsel %vm5753, %v6272, 0.0
        %6731 = vadd.xlane.f32.xlu0 %v6730
        %v6732 = vpop.xlane.xlu0 %6731
        %v6733 = vsel %vm5753, %v6273, 0.0
        %6734 = vadd.xlane.f32.xlu0 %v6733
        %v6735 = vpop.xlane.xlu0 %6734
        %v6736 = vsel %vm5753, %v6274, 0.0
        %6737 = vadd.xlane.f32.xlu0 %v6736
        %v6738 = vpop.xlane.xlu0 %6737
        %v6739 = vsel %vm5753, %v6275, 0.0
        %6740 = vadd.xlane.f32.xlu0 %v6739
        %v6741 = vpop.xlane.xlu0 %6740
        %v6742 = vsel %vm5753, %v6276, 0.0
        %6743 = vadd.xlane.f32.xlu0 %v6742
        %v6744 = vpop.xlane.xlu0 %6743
        %v6745 = vsel %vm5753, %v6277, 0.0
        %6746 = vadd.xlane.f32.xlu0 %v6745
        %v6747 = vpop.xlane.xlu0 %6746
        %v6748 = vsel %vm5753, %v6278, 0.0
        %6749 = vadd.xlane.f32.xlu0 %v6748
        %v6750 = vpop.xlane.xlu0 %6749
        %v6751 = vsel %vm5753, %v6279, 0.0
        %6752 = vadd.xlane.f32.xlu0 %v6751
        %v6753 = vpop.xlane.xlu0 %6752
        %v6754 = vsel %vm5753, %v6280, 0.0
        %6755 = vadd.xlane.f32.xlu0 %v6754
        %v6756 = vpop.xlane.xlu0 %6755
        %v6757 = vsel %vm5753, %v6281, 0.0
        %6758 = vadd.xlane.f32.xlu0 %v6757
        %v6759 = vpop.xlane.xlu0 %6758
        %v6760 = vsel %vm5753, %v6282, 0.0
        %6761 = vadd.xlane.f32.xlu0 %v6760
        %v6762 = vpop.xlane.xlu0 %6761
        %v6763 = vsel %vm5753, %v6283, 0.0
        %6764 = vadd.xlane.f32.xlu0 %v6763
        %v6765 = vpop.xlane.xlu0 %6764
        %v6766 = vsel %vm5753, %v6284, 0.0
        %6767 = vadd.xlane.f32.xlu0 %v6766
        %v6768 = vpop.xlane.xlu0 %6767
        %v6769 = vsel %vm5753, %v6285, 0.0
        %6770 = vadd.xlane.f32.xlu0 %v6769
        %v6771 = vpop.xlane.xlu0 %6770
        %v6772 = vsel %vm5753, %v6286, 0.0
        %6773 = vadd.xlane.f32.xlu0 %v6772
        %v6774 = vpop.xlane.xlu0 %6773
        %v6775 = vsel %vm5753, %v6287, 0.0
        %6776 = vadd.xlane.f32.xlu0 %v6775
        %v6777 = vpop.xlane.xlu0 %6776
        %v6778 = vsel %vm5753, %v6288, 0.0
        %6779 = vadd.xlane.f32.xlu0 %v6778
        %v6780 = vpop.xlane.xlu0 %6779
        %v6781 = vsel %vm5753, %v6289, 0.0
        %6782 = vadd.xlane.f32.xlu0 %v6781
        %v6783 = vpop.xlane.xlu0 %6782
        %v6784 = vsel %vm5753, %v6290, 0.0
        %6785 = vadd.xlane.f32.xlu0 %v6784
        %v6786 = vpop.xlane.xlu0 %6785
        %v6787 = vsel %vm5753, %v6291, 0.0
        %6788 = vadd.xlane.f32.xlu0 %v6787
        %v6789 = vpop.xlane.xlu0 %6788
        %v6790 = vsel %vm5753, %v6292, 0.0
        %6791 = vadd.xlane.f32.xlu0 %v6790
        %v6792 = vpop.xlane.xlu0 %6791
        %v6793 = vsel %vm5753, %v6293, 0.0
        %6794 = vadd.xlane.f32.xlu0 %v6793
        %v6795 = vpop.xlane.xlu0 %6794
        %v6796 = vsel %vm5753, %v6294, 0.0
        %6797 = vadd.xlane.f32.xlu0 %v6796
        %v6798 = vpop.xlane.xlu0 %6797
        %v6799 = vsel %vm5753, %v6295, 0.0
        %6800 = vadd.xlane.f32.xlu0 %v6799
        %v6801 = vpop.xlane.xlu0 %6800
        %v6802 = vsel %vm5753, %v6296, 0.0
        %6803 = vadd.xlane.f32.xlu0 %v6802
        %v6804 = vpop.xlane.xlu0 %6803
        %v6805 = vsel %vm5753, %v6297, 0.0
        %6806 = vadd.xlane.f32.xlu0 %v6805
        %v6807 = vpop.xlane.xlu0 %6806
        %v6808 = vsel %vm5753, %v6298, 0.0
        %6809 = vadd.xlane.f32.xlu0 %v6808
        %v6810 = vpop.xlane.xlu0 %6809
        %v6811 = vsel %vm5753, %v6299, 0.0
        %6812 = vadd.xlane.f32.xlu0 %v6811
        %v6813 = vpop.xlane.xlu0 %6812
        %v6814 = vsel %vm5753, %v6300, 0.0
        %6815 = vadd.xlane.f32.xlu0 %v6814
        %v6816 = vpop.xlane.xlu0 %6815
        %v6817 = vsel %vm5753, %v6301, 0.0
        %6818 = vadd.xlane.f32.xlu0 %v6817
        %v6819 = vpop.xlane.xlu0 %6818
        %v6820 = vsel %vm5753, %v6302, 0.0
        %6821 = vadd.xlane.f32.xlu0 %v6820
        %v6822 = vpop.xlane.xlu0 %6821
        %v6823 = vsel %vm5753, %v6303, 0.0
        %6824 = vadd.xlane.f32.xlu0 %v6823
        %v6825 = vpop.xlane.xlu0 %6824
        %v6826 = vsel %vm5753, %v6304, 0.0
        %6827 = vadd.xlane.f32.xlu0 %v6826
        %v6828 = vpop.xlane.xlu0 %6827
        %v6829 = vsel %vm5753, %v6305, 0.0
        %6830 = vadd.xlane.f32.xlu0 %v6829
        %v6831 = vpop.xlane.xlu0 %6830
        %v6832 = vsel %vm5753, %v6306, 0.0
        %6833 = vadd.xlane.f32.xlu0 %v6832
        %v6834 = vpop.xlane.xlu0 %6833
        %v6835 = vsel %vm5753, %v6307, 0.0
        %6836 = vadd.xlane.f32.xlu0 %v6835
        %v6837 = vpop.xlane.xlu0 %6836
        %v6838 = vsel %vm5753, %v6308, 0.0
        %6839 = vadd.xlane.f32.xlu0 %v6838
        %v6840 = vpop.xlane.xlu0 %6839
        %v6841 = vsel %vm5753, %v6309, 0.0
        %6842 = vadd.xlane.f32.xlu0 %v6841
        %v6843 = vpop.xlane.xlu0 %6842
        %v6844 = vsel %vm5753, %v6310, 0.0
        %6845 = vadd.xlane.f32.xlu0 %v6844
        %v6846 = vpop.xlane.xlu0 %6845
        %v6847 = vsel %vm5753, %v6311, 0.0
        %6848 = vadd.xlane.f32.xlu0 %v6847
        %v6849 = vpop.xlane.xlu0 %6848
        %v6850 = vsel %vm5753, %v6312, 0.0
        %6851 = vadd.xlane.f32.xlu0 %v6850
        %v6852 = vpop.xlane.xlu0 %6851
        %v6853 = vsel %vm5753, %v6313, 0.0
        %6854 = vadd.xlane.f32.xlu0 %v6853
        %v6855 = vpop.xlane.xlu0 %6854
        %v6856 = vsel %vm5753, %v6314, 0.0
        %6857 = vadd.xlane.f32.xlu0 %v6856
        %v6858 = vpop.xlane.xlu0 %6857
        %v6859 = vsel %vm5753, %v6315, 0.0
        %6860 = vadd.xlane.f32.xlu0 %v6859
        %v6861 = vpop.xlane.xlu0 %6860
        %v6862 = vsel %vm5753, %v6316, 0.0
        %6863 = vadd.xlane.f32.xlu0 %v6862
        %v6864 = vpop.xlane.xlu0 %6863
        %v6865 = vsel %vm5753, %v6317, 0.0
        %6866 = vadd.xlane.f32.xlu0 %v6865
        %v6867 = vpop.xlane.xlu0 %6866
        %v6868 = vsel %vm5753, %v6318, 0.0
        %6869 = vadd.xlane.f32.xlu0 %v6868
        %v6870 = vpop.xlane.xlu0 %6869
        %v6871 = vsel %vm5753, %v6319, 0.0
        %6872 = vadd.xlane.f32.xlu0 %v6871
        %v6873 = vpop.xlane.xlu0 %6872
        %v6874 = vsel %vm5753, %v6320, 0.0
        %6875 = vadd.xlane.f32.xlu0 %v6874
        %v6876 = vpop.xlane.xlu0 %6875
        %v6877 = vsel %vm5753, %v6321, 0.0
        %6878 = vadd.xlane.f32.xlu0 %v6877
        %v6879 = vpop.xlane.xlu0 %6878
        %v6880 = vsel %vm5753, %v6322, 0.0
        %6881 = vadd.xlane.f32.xlu0 %v6880
        %v6882 = vpop.xlane.xlu0 %6881
        %v6883 = vsel %vm5753, %v6323, 0.0
        %6884 = vadd.xlane.f32.xlu0 %v6883
        %v6885 = vpop.xlane.xlu0 %6884
        %v6886 = vsel %vm5753, %v6324, 0.0
        %6887 = vadd.xlane.f32.xlu0 %v6886
        %v6888 = vpop.xlane.xlu0 %6887
        %v6889 = vsel %vm5753, %v6325, 0.0
        %6890 = vadd.xlane.f32.xlu0 %v6889
        %v6891 = vpop.xlane.xlu0 %6890
        %v6892 = vsel %vm5753, %v6326, 0.0
        %6893 = vadd.xlane.f32.xlu0 %v6892
        %v6894 = vpop.xlane.xlu0 %6893
        %v6895 = vsel %vm5753, %v6327, 0.0
        %6896 = vadd.xlane.f32.xlu0 %v6895
        %v6897 = vpop.xlane.xlu0 %6896
        %v6898 = vsel %vm5753, %v6328, 0.0
        %6899 = vadd.xlane.f32.xlu0 %v6898
        %v6900 = vpop.xlane.xlu0 %6899
        %v6901 = vsel %vm5753, %v6329, 0.0
        %6902 = vadd.xlane.f32.xlu0 %v6901
        %v6903 = vpop.xlane.xlu0 %6902
        %v6904 = vsel %vm5753, %v6330, 0.0
        %6905 = vadd.xlane.f32.xlu0 %v6904
        %v6906 = vpop.xlane.xlu0 %6905
        %v6907 = vsel %vm5753, %v6331, 0.0
        %6908 = vadd.xlane.f32.xlu0 %v6907
        %v6909 = vpop.xlane.xlu0 %6908
        %v6910 = vsel %vm5753, %v6332, 0.0
        %6911 = vadd.xlane.f32.xlu0 %v6910
        %v6912 = vpop.xlane.xlu0 %6911
        %v6913 = vsel %vm5753, %v6333, 0.0
        %6914 = vadd.xlane.f32.xlu0 %v6913
        %v6915 = vpop.xlane.xlu0 %6914
        %v6916 = vsel %vm5753, %v6334, 0.0
        %6917 = vadd.xlane.f32.xlu0 %v6916
        %v6918 = vpop.xlane.xlu0 %6917
        %v6919 = vsel %vm5753, %v6335, 0.0
        %6920 = vadd.xlane.f32.xlu0 %v6919
        %v6921 = vpop.xlane.xlu0 %6920
        %v6922 = vsel %vm5753, %v6336, 0.0
        %6923 = vadd.xlane.f32.xlu0 %v6922
        %v6924 = vpop.xlane.xlu0 %6923
        %v6925 = vsel %vm5753, %v6337, 0.0
        %6926 = vadd.xlane.f32.xlu0 %v6925
        %v6927 = vpop.xlane.xlu0 %6926
        %v6928 = vsel %vm5753, %v6338, 0.0
        %6929 = vadd.xlane.f32.xlu0 %v6928
        %v6930 = vpop.xlane.xlu0 %6929
        %v6931 = vsel %vm5753, %v6339, 0.0
        %6932 = vadd.xlane.f32.xlu0 %v6931
        %v6933 = vpop.xlane.xlu0 %6932
        %v6934 = vsel %vm5753, %v6340, 0.0
        %6935 = vadd.xlane.f32.xlu0 %v6934
        %v6936 = vpop.xlane.xlu0 %6935
        %v6937 = vsel %vm5753, %v6341, 0.0
        %6938 = vadd.xlane.f32.xlu0 %v6937
        %v6939 = vpop.xlane.xlu0 %6938
        %v6940 = vsel %vm5753, %v6342, 0.0
        %6941 = vadd.xlane.f32.xlu0 %v6940
        %v6942 = vpop.xlane.xlu0 %6941
        %v6943 = vsel %vm5753, %v6343, 0.0
        %6944 = vadd.xlane.f32.xlu0 %v6943
        %v6945 = vpop.xlane.xlu0 %6944
        %v6946 = vsel %vm5753, %v6344, 0.0
        %6947 = vadd.xlane.f32.xlu0 %v6946
        %v6948 = vpop.xlane.xlu0 %6947
        %v6949 = vsel %vm5753, %v6345, 0.0
        %6950 = vadd.xlane.f32.xlu0 %v6949
        %v6951 = vpop.xlane.xlu0 %6950
        %v6952 = vsel %vm5753, %v6346, 0.0
        %6953 = vadd.xlane.f32.xlu0 %v6952
        %v6954 = vpop.xlane.xlu0 %6953
        %v6955 = vsel %vm5753, %v6347, 0.0
        %6956 = vadd.xlane.f32.xlu0 %v6955
        %v6957 = vpop.xlane.xlu0 %6956
        %v6958 = vsel %vm5753, %v6348, 0.0
        %6959 = vadd.xlane.f32.xlu0 %v6958
        %v6960 = vpop.xlane.xlu0 %6959
        %v6961 = vsel %vm5753, %v6349, 0.0
        %6962 = vadd.xlane.f32.xlu0 %v6961
        %v6963 = vpop.xlane.xlu0 %6962
        %v6964 = vsel %vm5753, %v6350, 0.0
        %6965 = vadd.xlane.f32.xlu0 %v6964
        %v6966 = vpop.xlane.xlu0 %6965
        %v6967 = vsel %vm5753, %v6351, 0.0
        %6968 = vadd.xlane.f32.xlu0 %v6967
        %v6969 = vpop.xlane.xlu0 %6968
        %v6970 = vsel %vm5753, %v6352, 0.0
        %6971 = vadd.xlane.f32.xlu0 %v6970
        %v6972 = vpop.xlane.xlu0 %6971
        %v6973 = vsel %vm5753, %v6353, 0.0
        %6974 = vadd.xlane.f32.xlu0 %v6973
        %v6975 = vpop.xlane.xlu0 %6974
        %v6976 = vsel %vm5753, %v6354, 0.0
        %6977 = vadd.xlane.f32.xlu0 %v6976
        %v6978 = vpop.xlane.xlu0 %6977
        %v6979 = vsel %vm5753, %v6355, 0.0
        %6980 = vadd.xlane.f32.xlu0 %v6979
        %v6981 = vpop.xlane.xlu0 %6980
        %v6982 = vsel %vm5753, %v6356, 0.0
        %6983 = vadd.xlane.f32.xlu0 %v6982
        %v6984 = vpop.xlane.xlu0 %6983
        %v6985 = vsel %vm5753, %v6357, 0.0
        %6986 = vadd.xlane.f32.xlu0 %v6985
        %v6987 = vpop.xlane.xlu0 %6986
        %v6988 = vsel %vm5753, %v6358, 0.0
        %6989 = vadd.xlane.f32.xlu0 %v6988
        %v6990 = vpop.xlane.xlu0 %6989
        %v6991 = vsel %vm5753, %v6359, 0.0
        %6992 = vadd.xlane.f32.xlu0 %v6991
        %v6993 = vpop.xlane.xlu0 %6992
        %v6994 = vsel %vm5753, %v6360, 0.0
        %6995 = vadd.xlane.f32.xlu0 %v6994
        %v6996 = vpop.xlane.xlu0 %6995
        %v6997 = vsel %vm5753, %v6361, 0.0
        %6998 = vadd.xlane.f32.xlu0 %v6997
        %v6999 = vpop.xlane.xlu0 %6998
        %v7000 = vsel %vm5753, %v6362, 0.0
        %7001 = vadd.xlane.f32.xlu0 %v7000
        %v7002 = vpop.xlane.xlu0 %7001
        %v7003 = vsel %vm5753, %v6363, 0.0
        %7004 = vadd.xlane.f32.xlu0 %v7003
        %v7005 = vpop.xlane.xlu0 %7004
        %v7006 = vsel %vm5753, %v6364, 0.0
        %7007 = vadd.xlane.f32.xlu0 %v7006
        %v7008 = vpop.xlane.xlu0 %7007
        %v7009 = vsel %vm5753, %v6365, 0.0
        %7010 = vadd.xlane.f32.xlu0 %v7009
        %v7011 = vpop.xlane.xlu0 %7010
        %v7012 = vsel %vm5753, %v6366, 0.0
        %7013 = vadd.xlane.f32.xlu0 %v7012
        %v7014 = vpop.xlane.xlu0 %7013
        %v7015 = vsel %vm5753, %v6367, 0.0
        %7016 = vadd.xlane.f32.xlu0 %v7015
        %v7017 = vpop.xlane.xlu0 %7016
        %v7018 = vsel %vm5753, %v6368, 0.0
        %7019 = vadd.xlane.f32.xlu0 %v7018
        %v7020 = vpop.xlane.xlu0 %7019
        %v7021 = vsel %vm5753, %v6369, 0.0
        %7022 = vadd.xlane.f32.xlu0 %v7021
        %v7023 = vpop.xlane.xlu0 %7022
        %v7024 = vsel %vm5753, %v6370, 0.0
        %7025 = vadd.xlane.f32.xlu0 %v7024
        %v7026 = vpop.xlane.xlu0 %7025
        %v7027 = vsel %vm5753, %v6371, 0.0
        %7028 = vadd.xlane.f32.xlu0 %v7027
        %v7029 = vpop.xlane.xlu0 %7028
        %v7030 = vsel %vm5753, %v6372, 0.0
        %7031 = vadd.xlane.f32.xlu0 %v7030
        %v7032 = vpop.xlane.xlu0 %7031
        %v7033 = vsel %vm5753, %v6373, 0.0
        %7034 = vadd.xlane.f32.xlu0 %v7033
        %v7035 = vpop.xlane.xlu0 %7034
        %v7036 = vsel %vm5753, %v6374, 0.0
        %7037 = vadd.xlane.f32.xlu0 %v7036
        %v7038 = vpop.xlane.xlu0 %7037
        %v7039 = vsel %vm5753, %v6375, 0.0
        %7040 = vadd.xlane.f32.xlu0 %v7039
        %v7041 = vpop.xlane.xlu0 %7040
        %v7042 = vsel %vm5753, %v6376, 0.0
        %7043 = vadd.xlane.f32.xlu0 %v7042
        %v7044 = vpop.xlane.xlu0 %7043
        %v7045 = vsel %vm5753, %v6377, 0.0
        %7046 = vadd.xlane.f32.xlu0 %v7045
        %v7047 = vpop.xlane.xlu0 %7046
        %v7048 = vsel %vm5753, %v6378, 0.0
        %7049 = vadd.xlane.f32.xlu0 %v7048
        %v7050 = vpop.xlane.xlu0 %7049
        %v7051 = vsel %vm5753, %v6379, 0.0
        %7052 = vadd.xlane.f32.xlu0 %v7051
        %v7053 = vpop.xlane.xlu0 %7052
        %v7054 = vsel %vm5753, %v6380, 0.0
        %7055 = vadd.xlane.f32.xlu0 %v7054
        %v7056 = vpop.xlane.xlu0 %7055
        %v7057 = vsel %vm5753, %v6381, 0.0
        %7058 = vadd.xlane.f32.xlu0 %v7057
        %v7059 = vpop.xlane.xlu0 %7058
        %v7060 = vsel %vm5753, %v6382, 0.0
        %7061 = vadd.xlane.f32.xlu0 %v7060
        %v7062 = vpop.xlane.xlu0 %7061
        %v7063 = vsel %vm5753, %v6383, 0.0
        %7064 = vadd.xlane.f32.xlu0 %v7063
        %v7065 = vpop.xlane.xlu0 %7064
        %v7066 = vsel %vm5753, %v6384, 0.0
        %7067 = vadd.xlane.f32.xlu0 %v7066
        %v7068 = vpop.xlane.xlu0 %7067
        %v7069 = vsel %vm5753, %v6385, 0.0
        %7070 = vadd.xlane.f32.xlu0 %v7069
        %v7071 = vpop.xlane.xlu0 %7070
        %v7072 = vsel %vm5753, %v6386, 0.0
        %7073 = vadd.xlane.f32.xlu0 %v7072
        %v7074 = vpop.xlane.xlu0 %7073
        %v7075 = vsel %vm5753, %v6387, 0.0
        %7076 = vadd.xlane.f32.xlu0 %v7075
        %v7077 = vpop.xlane.xlu0 %7076
        %v7078 = vsel %vm5753, %v6388, 0.0
        %7079 = vadd.xlane.f32.xlu0 %v7078
        %v7080 = vpop.xlane.xlu0 %7079
        %v7081 = vsel %vm5753, %v6389, 0.0
        %7082 = vadd.xlane.f32.xlu0 %v7081
        %v7083 = vpop.xlane.xlu0 %7082
        %v7084 = vsel %vm5753, %v6390, 0.0
        %7085 = vadd.xlane.f32.xlu0 %v7084
        %v7086 = vpop.xlane.xlu0 %7085
        %v7087 = vsel %vm5753, %v6391, 0.0
        %7088 = vadd.xlane.f32.xlu0 %v7087
        %v7089 = vpop.xlane.xlu0 %7088
        %v7090 = vsel %vm5753, %v6392, 0.0
        %7091 = vadd.xlane.f32.xlu0 %v7090
        %v7092 = vpop.xlane.xlu0 %7091
        %v7093 = vsel %vm5753, %v6393, 0.0
        %7094 = vadd.xlane.f32.xlu0 %v7093
        %v7095 = vpop.xlane.xlu0 %7094
        %v7096 = vsel %vm5753, %v6394, 0.0
        %7097 = vadd.xlane.f32.xlu0 %v7096
        %v7098 = vpop.xlane.xlu0 %7097
        %v7099 = vsel %vm5753, %v6395, 0.0
        %7100 = vadd.xlane.f32.xlu0 %v7099
        %v7101 = vpop.xlane.xlu0 %7100
        %v7102 = vsel %vm5753, %v6396, 0.0
        %7103 = vadd.xlane.f32.xlu0 %v7102
        %v7104 = vpop.xlane.xlu0 %7103
        %v7105 = vsel %vm5753, %v6397, 0.0
        %7106 = vadd.xlane.f32.xlu0 %v7105
        %v7107 = vpop.xlane.xlu0 %7106
        %v7108 = vsel %vm5753, %v6398, 0.0
        %7109 = vadd.xlane.f32.xlu0 %v7108
        %v7110 = vpop.xlane.xlu0 %7109
        %v7111 = vsel %vm5753, %v6399, 0.0
        %7112 = vadd.xlane.f32.xlu0 %v7111
        %v7113 = vpop.xlane.xlu0 %7112
        %v7114 = vsel %vm5753, %v6400, 0.0
        %7115 = vadd.xlane.f32.xlu0 %v7114
        %v7116 = vpop.xlane.xlu0 %7115
        %v7117 = vsel %vm5753, %v6401, 0.0
        %7118 = vadd.xlane.f32.xlu0 %v7117
        %v7119 = vpop.xlane.xlu0 %7118
        %v7120 = vsel %vm5753, %v6402, 0.0
        %7121 = vadd.xlane.f32.xlu0 %v7120
        %v7122 = vpop.xlane.xlu0 %7121
        %v7123 = vsel %vm5753, %v6403, 0.0
        %7124 = vadd.xlane.f32.xlu0 %v7123
        %v7125 = vpop.xlane.xlu0 %7124
        %v7126 = vsel %vm5753, %v6404, 0.0
        %7127 = vadd.xlane.f32.xlu0 %v7126
        %v7128 = vpop.xlane.xlu0 %7127
        %v7129 = vsel %vm5753, %v6405, 0.0
        %7130 = vadd.xlane.f32.xlu0 %v7129
        %v7131 = vpop.xlane.xlu0 %7130
        %v7132 = vsel %vm5753, %v6406, 0.0
        %7133 = vadd.xlane.f32.xlu0 %v7132
        %v7134 = vpop.xlane.xlu0 %7133
        %v7135 = vsel %vm5753, %v6407, 0.0
        %7136 = vadd.xlane.f32.xlu0 %v7135
        %v7137 = vpop.xlane.xlu0 %7136
        %v7138 = vsel %vm5753, %v6408, 0.0
        %7139 = vadd.xlane.f32.xlu0 %v7138
        %v7140 = vpop.xlane.xlu0 %7139
        %v7141 = vsel %vm5753, %v6409, 0.0
        %7142 = vadd.xlane.f32.xlu0 %v7141
        %v7143 = vpop.xlane.xlu0 %7142
        %v7144 = vsel %vm5753, %v6410, 0.0
        %7145 = vadd.xlane.f32.xlu0 %v7144
        %v7146 = vpop.xlane.xlu0 %7145
        %v7147 = vsel %vm5753, %v6411, 0.0
        %7148 = vadd.xlane.f32.xlu0 %v7147
        %v7149 = vpop.xlane.xlu0 %7148
        %v7150 = vsel %vm5753, %v6412, 0.0
        %7151 = vadd.xlane.f32.xlu0 %v7150
        %v7152 = vpop.xlane.xlu0 %7151
        %v7153 = vsel %vm5753, %v6413, 0.0
        %7154 = vadd.xlane.f32.xlu0 %v7153
        %v7155 = vpop.xlane.xlu0 %7154
        %v7156 = vsel %vm5753, %v6414, 0.0
        %7157 = vadd.xlane.f32.xlu0 %v7156
        %v7158 = vpop.xlane.xlu0 %7157
        %v7159 = vsel %vm5753, %v6415, 0.0
        %7160 = vadd.xlane.f32.xlu0 %v7159
        %v7161 = vpop.xlane.xlu0 %7160
        %v7162 = vsel %vm5753, %v6416, 0.0
        %7163 = vadd.xlane.f32.xlu0 %v7162
        %v7164 = vpop.xlane.xlu0 %7163
        %v7165 = vsel %vm5753, %v6417, 0.0
        %7166 = vadd.xlane.f32.xlu0 %v7165
        %v7167 = vpop.xlane.xlu0 %7166
        %v7168 = vsel %vm5753, %v6418, 0.0
        %7169 = vadd.xlane.f32.xlu0 %v7168
        %v7170 = vpop.xlane.xlu0 %7169
        %v7171 = vsel %vm5753, %v6419, 0.0
        %7172 = vadd.xlane.f32.xlu0 %v7171
        %v7173 = vpop.xlane.xlu0 %7172
        %v7174 = vsel %vm5753, %v6420, 0.0
        %7175 = vadd.xlane.f32.xlu0 %v7174
        %v7176 = vpop.xlane.xlu0 %7175
        %v7177 = vsel %vm5753, %v6421, 0.0
        %7178 = vadd.xlane.f32.xlu0 %v7177
        %v7179 = vpop.xlane.xlu0 %7178
        %v7180 = vsel %vm5753, %v6422, 0.0
        %7181 = vadd.xlane.f32.xlu0 %v7180
        %v7182 = vpop.xlane.xlu0 %7181
        %v7183 = vsel %vm5753, %v6423, 0.0
        %7184 = vadd.xlane.f32.xlu0 %v7183
        %v7185 = vpop.xlane.xlu0 %7184
        %v7186 = vsel %vm5753, %v6424, 0.0
        %7187 = vadd.xlane.f32.xlu0 %v7186
        %v7188 = vpop.xlane.xlu0 %7187
        %v7189 = vsel %vm5753, %v6425, 0.0
        %7190 = vadd.xlane.f32.xlu0 %v7189
        %v7191 = vpop.xlane.xlu0 %7190
        %v7192 = vsel %vm5753, %v6426, 0.0
        %7193 = vadd.xlane.f32.xlu0 %v7192
        %v7194 = vpop.xlane.xlu0 %7193
        %v7195 = vsel %vm5753, %v6427, 0.0
        %7196 = vadd.xlane.f32.xlu0 %v7195
        %v7197 = vpop.xlane.xlu0 %7196
        %v7198 = vsel %vm5753, %v6428, 0.0
        %7199 = vadd.xlane.f32.xlu0 %v7198
        %v7200 = vpop.xlane.xlu0 %7199
        %v7201 = vsel %vm5753, %v6429, 0.0
        %7202 = vadd.xlane.f32.xlu0 %v7201
        %v7203 = vpop.xlane.xlu0 %7202
        %v7204 = vsel %vm5753, %v6430, 0.0
        %7205 = vadd.xlane.f32.xlu0 %v7204
        %v7206 = vpop.xlane.xlu0 %7205
        %v7207 = vsel %vm5753, %v6431, 0.0
        %7208 = vadd.xlane.f32.xlu0 %v7207
        %v7209 = vpop.xlane.xlu0 %7208
        %v7210 = vsel %vm5753, %v6432, 0.0
        %7211 = vadd.xlane.f32.xlu0 %v7210
        %v7212 = vpop.xlane.xlu0 %7211
        %v7213 = vsel %vm5753, %v6433, 0.0
        %7214 = vadd.xlane.f32.xlu0 %v7213
        %v7215 = vpop.xlane.xlu0 %7214
        %v7216 = vsel %vm5753, %v6434, 0.0
        %7217 = vadd.xlane.f32.xlu0 %v7216
        %v7218 = vpop.xlane.xlu0 %7217
        %v7219 = vsel %vm5753, %v6435, 0.0
        %7220 = vadd.xlane.f32.xlu0 %v7219
        %v7221 = vpop.xlane.xlu0 %7220
        %v7222 = vsel %vm5753, %v6436, 0.0
        %7223 = vadd.xlane.f32.xlu0 %v7222
        %v7224 = vpop.xlane.xlu0 %7223
        %v7225 = vsel %vm5753, %v6437, 0.0
        %7226 = vadd.xlane.f32.xlu0 %v7225
        %v7227 = vpop.xlane.xlu0 %7226
        %v7228 = vsel %vm5753, %v6438, 0.0
        %7229 = vadd.xlane.f32.xlu0 %v7228
        %v7230 = vpop.xlane.xlu0 %7229
        %v7231 = vsel %vm5753, %v6439, 0.0
        %7232 = vadd.xlane.f32.xlu0 %v7231
        %v7233 = vpop.xlane.xlu0 %7232
        %v7234 = vsel %vm5753, %v6440, 0.0
        %7235 = vadd.xlane.f32.xlu0 %v7234
        %v7236 = vpop.xlane.xlu0 %7235
        %v7237 = vsel %vm5753, %v6441, 0.0
        %7238 = vadd.xlane.f32.xlu0 %v7237
        %v7239 = vpop.xlane.xlu0 %7238
        %v7240 = vsel %vm5753, %v6442, 0.0
        %7241 = vadd.xlane.f32.xlu0 %v7240
        %v7242 = vpop.xlane.xlu0 %7241
        %v7243 = vsel %vm5753, %v6443, 0.0
        %7244 = vadd.xlane.f32.xlu0 %v7243
        %v7245 = vpop.xlane.xlu0 %7244
        %v7246 = vsel %vm5753, %v6444, 0.0
        %7247 = vadd.xlane.f32.xlu0 %v7246
        %v7248 = vpop.xlane.xlu0 %7247
        %v7249 = vsel %vm5753, %v6445, 0.0
        %7250 = vadd.xlane.f32.xlu0 %v7249
        %v7251 = vpop.xlane.xlu0 %7250
        %v7252 = vsel %vm5753, %v6446, 0.0
        %7253 = vadd.xlane.f32.xlu0 %v7252
        %v7254 = vpop.xlane.xlu0 %7253
        %v7255 = vsel %vm5753, %v6447, 0.0
        %7256 = vadd.xlane.f32.xlu0 %v7255
        %v7257 = vpop.xlane.xlu0 %7256
        %v7258 = vsel %vm5753, %v6448, 0.0
        %7259 = vadd.xlane.f32.xlu0 %v7258
        %v7260 = vpop.xlane.xlu0 %7259
        %v7261 = vsel %vm5753, %v6449, 0.0
        %7262 = vadd.xlane.f32.xlu0 %v7261
        %v7263 = vpop.xlane.xlu0 %7262
        %v7264 = vsel %vm5753, %v6450, 0.0
        %7265 = vadd.xlane.f32.xlu0 %v7264
        %v7266 = vpop.xlane.xlu0 %7265
        %v7267 = vsel %vm5753, %v6451, 0.0
        %7268 = vadd.xlane.f32.xlu0 %v7267
        %v7269 = vpop.xlane.xlu0 %7268
        %v7270 = vsel %vm5753, %v6452, 0.0
        %7271 = vadd.xlane.f32.xlu0 %v7270
        %v7272 = vpop.xlane.xlu0 %7271
        %v7273 = vsel %vm5753, %v6453, 0.0
        %7274 = vadd.xlane.f32.xlu0 %v7273
        %v7275 = vpop.xlane.xlu0 %7274
        %v7276 = vsel %vm5753, %v6454, 0.0
        %7277 = vadd.xlane.f32.xlu0 %v7276
        %v7278 = vpop.xlane.xlu0 %7277
        %v7279 = vsel %vm5753, %v6455, 0.0
        %7280 = vadd.xlane.f32.xlu0 %v7279
        %v7281 = vpop.xlane.xlu0 %7280
        %v7282 = vsel %vm5753, %v6456, 0.0
        %7283 = vadd.xlane.f32.xlu0 %v7282
        %v7284 = vpop.xlane.xlu0 %7283
        %v7285 = vsel %vm5753, %v6457, 0.0
        %7286 = vadd.xlane.f32.xlu0 %v7285
        %v7287 = vpop.xlane.xlu0 %7286
        %v7288 = vsel %vm5753, %v6458, 0.0
        %7289 = vadd.xlane.f32.xlu0 %v7288
        %v7290 = vpop.xlane.xlu0 %7289
        %v7291 = vsel %vm5753, %v6459, 0.0
        %7292 = vadd.xlane.f32.xlu0 %v7291
        %v7293 = vpop.xlane.xlu0 %7292
        %v7294 = vsel %vm5753, %v6460, 0.0
        %7295 = vadd.xlane.f32.xlu0 %v7294
        %v7296 = vpop.xlane.xlu0 %7295
        %v7297 = vsel %vm5753, %v6461, 0.0
        %7298 = vadd.xlane.f32.xlu0 %v7297
        %v7299 = vpop.xlane.xlu0 %7298
        %v7300 = vsel %vm5753, %v6462, 0.0
        %7301 = vadd.xlane.f32.xlu0 %v7300
        %v7302 = vpop.xlane.xlu0 %7301
        %v7583 = vlaneseq
        %v7584 = vand.u32 %v7583, 127
        %v7585 = vlaneseq
        %v7586 = vshrl.u32 %v7585, 7
        %v7587 = vsub.s32 %v7584, %v7586
        %v7588 = vrot.slane %v6465, %v7587
        %v7589 = vadd.s32 %v7584, 4294967288
        %v7590 = vlaneseq
        %v7591 = vshrl.u32 %v7590, 7
        %v7592 = vsub.s32 %v7589, %v7591
        %v7593 = vrot.slane %v6468, %v7592
        %vm7594 = vcmask 130112
        %v7595 = vsel %vm7594, %v7593, %v7588
        %v7596 = vadd.s32 %v7584, 4294967280
        %v7597 = vlaneseq
        %v7598 = vshrl.u32 %v7597, 7
        %v7599 = vsub.s32 %v7596, %v7598
        %v7600 = vrot.slane %v6471, %v7599
        %vm7601 = vcmask 195712
        %v7602 = vsel %vm7601, %v7600, %v7595
        %v7603 = vadd.s32 %v7584, 4294967272
        %v7604 = vlaneseq
        %v7605 = vshrl.u32 %v7604, 7
        %v7606 = vsub.s32 %v7603, %v7605
        %v7607 = vrot.slane %v6474, %v7606
        %vm7608 = vcmask 261312
        %v7609 = vsel %vm7608, %v7607, %v7602
        %v7610 = vadd.s32 %v7584, 4294967264
        %v7611 = vlaneseq
        %v7612 = vshrl.u32 %v7611, 7
        %v7613 = vsub.s32 %v7610, %v7612
        %v7614 = vrot.slane %v6477, %v7613
        %vm7615 = vcmask 326912
        %v7616 = vsel %vm7615, %v7614, %v7609
        %v7617 = vadd.s32 %v7584, 4294967256
        %v7618 = vlaneseq
        %v7619 = vshrl.u32 %v7618, 7
        %v7620 = vsub.s32 %v7617, %v7619
        %v7621 = vrot.slane %v6480, %v7620
        %vm7622 = vcmask 392512
        %v7623 = vsel %vm7622, %v7621, %v7616
        %v7624 = vadd.s32 %v7584, 4294967248
        %v7625 = vlaneseq
        %v7626 = vshrl.u32 %v7625, 7
        %v7627 = vsub.s32 %v7624, %v7626
        %v7628 = vrot.slane %v6483, %v7627
        %vm7629 = vcmask 458112
        %v7630 = vsel %vm7629, %v7628, %v7623
        %v7631 = vadd.s32 %v7584, 4294967240
        %v7632 = vlaneseq
        %v7633 = vshrl.u32 %v7632, 7
        %v7634 = vsub.s32 %v7631, %v7633
        %v7635 = vrot.slane %v6486, %v7634
        %vm7636 = vcmask 523712
        %v7637 = vsel %vm7636, %v7635, %v7630
        %v7638 = vadd.s32 %v7584, 4294967232
        %v7639 = vlaneseq
        %v7640 = vshrl.u32 %v7639, 7
        %v7641 = vsub.s32 %v7638, %v7640
        %v7642 = vrot.slane %v6489, %v7641
        %vm7643 = vcmask 589312
        %v7644 = vsel %vm7643, %v7642, %v7637
        %v7645 = vadd.s32 %v7584, 4294967224
        %v7646 = vlaneseq
        %v7647 = vshrl.u32 %v7646, 7
        %v7648 = vsub.s32 %v7645, %v7647
        %v7649 = vrot.slane %v6492, %v7648
        %vm7650 = vcmask 654912
        %v7651 = vsel %vm7650, %v7649, %v7644
        %v7652 = vadd.s32 %v7584, 4294967216
        %v7653 = vlaneseq
        %v7654 = vshrl.u32 %v7653, 7
        %v7655 = vsub.s32 %v7652, %v7654
        %v7656 = vrot.slane %v6495, %v7655
        %vm7657 = vcmask 720512
        %v7658 = vsel %vm7657, %v7656, %v7651
        %v7659 = vadd.s32 %v7584, 4294967208
        %v7660 = vlaneseq
        %v7661 = vshrl.u32 %v7660, 7
        %v7662 = vsub.s32 %v7659, %v7661
        %v7663 = vrot.slane %v6498, %v7662
        %vm7664 = vcmask 786112
        %v7665 = vsel %vm7664, %v7663, %v7658
        %v7666 = vadd.s32 %v7584, 4294967200
        %v7667 = vlaneseq
        %v7668 = vshrl.u32 %v7667, 7
        %v7669 = vsub.s32 %v7666, %v7668
        %v7670 = vrot.slane %v6501, %v7669
        %vm7671 = vcmask 851712
        %v7672 = vsel %vm7671, %v7670, %v7665
        %v7673 = vadd.s32 %v7584, 4294967192
        %v7674 = vlaneseq
        %v7675 = vshrl.u32 %v7674, 7
        %v7676 = vsub.s32 %v7673, %v7675
        %v7677 = vrot.slane %v6504, %v7676
        %vm7678 = vcmask 917312
        %v7679 = vsel %vm7678, %v7677, %v7672
        %v7680 = vadd.s32 %v7584, 4294967184
        %v7681 = vlaneseq
        %v7682 = vshrl.u32 %v7681, 7
        %v7683 = vsub.s32 %v7680, %v7682
        %v7684 = vrot.slane %v6507, %v7683
        %vm7685 = vcmask 982912
        %v7686 = vsel %vm7685, %v7684, %v7679
        %v7687 = vadd.s32 %v7584, 4294967176
        %v7688 = vlaneseq
        %v7689 = vshrl.u32 %v7688, 7
        %v7690 = vsub.s32 %v7687, %v7689
        %v7691 = vrot.slane %v6510, %v7690
        %vm7692 = vcmask 1048512
        %v7693 = vsel %vm7692, %v7691, %v7686
        %v7694 = vlaneseq
        %v7695 = vshrl.u32 %v7694, 7
        %v7696 = vsub.s32 %v7584, %v7695
        %v7697 = vrot.slane %v6513, %v7696
        %v7698 = vlaneseq
        %v7699 = vshrl.u32 %v7698, 7
        %v7700 = vsub.s32 %v7589, %v7699
        %v7701 = vrot.slane %v6516, %v7700
        %v7702 = vsel %vm7594, %v7701, %v7697
        %v7703 = vlaneseq
        %v7704 = vshrl.u32 %v7703, 7
        %v7705 = vsub.s32 %v7596, %v7704
        %v7706 = vrot.slane %v6519, %v7705
        %v7707 = vsel %vm7601, %v7706, %v7702
        %v7708 = vlaneseq
        %v7709 = vshrl.u32 %v7708, 7
        %v7710 = vsub.s32 %v7603, %v7709
        %v7711 = vrot.slane %v6522, %v7710
        %v7712 = vsel %vm7608, %v7711, %v7707
        %v7713 = vlaneseq
        %v7714 = vshrl.u32 %v7713, 7
        %v7715 = vsub.s32 %v7610, %v7714
        %v7716 = vrot.slane %v6525, %v7715
        %v7717 = vsel %vm7615, %v7716, %v7712
        %v7718 = vlaneseq
        %v7719 = vshrl.u32 %v7718, 7
        %v7720 = vsub.s32 %v7617, %v7719
        %v7721 = vrot.slane %v6528, %v7720
        %v7722 = vsel %vm7622, %v7721, %v7717
        %v7723 = vlaneseq
        %v7724 = vshrl.u32 %v7723, 7
        %v7725 = vsub.s32 %v7624, %v7724
        %v7726 = vrot.slane %v6531, %v7725
        %v7727 = vsel %vm7629, %v7726, %v7722
        %v7728 = vlaneseq
        %v7729 = vshrl.u32 %v7728, 7
        %v7730 = vsub.s32 %v7631, %v7729
        %v7731 = vrot.slane %v6534, %v7730
        %v7732 = vsel %vm7636, %v7731, %v7727
        %v7733 = vlaneseq
        %v7734 = vshrl.u32 %v7733, 7
        %v7735 = vsub.s32 %v7638, %v7734
        %v7736 = vrot.slane %v6537, %v7735
        %v7737 = vsel %vm7643, %v7736, %v7732
        %v7738 = vlaneseq
        %v7739 = vshrl.u32 %v7738, 7
        %v7740 = vsub.s32 %v7645, %v7739
        %v7741 = vrot.slane %v6540, %v7740
        %v7742 = vsel %vm7650, %v7741, %v7737
        %v7743 = vlaneseq
        %v7744 = vshrl.u32 %v7743, 7
        %v7745 = vsub.s32 %v7652, %v7744
        %v7746 = vrot.slane %v6543, %v7745
        %v7747 = vsel %vm7657, %v7746, %v7742
        %v7748 = vlaneseq
        %v7749 = vshrl.u32 %v7748, 7
        %v7750 = vsub.s32 %v7659, %v7749
        %v7751 = vrot.slane %v6546, %v7750
        %v7752 = vsel %vm7664, %v7751, %v7747
        %v7753 = vlaneseq
        %v7754 = vshrl.u32 %v7753, 7
        %v7755 = vsub.s32 %v7584, %v7754
        %v7756 = vrot.slane %v6549, %v7755
        %v7757 = vlaneseq
        %v7758 = vshrl.u32 %v7757, 7
        %v7759 = vsub.s32 %v7589, %v7758
        %v7760 = vrot.slane %v6552, %v7759
        %v7761 = vsel %vm7594, %v7760, %v7756
        %v7762 = vlaneseq
        %v7763 = vshrl.u32 %v7762, 7
        %v7764 = vsub.s32 %v7596, %v7763
        %v7765 = vrot.slane %v6555, %v7764
        %v7766 = vsel %vm7601, %v7765, %v7761
        %v7767 = vlaneseq
        %v7768 = vshrl.u32 %v7767, 7
        %v7769 = vsub.s32 %v7603, %v7768
        %v7770 = vrot.slane %v6558, %v7769
        %v7771 = vsel %vm7608, %v7770, %v7766
        %v7772 = vlaneseq
        %v7773 = vshrl.u32 %v7772, 7
        %v7774 = vsub.s32 %v7610, %v7773
        %v7775 = vrot.slane %v6561, %v7774
        %v7776 = vsel %vm7615, %v7775, %v7771
        %v7777 = vlaneseq
        %v7778 = vshrl.u32 %v7777, 7
        %v7779 = vsub.s32 %v7617, %v7778
        %v7780 = vrot.slane %v6564, %v7779
        %v7781 = vsel %vm7622, %v7780, %v7776
        %v7782 = vlaneseq
        %v7783 = vshrl.u32 %v7782, 7
        %v7784 = vsub.s32 %v7624, %v7783
        %v7785 = vrot.slane %v6567, %v7784
        %v7786 = vsel %vm7629, %v7785, %v7781
        %v7787 = vlaneseq
        %v7788 = vshrl.u32 %v7787, 7
        %v7789 = vsub.s32 %v7631, %v7788
        %v7790 = vrot.slane %v6570, %v7789
        %v7791 = vsel %vm7636, %v7790, %v7786
        %v7792 = vlaneseq
        %v7793 = vshrl.u32 %v7792, 7
        %v7794 = vsub.s32 %v7638, %v7793
        %v7795 = vrot.slane %v6573, %v7794
        %v7796 = vsel %vm7643, %v7795, %v7791
        %v7797 = vlaneseq
        %v7798 = vshrl.u32 %v7797, 7
        %v7799 = vsub.s32 %v7645, %v7798
        %v7800 = vrot.slane %v6576, %v7799
        %v7801 = vsel %vm7650, %v7800, %v7796
        %v7802 = vlaneseq
        %v7803 = vshrl.u32 %v7802, 7
        %v7804 = vsub.s32 %v7652, %v7803
        %v7805 = vrot.slane %v6579, %v7804
        %v7806 = vsel %vm7657, %v7805, %v7801
        %v7807 = vlaneseq
        %v7808 = vshrl.u32 %v7807, 7
        %v7809 = vsub.s32 %v7659, %v7808
        %v7810 = vrot.slane %v6582, %v7809
        %v7811 = vsel %vm7664, %v7810, %v7806
        %v7812 = vlaneseq
        %v7813 = vshrl.u32 %v7812, 7
        %v7814 = vsub.s32 %v7666, %v7813
        %v7815 = vrot.slane %v6585, %v7814
        %v7816 = vsel %vm7671, %v7815, %v7811
        %v7817 = vlaneseq
        %v7818 = vshrl.u32 %v7817, 7
        %v7819 = vsub.s32 %v7673, %v7818
        %v7820 = vrot.slane %v6588, %v7819
        %v7821 = vsel %vm7678, %v7820, %v7816
        %v7822 = vlaneseq
        %v7823 = vshrl.u32 %v7822, 7
        %v7824 = vsub.s32 %v7680, %v7823
        %v7825 = vrot.slane %v6591, %v7824
        %v7826 = vsel %vm7685, %v7825, %v7821
        %v7827 = vlaneseq
        %v7828 = vshrl.u32 %v7827, 7
        %v7829 = vsub.s32 %v7687, %v7828
        %v7830 = vrot.slane %v6594, %v7829
        %v7831 = vsel %vm7692, %v7830, %v7826
        %v7832 = vlaneseq
        %v7833 = vshrl.u32 %v7832, 7
        %v7834 = vsub.s32 %v7584, %v7833
        %v7835 = vrot.slane %v6597, %v7834
        %v7836 = vlaneseq
        %v7837 = vshrl.u32 %v7836, 7
        %v7838 = vsub.s32 %v7589, %v7837
        %v7839 = vrot.slane %v6600, %v7838
        %v7840 = vsel %vm7594, %v7839, %v7835
        %v7841 = vlaneseq
        %v7842 = vshrl.u32 %v7841, 7
        %v7843 = vsub.s32 %v7596, %v7842
        %v7844 = vrot.slane %v6603, %v7843
        %v7845 = vsel %vm7601, %v7844, %v7840
        %v7846 = vlaneseq
        %v7847 = vshrl.u32 %v7846, 7
        %v7848 = vsub.s32 %v7603, %v7847
        %v7849 = vrot.slane %v6606, %v7848
        %v7850 = vsel %vm7608, %v7849, %v7845
        %v7851 = vlaneseq
        %v7852 = vshrl.u32 %v7851, 7
        %v7853 = vsub.s32 %v7610, %v7852
        %v7854 = vrot.slane %v6609, %v7853
        %v7855 = vsel %vm7615, %v7854, %v7850
        %v7856 = vlaneseq
        %v7857 = vshrl.u32 %v7856, 7
        %v7858 = vsub.s32 %v7617, %v7857
        %v7859 = vrot.slane %v6612, %v7858
        %v7860 = vsel %vm7622, %v7859, %v7855
        %v7861 = vlaneseq
        %v7862 = vshrl.u32 %v7861, 7
        %v7863 = vsub.s32 %v7624, %v7862
        %v7864 = vrot.slane %v6615, %v7863
        %v7865 = vsel %vm7629, %v7864, %v7860
        %v7866 = vlaneseq
        %v7867 = vshrl.u32 %v7866, 7
        %v7868 = vsub.s32 %v7631, %v7867
        %v7869 = vrot.slane %v6618, %v7868
        %v7870 = vsel %vm7636, %v7869, %v7865
        %v7871 = vlaneseq
        %v7872 = vshrl.u32 %v7871, 7
        %v7873 = vsub.s32 %v7638, %v7872
        %v7874 = vrot.slane %v6621, %v7873
        %v7875 = vsel %vm7643, %v7874, %v7870
        %v7876 = vlaneseq
        %v7877 = vshrl.u32 %v7876, 7
        %v7878 = vsub.s32 %v7645, %v7877
        %v7879 = vrot.slane %v6624, %v7878
        %v7880 = vsel %vm7650, %v7879, %v7875
        %v7881 = vlaneseq
        %v7882 = vshrl.u32 %v7881, 7
        %v7883 = vsub.s32 %v7652, %v7882
        %v7884 = vrot.slane %v6627, %v7883
        %v7885 = vsel %vm7657, %v7884, %v7880
        %v7886 = vlaneseq
        %v7887 = vshrl.u32 %v7886, 7
        %v7888 = vsub.s32 %v7659, %v7887
        %v7889 = vrot.slane %v6630, %v7888
        %v7890 = vsel %vm7664, %v7889, %v7885
        %v7891 = vlaneseq
        %v7892 = vshrl.u32 %v7891, 7
        %v7893 = vsub.s32 %v7584, %v7892
        %v7894 = vrot.slane %v6633, %v7893
        %v7895 = vlaneseq
        %v7896 = vshrl.u32 %v7895, 7
        %v7897 = vsub.s32 %v7589, %v7896
        %v7898 = vrot.slane %v6636, %v7897
        %v7899 = vsel %vm7594, %v7898, %v7894
        %v7900 = vlaneseq
        %v7901 = vshrl.u32 %v7900, 7
        %v7902 = vsub.s32 %v7596, %v7901
        %v7903 = vrot.slane %v6639, %v7902
        %v7904 = vsel %vm7601, %v7903, %v7899
        %v7905 = vlaneseq
        %v7906 = vshrl.u32 %v7905, 7
        %v7907 = vsub.s32 %v7603, %v7906
        %v7908 = vrot.slane %v6642, %v7907
        %v7909 = vsel %vm7608, %v7908, %v7904
        %v7910 = vlaneseq
        %v7911 = vshrl.u32 %v7910, 7
        %v7912 = vsub.s32 %v7610, %v7911
        %v7913 = vrot.slane %v6645, %v7912
        %v7914 = vsel %vm7615, %v7913, %v7909
        %v7915 = vlaneseq
        %v7916 = vshrl.u32 %v7915, 7
        %v7917 = vsub.s32 %v7617, %v7916
        %v7918 = vrot.slane %v6648, %v7917
        %v7919 = vsel %vm7622, %v7918, %v7914
        %v7920 = vlaneseq
        %v7921 = vshrl.u32 %v7920, 7
        %v7922 = vsub.s32 %v7624, %v7921
        %v7923 = vrot.slane %v6651, %v7922
        %v7924 = vsel %vm7629, %v7923, %v7919
        %v7925 = vlaneseq
        %v7926 = vshrl.u32 %v7925, 7
        %v7927 = vsub.s32 %v7631, %v7926
        %v7928 = vrot.slane %v6654, %v7927
        %v7929 = vsel %vm7636, %v7928, %v7924
        %v7930 = vlaneseq
        %v7931 = vshrl.u32 %v7930, 7
        %v7932 = vsub.s32 %v7638, %v7931
        %v7933 = vrot.slane %v6657, %v7932
        %v7934 = vsel %vm7643, %v7933, %v7929
        %v7935 = vlaneseq
        %v7936 = vshrl.u32 %v7935, 7
        %v7937 = vsub.s32 %v7645, %v7936
        %v7938 = vrot.slane %v6660, %v7937
        %v7939 = vsel %vm7650, %v7938, %v7934
        %v7940 = vlaneseq
        %v7941 = vshrl.u32 %v7940, 7
        %v7942 = vsub.s32 %v7652, %v7941
        %v7943 = vrot.slane %v6663, %v7942
        %v7944 = vsel %vm7657, %v7943, %v7939
        %v7945 = vlaneseq
        %v7946 = vshrl.u32 %v7945, 7
        %v7947 = vsub.s32 %v7659, %v7946
        %v7948 = vrot.slane %v6666, %v7947
        %v7949 = vsel %vm7664, %v7948, %v7944
        %v7950 = vlaneseq
        %v7951 = vshrl.u32 %v7950, 7
        %v7952 = vsub.s32 %v7666, %v7951
        %v7953 = vrot.slane %v6669, %v7952
        %v7954 = vsel %vm7671, %v7953, %v7949
        %v7955 = vlaneseq
        %v7956 = vshrl.u32 %v7955, 7
        %v7957 = vsub.s32 %v7673, %v7956
        %v7958 = vrot.slane %v6672, %v7957
        %v7959 = vsel %vm7678, %v7958, %v7954
        %v7960 = vlaneseq
        %v7961 = vshrl.u32 %v7960, 7
        %v7962 = vsub.s32 %v7680, %v7961
        %v7963 = vrot.slane %v6675, %v7962
        %v7964 = vsel %vm7685, %v7963, %v7959
        %v7965 = vlaneseq
        %v7966 = vshrl.u32 %v7965, 7
        %v7967 = vsub.s32 %v7687, %v7966
        %v7968 = vrot.slane %v6678, %v7967
        %v7969 = vsel %vm7692, %v7968, %v7964
        %v7970 = vlaneseq
        %v7971 = vshrl.u32 %v7970, 7
        %v7972 = vsub.s32 %v7584, %v7971
        %v7973 = vrot.slane %v6681, %v7972
        %v7974 = vlaneseq
        %v7975 = vshrl.u32 %v7974, 7
        %v7976 = vsub.s32 %v7589, %v7975
        %v7977 = vrot.slane %v6684, %v7976
        %v7978 = vsel %vm7594, %v7977, %v7973
        %v7979 = vlaneseq
        %v7980 = vshrl.u32 %v7979, 7
        %v7981 = vsub.s32 %v7596, %v7980
        %v7982 = vrot.slane %v6687, %v7981
        %v7983 = vsel %vm7601, %v7982, %v7978
        %v7984 = vlaneseq
        %v7985 = vshrl.u32 %v7984, 7
        %v7986 = vsub.s32 %v7603, %v7985
        %v7987 = vrot.slane %v6690, %v7986
        %v7988 = vsel %vm7608, %v7987, %v7983
        %v7989 = vlaneseq
        %v7990 = vshrl.u32 %v7989, 7
        %v7991 = vsub.s32 %v7610, %v7990
        %v7992 = vrot.slane %v6693, %v7991
        %v7993 = vsel %vm7615, %v7992, %v7988
        %v7994 = vlaneseq
        %v7995 = vshrl.u32 %v7994, 7
        %v7996 = vsub.s32 %v7617, %v7995
        %v7997 = vrot.slane %v6696, %v7996
        %v7998 = vsel %vm7622, %v7997, %v7993
        %v7999 = vlaneseq
        %v8000 = vshrl.u32 %v7999, 7
        %v8001 = vsub.s32 %v7624, %v8000
        %v8002 = vrot.slane %v6699, %v8001
        %v8003 = vsel %vm7629, %v8002, %v7998
        %v8004 = vlaneseq
        %v8005 = vshrl.u32 %v8004, 7
        %v8006 = vsub.s32 %v7631, %v8005
        %v8007 = vrot.slane %v6702, %v8006
        %v8008 = vsel %vm7636, %v8007, %v8003
        %v8009 = vlaneseq
        %v8010 = vshrl.u32 %v8009, 7
        %v8011 = vsub.s32 %v7638, %v8010
        %v8012 = vrot.slane %v6705, %v8011
        %v8013 = vsel %vm7643, %v8012, %v8008
        %v8014 = vlaneseq
        %v8015 = vshrl.u32 %v8014, 7
        %v8016 = vsub.s32 %v7645, %v8015
        %v8017 = vrot.slane %v6708, %v8016
        %v8018 = vsel %vm7650, %v8017, %v8013
        %v8019 = vlaneseq
        %v8020 = vshrl.u32 %v8019, 7
        %v8021 = vsub.s32 %v7652, %v8020
        %v8022 = vrot.slane %v6711, %v8021
        %v8023 = vsel %vm7657, %v8022, %v8018
        %v8024 = vlaneseq
        %v8025 = vshrl.u32 %v8024, 7
        %v8026 = vsub.s32 %v7659, %v8025
        %v8027 = vrot.slane %v6714, %v8026
        %v8028 = vsel %vm7664, %v8027, %v8023
        %v8029 = vlaneseq
        %v8030 = vshrl.u32 %v8029, 7
        %v8031 = vsub.s32 %v7584, %v8030
        %v8032 = vrot.slane %v6717, %v8031
        %v8033 = vlaneseq
        %v8034 = vshrl.u32 %v8033, 7
        %v8035 = vsub.s32 %v7589, %v8034
        %v8036 = vrot.slane %v6720, %v8035
        %v8037 = vsel %vm7594, %v8036, %v8032
        %v8038 = vlaneseq
        %v8039 = vshrl.u32 %v8038, 7
        %v8040 = vsub.s32 %v7596, %v8039
        %v8041 = vrot.slane %v6723, %v8040
        %v8042 = vsel %vm7601, %v8041, %v8037
        %v8043 = vlaneseq
        %v8044 = vshrl.u32 %v8043, 7
        %v8045 = vsub.s32 %v7603, %v8044
        %v8046 = vrot.slane %v6726, %v8045
        %v8047 = vsel %vm7608, %v8046, %v8042
        %v8048 = vlaneseq
        %v8049 = vshrl.u32 %v8048, 7
        %v8050 = vsub.s32 %v7610, %v8049
        %v8051 = vrot.slane %v6729, %v8050
        %v8052 = vsel %vm7615, %v8051, %v8047
        %v8053 = vlaneseq
        %v8054 = vshrl.u32 %v8053, 7
        %v8055 = vsub.s32 %v7617, %v8054
        %v8056 = vrot.slane %v6732, %v8055
        %v8057 = vsel %vm7622, %v8056, %v8052
        %v8058 = vlaneseq
        %v8059 = vshrl.u32 %v8058, 7
        %v8060 = vsub.s32 %v7624, %v8059
        %v8061 = vrot.slane %v6735, %v8060
        %v8062 = vsel %vm7629, %v8061, %v8057
        %v8063 = vlaneseq
        %v8064 = vshrl.u32 %v8063, 7
        %v8065 = vsub.s32 %v7631, %v8064
        %v8066 = vrot.slane %v6738, %v8065
        %v8067 = vsel %vm7636, %v8066, %v8062
        %v8068 = vlaneseq
        %v8069 = vshrl.u32 %v8068, 7
        %v8070 = vsub.s32 %v7638, %v8069
        %v8071 = vrot.slane %v6741, %v8070
        %v8072 = vsel %vm7643, %v8071, %v8067
        %v8073 = vlaneseq
        %v8074 = vshrl.u32 %v8073, 7
        %v8075 = vsub.s32 %v7645, %v8074
        %v8076 = vrot.slane %v6744, %v8075
        %v8077 = vsel %vm7650, %v8076, %v8072
        %v8078 = vlaneseq
        %v8079 = vshrl.u32 %v8078, 7
        %v8080 = vsub.s32 %v7652, %v8079
        %v8081 = vrot.slane %v6747, %v8080
        %v8082 = vsel %vm7657, %v8081, %v8077
        %v8083 = vlaneseq
        %v8084 = vshrl.u32 %v8083, 7
        %v8085 = vsub.s32 %v7659, %v8084
        %v8086 = vrot.slane %v6750, %v8085
        %v8087 = vsel %vm7664, %v8086, %v8082
        %v8088 = vlaneseq
        %v8089 = vshrl.u32 %v8088, 7
        %v8090 = vsub.s32 %v7666, %v8089
        %v8091 = vrot.slane %v6753, %v8090
        %v8092 = vsel %vm7671, %v8091, %v8087
        %v8093 = vlaneseq
        %v8094 = vshrl.u32 %v8093, 7
        %v8095 = vsub.s32 %v7673, %v8094
        %v8096 = vrot.slane %v6756, %v8095
        %v8097 = vsel %vm7678, %v8096, %v8092
        %v8098 = vlaneseq
        %v8099 = vshrl.u32 %v8098, 7
        %v8100 = vsub.s32 %v7680, %v8099
        %v8101 = vrot.slane %v6759, %v8100
        %v8102 = vsel %vm7685, %v8101, %v8097
        %v8103 = vlaneseq
        %v8104 = vshrl.u32 %v8103, 7
        %v8105 = vsub.s32 %v7687, %v8104
        %v8106 = vrot.slane %v6762, %v8105
        %v8107 = vsel %vm7692, %v8106, %v8102
        %v8108 = vlaneseq
        %v8109 = vshrl.u32 %v8108, 7
        %v8110 = vsub.s32 %v7584, %v8109
        %v8111 = vrot.slane %v6765, %v8110
        %v8112 = vlaneseq
        %v8113 = vshrl.u32 %v8112, 7
        %v8114 = vsub.s32 %v7589, %v8113
        %v8115 = vrot.slane %v6768, %v8114
        %v8116 = vsel %vm7594, %v8115, %v8111
        %v8117 = vlaneseq
        %v8118 = vshrl.u32 %v8117, 7
        %v8119 = vsub.s32 %v7596, %v8118
        %v8120 = vrot.slane %v6771, %v8119
        %v8121 = vsel %vm7601, %v8120, %v8116
        %v8122 = vlaneseq
        %v8123 = vshrl.u32 %v8122, 7
        %v8124 = vsub.s32 %v7603, %v8123
        %v8125 = vrot.slane %v6774, %v8124
        %v8126 = vsel %vm7608, %v8125, %v8121
        %v8127 = vlaneseq
        %v8128 = vshrl.u32 %v8127, 7
        %v8129 = vsub.s32 %v7610, %v8128
        %v8130 = vrot.slane %v6777, %v8129
        %v8131 = vsel %vm7615, %v8130, %v8126
        %v8132 = vlaneseq
        %v8133 = vshrl.u32 %v8132, 7
        %v8134 = vsub.s32 %v7617, %v8133
        %v8135 = vrot.slane %v6780, %v8134
        %v8136 = vsel %vm7622, %v8135, %v8131
        %v8137 = vlaneseq
        %v8138 = vshrl.u32 %v8137, 7
        %v8139 = vsub.s32 %v7624, %v8138
        %v8140 = vrot.slane %v6783, %v8139
        %v8141 = vsel %vm7629, %v8140, %v8136
        %v8142 = vlaneseq
        %v8143 = vshrl.u32 %v8142, 7
        %v8144 = vsub.s32 %v7631, %v8143
        %v8145 = vrot.slane %v6786, %v8144
        %v8146 = vsel %vm7636, %v8145, %v8141
        %v8147 = vlaneseq
        %v8148 = vshrl.u32 %v8147, 7
        %v8149 = vsub.s32 %v7638, %v8148
        %v8150 = vrot.slane %v6789, %v8149
        %v8151 = vsel %vm7643, %v8150, %v8146
        %v8152 = vlaneseq
        %v8153 = vshrl.u32 %v8152, 7
        %v8154 = vsub.s32 %v7645, %v8153
        %v8155 = vrot.slane %v6792, %v8154
        %v8156 = vsel %vm7650, %v8155, %v8151
        %v8157 = vlaneseq
        %v8158 = vshrl.u32 %v8157, 7
        %v8159 = vsub.s32 %v7652, %v8158
        %v8160 = vrot.slane %v6795, %v8159
        %v8161 = vsel %vm7657, %v8160, %v8156
        %v8162 = vlaneseq
        %v8163 = vshrl.u32 %v8162, 7
        %v8164 = vsub.s32 %v7659, %v8163
        %v8165 = vrot.slane %v6798, %v8164
        %v8166 = vsel %vm7664, %v8165, %v8161
        %v8167 = vlaneseq
        %v8168 = vshrl.u32 %v8167, 7
        %v8169 = vsub.s32 %v7584, %v8168
        %v8170 = vrot.slane %v6801, %v8169
        %v8171 = vlaneseq
        %v8172 = vshrl.u32 %v8171, 7
        %v8173 = vsub.s32 %v7589, %v8172
        %v8174 = vrot.slane %v6804, %v8173
        %v8175 = vsel %vm7594, %v8174, %v8170
        %v8176 = vlaneseq
        %v8177 = vshrl.u32 %v8176, 7
        %v8178 = vsub.s32 %v7596, %v8177
        %v8179 = vrot.slane %v6807, %v8178
        %v8180 = vsel %vm7601, %v8179, %v8175
        %v8181 = vlaneseq
        %v8182 = vshrl.u32 %v8181, 7
        %v8183 = vsub.s32 %v7603, %v8182
        %v8184 = vrot.slane %v6810, %v8183
        %v8185 = vsel %vm7608, %v8184, %v8180
        %v8186 = vlaneseq
        %v8187 = vshrl.u32 %v8186, 7
        %v8188 = vsub.s32 %v7610, %v8187
        %v8189 = vrot.slane %v6813, %v8188
        %v8190 = vsel %vm7615, %v8189, %v8185
        %v8191 = vlaneseq
        %v8192 = vshrl.u32 %v8191, 7
        %v8193 = vsub.s32 %v7617, %v8192
        %v8194 = vrot.slane %v6816, %v8193
        %v8195 = vsel %vm7622, %v8194, %v8190
        %v8196 = vlaneseq
        %v8197 = vshrl.u32 %v8196, 7
        %v8198 = vsub.s32 %v7624, %v8197
        %v8199 = vrot.slane %v6819, %v8198
        %v8200 = vsel %vm7629, %v8199, %v8195
        %v8201 = vlaneseq
        %v8202 = vshrl.u32 %v8201, 7
        %v8203 = vsub.s32 %v7631, %v8202
        %v8204 = vrot.slane %v6822, %v8203
        %v8205 = vsel %vm7636, %v8204, %v8200
        %v8206 = vlaneseq
        %v8207 = vshrl.u32 %v8206, 7
        %v8208 = vsub.s32 %v7638, %v8207
        %v8209 = vrot.slane %v6825, %v8208
        %v8210 = vsel %vm7643, %v8209, %v8205
        %v8211 = vlaneseq
        %v8212 = vshrl.u32 %v8211, 7
        %v8213 = vsub.s32 %v7645, %v8212
        %v8214 = vrot.slane %v6828, %v8213
        %v8215 = vsel %vm7650, %v8214, %v8210
        %v8216 = vlaneseq
        %v8217 = vshrl.u32 %v8216, 7
        %v8218 = vsub.s32 %v7652, %v8217
        %v8219 = vrot.slane %v6831, %v8218
        %v8220 = vsel %vm7657, %v8219, %v8215
        %v8221 = vlaneseq
        %v8222 = vshrl.u32 %v8221, 7
        %v8223 = vsub.s32 %v7659, %v8222
        %v8224 = vrot.slane %v6834, %v8223
        %v8225 = vsel %vm7664, %v8224, %v8220
        %v8226 = vlaneseq
        %v8227 = vshrl.u32 %v8226, 7
        %v8228 = vsub.s32 %v7666, %v8227
        %v8229 = vrot.slane %v6837, %v8228
        %v8230 = vsel %vm7671, %v8229, %v8225
        %v8231 = vlaneseq
        %v8232 = vshrl.u32 %v8231, 7
        %v8233 = vsub.s32 %v7673, %v8232
        %v8234 = vrot.slane %v6840, %v8233
        %v8235 = vsel %vm7678, %v8234, %v8230
        %v8236 = vlaneseq
        %v8237 = vshrl.u32 %v8236, 7
        %v8238 = vsub.s32 %v7680, %v8237
        %v8239 = vrot.slane %v6843, %v8238
        %v8240 = vsel %vm7685, %v8239, %v8235
        %v8241 = vlaneseq
        %v8242 = vshrl.u32 %v8241, 7
        %v8243 = vsub.s32 %v7687, %v8242
        %v8244 = vrot.slane %v6846, %v8243
        %v8245 = vsel %vm7692, %v8244, %v8240
        %v8246 = vlaneseq
        %v8247 = vshrl.u32 %v8246, 7
        %v8248 = vsub.s32 %v7584, %v8247
        %v8249 = vrot.slane %v6849, %v8248
        %v8250 = vlaneseq
        %v8251 = vshrl.u32 %v8250, 7
        %v8252 = vsub.s32 %v7589, %v8251
        %v8253 = vrot.slane %v6852, %v8252
        %v8254 = vsel %vm7594, %v8253, %v8249
        %v8255 = vlaneseq
        %v8256 = vshrl.u32 %v8255, 7
        %v8257 = vsub.s32 %v7596, %v8256
        %v8258 = vrot.slane %v6855, %v8257
        %v8259 = vsel %vm7601, %v8258, %v8254
        %v8260 = vlaneseq
        %v8261 = vshrl.u32 %v8260, 7
        %v8262 = vsub.s32 %v7603, %v8261
        %v8263 = vrot.slane %v6858, %v8262
        %v8264 = vsel %vm7608, %v8263, %v8259
        %v8265 = vlaneseq
        %v8266 = vshrl.u32 %v8265, 7
        %v8267 = vsub.s32 %v7610, %v8266
        %v8268 = vrot.slane %v6861, %v8267
        %v8269 = vsel %vm7615, %v8268, %v8264
        %v8270 = vlaneseq
        %v8271 = vshrl.u32 %v8270, 7
        %v8272 = vsub.s32 %v7617, %v8271
        %v8273 = vrot.slane %v6864, %v8272
        %v8274 = vsel %vm7622, %v8273, %v8269
        %v8275 = vlaneseq
        %v8276 = vshrl.u32 %v8275, 7
        %v8277 = vsub.s32 %v7624, %v8276
        %v8278 = vrot.slane %v6867, %v8277
        %v8279 = vsel %vm7629, %v8278, %v8274
        %v8280 = vlaneseq
        %v8281 = vshrl.u32 %v8280, 7
        %v8282 = vsub.s32 %v7631, %v8281
        %v8283 = vrot.slane %v6870, %v8282
        %v8284 = vsel %vm7636, %v8283, %v8279
        %v8285 = vlaneseq
        %v8286 = vshrl.u32 %v8285, 7
        %v8287 = vsub.s32 %v7638, %v8286
        %v8288 = vrot.slane %v6873, %v8287
        %v8289 = vsel %vm7643, %v8288, %v8284
        %v8290 = vlaneseq
        %v8291 = vshrl.u32 %v8290, 7
        %v8292 = vsub.s32 %v7645, %v8291
        %v8293 = vrot.slane %v6876, %v8292
        %v8294 = vsel %vm7650, %v8293, %v8289
        %v8295 = vlaneseq
        %v8296 = vshrl.u32 %v8295, 7
        %v8297 = vsub.s32 %v7652, %v8296
        %v8298 = vrot.slane %v6879, %v8297
        %v8299 = vsel %vm7657, %v8298, %v8294
        %v8300 = vlaneseq
        %v8301 = vshrl.u32 %v8300, 7
        %v8302 = vsub.s32 %v7659, %v8301
        %v8303 = vrot.slane %v6882, %v8302
        %v8304 = vsel %vm7664, %v8303, %v8299
        %v8305 = vlaneseq
        %v8306 = vshrl.u32 %v8305, 7
        %v8307 = vsub.s32 %v7584, %v8306
        %v8308 = vrot.slane %v6885, %v8307
        %v8309 = vlaneseq
        %v8310 = vshrl.u32 %v8309, 7
        %v8311 = vsub.s32 %v7589, %v8310
        %v8312 = vrot.slane %v6888, %v8311
        %v8313 = vsel %vm7594, %v8312, %v8308
        %v8314 = vlaneseq
        %v8315 = vshrl.u32 %v8314, 7
        %v8316 = vsub.s32 %v7596, %v8315
        %v8317 = vrot.slane %v6891, %v8316
        %v8318 = vsel %vm7601, %v8317, %v8313
        %v8319 = vlaneseq
        %v8320 = vshrl.u32 %v8319, 7
        %v8321 = vsub.s32 %v7603, %v8320
        %v8322 = vrot.slane %v6894, %v8321
        %v8323 = vsel %vm7608, %v8322, %v8318
        %v8324 = vlaneseq
        %v8325 = vshrl.u32 %v8324, 7
        %v8326 = vsub.s32 %v7610, %v8325
        %v8327 = vrot.slane %v6897, %v8326
        %v8328 = vsel %vm7615, %v8327, %v8323
        %v8329 = vlaneseq
        %v8330 = vshrl.u32 %v8329, 7
        %v8331 = vsub.s32 %v7617, %v8330
        %v8332 = vrot.slane %v6900, %v8331
        %v8333 = vsel %vm7622, %v8332, %v8328
        %v8334 = vlaneseq
        %v8335 = vshrl.u32 %v8334, 7
        %v8336 = vsub.s32 %v7624, %v8335
        %v8337 = vrot.slane %v6903, %v8336
        %v8338 = vsel %vm7629, %v8337, %v8333
        %v8339 = vlaneseq
        %v8340 = vshrl.u32 %v8339, 7
        %v8341 = vsub.s32 %v7631, %v8340
        %v8342 = vrot.slane %v6906, %v8341
        %v8343 = vsel %vm7636, %v8342, %v8338
        %v8344 = vlaneseq
        %v8345 = vshrl.u32 %v8344, 7
        %v8346 = vsub.s32 %v7638, %v8345
        %v8347 = vrot.slane %v6909, %v8346
        %v8348 = vsel %vm7643, %v8347, %v8343
        %v8349 = vlaneseq
        %v8350 = vshrl.u32 %v8349, 7
        %v8351 = vsub.s32 %v7645, %v8350
        %v8352 = vrot.slane %v6912, %v8351
        %v8353 = vsel %vm7650, %v8352, %v8348
        %v8354 = vlaneseq
        %v8355 = vshrl.u32 %v8354, 7
        %v8356 = vsub.s32 %v7652, %v8355
        %v8357 = vrot.slane %v6915, %v8356
        %v8358 = vsel %vm7657, %v8357, %v8353
        %v8359 = vlaneseq
        %v8360 = vshrl.u32 %v8359, 7
        %v8361 = vsub.s32 %v7659, %v8360
        %v8362 = vrot.slane %v6918, %v8361
        %v8363 = vsel %vm7664, %v8362, %v8358
        %v8364 = vlaneseq
        %v8365 = vshrl.u32 %v8364, 7
        %v8366 = vsub.s32 %v7666, %v8365
        %v8367 = vrot.slane %v6921, %v8366
        %v8368 = vsel %vm7671, %v8367, %v8363
        %v8369 = vlaneseq
        %v8370 = vshrl.u32 %v8369, 7
        %v8371 = vsub.s32 %v7673, %v8370
        %v8372 = vrot.slane %v6924, %v8371
        %v8373 = vsel %vm7678, %v8372, %v8368
        %v8374 = vlaneseq
        %v8375 = vshrl.u32 %v8374, 7
        %v8376 = vsub.s32 %v7680, %v8375
        %v8377 = vrot.slane %v6927, %v8376
        %v8378 = vsel %vm7685, %v8377, %v8373
        %v8379 = vlaneseq
        %v8380 = vshrl.u32 %v8379, 7
        %v8381 = vsub.s32 %v7687, %v8380
        %v8382 = vrot.slane %v6930, %v8381
        %v8383 = vsel %vm7692, %v8382, %v8378
        %v8384 = vlaneseq
        %v8385 = vshrl.u32 %v8384, 7
        %v8386 = vsub.s32 %v7584, %v8385
        %v8387 = vrot.slane %v6933, %v8386
        %v8388 = vlaneseq
        %v8389 = vshrl.u32 %v8388, 7
        %v8390 = vsub.s32 %v7589, %v8389
        %v8391 = vrot.slane %v6936, %v8390
        %v8392 = vsel %vm7594, %v8391, %v8387
        %v8393 = vlaneseq
        %v8394 = vshrl.u32 %v8393, 7
        %v8395 = vsub.s32 %v7596, %v8394
        %v8396 = vrot.slane %v6939, %v8395
        %v8397 = vsel %vm7601, %v8396, %v8392
        %v8398 = vlaneseq
        %v8399 = vshrl.u32 %v8398, 7
        %v8400 = vsub.s32 %v7603, %v8399
        %v8401 = vrot.slane %v6942, %v8400
        %v8402 = vsel %vm7608, %v8401, %v8397
        %v8403 = vlaneseq
        %v8404 = vshrl.u32 %v8403, 7
        %v8405 = vsub.s32 %v7610, %v8404
        %v8406 = vrot.slane %v6945, %v8405
        %v8407 = vsel %vm7615, %v8406, %v8402
        %v8408 = vlaneseq
        %v8409 = vshrl.u32 %v8408, 7
        %v8410 = vsub.s32 %v7617, %v8409
        %v8411 = vrot.slane %v6948, %v8410
        %v8412 = vsel %vm7622, %v8411, %v8407
        %v8413 = vlaneseq
        %v8414 = vshrl.u32 %v8413, 7
        %v8415 = vsub.s32 %v7624, %v8414
        %v8416 = vrot.slane %v6951, %v8415
        %v8417 = vsel %vm7629, %v8416, %v8412
        %v8418 = vlaneseq
        %v8419 = vshrl.u32 %v8418, 7
        %v8420 = vsub.s32 %v7631, %v8419
        %v8421 = vrot.slane %v6954, %v8420
        %v8422 = vsel %vm7636, %v8421, %v8417
        %v8423 = vlaneseq
        %v8424 = vshrl.u32 %v8423, 7
        %v8425 = vsub.s32 %v7638, %v8424
        %v8426 = vrot.slane %v6957, %v8425
        %v8427 = vsel %vm7643, %v8426, %v8422
        %v8428 = vlaneseq
        %v8429 = vshrl.u32 %v8428, 7
        %v8430 = vsub.s32 %v7645, %v8429
        %v8431 = vrot.slane %v6960, %v8430
        %v8432 = vsel %vm7650, %v8431, %v8427
        %v8433 = vlaneseq
        %v8434 = vshrl.u32 %v8433, 7
        %v8435 = vsub.s32 %v7652, %v8434
        %v8436 = vrot.slane %v6963, %v8435
        %v8437 = vsel %vm7657, %v8436, %v8432
        %v8438 = vlaneseq
        %v8439 = vshrl.u32 %v8438, 7
        %v8440 = vsub.s32 %v7659, %v8439
        %v8441 = vrot.slane %v6966, %v8440
        %v8442 = vsel %vm7664, %v8441, %v8437
        %v8443 = vlaneseq
        %v8444 = vshrl.u32 %v8443, 7
        %v8445 = vsub.s32 %v7584, %v8444
        %v8446 = vrot.slane %v6969, %v8445
        %v8447 = vlaneseq
        %v8448 = vshrl.u32 %v8447, 7
        %v8449 = vsub.s32 %v7589, %v8448
        %v8450 = vrot.slane %v6972, %v8449
        %v8451 = vsel %vm7594, %v8450, %v8446
        %v8452 = vlaneseq
        %v8453 = vshrl.u32 %v8452, 7
        %v8454 = vsub.s32 %v7596, %v8453
        %v8455 = vrot.slane %v6975, %v8454
        %v8456 = vsel %vm7601, %v8455, %v8451
        %v8457 = vlaneseq
        %v8458 = vshrl.u32 %v8457, 7
        %v8459 = vsub.s32 %v7603, %v8458
        %v8460 = vrot.slane %v6978, %v8459
        %v8461 = vsel %vm7608, %v8460, %v8456
        %v8462 = vlaneseq
        %v8463 = vshrl.u32 %v8462, 7
        %v8464 = vsub.s32 %v7610, %v8463
        %v8465 = vrot.slane %v6981, %v8464
        %v8466 = vsel %vm7615, %v8465, %v8461
        %v8467 = vlaneseq
        %v8468 = vshrl.u32 %v8467, 7
        %v8469 = vsub.s32 %v7617, %v8468
        %v8470 = vrot.slane %v6984, %v8469
        %v8471 = vsel %vm7622, %v8470, %v8466
        %v8472 = vlaneseq
        %v8473 = vshrl.u32 %v8472, 7
        %v8474 = vsub.s32 %v7624, %v8473
        %v8475 = vrot.slane %v6987, %v8474
        %v8476 = vsel %vm7629, %v8475, %v8471
        %v8477 = vlaneseq
        %v8478 = vshrl.u32 %v8477, 7
        %v8479 = vsub.s32 %v7631, %v8478
        %v8480 = vrot.slane %v6990, %v8479
        %v8481 = vsel %vm7636, %v8480, %v8476
        %v8482 = vlaneseq
        %v8483 = vshrl.u32 %v8482, 7
        %v8484 = vsub.s32 %v7638, %v8483
        %v8485 = vrot.slane %v6993, %v8484
        %v8486 = vsel %vm7643, %v8485, %v8481
        %v8487 = vlaneseq
        %v8488 = vshrl.u32 %v8487, 7
        %v8489 = vsub.s32 %v7645, %v8488
        %v8490 = vrot.slane %v6996, %v8489
        %v8491 = vsel %vm7650, %v8490, %v8486
        %v8492 = vlaneseq
        %v8493 = vshrl.u32 %v8492, 7
        %v8494 = vsub.s32 %v7652, %v8493
        %v8495 = vrot.slane %v6999, %v8494
        %v8496 = vsel %vm7657, %v8495, %v8491
        %v8497 = vlaneseq
        %v8498 = vshrl.u32 %v8497, 7
        %v8499 = vsub.s32 %v7659, %v8498
        %v8500 = vrot.slane %v7002, %v8499
        %v8501 = vsel %vm7664, %v8500, %v8496
        %v8502 = vlaneseq
        %v8503 = vshrl.u32 %v8502, 7
        %v8504 = vsub.s32 %v7666, %v8503
        %v8505 = vrot.slane %v7005, %v8504
        %v8506 = vsel %vm7671, %v8505, %v8501
        %v8507 = vlaneseq
        %v8508 = vshrl.u32 %v8507, 7
        %v8509 = vsub.s32 %v7673, %v8508
        %v8510 = vrot.slane %v7008, %v8509
        %v8511 = vsel %vm7678, %v8510, %v8506
        %v8512 = vlaneseq
        %v8513 = vshrl.u32 %v8512, 7
        %v8514 = vsub.s32 %v7680, %v8513
        %v8515 = vrot.slane %v7011, %v8514
        %v8516 = vsel %vm7685, %v8515, %v8511
        %v8517 = vlaneseq
        %v8518 = vshrl.u32 %v8517, 7
        %v8519 = vsub.s32 %v7687, %v8518
        %v8520 = vrot.slane %v7014, %v8519
        %v8521 = vsel %vm7692, %v8520, %v8516
        %v8522 = vlaneseq
        %v8523 = vshrl.u32 %v8522, 7
        %v8524 = vsub.s32 %v7584, %v8523
        %v8525 = vrot.slane %v7017, %v8524
        %v8526 = vlaneseq
        %v8527 = vshrl.u32 %v8526, 7
        %v8528 = vsub.s32 %v7589, %v8527
        %v8529 = vrot.slane %v7020, %v8528
        %v8530 = vsel %vm7594, %v8529, %v8525
        %v8531 = vlaneseq
        %v8532 = vshrl.u32 %v8531, 7
        %v8533 = vsub.s32 %v7596, %v8532
        %v8534 = vrot.slane %v7023, %v8533
        %v8535 = vsel %vm7601, %v8534, %v8530
        %v8536 = vlaneseq
        %v8537 = vshrl.u32 %v8536, 7
        %v8538 = vsub.s32 %v7603, %v8537
        %v8539 = vrot.slane %v7026, %v8538
        %v8540 = vsel %vm7608, %v8539, %v8535
        %v8541 = vlaneseq
        %v8542 = vshrl.u32 %v8541, 7
        %v8543 = vsub.s32 %v7610, %v8542
        %v8544 = vrot.slane %v7029, %v8543
        %v8545 = vsel %vm7615, %v8544, %v8540
        %v8546 = vlaneseq
        %v8547 = vshrl.u32 %v8546, 7
        %v8548 = vsub.s32 %v7617, %v8547
        %v8549 = vrot.slane %v7032, %v8548
        %v8550 = vsel %vm7622, %v8549, %v8545
        %v8551 = vlaneseq
        %v8552 = vshrl.u32 %v8551, 7
        %v8553 = vsub.s32 %v7624, %v8552
        %v8554 = vrot.slane %v7035, %v8553
        %v8555 = vsel %vm7629, %v8554, %v8550
        %v8556 = vlaneseq
        %v8557 = vshrl.u32 %v8556, 7
        %v8558 = vsub.s32 %v7631, %v8557
        %v8559 = vrot.slane %v7038, %v8558
        %v8560 = vsel %vm7636, %v8559, %v8555
        %v8561 = vlaneseq
        %v8562 = vshrl.u32 %v8561, 7
        %v8563 = vsub.s32 %v7638, %v8562
        %v8564 = vrot.slane %v7041, %v8563
        %v8565 = vsel %vm7643, %v8564, %v8560
        %v8566 = vlaneseq
        %v8567 = vshrl.u32 %v8566, 7
        %v8568 = vsub.s32 %v7645, %v8567
        %v8569 = vrot.slane %v7044, %v8568
        %v8570 = vsel %vm7650, %v8569, %v8565
        %v8571 = vlaneseq
        %v8572 = vshrl.u32 %v8571, 7
        %v8573 = vsub.s32 %v7652, %v8572
        %v8574 = vrot.slane %v7047, %v8573
        %v8575 = vsel %vm7657, %v8574, %v8570
        %v8576 = vlaneseq
        %v8577 = vshrl.u32 %v8576, 7
        %v8578 = vsub.s32 %v7659, %v8577
        %v8579 = vrot.slane %v7050, %v8578
        %v8580 = vsel %vm7664, %v8579, %v8575
        %v8581 = vlaneseq
        %v8582 = vshrl.u32 %v8581, 7
        %v8583 = vsub.s32 %v7584, %v8582
        %v8584 = vrot.slane %v7053, %v8583
        %v8585 = vlaneseq
        %v8586 = vshrl.u32 %v8585, 7
        %v8587 = vsub.s32 %v7589, %v8586
        %v8588 = vrot.slane %v7056, %v8587
        %v8589 = vsel %vm7594, %v8588, %v8584
        %v8590 = vlaneseq
        %v8591 = vshrl.u32 %v8590, 7
        %v8592 = vsub.s32 %v7596, %v8591
        %v8593 = vrot.slane %v7059, %v8592
        %v8594 = vsel %vm7601, %v8593, %v8589
        %v8595 = vlaneseq
        %v8596 = vshrl.u32 %v8595, 7
        %v8597 = vsub.s32 %v7603, %v8596
        %v8598 = vrot.slane %v7062, %v8597
        %v8599 = vsel %vm7608, %v8598, %v8594
        %v8600 = vlaneseq
        %v8601 = vshrl.u32 %v8600, 7
        %v8602 = vsub.s32 %v7610, %v8601
        %v8603 = vrot.slane %v7065, %v8602
        %v8604 = vsel %vm7615, %v8603, %v8599
        %v8605 = vlaneseq
        %v8606 = vshrl.u32 %v8605, 7
        %v8607 = vsub.s32 %v7617, %v8606
        %v8608 = vrot.slane %v7068, %v8607
        %v8609 = vsel %vm7622, %v8608, %v8604
        %v8610 = vlaneseq
        %v8611 = vshrl.u32 %v8610, 7
        %v8612 = vsub.s32 %v7624, %v8611
        %v8613 = vrot.slane %v7071, %v8612
        %v8614 = vsel %vm7629, %v8613, %v8609
        %v8615 = vlaneseq
        %v8616 = vshrl.u32 %v8615, 7
        %v8617 = vsub.s32 %v7631, %v8616
        %v8618 = vrot.slane %v7074, %v8617
        %v8619 = vsel %vm7636, %v8618, %v8614
        %v8620 = vlaneseq
        %v8621 = vshrl.u32 %v8620, 7
        %v8622 = vsub.s32 %v7638, %v8621
        %v8623 = vrot.slane %v7077, %v8622
        %v8624 = vsel %vm7643, %v8623, %v8619
        %v8625 = vlaneseq
        %v8626 = vshrl.u32 %v8625, 7
        %v8627 = vsub.s32 %v7645, %v8626
        %v8628 = vrot.slane %v7080, %v8627
        %v8629 = vsel %vm7650, %v8628, %v8624
        %v8630 = vlaneseq
        %v8631 = vshrl.u32 %v8630, 7
        %v8632 = vsub.s32 %v7652, %v8631
        %v8633 = vrot.slane %v7083, %v8632
        %v8634 = vsel %vm7657, %v8633, %v8629
        %v8635 = vlaneseq
        %v8636 = vshrl.u32 %v8635, 7
        %v8637 = vsub.s32 %v7659, %v8636
        %v8638 = vrot.slane %v7086, %v8637
        %v8639 = vsel %vm7664, %v8638, %v8634
        %v8640 = vlaneseq
        %v8641 = vshrl.u32 %v8640, 7
        %v8642 = vsub.s32 %v7666, %v8641
        %v8643 = vrot.slane %v7089, %v8642
        %v8644 = vsel %vm7671, %v8643, %v8639
        %v8645 = vlaneseq
        %v8646 = vshrl.u32 %v8645, 7
        %v8647 = vsub.s32 %v7673, %v8646
        %v8648 = vrot.slane %v7092, %v8647
        %v8649 = vsel %vm7678, %v8648, %v8644
        %v8650 = vlaneseq
        %v8651 = vshrl.u32 %v8650, 7
        %v8652 = vsub.s32 %v7680, %v8651
        %v8653 = vrot.slane %v7095, %v8652
        %v8654 = vsel %vm7685, %v8653, %v8649
        %v8655 = vlaneseq
        %v8656 = vshrl.u32 %v8655, 7
        %v8657 = vsub.s32 %v7687, %v8656
        %v8658 = vrot.slane %v7098, %v8657
        %v8659 = vsel %vm7692, %v8658, %v8654
        %v8660 = vlaneseq
        %v8661 = vshrl.u32 %v8660, 7
        %v8662 = vsub.s32 %v7584, %v8661
        %v8663 = vrot.slane %v7101, %v8662
        %v8664 = vlaneseq
        %v8665 = vshrl.u32 %v8664, 7
        %v8666 = vsub.s32 %v7589, %v8665
        %v8667 = vrot.slane %v7104, %v8666
        %v8668 = vsel %vm7594, %v8667, %v8663
        %v8669 = vlaneseq
        %v8670 = vshrl.u32 %v8669, 7
        %v8671 = vsub.s32 %v7596, %v8670
        %v8672 = vrot.slane %v7107, %v8671
        %v8673 = vsel %vm7601, %v8672, %v8668
        %v8674 = vlaneseq
        %v8675 = vshrl.u32 %v8674, 7
        %v8676 = vsub.s32 %v7603, %v8675
        %v8677 = vrot.slane %v7110, %v8676
        %v8678 = vsel %vm7608, %v8677, %v8673
        %v8679 = vlaneseq
        %v8680 = vshrl.u32 %v8679, 7
        %v8681 = vsub.s32 %v7610, %v8680
        %v8682 = vrot.slane %v7113, %v8681
        %v8683 = vsel %vm7615, %v8682, %v8678
        %v8684 = vlaneseq
        %v8685 = vshrl.u32 %v8684, 7
        %v8686 = vsub.s32 %v7617, %v8685
        %v8687 = vrot.slane %v7116, %v8686
        %v8688 = vsel %vm7622, %v8687, %v8683
        %v8689 = vlaneseq
        %v8690 = vshrl.u32 %v8689, 7
        %v8691 = vsub.s32 %v7624, %v8690
        %v8692 = vrot.slane %v7119, %v8691
        %v8693 = vsel %vm7629, %v8692, %v8688
        %v8694 = vlaneseq
        %v8695 = vshrl.u32 %v8694, 7
        %v8696 = vsub.s32 %v7631, %v8695
        %v8697 = vrot.slane %v7122, %v8696
        %v8698 = vsel %vm7636, %v8697, %v8693
        %v8699 = vlaneseq
        %v8700 = vshrl.u32 %v8699, 7
        %v8701 = vsub.s32 %v7638, %v8700
        %v8702 = vrot.slane %v7125, %v8701
        %v8703 = vsel %vm7643, %v8702, %v8698
        %v8704 = vlaneseq
        %v8705 = vshrl.u32 %v8704, 7
        %v8706 = vsub.s32 %v7645, %v8705
        %v8707 = vrot.slane %v7128, %v8706
        %v8708 = vsel %vm7650, %v8707, %v8703
        %v8709 = vlaneseq
        %v8710 = vshrl.u32 %v8709, 7
        %v8711 = vsub.s32 %v7652, %v8710
        %v8712 = vrot.slane %v7131, %v8711
        %v8713 = vsel %vm7657, %v8712, %v8708
        %v8714 = vlaneseq
        %v8715 = vshrl.u32 %v8714, 7
        %v8716 = vsub.s32 %v7659, %v8715
        %v8717 = vrot.slane %v7134, %v8716
        %v8718 = vsel %vm7664, %v8717, %v8713
        %v8719 = vlaneseq
        %v8720 = vshrl.u32 %v8719, 7
        %v8721 = vsub.s32 %v7584, %v8720
        %v8722 = vrot.slane %v7137, %v8721
        %v8723 = vlaneseq
        %v8724 = vshrl.u32 %v8723, 7
        %v8725 = vsub.s32 %v7589, %v8724
        %v8726 = vrot.slane %v7140, %v8725
        %v8727 = vsel %vm7594, %v8726, %v8722
        %v8728 = vlaneseq
        %v8729 = vshrl.u32 %v8728, 7
        %v8730 = vsub.s32 %v7596, %v8729
        %v8731 = vrot.slane %v7143, %v8730
        %v8732 = vsel %vm7601, %v8731, %v8727
        %v8733 = vlaneseq
        %v8734 = vshrl.u32 %v8733, 7
        %v8735 = vsub.s32 %v7603, %v8734
        %v8736 = vrot.slane %v7146, %v8735
        %v8737 = vsel %vm7608, %v8736, %v8732
        %v8738 = vlaneseq
        %v8739 = vshrl.u32 %v8738, 7
        %v8740 = vsub.s32 %v7610, %v8739
        %v8741 = vrot.slane %v7149, %v8740
        %v8742 = vsel %vm7615, %v8741, %v8737
        %v8743 = vlaneseq
        %v8744 = vshrl.u32 %v8743, 7
        %v8745 = vsub.s32 %v7617, %v8744
        %v8746 = vrot.slane %v7152, %v8745
        %v8747 = vsel %vm7622, %v8746, %v8742
        %v8748 = vlaneseq
        %v8749 = vshrl.u32 %v8748, 7
        %v8750 = vsub.s32 %v7624, %v8749
        %v8751 = vrot.slane %v7155, %v8750
        %v8752 = vsel %vm7629, %v8751, %v8747
        %v8753 = vlaneseq
        %v8754 = vshrl.u32 %v8753, 7
        %v8755 = vsub.s32 %v7631, %v8754
        %v8756 = vrot.slane %v7158, %v8755
        %v8757 = vsel %vm7636, %v8756, %v8752
        %v8758 = vlaneseq
        %v8759 = vshrl.u32 %v8758, 7
        %v8760 = vsub.s32 %v7638, %v8759
        %v8761 = vrot.slane %v7161, %v8760
        %v8762 = vsel %vm7643, %v8761, %v8757
        %v8763 = vlaneseq
        %v8764 = vshrl.u32 %v8763, 7
        %v8765 = vsub.s32 %v7645, %v8764
        %v8766 = vrot.slane %v7164, %v8765
        %v8767 = vsel %vm7650, %v8766, %v8762
        %v8768 = vlaneseq
        %v8769 = vshrl.u32 %v8768, 7
        %v8770 = vsub.s32 %v7652, %v8769
        %v8771 = vrot.slane %v7167, %v8770
        %v8772 = vsel %vm7657, %v8771, %v8767
        %v8773 = vlaneseq
        %v8774 = vshrl.u32 %v8773, 7
        %v8775 = vsub.s32 %v7659, %v8774
        %v8776 = vrot.slane %v7170, %v8775
        %v8777 = vsel %vm7664, %v8776, %v8772
        %v8778 = vlaneseq
        %v8779 = vshrl.u32 %v8778, 7
        %v8780 = vsub.s32 %v7666, %v8779
        %v8781 = vrot.slane %v7173, %v8780
        %v8782 = vsel %vm7671, %v8781, %v8777
        %v8783 = vlaneseq
        %v8784 = vshrl.u32 %v8783, 7
        %v8785 = vsub.s32 %v7673, %v8784
        %v8786 = vrot.slane %v7176, %v8785
        %v8787 = vsel %vm7678, %v8786, %v8782
        %v8788 = vlaneseq
        %v8789 = vshrl.u32 %v8788, 7
        %v8790 = vsub.s32 %v7680, %v8789
        %v8791 = vrot.slane %v7179, %v8790
        %v8792 = vsel %vm7685, %v8791, %v8787
        %v8793 = vlaneseq
        %v8794 = vshrl.u32 %v8793, 7
        %v8795 = vsub.s32 %v7687, %v8794
        %v8796 = vrot.slane %v7182, %v8795
        %v8797 = vsel %vm7692, %v8796, %v8792
        %v8798 = vlaneseq
        %v8799 = vshrl.u32 %v8798, 7
        %v8800 = vsub.s32 %v7584, %v8799
        %v8801 = vrot.slane %v7185, %v8800
        %v8802 = vlaneseq
        %v8803 = vshrl.u32 %v8802, 7
        %v8804 = vsub.s32 %v7589, %v8803
        %v8805 = vrot.slane %v7188, %v8804
        %v8806 = vsel %vm7594, %v8805, %v8801
        %v8807 = vlaneseq
        %v8808 = vshrl.u32 %v8807, 7
        %v8809 = vsub.s32 %v7596, %v8808
        %v8810 = vrot.slane %v7191, %v8809
        %v8811 = vsel %vm7601, %v8810, %v8806
        %v8812 = vlaneseq
        %v8813 = vshrl.u32 %v8812, 7
        %v8814 = vsub.s32 %v7603, %v8813
        %v8815 = vrot.slane %v7194, %v8814
        %v8816 = vsel %vm7608, %v8815, %v8811
        %v8817 = vlaneseq
        %v8818 = vshrl.u32 %v8817, 7
        %v8819 = vsub.s32 %v7610, %v8818
        %v8820 = vrot.slane %v7197, %v8819
        %v8821 = vsel %vm7615, %v8820, %v8816
        %v8822 = vlaneseq
        %v8823 = vshrl.u32 %v8822, 7
        %v8824 = vsub.s32 %v7617, %v8823
        %v8825 = vrot.slane %v7200, %v8824
        %v8826 = vsel %vm7622, %v8825, %v8821
        %v8827 = vlaneseq
        %v8828 = vshrl.u32 %v8827, 7
        %v8829 = vsub.s32 %v7624, %v8828
        %v8830 = vrot.slane %v7203, %v8829
        %v8831 = vsel %vm7629, %v8830, %v8826
        %v8832 = vlaneseq
        %v8833 = vshrl.u32 %v8832, 7
        %v8834 = vsub.s32 %v7631, %v8833
        %v8835 = vrot.slane %v7206, %v8834
        %v8836 = vsel %vm7636, %v8835, %v8831
        %v8837 = vlaneseq
        %v8838 = vshrl.u32 %v8837, 7
        %v8839 = vsub.s32 %v7638, %v8838
        %v8840 = vrot.slane %v7209, %v8839
        %v8841 = vsel %vm7643, %v8840, %v8836
        %v8842 = vlaneseq
        %v8843 = vshrl.u32 %v8842, 7
        %v8844 = vsub.s32 %v7645, %v8843
        %v8845 = vrot.slane %v7212, %v8844
        %v8846 = vsel %vm7650, %v8845, %v8841
        %v8847 = vlaneseq
        %v8848 = vshrl.u32 %v8847, 7
        %v8849 = vsub.s32 %v7652, %v8848
        %v8850 = vrot.slane %v7215, %v8849
        %v8851 = vsel %vm7657, %v8850, %v8846
        %v8852 = vlaneseq
        %v8853 = vshrl.u32 %v8852, 7
        %v8854 = vsub.s32 %v7659, %v8853
        %v8855 = vrot.slane %v7218, %v8854
        %v8856 = vsel %vm7664, %v8855, %v8851
        %v8857 = vlaneseq
        %v8858 = vshrl.u32 %v8857, 7
        %v8859 = vsub.s32 %v7584, %v8858
        %v8860 = vrot.slane %v7221, %v8859
        %v8861 = vlaneseq
        %v8862 = vshrl.u32 %v8861, 7
        %v8863 = vsub.s32 %v7589, %v8862
        %v8864 = vrot.slane %v7224, %v8863
        %v8865 = vsel %vm7594, %v8864, %v8860
        %v8866 = vlaneseq
        %v8867 = vshrl.u32 %v8866, 7
        %v8868 = vsub.s32 %v7596, %v8867
        %v8869 = vrot.slane %v7227, %v8868
        %v8870 = vsel %vm7601, %v8869, %v8865
        %v8871 = vlaneseq
        %v8872 = vshrl.u32 %v8871, 7
        %v8873 = vsub.s32 %v7603, %v8872
        %v8874 = vrot.slane %v7230, %v8873
        %v8875 = vsel %vm7608, %v8874, %v8870
        %v8876 = vlaneseq
        %v8877 = vshrl.u32 %v8876, 7
        %v8878 = vsub.s32 %v7610, %v8877
        %v8879 = vrot.slane %v7233, %v8878
        %v8880 = vsel %vm7615, %v8879, %v8875
        %v8881 = vlaneseq
        %v8882 = vshrl.u32 %v8881, 7
        %v8883 = vsub.s32 %v7617, %v8882
        %v8884 = vrot.slane %v7236, %v8883
        %v8885 = vsel %vm7622, %v8884, %v8880
        %v8886 = vlaneseq
        %v8887 = vshrl.u32 %v8886, 7
        %v8888 = vsub.s32 %v7624, %v8887
        %v8889 = vrot.slane %v7239, %v8888
        %v8890 = vsel %vm7629, %v8889, %v8885
        %v8891 = vlaneseq
        %v8892 = vshrl.u32 %v8891, 7
        %v8893 = vsub.s32 %v7631, %v8892
        %v8894 = vrot.slane %v7242, %v8893
        %v8895 = vsel %vm7636, %v8894, %v8890
        %v8896 = vlaneseq
        %v8897 = vshrl.u32 %v8896, 7
        %v8898 = vsub.s32 %v7638, %v8897
        %v8899 = vrot.slane %v7245, %v8898
        %v8900 = vsel %vm7643, %v8899, %v8895
        %v8901 = vlaneseq
        %v8902 = vshrl.u32 %v8901, 7
        %v8903 = vsub.s32 %v7645, %v8902
        %v8904 = vrot.slane %v7248, %v8903
        %v8905 = vsel %vm7650, %v8904, %v8900
        %v8906 = vlaneseq
        %v8907 = vshrl.u32 %v8906, 7
        %v8908 = vsub.s32 %v7652, %v8907
        %v8909 = vrot.slane %v7251, %v8908
        %v8910 = vsel %vm7657, %v8909, %v8905
        %v8911 = vlaneseq
        %v8912 = vshrl.u32 %v8911, 7
        %v8913 = vsub.s32 %v7659, %v8912
        %v8914 = vrot.slane %v7254, %v8913
        %v8915 = vsel %vm7664, %v8914, %v8910
        %v8916 = vlaneseq
        %v8917 = vshrl.u32 %v8916, 7
        %v8918 = vsub.s32 %v7666, %v8917
        %v8919 = vrot.slane %v7257, %v8918
        %v8920 = vsel %vm7671, %v8919, %v8915
        %v8921 = vlaneseq
        %v8922 = vshrl.u32 %v8921, 7
        %v8923 = vsub.s32 %v7673, %v8922
        %v8924 = vrot.slane %v7260, %v8923
        %v8925 = vsel %vm7678, %v8924, %v8920
        %v8926 = vlaneseq
        %v8927 = vshrl.u32 %v8926, 7
        %v8928 = vsub.s32 %v7680, %v8927
        %v8929 = vrot.slane %v7263, %v8928
        %v8930 = vsel %vm7685, %v8929, %v8925
        %v8931 = vlaneseq
        %v8932 = vshrl.u32 %v8931, 7
        %v8933 = vsub.s32 %v7687, %v8932
        %v8934 = vrot.slane %v7266, %v8933
        %v8935 = vsel %vm7692, %v8934, %v8930
        %v8936 = vlaneseq
        %v8937 = vshrl.u32 %v8936, 7
        %v8938 = vsub.s32 %v7584, %v8937
        %v8939 = vrot.slane %v7269, %v8938
        %v8940 = vlaneseq
        %v8941 = vshrl.u32 %v8940, 7
        %v8942 = vsub.s32 %v7589, %v8941
        %v8943 = vrot.slane %v7272, %v8942
        %v8944 = vsel %vm7594, %v8943, %v8939
        %v8945 = vlaneseq
        %v8946 = vshrl.u32 %v8945, 7
        %v8947 = vsub.s32 %v7596, %v8946
        %v8948 = vrot.slane %v7275, %v8947
        %v8949 = vsel %vm7601, %v8948, %v8944
        %v8950 = vlaneseq
        %v8951 = vshrl.u32 %v8950, 7
        %v8952 = vsub.s32 %v7603, %v8951
        %v8953 = vrot.slane %v7278, %v8952
        %v8954 = vsel %vm7608, %v8953, %v8949
        %v8955 = vlaneseq
        %v8956 = vshrl.u32 %v8955, 7
        %v8957 = vsub.s32 %v7610, %v8956
        %v8958 = vrot.slane %v7281, %v8957
        %v8959 = vsel %vm7615, %v8958, %v8954
        %v8960 = vlaneseq
        %v8961 = vshrl.u32 %v8960, 7
        %v8962 = vsub.s32 %v7617, %v8961
        %v8963 = vrot.slane %v7284, %v8962
        %v8964 = vsel %vm7622, %v8963, %v8959
        %v8965 = vlaneseq
        %v8966 = vshrl.u32 %v8965, 7
        %v8967 = vsub.s32 %v7624, %v8966
        %v8968 = vrot.slane %v7287, %v8967
        %v8969 = vsel %vm7629, %v8968, %v8964
        %v8970 = vlaneseq
        %v8971 = vshrl.u32 %v8970, 7
        %v8972 = vsub.s32 %v7631, %v8971
        %v8973 = vrot.slane %v7290, %v8972
        %v8974 = vsel %vm7636, %v8973, %v8969
        %v8975 = vlaneseq
        %v8976 = vshrl.u32 %v8975, 7
        %v8977 = vsub.s32 %v7638, %v8976
        %v8978 = vrot.slane %v7293, %v8977
        %v8979 = vsel %vm7643, %v8978, %v8974
        %v8980 = vlaneseq
        %v8981 = vshrl.u32 %v8980, 7
        %v8982 = vsub.s32 %v7645, %v8981
        %v8983 = vrot.slane %v7296, %v8982
        %v8984 = vsel %vm7650, %v8983, %v8979
        %v8985 = vlaneseq
        %v8986 = vshrl.u32 %v8985, 7
        %v8987 = vsub.s32 %v7652, %v8986
        %v8988 = vrot.slane %v7299, %v8987
        %v8989 = vsel %vm7657, %v8988, %v8984
        %v8990 = vlaneseq
        %v8991 = vshrl.u32 %v8990, 7
        %v8992 = vsub.s32 %v7659, %v8991
        %v8993 = vrot.slane %v7302, %v8992
        %v8994 = vsel %vm7664, %v8993, %v8989
        %vm8995 = vcmask 1041409
        %v8996 = vsel %vm8995, %v7831, %v7693
        %vm8997 = vcmask 1042434
        %v8998 = vsel %vm8997, %v7969, %v8996
        %vm8999 = vcmask 1043459
        %v9000 = vsel %vm8999, %v8107, %v8998
        %vm9001 = vcmask 1044484
        %v9002 = vsel %vm9001, %v8245, %v9000
        %vm9003 = vcmask 1045509
        %v9004 = vsel %vm9003, %v8383, %v9002
        %vm9005 = vcmask 1046534
        %v9006 = vsel %vm9005, %v8521, %v9004
        %vm9007 = vcmask 1047559
        %v9008 = vsel %vm9007, %v8659, %v9006
        %v9009 = vsel %vm8995, %v7890, %v7752
        %v9010 = vsel %vm8997, %v8028, %v9009
        %v9011 = vsel %vm8999, %v8166, %v9010
        %v9012 = vsel %vm9001, %v8304, %v9011
        %v9013 = vsel %vm9003, %v8442, %v9012
        %v9014 = vsel %vm9005, %v8580, %v9013
        %v9015 = vsel %vm9007, %v8718, %v9014
        %v9016 = vsel %vm8995, %v8935, %v8797
        %v9017 = vsel %vm8995, %v8994, %v8856
        %vm9022 = vcmask 785408
        %v9023 = vsel %vm9022, %v9015, 0.0
        %v9024 = vadd.f32 %v9008, %v9023
        %9025 = vadd.xlane.f32.xlu0 %v9024
        %v9026 = vpop.xlane.xlu0 %9025
        %vm9027 = vcmask 1041408
        %v9028 = vsel %vm9027, %v9016, 0.0
        %vm9029 = vcmask 779264
        %v9030 = vsel %vm9029, %v9017, 0.0
        %v9031 = vadd.f32 %v9028, %v9030
        %9032 = vadd.xlane.f32.xlu0 %v9031
        %v9033 = vpop.xlane.xlu0 %9032
        %v9034 = vld [vmem:[%s7] sm:$0x1]
        %v9036 = vlaneseq
        %v9037 = vshrl.u32 %v9036, 7
        %v9038 = vsub.s32 0, %v9037
        %v9039 = vrot.slane %v9034, %v9038
        %9041 = vbcast.lane.b32.xlu0 %v9039, 256
        %v9042 = vpop.permute.xlu0 %9041
        %s9044 = sor.u32 256, 8
        %9045 = vbcast.lane.b32.xlu0 %v9039, %s9044
        %v9046 = vpop.permute.xlu0 %9045
        %v9049 = vadd.f32 %v9026, %v9042
        %v9050 = vadd.f32 %v9033, %v9046
        %9053 = vset.pattern.permute.xlu0 0
        %9054 = vperm.xlu0 %9053, %v9049
        %v9055 = vpop.permute.xlu0 %9054
        %9056 = vset.pattern.permute.xlu0 0
        %9057 = vperm.xlu0 %9056, %v9050
        %v9058 = vpop.permute.xlu0 %9057
        %v9059 = vlaneseq
        %v9060 = vshrl.u32 %v9059, 7
        %v9061 = vsub.s32 %v7584, %v9060
        %v9062 = vrot.slane %v9055, %v9061
        %v9063 = vlaneseq
        %v9064 = vshrl.u32 %v9063, 7
        %v9065 = vsub.s32 %v7589, %v9064
        %v9066 = vrot.slane %v9058, %v9065
        %v9067 = vsel %vm7594, %v9066, %v9062
        %vm9069 = vcmask 73728
        %9070 = vst.msk [vmem:[%s297] sm:$0x1] %vm9069, %v9067
        %s9071 = sand.u32 %s203, 1
        %s9072 = scalar_lea.sflag [#allocation5], %s9071
        %s9073 = sand.u32 %s203, 1
        %s9074 = scalar_lea.vmem [#allocation4], %s9073
        // Predicated region
        $region53: #{kernel_size_cnn_forward.1} parent=51 // pred_check
          %p9075 = pneg %p213
        $region54: #{kernel_size_cnn_forward.1} parent=51 // pred_check_branch
          %9077 = sbr.rel (%p9075) target = $region56
        $region55: #{kernel_size_cnn_forward.1} parent=51 // pred_region
          %s9079 = ssub.s32 16, 16
          %9080 = vsyncadd %s9072, %s9079
          %s9081 = smul.addr %s22, 16
          %s9082 = scalar_lea.hbm %s8, %s9081
          %s9084 = sshll.u32 %s9074, 4
          %s9085 = int_to_ptr.vmem [resolvable:$true] %s9084
          %9087 = dma.vmem_to_hbm [thread:$0]  %s9085, 16, %s9082, %s9072
        $region56: #{kernel_size_cnn_forward.1} parent=51 // pred_fallthru
          _
      $region52: #{kernel_size_cnn_forward.1} parent=5 // pred_fallthru
        _
      %p9088 = scmp.le.s32.totalorder 2, %s17
      // Predicated region
      $region57: #{kernel_size_cnn_forward.1} parent=5 // pred_check
        %p9089 = pneg %p9088
      $region58: #{kernel_size_cnn_forward.1} parent=5 // pred_check_branch
        %9091 = sbr.rel (%p9089) target = $region60
      $region59: #{kernel_size_cnn_forward.1} parent=5 // pred_region
        %s9092 = ssub.s32 %s17, 2
        // Predicated region
        $region61: #{kernel_size_cnn_forward.1} parent=59 // pred_check
          %p9093 = pneg %p219
        $region62: #{kernel_size_cnn_forward.1} parent=59 // pred_check_branch
          %9095 = sbr.rel (%p9093) target = $region64
        $region63: #{kernel_size_cnn_forward.1} parent=59 // pred_region
          %s9096 = sand.u32 %s204, 1
          %s9097 = scalar_lea.sflag [#allocation5], %s9096
          %s9098 = sand.u32 %s204, 1
          %s9099 = scalar_lea.vmem [#allocation4], %s9098
          %9100 = dma.done %s9097, 16
        $region64: #{kernel_size_cnn_forward.1} parent=59 // pred_fallthru
          _
      $region60: #{kernel_size_cnn_forward.1} parent=5 // pred_fallthru
        _
    $region6: #{kernel_size_cnn_forward.1} parent=1 // loop_footer
      %s21 = sadd.s32 1, %s17
    $region7: #{kernel_size_cnn_forward.1} parent=1 // loop_footer_branch
      %16 = sbr.rel target = $region3
    $region8: #{kernel_size_cnn_forward.1} parent=1 // loop_exit
      _
    %9101 = vsyncpa [#allocation5], 1
    %s9102 = scalar_lea.sflag [#allocation5], 1
    %9103 = vsyncpa %s9102, 1

</llo_original>
